<compile_context>
chip_gen: v7x
topology: tpu7x:2x2x1
jax: 0.10.0
libtpu: 0.0.40
codegen_flags: <defaults>
</compile_context>

<pallas_src>
import functools
import math

import jax
import jax.numpy as jnp
import numpy as np
from jax import lax
from jax.experimental import pallas as pl
from jax.experimental.pallas import tpu as pltpu


# ----------------------------------------------------------------------------
# Fused AttentionBlock kernel (one sample per grid step)
# ----------------------------------------------------------------------------
def _attention_block_kernel(x_ref, m_ref, wqkv_ref, bqkv_ref, wproj_ref,
                            bproj_ref, o_ref, acc_ref, *, n_heads, eps, cnt):
    """Fused GroupNorm -> qkv conv -> legacy MHA -> proj_out -> residual.

    x_ref:     (1, C, T)  raw NCT activation slab (residual source), f32
    m_ref:     (C, G)     one-hot channel->group membership, f32
    wqkv_ref:  (C, 3C)    bf16 qkv weights, columns reordered to [Q | K | V]
                          head-major blocks, GN gamma + qk scale pre-folded
    bqkv_ref:  (1, 3C)    f32 qkv bias (beta + qk scale pre-folded)
    wproj_ref: (C, C)     bf16 proj_out weights, (Cin, Cout)
    bproj_ref: (1, C)     f32 proj_out bias
    o_ref:     (1, C, T)  output slab (same NCT layout as the input)
    acc_ref:   (T, C)     f32 VMEM scratch: residual + per-head proj accum
    """
    x_ct = x_ref[0].astype(jnp.float32)                       # (C, T)
    x = jnp.transpose(x_ct)                                    # (T, C)  (XLU)
    T, C = x.shape
    ch = C // n_heads

    # ---- GroupNorm statistics (two-pass, f32) via membership matmuls ----
    M = m_ref[...]                                             # (C, G)
    s = jnp.sum(x, axis=0, keepdims=True)                      # (1, C)
    gmean = jnp.dot(s, M, preferred_element_type=jnp.float32) / cnt      # (1,G)
    mean_c = jnp.einsum("ag,cg->ac", gmean, M,
                        preferred_element_type=jnp.float32)    # (1, C)
    d = x - mean_c
    s2 = jnp.sum(d * d, axis=0, keepdims=True)                 # (1, C)
    gvar = jnp.dot(s2, M, preferred_element_type=jnp.float32) / cnt      # (1,G)
    inv = lax.rsqrt(gvar + eps)
    inv_c = jnp.einsum("ag,cg->ac", inv, M,
                       preferred_element_type=jnp.float32)     # (1, C)
    xn = (d * inv_c).astype(jnp.bfloat16)        # gamma/beta folded into W/b
    # TODO(synk): use_positional_encoding=True path (additive sinusoidal PE on
    # the normalized activations) not implemented; module default is False.

    # ---- qkv projection: one lane-dense K=C matmul, bf16 operands ----
    qkv = jnp.dot(xn, wqkv_ref[...],
                  preferred_element_type=jnp.float32) + bqkv_ref[...]  # (T,3C)
    q = qkv[:, 0:C].astype(jnp.bfloat16)                       # (T, C)
    # transpose the whole K slab ONCE (f32 XLU) so per-head score matmuls are
    # plain dots with cheap sublane slices of kT (no in-loop transposes)
    kT = jnp.transpose(qkv[:, C:2 * C]).astype(jnp.bfloat16)   # (C, T)
    v = qkv[:, 2 * C:3 * C].astype(jnp.bfloat16)               # (T, C)

    # ---- accumulator seeded with residual + proj bias (saves a final pass) --
    acc_ref[...] = x + bproj_ref[...]

    # ---- per-head attention; output projection accumulated per head so the
    #      accumulator stays lane-dense (no 32-lane concat) ----
    for h in range(n_heads):
        lo, hi = h * ch, (h + 1) * ch
        sc = jnp.dot(q[:, lo:hi], kT[lo:hi, :],
                     preferred_element_type=jnp.float32)       # (T, T) f32
        sc = sc - jnp.max(sc, axis=-1, keepdims=True)
        p = jnp.exp(sc)
        p = p * pl.reciprocal(jnp.sum(p, axis=-1, keepdims=True), approx=False)
        head = jnp.dot(p.astype(jnp.bfloat16), v[:, lo:hi],
                       preferred_element_type=jnp.float32)     # (T, ch) f32
        acc_ref[...] += jnp.dot(head.astype(jnp.bfloat16), wproj_ref[lo:hi, :],
                                preferred_element_type=jnp.float32)

    # ---- write back in the original NCT layout (one XLU transpose) ----
    o_ref[0] = jnp.transpose(acc_ref[...]).astype(o_ref.dtype)


# ----------------------------------------------------------------------------
# Wrapper
# ----------------------------------------------------------------------------
def attention_block(x, params, *, n_heads, num_groups, eps=1e-5):
    """x: (N, C, *spatial), PyTorch NC* layout."""
    N, C = x.shape[0], x.shape[1]
    spatial = x.shape[2:]
    T = int(np.prod(spatial))
    ch = C // n_heads
    G = num_groups
    scale = 1.0 / math.sqrt(math.sqrt(ch))

    # minor-dim merge only: no HBM layout pass (kernel handles the transpose)
    x_nct = x.reshape(N, C, T)

    # one-hot channel -> group membership matrix for the GN stats matmuls
    M = (jnp.arange(C)[:, None] // (C // G) == jnp.arange(G)[None, :]
         ).astype(jnp.float32)

    # Conv1d(C, 3C, 1) weight (3C, C): legacy layout interleaves heads as
    # [h0:(q,k,v), h1:(q,k,v), ...]. Reorder rows to [Q | K | V] blocks
    # (head-major within each block), transpose to channels-last, then fold
    # GroupNorm gamma/beta and the 1/ch^0.25 attention scale into W / b.
    w_qkv = params["w_qkv"].reshape(n_heads, 3, ch, C)
    w_qkv = jnp.transpose(w_qkv, (1, 0, 2, 3)).reshape(3 * C, C)
    b_qkv = params["b_qkv"].reshape(n_heads, 3, ch)
    b_qkv = jnp.transpose(b_qkv, (1, 0, 2)).reshape(3 * C)

    w_cl = jnp.transpose(w_qkv)                                # (C, 3C)
    gamma = params["gn_g"].astype(jnp.float32)
    beta = params["gn_b"].astype(jnp.float32)
    w_fold = gamma[:, None] * w_cl                             # gamma fold
    b_fold = beta[None, :] @ w_cl + b_qkv[None, :]             # beta fold (1,3C)
    qk_scale = jnp.concatenate([jnp.full((2 * C,), scale, jnp.float32),
                                jnp.ones((C,), jnp.float32)])[None, :]
    w_fold = (w_fold * qk_scale).astype(jnp.bfloat16)          # bf16 weights
    b_fold = (b_fold * qk_scale).astype(jnp.float32)

    w_proj_k = jnp.transpose(params["w_proj"]).astype(jnp.bfloat16)  # (Cin,Cout)
    b_proj_k = params["b_proj"].reshape(1, C).astype(jnp.float32)

    kernel = functools.partial(_attention_block_kernel, n_heads=n_heads,
                               eps=eps, cnt=float(T * (C // G)))

    flops = N * (2 * T * C * 3 * C           # qkv projection
                 + 4 * n_heads * T * T * ch  # scores + attn@V
                 + 2 * T * C * C)            # output projection
    bytes_accessed = (2 * N * T * C * 4                       # x in + out (f32)
                      + (C * 3 * C + C * C) * 2               # bf16 weights
                      + (3 * C + C + C * G) * 4)              # biases + M
    cost = pl.CostEstimate(flops=flops,
                           transcendentals=N * n_heads * T * T,
                           bytes_accessed=bytes_accessed)

    out_nct = pl.pallas_call(
        kernel,
        out_shape=jax.ShapeDtypeStruct((N, C, T), x.dtype),
        grid=(N,),
        in_specs=[
            pl.BlockSpec((1, C, T), lambda n: (n, 0, 0)),      # x slab
            pl.BlockSpec((C, G), lambda n: (0, 0)),            # membership
            pl.BlockSpec((C, 3 * C), lambda n: (0, 0)),        # qkv W (bf16)
            pl.BlockSpec((1, 3 * C), lambda n: (0, 0)),        # qkv b
            pl.BlockSpec((C, C), lambda n: (0, 0)),            # proj W (bf16)
            pl.BlockSpec((1, C), lambda n: (0, 0)),            # proj b
        ],
        out_specs=pl.BlockSpec((1, C, T), lambda n: (n, 0, 0)),
        scratch_shapes=[pltpu.VMEM((T, C), jnp.float32)],
        compiler_params=pltpu.CompilerParams(
            dimension_semantics=("parallel",)),
        cost_estimate=cost,
    )(x_nct, M, w_fold, b_fold, w_proj_k, b_proj_k)

    return out_nct.reshape((N, C) + spatial)


# ----------------------------------------------------------------------------
# Pure-JAX f32 reference (mirrors the PyTorch forward exactly)
# ----------------------------------------------------------------------------
def ref_forward(x, params, *, n_heads, num_groups, eps=1e-5):
    N, C = x.shape[0], x.shape[1]
    spatial = x.shape[2:]
    T = int(np.prod(spatial))
    xr = x.reshape(N, C, T)
    # GroupNorm
    xg = xr.reshape(N, num_groups, C // num_groups, T)
    mean = xg.mean(axis=(2, 3), keepdims=True)
    var = xg.var(axis=(2, 3), keepdims=True)
    xn = ((xg - mean) / jnp.sqrt(var + eps)).reshape(N, C, T)
    xn = xn * params["gn_g"][None, :, None] + params["gn_b"][None, :, None]
    # qkv Conv1d
    qkv = jnp.einsum("oc,nct->not", params["w_qkv"], xn) \
        + params["b_qkv"][None, :, None]                       # (N, 3C, T)
    ch = C // n_heads
    qkv = qkv.reshape(N * n_heads, 3 * ch, T)
    q, k, v = qkv[:, :ch], qkv[:, ch:2 * ch], qkv[:, 2 * ch:]
    scale = 1.0 / math.sqrt(math.sqrt(ch))
    w = jnp.einsum("bct,bcs->bts", q * scale, k * scale)
    w = jax.nn.softmax(w.astype(jnp.float32), axis=-1)
    a = jnp.einsum("bts,bcs->bct", w, v).reshape(N, C, T)
    h = jnp.einsum("oc,nct->not", params["w_proj"], a) \
        + params["b_proj"][None, :, None]
    return (xr + h).reshape(x.shape)


# ----------------------------------------------------------------------------
# Main
# ----------------------------------------------------------------------------
if __name__ == "__main__":
    N, C, H, W = 2, 128, 16, 16     # T = 256: both NCT lane dims stay >= 128
    n_heads = 4                      # head dim = 32
    num_groups = 8

    key = jax.random.PRNGKey(0)
    kx, k1, k2, k3, k4, k5, k6 = jax.random.split(key, 7)
    x = jax.random.normal(kx, (N, C, H, W), jnp.float32)

    params = {
        # GroupNorm(8, C)
        "gn_g": 1.0 + 0.1 * jax.random.normal(k1, (C,), jnp.float32),
        "gn_b": 0.1 * jax.random.normal(k2, (C,), jnp.float32),
        # Conv1d(C, 3C, 1)
        "w_qkv": 0.1 * jax.random.normal(k3, (3 * C, C), jnp.float32),
        "b_qkv": 0.05 * jax.random.normal(k4, (3 * C,), jnp.float32),
        # proj_out is zero_module(Conv1d(C, C, 1)) at init; non-zero weights
        # here exercise the attention path (zero-init case checked below).
        "w_proj": 0.1 * jax.random.normal(k5, (C, C), jnp.float32),
        "b_proj": 0.05 * jax.random.normal(k6, (C,), jnp.float32),
    }

    fwd = jax.jit(functools.partial(attention_block, n_heads=n_heads,
                                    num_groups=num_groups))
    out = jax.block_until_ready(fwd(x, params))

    # Kernel uses bf16 MXU operands (f32 accumulation); compare against the
    # exact f32 reference with a bf16-appropriate tolerance.  Structural bugs
    # (head order, GN groups, layout) would be O(1) off and still caught.
    ref = ref_forward(x, params, n_heads=n_heads, num_groups=num_groups)
    np.testing.assert_allclose(np.asarray(out), np.asarray(ref),
                               rtol=5e-2, atol=5e-2)

    # module init state: zero proj_out -> forward is the identity (exact; the
    # bf16 matmuls are multiplied by zero weights, residual path is pure f32)
    params0 = dict(params, w_proj=jnp.zeros((C, C), jnp.float32),
                   b_proj=jnp.zeros((C,), jnp.float32))
    out0 = jax.block_until_ready(fwd(x, params0))
    np.testing.assert_allclose(np.asarray(out0), np.asarray(x),
                               rtol=1e-5, atol=1e-5)

    print("KERNEL_OK")
</pallas_src>

<mosaic_0001>
module attributes {stable_mosaic.version = 11 : i64} {
  func.func @_attention_block_kernel(%arg0: i32, %arg1: memref<1x128x256xf32, #tpu.memory_space<vmem>>, %arg2: memref<128x8xf32, #tpu.memory_space<vmem>>, %arg3: memref<128x384xbf16, #tpu.memory_space<vmem>>, %arg4: memref<1x384xf32, #tpu.memory_space<vmem>>, %arg5: memref<128x128xbf16, #tpu.memory_space<vmem>>, %arg6: memref<1x128xf32, #tpu.memory_space<vmem>>, %arg7: memref<1x128x256xf32, #tpu.memory_space<vmem>>, %arg8: memref<256x128xf32, #tpu.memory_space<vmem>>) attributes {dimension_semantics = [#tpu.dimension_semantics<parallel>], iteration_bounds = array<i64: 2>, scalar_prefetch = 0 : i64, scratch_operands = 1 : i64, tpu.core_type = #tpu.core_type<tc>, window_params = [{transform_indices = @transform_0, window_bounds = array<i64: 1, 128, 256>}, {pipeline_mode = #tpu.pipeline_mode<synchronous>, transform_indices = @transform_1, window_bounds = array<i64: 128, 8>}, {pipeline_mode = #tpu.pipeline_mode<synchronous>, transform_indices = @transform_2, window_bounds = array<i64: 128, 384>}, {pipeline_mode = #tpu.pipeline_mode<synchronous>, transform_indices = @transform_3, window_bounds = array<i64: 1, 384>}, {pipeline_mode = #tpu.pipeline_mode<synchronous>, transform_indices = @transform_4, window_bounds = array<i64: 128, 128>}, {pipeline_mode = #tpu.pipeline_mode<synchronous>, transform_indices = @transform_5, window_bounds = array<i64: 1, 128>}, {transform_indices = @transform_6, window_bounds = array<i64: 1, 128, 256>}]} {
    %c0 = arith.constant 0 : index
    %c0_0 = arith.constant 0 : index
    %c0_1 = arith.constant 0 : index
    %0 = vector.load %arg1[%c0, %c0_0, %c0_1] : memref<1x128x256xf32, #tpu.memory_space<vmem>>, vector<1x128x256xf32>
    %1 = vector.shape_cast %0 : vector<1x128x256xf32> to vector<128x256xf32>
    %2 = tpu.transpose %1, [1, 0] : vector<128x256xf32> -> vector<256x128xf32>
    %c0_2 = arith.constant 0 : index
    %c0_3 = arith.constant 0 : index
    %3 = vector.load %arg2[%c0_2, %c0_3] : memref<128x8xf32, #tpu.memory_space<vmem>>, vector<128x8xf32>
    %cst = arith.constant dense<0.000000e+00> : vector<128xf32>
    %4 = vector.multi_reduction <add>, %2, %cst [0] : vector<256x128xf32> to vector<128xf32>
    %5 = vector.shape_cast %4 : vector<128xf32> to vector<1x128xf32>
    %cst_4 = arith.constant dense<0.000000e+00> : vector<1x8xf32>
    %6 = tpu.matmul %5, %3, %cst_4 {dimension_numbers = #tpu.dot_dimension_numbers<[1], [0], [0], [1], [0, 0, 1, 1], [], []>} : vector<1x128xf32>, vector<128x8xf32>, vector<1x8xf32> -> vector<1x8xf32>
    %cst_5 = arith.constant 4.096000e+03 : f32
    %7 = vector.broadcast %cst_5 : f32 to vector<1x8xf32>
    %8 = arith.divf %6, %7 : vector<1x8xf32>
    "tpu.trace_start"() <{level = 10 : i32, message = "ag,cg->ac"}> : () -> ()
    %cst_6 = arith.constant dense<0.000000e+00> : vector<1x128xf32>
    %9 = tpu.matmul %8, %3, %cst_6 {dimension_numbers = #tpu.dot_dimension_numbers<[1], [1], [0], [0], [0, 0, 1, 0], [], []>} : vector<1x8xf32>, vector<128x8xf32>, vector<1x128xf32> -> vector<1x128xf32>
    "tpu.trace_stop"() : () -> ()
    %10 = vector.broadcast %9 : vector<1x128xf32> to vector<256x128xf32>
    %11 = arith.subf %2, %10 : vector<256x128xf32>
    %12 = arith.mulf %11, %11 : vector<256x128xf32>
    %cst_7 = arith.constant dense<0.000000e+00> : vector<128xf32>
    %13 = vector.multi_reduction <add>, %12, %cst_7 [0] : vector<256x128xf32> to vector<128xf32>
    %14 = vector.shape_cast %13 : vector<128xf32> to vector<1x128xf32>
    %cst_8 = arith.constant dense<0.000000e+00> : vector<1x8xf32>
    %15 = tpu.matmul %14, %3, %cst_8 {dimension_numbers = #tpu.dot_dimension_numbers<[1], [0], [0], [1], [0, 0, 1, 1], [], []>} : vector<1x128xf32>, vector<128x8xf32>, vector<1x8xf32> -> vector<1x8xf32>
    %cst_9 = arith.constant 4.096000e+03 : f32
    %16 = vector.broadcast %cst_9 : f32 to vector<1x8xf32>
    %17 = arith.divf %15, %16 : vector<1x8xf32>
    %cst_10 = arith.constant 9.99999974E-6 : f32
    %18 = vector.broadcast %cst_10 : f32 to vector<1x8xf32>
    %19 = arith.addf %17, %18 : vector<1x8xf32>
    %20 = math.rsqrt %19 : vector<1x8xf32>
    "tpu.trace_start"() <{level = 10 : i32, message = "ag,cg->ac"}> : () -> ()
    %cst_11 = arith.constant dense<0.000000e+00> : vector<1x128xf32>
    %21 = tpu.matmul %20, %3, %cst_11 {dimension_numbers = #tpu.dot_dimension_numbers<[1], [1], [0], [0], [0, 0, 1, 0], [], []>} : vector<1x8xf32>, vector<128x8xf32>, vector<1x128xf32> -> vector<1x128xf32>
    "tpu.trace_stop"() : () -> ()
    %22 = vector.broadcast %21 : vector<1x128xf32> to vector<256x128xf32>
    %23 = arith.mulf %11, %22 : vector<256x128xf32>
    %24 = arith.truncf %23 : vector<256x128xf32> to vector<256x128xbf16>
    %c0_12 = arith.constant 0 : index
    %c0_13 = arith.constant 0 : index
    %25 = vector.load %arg3[%c0_12, %c0_13] : memref<128x384xbf16, #tpu.memory_space<vmem>>, vector<128x384xbf16>
    %cst_14 = arith.constant dense<0.000000e+00> : vector<256x384xf32>
    %26 = tpu.matmul %24, %25, %cst_14 {dimension_numbers = #tpu.dot_dimension_numbers<[1], [0], [0], [1], [0, 0, 1, 1], [], []>} : vector<256x128xbf16>, vector<128x384xbf16>, vector<256x384xf32> -> vector<256x384xf32>
    %c0_15 = arith.constant 0 : index
    %c0_16 = arith.constant 0 : index
    %27 = vector.load %arg4[%c0_15, %c0_16] : memref<1x384xf32, #tpu.memory_space<vmem>>, vector<1x384xf32>
    %28 = vector.broadcast %27 : vector<1x384xf32> to vector<256x384xf32>
    %29 = arith.addf %26, %28 : vector<256x384xf32>
    %30 = vector.extract_strided_slice %29 {offsets = [0, 0], sizes = [256, 128], strides = [1, 1]} : vector<256x384xf32> to vector<256x128xf32>
    %31 = arith.truncf %30 : vector<256x128xf32> to vector<256x128xbf16>
    %32 = vector.extract_strided_slice %29 {offsets = [0, 128], sizes = [256, 128], strides = [1, 1]} : vector<256x384xf32> to vector<256x128xf32>
    %33 = tpu.transpose %32, [1, 0] : vector<256x128xf32> -> vector<128x256xf32>
    %34 = arith.truncf %33 : vector<128x256xf32> to vector<128x256xbf16>
    %35 = vector.extract_strided_slice %29 {offsets = [0, 256], sizes = [256, 128], strides = [1, 1]} : vector<256x384xf32> to vector<256x128xf32>
    %36 = arith.truncf %35 : vector<256x128xf32> to vector<256x128xbf16>
    %c0_17 = arith.constant 0 : index
    %c0_18 = arith.constant 0 : index
    %37 = vector.load %arg6[%c0_17, %c0_18] : memref<1x128xf32, #tpu.memory_space<vmem>>, vector<1x128xf32>
    %38 = vector.broadcast %37 : vector<1x128xf32> to vector<256x128xf32>
    %39 = arith.addf %2, %38 : vector<256x128xf32>
    %c0_19 = arith.constant 0 : index
    %c0_20 = arith.constant 0 : index
    %40 = vector.load %arg8[%c0_19, %c0_20] : memref<256x128xf32, #tpu.memory_space<vmem>>, vector<256x128xf32>
    tpu.vector_store %arg8[%c0_19, %c0_20], %39 {strides = array<i32>} : memref<256x128xf32, #tpu.memory_space<vmem>>, vector<256x128xf32>,
    %41 = vector.extract_strided_slice %31 {offsets = [0, 0], sizes = [256, 32], strides = [1, 1]} : vector<256x128xbf16> to vector<256x32xbf16>
    %42 = vector.extract_strided_slice %34 {offsets = [0, 0], sizes = [32, 256], strides = [1, 1]} : vector<128x256xbf16> to vector<32x256xbf16>
    %cst_21 = arith.constant dense<0.000000e+00> : vector<256x256xf32>
    %43 = tpu.matmul %41, %42, %cst_21 {dimension_numbers = #tpu.dot_dimension_numbers<[1], [0], [0], [1], [0, 0, 1, 1], [], []>} : vector<256x32xbf16>, vector<32x256xbf16>, vector<256x256xf32> -> vector<256x256xf32>
    %cst_22 = arith.constant dense<0xFF800000> : vector<256xf32>
    %44 = vector.multi_reduction <maximumf>, %43, %cst_22 [1] : vector<256x256xf32> to vector<256xf32>
    %45 = vector.shape_cast %44 : vector<256xf32> to vector<256x1xf32>
    %46 = vector.broadcast %45 : vector<256x1xf32> to vector<256x256xf32>
    %47 = arith.subf %43, %46 : vector<256x256xf32>
    %48 = math.exp %47 : vector<256x256xf32>
    %cst_23 = arith.constant dense<0.000000e+00> : vector<256xf32>
    %49 = vector.multi_reduction <add>, %48, %cst_23 [1] : vector<256x256xf32> to vector<256xf32>
    %50 = vector.shape_cast %49 : vector<256xf32> to vector<256x1xf32>
    %51 = tpu.reciprocal %50 : vector<256x1xf32> -> vector<256x1xf32>
    %52 = vector.broadcast %51 : vector<256x1xf32> to vector<256x256xf32>
    %53 = arith.mulf %48, %52 : vector<256x256xf32>
    %54 = arith.truncf %53 : vector<256x256xf32> to vector<256x256xbf16>
    %55 = vector.extract_strided_slice %36 {offsets = [0, 0], sizes = [256, 32], strides = [1, 1]} : vector<256x128xbf16> to vector<256x32xbf16>
    %cst_24 = arith.constant dense<0.000000e+00> : vector<256x32xf32>
    %56 = tpu.matmul %54, %55, %cst_24 {dimension_numbers = #tpu.dot_dimension_numbers<[1], [0], [0], [1], [0, 0, 1, 1], [], []>} : vector<256x256xbf16>, vector<256x32xbf16>, vector<256x32xf32> -> vector<256x32xf32>
    %c0_25 = arith.constant 0 : index
    %c0_26 = arith.constant 0 : index
    %57 = vector.load %arg8[%c0_25, %c0_26] : memref<256x128xf32, #tpu.memory_space<vmem>>, vector<256x128xf32>
    %58 = arith.truncf %56 : vector<256x32xf32> to vector<256x32xbf16>
    %c0_27 = arith.constant 0 : index
    %c0_28 = arith.constant 0 : index
    %59 = vector.load %arg5[%c0_27, %c0_28] : memref<128x128xbf16, #tpu.memory_space<vmem>>, vector<32x128xbf16>
    %cst_29 = arith.constant dense<0.000000e+00> : vector<256x128xf32>
    %60 = tpu.matmul %58, %59, %cst_29 {dimension_numbers = #tpu.dot_dimension_numbers<[1], [0], [0], [1], [0, 0, 1, 1], [], []>} : vector<256x32xbf16>, vector<32x128xbf16>, vector<256x128xf32> -> vector<256x128xf32>
    %61 = arith.addf %57, %60 : vector<256x128xf32>
    %c0_30 = arith.constant 0 : index
    %c0_31 = arith.constant 0 : index
    %62 = vector.load %arg8[%c0_30, %c0_31] : memref<256x128xf32, #tpu.memory_space<vmem>>, vector<256x128xf32>
    tpu.vector_store %arg8[%c0_30, %c0_31], %61 {strides = array<i32>} : memref<256x128xf32, #tpu.memory_space<vmem>>, vector<256x128xf32>,
    %63 = vector.extract_strided_slice %31 {offsets = [0, 32], sizes = [256, 32], strides = [1, 1]} : vector<256x128xbf16> to vector<256x32xbf16>
    %64 = vector.extract_strided_slice %34 {offsets = [32, 0], sizes = [32, 256], strides = [1, 1]} : vector<128x256xbf16> to vector<32x256xbf16>
    %cst_32 = arith.constant dense<0.000000e+00> : vector<256x256xf32>
    %65 = tpu.matmul %63, %64, %cst_32 {dimension_numbers = #tpu.dot_dimension_numbers<[1], [0], [0], [1], [0, 0, 1, 1], [], []>} : vector<256x32xbf16>, vector<32x256xbf16>, vector<256x256xf32> -> vector<256x256xf32>
    %cst_33 = arith.constant dense<0xFF800000> : vector<256xf32>
    %66 = vector.multi_reduction <maximumf>, %65, %cst_33 [1] : vector<256x256xf32> to vector<256xf32>
    %67 = vector.shape_cast %66 : vector<256xf32> to vector<256x1xf32>
    %68 = vector.broadcast %67 : vector<256x1xf32> to vector<256x256xf32>
    %69 = arith.subf %65, %68 : vector<256x256xf32>
    %70 = math.exp %69 : vector<256x256xf32>
    %cst_34 = arith.constant dense<0.000000e+00> : vector<256xf32>
    %71 = vector.multi_reduction <add>, %70, %cst_34 [1] : vector<256x256xf32> to vector<256xf32>
    %72 = vector.shape_cast %71 : vector<256xf32> to vector<256x1xf32>
    %73 = tpu.reciprocal %72 : vector<256x1xf32> -> vector<256x1xf32>
    %74 = vector.broadcast %73 : vector<256x1xf32> to vector<256x256xf32>
    %75 = arith.mulf %70, %74 : vector<256x256xf32>
    %76 = arith.truncf %75 : vector<256x256xf32> to vector<256x256xbf16>
    %77 = vector.extract_strided_slice %36 {offsets = [0, 32], sizes = [256, 32], strides = [1, 1]} : vector<256x128xbf16> to vector<256x32xbf16>
    %cst_35 = arith.constant dense<0.000000e+00> : vector<256x32xf32>
    %78 = tpu.matmul %76, %77, %cst_35 {dimension_numbers = #tpu.dot_dimension_numbers<[1], [0], [0], [1], [0, 0, 1, 1], [], []>} : vector<256x256xbf16>, vector<256x32xbf16>, vector<256x32xf32> -> vector<256x32xf32>
    %c0_36 = arith.constant 0 : index
    %c0_37 = arith.constant 0 : index
    %79 = vector.load %arg8[%c0_36, %c0_37] : memref<256x128xf32, #tpu.memory_space<vmem>>, vector<256x128xf32>
    %80 = arith.truncf %78 : vector<256x32xf32> to vector<256x32xbf16>
    %c32 = arith.constant 32 : index
    %c0_38 = arith.constant 0 : index
    %81 = vector.load %arg5[%c32, %c0_38] : memref<128x128xbf16, #tpu.memory_space<vmem>>, vector<32x128xbf16>
    %cst_39 = arith.constant dense<0.000000e+00> : vector<256x128xf32>
    %82 = tpu.matmul %80, %81, %cst_39 {dimension_numbers = #tpu.dot_dimension_numbers<[1], [0], [0], [1], [0, 0, 1, 1], [], []>} : vector<256x32xbf16>, vector<32x128xbf16>, vector<256x128xf32> -> vector<256x128xf32>
    %83 = arith.addf %79, %82 : vector<256x128xf32>
    %c0_40 = arith.constant 0 : index
    %c0_41 = arith.constant 0 : index
    %84 = vector.load %arg8[%c0_40, %c0_41] : memref<256x128xf32, #tpu.memory_space<vmem>>, vector<256x128xf32>
    tpu.vector_store %arg8[%c0_40, %c0_41], %83 {strides = array<i32>} : memref<256x128xf32, #tpu.memory_space<vmem>>, vector<256x128xf32>,
    %85 = vector.extract_strided_slice %31 {offsets = [0, 64], sizes = [256, 32], strides = [1, 1]} : vector<256x128xbf16> to vector<256x32xbf16>
    %86 = vector.extract_strided_slice %34 {offsets = [64, 0], sizes = [32, 256], strides = [1, 1]} : vector<128x256xbf16> to vector<32x256xbf16>
    %cst_42 = arith.constant dense<0.000000e+00> : vector<256x256xf32>
    %87 = tpu.matmul %85, %86, %cst_42 {dimension_numbers = #tpu.dot_dimension_numbers<[1], [0], [0], [1], [0, 0, 1, 1], [], []>} : vector<256x32xbf16>, vector<32x256xbf16>, vector<256x256xf32> -> vector<256x256xf32>
    %cst_43 = arith.constant dense<0xFF800000> : vector<256xf32>
    %88 = vector.multi_reduction <maximumf>, %87, %cst_43 [1] : vector<256x256xf32> to vector<256xf32>
    %89 = vector.shape_cast %88 : vector<256xf32> to vector<256x1xf32>
    %90 = vector.broadcast %89 : vector<256x1xf32> to vector<256x256xf32>
    %91 = arith.subf %87, %90 : vector<256x256xf32>
    %92 = math.exp %91 : vector<256x256xf32>
    %cst_44 = arith.constant dense<0.000000e+00> : vector<256xf32>
    %93 = vector.multi_reduction <add>, %92, %cst_44 [1] : vector<256x256xf32> to vector<256xf32>
    %94 = vector.shape_cast %93 : vector<256xf32> to vector<256x1xf32>
    %95 = tpu.reciprocal %94 : vector<256x1xf32> -> vector<256x1xf32>
    %96 = vector.broadcast %95 : vector<256x1xf32> to vector<256x256xf32>
    %97 = arith.mulf %92, %96 : vector<256x256xf32>
    %98 = arith.truncf %97 : vector<256x256xf32> to vector<256x256xbf16>
    %99 = vector.extract_strided_slice %36 {offsets = [0, 64], sizes = [256, 32], strides = [1, 1]} : vector<256x128xbf16> to vector<256x32xbf16>
    %cst_45 = arith.constant dense<0.000000e+00> : vector<256x32xf32>
    %100 = tpu.matmul %98, %99, %cst_45 {dimension_numbers = #tpu.dot_dimension_numbers<[1], [0], [0], [1], [0, 0, 1, 1], [], []>} : vector<256x256xbf16>, vector<256x32xbf16>, vector<256x32xf32> -> vector<256x32xf32>
    %c0_46 = arith.constant 0 : index
    %c0_47 = arith.constant 0 : index
    %101 = vector.load %arg8[%c0_46, %c0_47] : memref<256x128xf32, #tpu.memory_space<vmem>>, vector<256x128xf32>
    %102 = arith.truncf %100 : vector<256x32xf32> to vector<256x32xbf16>
    %c64 = arith.constant 64 : index
    %c0_48 = arith.constant 0 : index
    %103 = vector.load %arg5[%c64, %c0_48] : memref<128x128xbf16, #tpu.memory_space<vmem>>, vector<32x128xbf16>
    %cst_49 = arith.constant dense<0.000000e+00> : vector<256x128xf32>
    %104 = tpu.matmul %102, %103, %cst_49 {dimension_numbers = #tpu.dot_dimension_numbers<[1], [0], [0], [1], [0, 0, 1, 1], [], []>} : vector<256x32xbf16>, vector<32x128xbf16>, vector<256x128xf32> -> vector<256x128xf32>
    %105 = arith.addf %101, %104 : vector<256x128xf32>
    %c0_50 = arith.constant 0 : index
    %c0_51 = arith.constant 0 : index
    %106 = vector.load %arg8[%c0_50, %c0_51] : memref<256x128xf32, #tpu.memory_space<vmem>>, vector<256x128xf32>
    tpu.vector_store %arg8[%c0_50, %c0_51], %105 {strides = array<i32>} : memref<256x128xf32, #tpu.memory_space<vmem>>, vector<256x128xf32>,
    %107 = vector.extract_strided_slice %31 {offsets = [0, 96], sizes = [256, 32], strides = [1, 1]} : vector<256x128xbf16> to vector<256x32xbf16>
    %108 = vector.extract_strided_slice %34 {offsets = [96, 0], sizes = [32, 256], strides = [1, 1]} : vector<128x256xbf16> to vector<32x256xbf16>
    %cst_52 = arith.constant dense<0.000000e+00> : vector<256x256xf32>
    %109 = tpu.matmul %107, %108, %cst_52 {dimension_numbers = #tpu.dot_dimension_numbers<[1], [0], [0], [1], [0, 0, 1, 1], [], []>} : vector<256x32xbf16>, vector<32x256xbf16>, vector<256x256xf32> -> vector<256x256xf32>
    %cst_53 = arith.constant dense<0xFF800000> : vector<256xf32>
    %110 = vector.multi_reduction <maximumf>, %109, %cst_53 [1] : vector<256x256xf32> to vector<256xf32>
    %111 = vector.shape_cast %110 : vector<256xf32> to vector<256x1xf32>
    %112 = vector.broadcast %111 : vector<256x1xf32> to vector<256x256xf32>
    %113 = arith.subf %109, %112 : vector<256x256xf32>
    %114 = math.exp %113 : vector<256x256xf32>
    %cst_54 = arith.constant dense<0.000000e+00> : vector<256xf32>
    %115 = vector.multi_reduction <add>, %114, %cst_54 [1] : vector<256x256xf32> to vector<256xf32>
    %116 = vector.shape_cast %115 : vector<256xf32> to vector<256x1xf32>
    %117 = tpu.reciprocal %116 : vector<256x1xf32> -> vector<256x1xf32>
    %118 = vector.broadcast %117 : vector<256x1xf32> to vector<256x256xf32>
    %119 = arith.mulf %114, %118 : vector<256x256xf32>
    %120 = arith.truncf %119 : vector<256x256xf32> to vector<256x256xbf16>
    %121 = vector.extract_strided_slice %36 {offsets = [0, 96], sizes = [256, 32], strides = [1, 1]} : vector<256x128xbf16> to vector<256x32xbf16>
    %cst_55 = arith.constant dense<0.000000e+00> : vector<256x32xf32>
    %122 = tpu.matmul %120, %121, %cst_55 {dimension_numbers = #tpu.dot_dimension_numbers<[1], [0], [0], [1], [0, 0, 1, 1], [], []>} : vector<256x256xbf16>, vector<256x32xbf16>, vector<256x32xf32> -> vector<256x32xf32>
    %c0_56 = arith.constant 0 : index
    %c0_57 = arith.constant 0 : index
    %123 = vector.load %arg8[%c0_56, %c0_57] : memref<256x128xf32, #tpu.memory_space<vmem>>, vector<256x128xf32>
    %124 = arith.truncf %122 : vector<256x32xf32> to vector<256x32xbf16>
    %c96 = arith.constant 96 : index
    %c0_58 = arith.constant 0 : index
    %125 = vector.load %arg5[%c96, %c0_58] : memref<128x128xbf16, #tpu.memory_space<vmem>>, vector<32x128xbf16>
    %cst_59 = arith.constant dense<0.000000e+00> : vector<256x128xf32>
    %126 = tpu.matmul %124, %125, %cst_59 {dimension_numbers = #tpu.dot_dimension_numbers<[1], [0], [0], [1], [0, 0, 1, 1], [], []>} : vector<256x32xbf16>, vector<32x128xbf16>, vector<256x128xf32> -> vector<256x128xf32>
    %127 = arith.addf %123, %126 : vector<256x128xf32>
    %c0_60 = arith.constant 0 : index
    %c0_61 = arith.constant 0 : index
    %128 = vector.load %arg8[%c0_60, %c0_61] : memref<256x128xf32, #tpu.memory_space<vmem>>, vector<256x128xf32>
    tpu.vector_store %arg8[%c0_60, %c0_61], %127 {strides = array<i32>} : memref<256x128xf32, #tpu.memory_space<vmem>>, vector<256x128xf32>,
    %c0_62 = arith.constant 0 : index
    %c0_63 = arith.constant 0 : index
    %129 = vector.load %arg8[%c0_62, %c0_63] : memref<256x128xf32, #tpu.memory_space<vmem>>, vector<256x128xf32>
    %130 = tpu.transpose %129, [1, 0] : vector<256x128xf32> -> vector<128x256xf32>
    %c0_64 = arith.constant 0 : index
    %c0_65 = arith.constant 0 : index
    %c0_66 = arith.constant 0 : index
    %131 = vector.load %arg7[%c0_64, %c0_65, %c0_66] : memref<1x128x256xf32, #tpu.memory_space<vmem>>, vector<1x128x256xf32>
    %132 = vector.shape_cast %131 : vector<1x128x256xf32> to vector<128x256xf32>
    %133 = vector.shape_cast %130 : vector<128x256xf32> to vector<1x128x256xf32>
    tpu.vector_store %arg7[%c0_64, %c0_65, %c0_66], %133 {strides = array<i32>} : memref<1x128x256xf32, #tpu.memory_space<vmem>>, vector<1x128x256xf32>,
    return
  }
  func.func @transform_0(%arg0: i32) -> (i32, i32, i32) {
    %c0_i32 = arith.constant 0 : i32
    %c0_i32_0 = arith.constant 0 : i32
    %c0_i32_1 = arith.constant 0 : i32
    return %arg0, %c0_i32, %c0_i32_0 : i32, i32, i32
  }
  func.func @transform_1(%arg0: i32) -> (i32, i32) {
    %c0_i32 = arith.constant 0 : i32
    %c0_i32_0 = arith.constant 0 : i32
    %c0_i32_1 = arith.constant 0 : i32
    return %c0_i32, %c0_i32_0 : i32, i32
  }
  func.func @transform_2(%arg0: i32) -> (i32, i32) {
    %c0_i32 = arith.constant 0 : i32
    %c0_i32_0 = arith.constant 0 : i32
    %c0_i32_1 = arith.constant 0 : i32
    return %c0_i32, %c0_i32_0 : i32, i32
  }
  func.func @transform_3(%arg0: i32) -> (i32, i32) {
    %c0_i32 = arith.constant 0 : i32
    %c0_i32_0 = arith.constant 0 : i32
    %c0_i32_1 = arith.constant 0 : i32
    return %c0_i32, %c0_i32_0 : i32, i32
  }
  func.func @transform_4(%arg0: i32) -> (i32, i32) {
    %c0_i32 = arith.constant 0 : i32
    %c0_i32_0 = arith.constant 0 : i32
    %c0_i32_1 = arith.constant 0 : i32
    return %c0_i32, %c0_i32_0 : i32, i32
  }
  func.func @transform_5(%arg0: i32) -> (i32, i32) {
    %c0_i32 = arith.constant 0 : i32
    %c0_i32_0 = arith.constant 0 : i32
    %c0_i32_1 = arith.constant 0 : i32
    return %c0_i32, %c0_i32_0 : i32, i32
  }
  func.func @transform_6(%arg0: i32) -> (i32, i32, i32) {
    %c0_i32 = arith.constant 0 : i32
    %c0_i32_0 = arith.constant 0 : i32
    %c0_i32_1 = arith.constant 0 : i32
    return %arg0, %c0_i32, %c0_i32_0 : i32, i32, i32
  }
}

</mosaic_0001>

<llo_original>
// kernel: attention_block.1
$region0: #{attention_block.1}
  #allocation0 [shape = 'u32[]', space=smem, size = 0x4, offset = 0x4, fixed_abs, tag = 'smem constant byte address 0x4 - core index']
  #allocation1 [shape = 'u32[144,128]{1,0:T(1,128)}', space=vmem, size = 0x12000, scoped, tag = 'internal scratch']
  #allocation2 [shape = 'f32[256,128]{1,0:T(8,128)}', space=vmem, size = 0x20000, scoped, tag = 'scratch operand']
  %s0 = inlined_call_operand.vmem [shape: f32[2,128,256], index: 0, kind: input, shape index: {}]
  %s1 = inlined_call_operand.vmem [shape: f32[128,8], index: 1, kind: input, shape index: {}]
  %s2 = inlined_call_operand.vmem [shape: bf16[128,384], index: 2, kind: input, shape index: {}]
  %s3 = inlined_call_operand.vmem [shape: f32[1,384], index: 3, kind: input, shape index: {}]
  %s4 = inlined_call_operand.vmem [shape: bf16[128,128], index: 4, kind: input, shape index: {}]
  %s5 = inlined_call_operand.vmem [shape: f32[1,128], index: 5, kind: input, shape index: {}]
  %s6 = inlined_call_operand.vmem [shape: f32[2,128,256], index: 6, kind: output, shape index: {}]
  %s7 = sld [smem:[#allocation0]]
  $region57: #{attention_block.1} parent=0
    _
  %s9 = ssub.s32 1, %s7
  %s10 = scalar_select 0, %s9, %s7
  loop: start=0, step=1, limit=4
  $region2: #{attention_block.1} parent=0 // loop_pre_header
    _
  $region3: #{attention_block.1} parent=0 // loop_header
    %s12 = sphi 0, %s16
    %p13 = scmp.ge.s32.totalorder %s12, 4
    %s22 = sphi 0, %s24
    %s25 = sphi 0, %s22
    %s26 = sphi 0, %s25
    %s42 = sphi 0, %s26
    %s46 = sphi 0, %s46
    %s48 = sphi 0, %s46
    %s49 = sphi 0, %s48
    %s63 = sphi 0, %s49
    %s67 = sphi 0, %s67
    %s69 = sphi 0, %s67
    %s70 = sphi 0, %s69
    %s84 = sphi 0, %s70
    %s88 = sphi 0, %s88
    %s90 = sphi 0, %s88
    %s91 = sphi 0, %s90
    %s105 = sphi 0, %s91
    %s109 = sphi 0, %s109
    %s111 = sphi 0, %s109
    %s112 = sphi 0, %s111
    %s126 = sphi 0, %s112
    %s130 = sphi 0, %s130
    %s132 = sphi 0, %s130
    %s133 = sphi 0, %s132
    %s147 = sphi 0, %s133
    %s153 = sphi 0, %s155
    %s156 = sphi 0, %s153
    %s157 = sphi 0, %s156
    %s173 = sphi 0, %s157
  $region4: #{attention_block.1} parent=0 // loop_header_branch
    %15 = sbr.rel (%p13) target = $region8
  $region5: #{attention_block.1} parent=0 // loop_body
    %s17 = ssub.s32 %s12, 1
    %s18 = ssub.s32 %s12, 2
    %s19 = sadd.s32 %s12, 1
    %s20 = ssub.s32 %s12, %s19
    %p21 = scmp.eq.s32.totalorder %s20, 0
    %s23 = sadd.s32 %s22, 1
    %s24 = scalar_select %p21, %s22, %s23
    %p27 = pneg %p21
    %p28 = scmp.eq.s32.totalorder %s12, 1
    %p29 = por %p27, %p28
    %p30 = scmp.ne.s32.totalorder %s22, %s25
    %p31 = scmp.eq.s32.totalorder %s12, 0
    %p32 = por %p30, %p31
    %p33 = scmp.ne.s32.totalorder %s22, %s25
    %p34 = scmp.eq.s32.totalorder %s17, 1
    %p35 = por %p33, %p34
    %p36 = scmp.ne.s32.totalorder %s25, %s26
    %p37 = scmp.eq.s32.totalorder %s17, 0
    %p38 = por %p36, %p37
    %p39 = scmp.ne.s32.totalorder %s25, %s26
    %p40 = scmp.eq.s32.totalorder %s18, 1
    %p41 = por %p39, %p40
    %p43 = scmp.ne.s32.totalorder %s26, %s42
    %p44 = scmp.eq.s32.totalorder %s18, 0
    %p45 = por %p43, %p44
    %s47 = sadd.s32 %s46, 1
    %p50 = scmp.eq.s32.totalorder %s12, 1
    %p51 = scmp.ne.s32.totalorder %s46, %s48
    %p52 = scmp.eq.s32.totalorder %s12, 0
    %p53 = por %p51, %p52
    %p54 = scmp.ne.s32.totalorder %s46, %s48
    %p55 = scmp.eq.s32.totalorder %s17, 1
    %p56 = por %p54, %p55
    %p57 = scmp.ne.s32.totalorder %s48, %s49
    %p58 = scmp.eq.s32.totalorder %s17, 0
    %p59 = por %p57, %p58
    %p60 = scmp.ne.s32.totalorder %s48, %s49
    %p61 = scmp.eq.s32.totalorder %s18, 1
    %p62 = por %p60, %p61
    %p64 = scmp.ne.s32.totalorder %s49, %s63
    %p65 = scmp.eq.s32.totalorder %s18, 0
    %p66 = por %p64, %p65
    %s68 = sadd.s32 %s67, 1
    %p71 = scmp.eq.s32.totalorder %s12, 1
    %p72 = scmp.ne.s32.totalorder %s67, %s69
    %p73 = scmp.eq.s32.totalorder %s12, 0
    %p74 = por %p72, %p73
    %p75 = scmp.ne.s32.totalorder %s67, %s69
    %p76 = scmp.eq.s32.totalorder %s17, 1
    %p77 = por %p75, %p76
    %p78 = scmp.ne.s32.totalorder %s69, %s70
    %p79 = scmp.eq.s32.totalorder %s17, 0
    %p80 = por %p78, %p79
    %p81 = scmp.ne.s32.totalorder %s69, %s70
    %p82 = scmp.eq.s32.totalorder %s18, 1
    %p83 = por %p81, %p82
    %p85 = scmp.ne.s32.totalorder %s70, %s84
    %p86 = scmp.eq.s32.totalorder %s18, 0
    %p87 = por %p85, %p86
    %s89 = sadd.s32 %s88, 1
    %p92 = scmp.eq.s32.totalorder %s12, 1
    %p93 = scmp.ne.s32.totalorder %s88, %s90
    %p94 = scmp.eq.s32.totalorder %s12, 0
    %p95 = por %p93, %p94
    %p96 = scmp.ne.s32.totalorder %s88, %s90
    %p97 = scmp.eq.s32.totalorder %s17, 1
    %p98 = por %p96, %p97
    %p99 = scmp.ne.s32.totalorder %s90, %s91
    %p100 = scmp.eq.s32.totalorder %s17, 0
    %p101 = por %p99, %p100
    %p102 = scmp.ne.s32.totalorder %s90, %s91
    %p103 = scmp.eq.s32.totalorder %s18, 1
    %p104 = por %p102, %p103
    %p106 = scmp.ne.s32.totalorder %s91, %s105
    %p107 = scmp.eq.s32.totalorder %s18, 0
    %p108 = por %p106, %p107
    %s110 = sadd.s32 %s109, 1
    %p113 = scmp.eq.s32.totalorder %s12, 1
    %p114 = scmp.ne.s32.totalorder %s109, %s111
    %p115 = scmp.eq.s32.totalorder %s12, 0
    %p116 = por %p114, %p115
    %p117 = scmp.ne.s32.totalorder %s109, %s111
    %p118 = scmp.eq.s32.totalorder %s17, 1
    %p119 = por %p117, %p118
    %p120 = scmp.ne.s32.totalorder %s111, %s112
    %p121 = scmp.eq.s32.totalorder %s17, 0
    %p122 = por %p120, %p121
    %p123 = scmp.ne.s32.totalorder %s111, %s112
    %p124 = scmp.eq.s32.totalorder %s18, 1
    %p125 = por %p123, %p124
    %p127 = scmp.ne.s32.totalorder %s112, %s126
    %p128 = scmp.eq.s32.totalorder %s18, 0
    %p129 = por %p127, %p128
    %s131 = sadd.s32 %s130, 1
    %p134 = scmp.eq.s32.totalorder %s12, 1
    %p135 = scmp.ne.s32.totalorder %s130, %s132
    %p136 = scmp.eq.s32.totalorder %s12, 0
    %p137 = por %p135, %p136
    %p138 = scmp.ne.s32.totalorder %s130, %s132
    %p139 = scmp.eq.s32.totalorder %s17, 1
    %p140 = por %p138, %p139
    %p141 = scmp.ne.s32.totalorder %s132, %s133
    %p142 = scmp.eq.s32.totalorder %s17, 0
    %p143 = por %p141, %p142
    %p144 = scmp.ne.s32.totalorder %s132, %s133
    %p145 = scmp.eq.s32.totalorder %s18, 1
    %p146 = por %p144, %p145
    %p148 = scmp.ne.s32.totalorder %s133, %s147
    %p149 = scmp.eq.s32.totalorder %s18, 0
    %p150 = por %p148, %p149
    %s151 = ssub.s32 %s12, %s19
    %p152 = scmp.eq.s32.totalorder %s151, 0
    %s154 = sadd.s32 %s153, 1
    %s155 = scalar_select %p152, %s153, %s154
    %p158 = pneg %p152
    %p159 = scmp.eq.s32.totalorder %s12, 1
    %p160 = por %p158, %p159
    %p161 = scmp.ne.s32.totalorder %s153, %s156
    %p162 = scmp.eq.s32.totalorder %s12, 0
    %p163 = por %p161, %p162
    %p164 = scmp.ne.s32.totalorder %s153, %s156
    %p165 = scmp.eq.s32.totalorder %s17, 1
    %p166 = por %p164, %p165
    %p167 = scmp.ne.s32.totalorder %s156, %s157
    %p168 = scmp.eq.s32.totalorder %s17, 0
    %p169 = por %p167, %p168
    %p170 = scmp.ne.s32.totalorder %s156, %s157
    %p171 = scmp.eq.s32.totalorder %s18, 1
    %p172 = por %p170, %p171
    %p174 = scmp.ne.s32.totalorder %s157, %s173
    %p175 = scmp.eq.s32.totalorder %s18, 0
    %p176 = por %p174, %p175
    %p177 = scmp.le.s32.totalorder 1, %s12
    %p178 = scmp.lt.s32.totalorder %s12, 3
    %p179 = pnand %p177, %p178
    %p180 = pneg %p179
    // Predicated region
    $region9: #{attention_block.1} parent=5 // pred_check
      _
    $region10: #{attention_block.1} parent=5 // pred_check_branch
      %182 = sbr.rel (%p179) target = $region12
    $region11: #{attention_block.1} parent=5 // pred_region
      %s183 = ssub.s32 %s12, 1
      // Predicated region
      $region13: #{attention_block.1} parent=11 // pred_check
        %p184 = pneg %p59
      $region14: #{attention_block.1} parent=11 // pred_check_branch
        %186 = sbr.rel (%p184) target = $region16
      $region15: #{attention_block.1} parent=11 // pred_region
        _
      $region16: #{attention_block.1} parent=11 // pred_fallthru
        _
      // Predicated region
      $region17: #{attention_block.1} parent=11 // pred_check
        %p187 = pneg %p80
      $region18: #{attention_block.1} parent=11 // pred_check_branch
        %189 = sbr.rel (%p187) target = $region20
      $region19: #{attention_block.1} parent=11 // pred_region
        _
      $region20: #{attention_block.1} parent=11 // pred_fallthru
        _
      // Predicated region
      $region21: #{attention_block.1} parent=11 // pred_check
        %p190 = pneg %p101
      $region22: #{attention_block.1} parent=11 // pred_check_branch
        %192 = sbr.rel (%p190) target = $region24
      $region23: #{attention_block.1} parent=11 // pred_region
        _
      $region24: #{attention_block.1} parent=11 // pred_fallthru
        _
      // Predicated region
      $region25: #{attention_block.1} parent=11 // pred_check
        %p193 = pneg %p122
      $region26: #{attention_block.1} parent=11 // pred_check_branch
        %195 = sbr.rel (%p193) target = $region28
      $region27: #{attention_block.1} parent=11 // pred_region
        _
      $region28: #{attention_block.1} parent=11 // pred_fallthru
        _
      // Predicated region
      $region29: #{attention_block.1} parent=11 // pred_check
        %p196 = pneg %p143
      $region30: #{attention_block.1} parent=11 // pred_check_branch
        %198 = sbr.rel (%p196) target = $region32
      $region31: #{attention_block.1} parent=11 // pred_region
        _
      $region32: #{attention_block.1} parent=11 // pred_fallthru
        _
    $region12: #{attention_block.1} parent=5 // pred_fallthru
      _
    %p199 = scmp.lt.s32.totalorder %s12, 2
    // Predicated region
    $region33: #{attention_block.1} parent=5 // pred_check
      %p200 = pneg %p199
    $region34: #{attention_block.1} parent=5 // pred_check_branch
      %202 = sbr.rel (%p200) target = $region36
    $region35: #{attention_block.1} parent=5 // pred_region
      // Predicated region
      $region37: #{attention_block.1} parent=35 // pred_check
        %p203 = pneg %p32
      $region38: #{attention_block.1} parent=35 // pred_check_branch
        %205 = sbr.rel (%p203) target = $region40
      $region39: #{attention_block.1} parent=35 // pred_region
        %p206 = scmp.lt.s32.totalorder %s12, 1
        %s207 = scalar_select %p206, %s12, 1
        %s208 = smul.addr %s207, 32
        %s209 = smul.addr %s208, 8
        %s210 = scalar_lea.vmem %s0, %s209
      $region40: #{attention_block.1} parent=35 // pred_fallthru
        _
    $region36: #{attention_block.1} parent=5 // pred_fallthru
      _
    %p211 = scmp.le.s32.totalorder 1, %s12
    %p212 = scmp.lt.s32.totalorder %s12, 3
    %p213 = pnand %p211, %p212
    %p214 = pneg %p213
    // Predicated region
    $region41: #{attention_block.1} parent=5 // pred_check
      _
    $region42: #{attention_block.1} parent=5 // pred_check_branch
      %216 = sbr.rel (%p213) target = $region44
    $region43: #{attention_block.1} parent=5 // pred_region
      %s217 = ssub.s32 %s12, 1
      %p218 = scmp.lt.s32.totalorder %s17, 1
      %s219 = scalar_select %p218, %s17, 1
      %s220 = smul.addr %s219, 32
      %s221 = smul.addr %s220, 8
      %s222 = scalar_lea.vmem %s0, %s221
      %p223 = pneg %p38
      %p224 = pneg %p35
      %p225 = pneg %p59
      %p226 = pneg %p56
      %p227 = pneg %p80
      %p228 = pneg %p77
      %p229 = pneg %p101
      %p230 = pneg %p98
      %p231 = pneg %p122
      %p232 = pneg %p119
      %p233 = pneg %p143
      %p234 = pneg %p140
      %p235 = pneg %p169
      %p236 = pneg %p166
      %p237 = scmp.lt.s32.totalorder %s17, 1
      %s238 = scalar_select %p237, %s17, 1
      %s239 = smul.addr %s238, 32
      %s240 = smul.addr %s239, 8
      %s241 = scalar_lea.vmem %s6, %s240
      %p242 = scmp.lt.s32.totalorder %s17, 1
      %s243 = scalar_select %p242, %s17, 1
      %s244 = smul.addr %s243, 32
      %s245 = smul.addr %s244, 8
      %s246 = scalar_lea.vmem %s0, %s245
      %p247 = scmp.lt.s32.totalorder %s17, 1
      %s248 = scalar_select %p247, %s17, 1
      %s249 = smul.addr %s248, 32
      %s250 = smul.addr %s249, 8
      %s251 = scalar_lea.vmem %s6, %s250
      %v253 = vld [vmem:[%s246] sm:$0xff]
      %v254 = vld [vmem:[%s246 + $0x8] sm:$0xff]
      %v255 = vld [vmem:[%s246 + $0x10] sm:$0xff]
      %v256 = vld [vmem:[%s246 + $0x18] sm:$0xff]
      %v257 = vld [vmem:[%s246 + $0x20] sm:$0xff]
      %v258 = vld [vmem:[%s246 + $0x28] sm:$0xff]
      %v259 = vld [vmem:[%s246 + $0x30] sm:$0xff]
      %v260 = vld [vmem:[%s246 + $0x38] sm:$0xff]
      %v261 = vld [vmem:[%s246 + $0x40] sm:$0xff]
      %v262 = vld [vmem:[%s246 + $0x48] sm:$0xff]
      %v263 = vld [vmem:[%s246 + $0x50] sm:$0xff]
      %v264 = vld [vmem:[%s246 + $0x58] sm:$0xff]
      %v265 = vld [vmem:[%s246 + $0x60] sm:$0xff]
      %v266 = vld [vmem:[%s246 + $0x68] sm:$0xff]
      %v267 = vld [vmem:[%s246 + $0x70] sm:$0xff]
      %v268 = vld [vmem:[%s246 + $0x78] sm:$0xff]
      %v269 = vld [vmem:[%s246 + $0x80] sm:$0xff]
      %v270 = vld [vmem:[%s246 + $0x88] sm:$0xff]
      %v271 = vld [vmem:[%s246 + $0x90] sm:$0xff]
      %v272 = vld [vmem:[%s246 + $0x98] sm:$0xff]
      %v273 = vld [vmem:[%s246 + $0xa0] sm:$0xff]
      %v274 = vld [vmem:[%s246 + $0xa8] sm:$0xff]
      %v275 = vld [vmem:[%s246 + $0xb0] sm:$0xff]
      %v276 = vld [vmem:[%s246 + $0xb8] sm:$0xff]
      %v277 = vld [vmem:[%s246 + $0xc0] sm:$0xff]
      %v278 = vld [vmem:[%s246 + $0xc8] sm:$0xff]
      %v279 = vld [vmem:[%s246 + $0xd0] sm:$0xff]
      %v280 = vld [vmem:[%s246 + $0xd8] sm:$0xff]
      %v281 = vld [vmem:[%s246 + $0xe0] sm:$0xff]
      %v282 = vld [vmem:[%s246 + $0xe8] sm:$0xff]
      %v283 = vld [vmem:[%s246 + $0xf0] sm:$0xff]
      %v284 = vld [vmem:[%s246 + $0xf8] sm:$0xff]
      %285 = vxpose.xlu0.b32.start [1/16] %v253, 128
      %286 = vxpose.xlu0.b32.cont [2/16] %v255, 128
      %287 = vxpose.xlu0.b32.cont [3/16] %v257, 128
      %288 = vxpose.xlu0.b32.cont [4/16] %v259, 128
      %289 = vxpose.xlu0.b32.cont [5/16] %v261, 128
      %290 = vxpose.xlu0.b32.cont [6/16] %v263, 128
      %291 = vxpose.xlu0.b32.cont [7/16] %v265, 128
      %292 = vxpose.xlu0.b32.cont [8/16] %v267, 128
      %293 = vxpose.xlu0.b32.cont [9/16] %v269, 128
      %294 = vxpose.xlu0.b32.cont [10/16] %v271, 128
      %295 = vxpose.xlu0.b32.cont [11/16] %v273, 128
      %296 = vxpose.xlu0.b32.cont [12/16] %v275, 128
      %297 = vxpose.xlu0.b32.cont [13/16] %v277, 128
      %298 = vxpose.xlu0.b32.cont [14/16] %v279, 128
      %299 = vxpose.xlu0.b32.cont [15/16] %v281, 128
      %300 = vxpose.xlu0.b32.end [16/16] %v283, 128
      %v301 = vpop.trf.xlu0
      %v302 = vpop.trf.xlu0
      %v303 = vpop.trf.xlu0
      %v304 = vpop.trf.xlu0
      %v305 = vpop.trf.xlu0
      %v306 = vpop.trf.xlu0
      %v307 = vpop.trf.xlu0
      %v308 = vpop.trf.xlu0
      %v309 = vpop.trf.xlu0
      %v310 = vpop.trf.xlu0
      %v311 = vpop.trf.xlu0
      %v312 = vpop.trf.xlu0
      %v313 = vpop.trf.xlu0
      %v314 = vpop.trf.xlu0
      %v315 = vpop.trf.xlu0
      %v316 = vpop.trf.xlu0
      %317 = vxpose.xlu0.b32.start [1/16] %v254, 128
      %318 = vxpose.xlu0.b32.cont [2/16] %v256, 128
      %319 = vxpose.xlu0.b32.cont [3/16] %v258, 128
      %320 = vxpose.xlu0.b32.cont [4/16] %v260, 128
      %321 = vxpose.xlu0.b32.cont [5/16] %v262, 128
      %322 = vxpose.xlu0.b32.cont [6/16] %v264, 128
      %323 = vxpose.xlu0.b32.cont [7/16] %v266, 128
      %324 = vxpose.xlu0.b32.cont [8/16] %v268, 128
      %325 = vxpose.xlu0.b32.cont [9/16] %v270, 128
      %326 = vxpose.xlu0.b32.cont [10/16] %v272, 128
      %327 = vxpose.xlu0.b32.cont [11/16] %v274, 128
      %328 = vxpose.xlu0.b32.cont [12/16] %v276, 128
      %329 = vxpose.xlu0.b32.cont [13/16] %v278, 128
      %330 = vxpose.xlu0.b32.cont [14/16] %v280, 128
      %331 = vxpose.xlu0.b32.cont [15/16] %v282, 128
      %332 = vxpose.xlu0.b32.end [16/16] %v284, 128
      %v333 = vpop.trf.xlu0
      %v334 = vpop.trf.xlu0
      %v335 = vpop.trf.xlu0
      %v336 = vpop.trf.xlu0
      %v337 = vpop.trf.xlu0
      %v338 = vpop.trf.xlu0
      %v339 = vpop.trf.xlu0
      %v340 = vpop.trf.xlu0
      %v341 = vpop.trf.xlu0
      %v342 = vpop.trf.xlu0
      %v343 = vpop.trf.xlu0
      %v344 = vpop.trf.xlu0
      %v345 = vpop.trf.xlu0
      %v346 = vpop.trf.xlu0
      %v347 = vpop.trf.xlu0
      %v348 = vpop.trf.xlu0
      %v349 = vld [vmem:[%s1] sm:$0xff]
      %v350 = vld [vmem:[%s1 + $0x8] sm:$0xff]
      %v351 = vld [vmem:[%s1 + $0x10] sm:$0xff]
      %v352 = vld [vmem:[%s1 + $0x18] sm:$0xff]
      %v353 = vld [vmem:[%s1 + $0x20] sm:$0xff]
      %v354 = vld [vmem:[%s1 + $0x28] sm:$0xff]
      %v355 = vld [vmem:[%s1 + $0x30] sm:$0xff]
      %v356 = vld [vmem:[%s1 + $0x38] sm:$0xff]
      %v357 = vld [vmem:[%s1 + $0x40] sm:$0xff]
      %v358 = vld [vmem:[%s1 + $0x48] sm:$0xff]
      %v359 = vld [vmem:[%s1 + $0x50] sm:$0xff]
      %v360 = vld [vmem:[%s1 + $0x58] sm:$0xff]
      %v361 = vld [vmem:[%s1 + $0x60] sm:$0xff]
      %v362 = vld [vmem:[%s1 + $0x68] sm:$0xff]
      %v363 = vld [vmem:[%s1 + $0x70] sm:$0xff]
      %v364 = vld [vmem:[%s1 + $0x78] sm:$0xff]
      %v365 = vadd.f32 %v301, %v302
      %v366 = vadd.f32 %v365, %v303
      %v367 = vadd.f32 %v366, %v304
      %v368 = vadd.f32 %v367, %v305
      %v369 = vadd.f32 %v368, %v306
      %v370 = vadd.f32 %v369, %v307
      %v371 = vadd.f32 %v370, %v308
      %v372 = vadd.f32 %v371, %v309
      %v373 = vadd.f32 %v372, %v310
      %v374 = vadd.f32 %v373, %v311
      %v375 = vadd.f32 %v374, %v312
      %v376 = vadd.f32 %v375, %v313
      %v377 = vadd.f32 %v376, %v314
      %v378 = vadd.f32 %v377, %v315
      %v379 = vadd.f32 %v378, %v316
      %v380 = vadd.f32 %v379, %v333
      %v381 = vadd.f32 %v380, %v334
      %v382 = vadd.f32 %v381, %v335
      %v383 = vadd.f32 %v382, %v336
      %v384 = vadd.f32 %v383, %v337
      %v385 = vadd.f32 %v384, %v338
      %v386 = vadd.f32 %v385, %v339
      %v387 = vadd.f32 %v386, %v340
      %v388 = vadd.f32 %v387, %v341
      %v389 = vadd.f32 %v388, %v342
      %v390 = vadd.f32 %v389, %v343
      %v391 = vadd.f32 %v390, %v344
      %v392 = vadd.f32 %v391, %v345
      %v393 = vadd.f32 %v392, %v346
      %v394 = vadd.f32 %v393, %v347
      %v395 = vadd.f32 %v394, %v348
      %v396 = vrot.slane %v395, 4
      %v397 = vadd.f32 %v395, %v396
      %v398 = vrot.slane %v397, 2
      %v399 = vadd.f32 %v397, %v398
      %v400 = vrot.slane %v399, 1
      %v401 = vadd.f32 %v399, %v400
      %402 = vmatprep.subr.mxu0 0.0
      %403 = vmatpush1.msra.mxu0 %v349
      %404 = vmatprep.subr.mxu0 0.0
      %405 = vmatpush1.msra.mxu0 %v350
      %406 = vmatprep.subr.mxu0 0.0
      %407 = vmatpush1.msra.mxu0 %v351
      %408 = vmatprep.subr.mxu0 0.0
      %409 = vmatpush1.msra.mxu0 %v352
      %410 = vmatprep.subr.mxu0 0.0
      %411 = vmatpush1.msra.mxu0 %v353
      %412 = vmatprep.subr.mxu0 0.0
      %413 = vmatpush1.msra.mxu0 %v354
      %414 = vmatprep.subr.mxu0 0.0
      %415 = vmatpush1.msra.mxu0 %v355
      %416 = vmatprep.subr.mxu0 0.0
      %417 = vmatpush1.msra.mxu0 %v356
      %418 = vmatprep.subr.mxu0 0.0
      %419 = vmatpush1.msra.mxu0 %v357
      %420 = vmatprep.subr.mxu0 0.0
      %421 = vmatpush1.msra.mxu0 %v358
      %422 = vmatprep.subr.mxu0 0.0
      %423 = vmatpush1.msra.mxu0 %v359
      %424 = vmatprep.subr.mxu0 0.0
      %425 = vmatpush1.msra.mxu0 %v360
      %426 = vmatprep.subr.mxu0 0.0
      %427 = vmatpush1.msra.mxu0 %v361
      %428 = vmatprep.subr.mxu0 0.0
      %429 = vmatpush1.msra.mxu0 %v362
      %430 = vmatprep.subr.mxu0 0.0
      %431 = vmatpush1.msra.mxu0 %v363
      %432 = vmatprep.subr.mxu0 0.0
      %433 = vmatpush1.msra.mxu0 %v364
      %434 = vmatprep.subr.mxu0 0.0
      %435 = vmatpush1.msra.mxu0 0.0
      %436 = vmatprep.subr.mxu0 0.0
      %437 = vmatpush1.msra.mxu0 0.0
      %438 = vmatprep.subr.mxu0 0.0
      %439 = vmatpush1.msra.mxu0 0.0
      %440 = vmatprep.subr.mxu0 0.0
      %441 = vmatpush1.msra.mxu0 0.0
      %442 = vmatprep.subr.mxu0 0.0
      %443 = vmatpush1.msra.mxu0 0.0
      %444 = vmatprep.subr.mxu0 0.0
      %445 = vmatpush1.msra.mxu0 0.0
      %446 = vmatprep.subr.mxu0 0.0
      %447 = vmatpush1.msra.mxu0 0.0
      %448 = vmatprep.subr.mxu0 0.0
      %449 = vmatpush1.msra.mxu0 0.0
      %450 = vmatprep.subr.mxu0 0.0
      %451 = vmatpush1.msra.mxu0 0.0
      %452 = vmatprep.subr.mxu0 0.0
      %453 = vmatpush1.msra.mxu0 0.0
      %454 = vmatprep.subr.mxu0 0.0
      %455 = vmatpush1.msra.mxu0 0.0
      %456 = vmatprep.subr.mxu0 0.0
      %457 = vmatpush1.msra.mxu0 0.0
      %458 = vmatprep.subr.mxu0 0.0
      %459 = vmatpush1.msra.mxu0 0.0
      %460 = vmatprep.subr.mxu0 0.0
      %461 = vmatpush1.msra.mxu0 0.0
      %462 = vmatprep.subr.mxu0 0.0
      %463 = vmatpush1.msra.mxu0 0.0
      %464 = vmatprep.subr.mxu0 0.0
      %465 = vmatpush1.msra.mxu0 0.0
      %466 = vmatprep.mubr.f32.mxu0 0.0
      %467 = vmatmul.mubr.f32.gmra.mrb[0].mxu0 %v401
      %v468 = vpop.f32.mrb[0].mxu0
      %v469 = vadd.f32 0.0, %v468
      %v470 = vpop.f32.mrb[0].mxu0
      %471 = vdwg.mxu0
      %v472 = vrcp.pop 4096.0
      %v473 = vmul.f32 %v469, %v472
      %vm474 = vcmask 64512
      %v476 = vsel %vm474, %v473, 0
      %v479 = vsel %vm474, %v349, 0
      %v482 = vsel %vm474, %v350, 0
      %v485 = vsel %vm474, %v351, 0
      %v488 = vsel %vm474, %v352, 0
      %v491 = vsel %vm474, %v353, 0
      %v494 = vsel %vm474, %v354, 0
      %v497 = vsel %vm474, %v355, 0
      %v500 = vsel %vm474, %v356, 0
      %v503 = vsel %vm474, %v357, 0
      %v506 = vsel %vm474, %v358, 0
      %v509 = vsel %vm474, %v359, 0
      %v512 = vsel %vm474, %v360, 0
      %v515 = vsel %vm474, %v361, 0
      %v518 = vsel %vm474, %v362, 0
      %v521 = vsel %vm474, %v363, 0
      %v524 = vsel %vm474, %v364, 0
      %526 = vmatprep.subr.mxu0 0.0
      %527 = vmatpush1.xpose.msra.mxu0 %v479
      %528 = vmatprep.subr.mxu0 0.0
      %529 = vmatpush1.xpose.msra.mxu0 %v482
      %530 = vmatprep.subr.mxu0 0.0
      %531 = vmatpush1.xpose.msra.mxu0 %v485
      %532 = vmatprep.subr.mxu0 0.0
      %533 = vmatpush1.xpose.msra.mxu0 %v488
      %534 = vmatprep.subr.mxu0 0.0
      %535 = vmatpush1.xpose.msra.mxu0 %v491
      %536 = vmatprep.subr.mxu0 0.0
      %537 = vmatpush1.xpose.msra.mxu0 %v494
      %538 = vmatprep.subr.mxu0 0.0
      %539 = vmatpush1.xpose.msra.mxu0 %v497
      %540 = vmatprep.subr.mxu0 0.0
      %541 = vmatpush1.xpose.msra.mxu0 %v500
      %542 = vmatprep.subr.mxu0 0.0
      %543 = vmatpush1.xpose.msra.mxu0 %v503
      %544 = vmatprep.subr.mxu0 0.0
      %545 = vmatpush1.xpose.msra.mxu0 %v506
      %546 = vmatprep.subr.mxu0 0.0
      %547 = vmatpush1.xpose.msra.mxu0 %v509
      %548 = vmatprep.subr.mxu0 0.0
      %549 = vmatpush1.xpose.msra.mxu0 %v512
      %550 = vmatprep.subr.mxu0 0.0
      %551 = vmatpush1.xpose.msra.mxu0 %v515
      %552 = vmatprep.subr.mxu0 0.0
      %553 = vmatpush1.xpose.msra.mxu0 %v518
      %554 = vmatprep.subr.mxu0 0.0
      %555 = vmatpush1.xpose.msra.mxu0 %v521
      %556 = vmatprep.subr.mxu0 0.0
      %557 = vmatpush1.xpose.msra.mxu0 %v524
      %558 = vmatprep.subr.mxu0 0.0
      %559 = vmatpush1.xpose.msra.mxu0 0.0
      %560 = vmatprep.subr.mxu0 0.0
      %561 = vmatpush1.xpose.msra.mxu0 0.0
      %562 = vmatprep.subr.mxu0 0.0
      %563 = vmatpush1.xpose.msra.mxu0 0.0
      %564 = vmatprep.subr.mxu0 0.0
      %565 = vmatpush1.xpose.msra.mxu0 0.0
      %566 = vmatprep.subr.mxu0 0.0
      %567 = vmatpush1.xpose.msra.mxu0 0.0
      %568 = vmatprep.subr.mxu0 0.0
      %569 = vmatpush1.xpose.msra.mxu0 0.0
      %570 = vmatprep.subr.mxu0 0.0
      %571 = vmatpush1.xpose.msra.mxu0 0.0
      %572 = vmatprep.subr.mxu0 0.0
      %573 = vmatpush1.xpose.msra.mxu0 0.0
      %574 = vmatprep.subr.mxu0 0.0
      %575 = vmatpush1.xpose.msra.mxu0 0.0
      %576 = vmatprep.subr.mxu0 0.0
      %577 = vmatpush1.xpose.msra.mxu0 0.0
      %578 = vmatprep.subr.mxu0 0.0
      %579 = vmatpush1.xpose.msra.mxu0 0.0
      %580 = vmatprep.subr.mxu0 0.0
      %581 = vmatpush1.xpose.msra.mxu0 0.0
      %582 = vmatprep.subr.mxu0 0.0
      %583 = vmatpush1.xpose.msra.mxu0 0.0
      %584 = vmatprep.subr.mxu0 0.0
      %585 = vmatpush1.xpose.msra.mxu0 0.0
      %586 = vmatprep.subr.mxu0 0.0
      %587 = vmatpush1.xpose.msra.mxu0 0.0
      %588 = vmatprep.subr.mxu0 0.0
      %589 = vmatpush1.xpose.msra.mxu0 0.0
      %590 = vmatprep.mubr.f32.mxu0 0.0
      %591 = vmatmul.mubr.f32.gmra.mrb[0].mxu0 %v476
      %v592 = vpop.f32.mrb[0].mxu0
      %v593 = vadd.f32 0.0, %v592
      %v594 = vpop.f32.mrb[0].mxu0
      %595 = vdwg.mxu0
      %v596 = vlaneseq
      %v597 = vshrl.u32 %v596, 7
      %v598 = vsub.s32 0, %v597
      %v599 = vrot.slane %v593, %v598
      %v600 = vsub.f32 %v301, %v599
      %v601 = vsub.f32 %v302, %v599
      %v602 = vsub.f32 %v303, %v599
      %v603 = vsub.f32 %v304, %v599
      %v604 = vsub.f32 %v305, %v599
      %v605 = vsub.f32 %v306, %v599
      %v606 = vsub.f32 %v307, %v599
      %v607 = vsub.f32 %v308, %v599
      %v608 = vsub.f32 %v309, %v599
      %v609 = vsub.f32 %v310, %v599
      %v610 = vsub.f32 %v311, %v599
      %v611 = vsub.f32 %v312, %v599
      %v612 = vsub.f32 %v313, %v599
      %v613 = vsub.f32 %v314, %v599
      %v614 = vsub.f32 %v315, %v599
      %v615 = vsub.f32 %v316, %v599
      %v616 = vsub.f32 %v333, %v599
      %v617 = vsub.f32 %v334, %v599
      %v618 = vsub.f32 %v335, %v599
      %v619 = vsub.f32 %v336, %v599
      %v620 = vsub.f32 %v337, %v599
      %v621 = vsub.f32 %v338, %v599
      %v622 = vsub.f32 %v339, %v599
      %v623 = vsub.f32 %v340, %v599
      %v624 = vsub.f32 %v341, %v599
      %v625 = vsub.f32 %v342, %v599
      %v626 = vsub.f32 %v343, %v599
      %v627 = vsub.f32 %v344, %v599
      %v628 = vsub.f32 %v345, %v599
      %v629 = vsub.f32 %v346, %v599
      %v630 = vsub.f32 %v347, %v599
      %v631 = vsub.f32 %v348, %v599
      %v632 = vmul.f32 %v600, %v600
      %v633 = vmul.f32 %v601, %v601
      %v634 = vmul.f32 %v602, %v602
      %v635 = vmul.f32 %v603, %v603
      %v636 = vmul.f32 %v604, %v604
      %v637 = vmul.f32 %v605, %v605
      %v638 = vmul.f32 %v606, %v606
      %v639 = vmul.f32 %v607, %v607
      %v640 = vmul.f32 %v608, %v608
      %v641 = vmul.f32 %v609, %v609
      %v642 = vmul.f32 %v610, %v610
      %v643 = vmul.f32 %v611, %v611
      %v644 = vmul.f32 %v612, %v612
      %v645 = vmul.f32 %v613, %v613
      %v646 = vmul.f32 %v614, %v614
      %v647 = vmul.f32 %v615, %v615
      %v648 = vmul.f32 %v616, %v616
      %v649 = vmul.f32 %v617, %v617
      %v650 = vmul.f32 %v618, %v618
      %v651 = vmul.f32 %v619, %v619
      %v652 = vmul.f32 %v620, %v620
      %v653 = vmul.f32 %v621, %v621
      %v654 = vmul.f32 %v622, %v622
      %v655 = vmul.f32 %v623, %v623
      %v656 = vmul.f32 %v624, %v624
      %v657 = vmul.f32 %v625, %v625
      %v658 = vmul.f32 %v626, %v626
      %v659 = vmul.f32 %v627, %v627
      %v660 = vmul.f32 %v628, %v628
      %v661 = vmul.f32 %v629, %v629
      %v662 = vmul.f32 %v630, %v630
      %v663 = vmul.f32 %v631, %v631
      %v664 = vadd.f32 %v632, %v633
      %v665 = vadd.f32 %v664, %v634
      %v666 = vadd.f32 %v665, %v635
      %v667 = vadd.f32 %v666, %v636
      %v668 = vadd.f32 %v667, %v637
      %v669 = vadd.f32 %v668, %v638
      %v670 = vadd.f32 %v669, %v639
      %v671 = vadd.f32 %v670, %v640
      %v672 = vadd.f32 %v671, %v641
      %v673 = vadd.f32 %v672, %v642
      %v674 = vadd.f32 %v673, %v643
      %v675 = vadd.f32 %v674, %v644
      %v676 = vadd.f32 %v675, %v645
      %v677 = vadd.f32 %v676, %v646
      %v678 = vadd.f32 %v677, %v647
      %v679 = vadd.f32 %v678, %v648
      %v680 = vadd.f32 %v679, %v649
      %v681 = vadd.f32 %v680, %v650
      %v682 = vadd.f32 %v681, %v651
      %v683 = vadd.f32 %v682, %v652
      %v684 = vadd.f32 %v683, %v653
      %v685 = vadd.f32 %v684, %v654
      %v686 = vadd.f32 %v685, %v655
      %v687 = vadd.f32 %v686, %v656
      %v688 = vadd.f32 %v687, %v657
      %v689 = vadd.f32 %v688, %v658
      %v690 = vadd.f32 %v689, %v659
      %v691 = vadd.f32 %v690, %v660
      %v692 = vadd.f32 %v691, %v661
      %v693 = vadd.f32 %v692, %v662
      %v694 = vadd.f32 %v693, %v663
      %v695 = vrot.slane %v694, 4
      %v696 = vadd.f32 %v694, %v695
      %v697 = vrot.slane %v696, 2
      %v698 = vadd.f32 %v696, %v697
      %v699 = vrot.slane %v698, 1
      %v700 = vadd.f32 %v698, %v699
      %701 = vmatprep.subr.mxu0 0.0
      %702 = vmatpush1.msra.mxu0 %v349
      %703 = vmatprep.subr.mxu0 0.0
      %704 = vmatpush1.msra.mxu0 %v350
      %705 = vmatprep.subr.mxu0 0.0
      %706 = vmatpush1.msra.mxu0 %v351
      %707 = vmatprep.subr.mxu0 0.0
      %708 = vmatpush1.msra.mxu0 %v352
      %709 = vmatprep.subr.mxu0 0.0
      %710 = vmatpush1.msra.mxu0 %v353
      %711 = vmatprep.subr.mxu0 0.0
      %712 = vmatpush1.msra.mxu0 %v354
      %713 = vmatprep.subr.mxu0 0.0
      %714 = vmatpush1.msra.mxu0 %v355
      %715 = vmatprep.subr.mxu0 0.0
      %716 = vmatpush1.msra.mxu0 %v356
      %717 = vmatprep.subr.mxu0 0.0
      %718 = vmatpush1.msra.mxu0 %v357
      %719 = vmatprep.subr.mxu0 0.0
      %720 = vmatpush1.msra.mxu0 %v358
      %721 = vmatprep.subr.mxu0 0.0
      %722 = vmatpush1.msra.mxu0 %v359
      %723 = vmatprep.subr.mxu0 0.0
      %724 = vmatpush1.msra.mxu0 %v360
      %725 = vmatprep.subr.mxu0 0.0
      %726 = vmatpush1.msra.mxu0 %v361
      %727 = vmatprep.subr.mxu0 0.0
      %728 = vmatpush1.msra.mxu0 %v362
      %729 = vmatprep.subr.mxu0 0.0
      %730 = vmatpush1.msra.mxu0 %v363
      %731 = vmatprep.subr.mxu0 0.0
      %732 = vmatpush1.msra.mxu0 %v364
      %733 = vmatprep.subr.mxu0 0.0
      %734 = vmatpush1.msra.mxu0 0.0
      %735 = vmatprep.subr.mxu0 0.0
      %736 = vmatpush1.msra.mxu0 0.0
      %737 = vmatprep.subr.mxu0 0.0
      %738 = vmatpush1.msra.mxu0 0.0
      %739 = vmatprep.subr.mxu0 0.0
      %740 = vmatpush1.msra.mxu0 0.0
      %741 = vmatprep.subr.mxu0 0.0
      %742 = vmatpush1.msra.mxu0 0.0
      %743 = vmatprep.subr.mxu0 0.0
      %744 = vmatpush1.msra.mxu0 0.0
      %745 = vmatprep.subr.mxu0 0.0
      %746 = vmatpush1.msra.mxu0 0.0
      %747 = vmatprep.subr.mxu0 0.0
      %748 = vmatpush1.msra.mxu0 0.0
      %749 = vmatprep.subr.mxu0 0.0
      %750 = vmatpush1.msra.mxu0 0.0
      %751 = vmatprep.subr.mxu0 0.0
      %752 = vmatpush1.msra.mxu0 0.0
      %753 = vmatprep.subr.mxu0 0.0
      %754 = vmatpush1.msra.mxu0 0.0
      %755 = vmatprep.subr.mxu0 0.0
      %756 = vmatpush1.msra.mxu0 0.0
      %757 = vmatprep.subr.mxu0 0.0
      %758 = vmatpush1.msra.mxu0 0.0
      %759 = vmatprep.subr.mxu0 0.0
      %760 = vmatpush1.msra.mxu0 0.0
      %761 = vmatprep.subr.mxu0 0.0
      %762 = vmatpush1.msra.mxu0 0.0
      %763 = vmatprep.subr.mxu0 0.0
      %764 = vmatpush1.msra.mxu0 0.0
      %765 = vmatprep.mubr.f32.mxu0 0.0
      %766 = vmatmul.mubr.f32.gmra.mrb[0].mxu0 %v700
      %v767 = vpop.f32.mrb[0].mxu0
      %v768 = vadd.f32 0.0, %v767
      %v769 = vpop.f32.mrb[0].mxu0
      %770 = vdwg.mxu0
      %v771 = vmul.f32 %v768, %v472
      %v772 = vadd.f32 %v771, 1e-05
      %v773 = vrsqrt.pop %v772
      %v775 = vsel %vm474, %v773, 0
      %777 = vmatprep.subr.mxu0 0.0
      %778 = vmatpush1.xpose.msra.mxu0 %v479
      %779 = vmatprep.subr.mxu0 0.0
      %780 = vmatpush1.xpose.msra.mxu0 %v482
      %781 = vmatprep.subr.mxu0 0.0
      %782 = vmatpush1.xpose.msra.mxu0 %v485
      %783 = vmatprep.subr.mxu0 0.0
      %784 = vmatpush1.xpose.msra.mxu0 %v488
      %785 = vmatprep.subr.mxu0 0.0
      %786 = vmatpush1.xpose.msra.mxu0 %v491
      %787 = vmatprep.subr.mxu0 0.0
      %788 = vmatpush1.xpose.msra.mxu0 %v494
      %789 = vmatprep.subr.mxu0 0.0
      %790 = vmatpush1.xpose.msra.mxu0 %v497
      %791 = vmatprep.subr.mxu0 0.0
      %792 = vmatpush1.xpose.msra.mxu0 %v500
      %793 = vmatprep.subr.mxu0 0.0
      %794 = vmatpush1.xpose.msra.mxu0 %v503
      %795 = vmatprep.subr.mxu0 0.0
      %796 = vmatpush1.xpose.msra.mxu0 %v506
      %797 = vmatprep.subr.mxu0 0.0
      %798 = vmatpush1.xpose.msra.mxu0 %v509
      %799 = vmatprep.subr.mxu0 0.0
      %800 = vmatpush1.xpose.msra.mxu0 %v512
      %801 = vmatprep.subr.mxu0 0.0
      %802 = vmatpush1.xpose.msra.mxu0 %v515
      %803 = vmatprep.subr.mxu0 0.0
      %804 = vmatpush1.xpose.msra.mxu0 %v518
      %805 = vmatprep.subr.mxu0 0.0
      %806 = vmatpush1.xpose.msra.mxu0 %v521
      %807 = vmatprep.subr.mxu0 0.0
      %808 = vmatpush1.xpose.msra.mxu0 %v524
      %809 = vmatprep.subr.mxu0 0.0
      %810 = vmatpush1.xpose.msra.mxu0 0.0
      %811 = vmatprep.subr.mxu0 0.0
      %812 = vmatpush1.xpose.msra.mxu0 0.0
      %813 = vmatprep.subr.mxu0 0.0
      %814 = vmatpush1.xpose.msra.mxu0 0.0
      %815 = vmatprep.subr.mxu0 0.0
      %816 = vmatpush1.xpose.msra.mxu0 0.0
      %817 = vmatprep.subr.mxu0 0.0
      %818 = vmatpush1.xpose.msra.mxu0 0.0
      %819 = vmatprep.subr.mxu0 0.0
      %820 = vmatpush1.xpose.msra.mxu0 0.0
      %821 = vmatprep.subr.mxu0 0.0
      %822 = vmatpush1.xpose.msra.mxu0 0.0
      %823 = vmatprep.subr.mxu0 0.0
      %824 = vmatpush1.xpose.msra.mxu0 0.0
      %825 = vmatprep.subr.mxu0 0.0
      %826 = vmatpush1.xpose.msra.mxu0 0.0
      %827 = vmatprep.subr.mxu0 0.0
      %828 = vmatpush1.xpose.msra.mxu0 0.0
      %829 = vmatprep.subr.mxu0 0.0
      %830 = vmatpush1.xpose.msra.mxu0 0.0
      %831 = vmatprep.subr.mxu0 0.0
      %832 = vmatpush1.xpose.msra.mxu0 0.0
      %833 = vmatprep.subr.mxu0 0.0
      %834 = vmatpush1.xpose.msra.mxu0 0.0
      %835 = vmatprep.subr.mxu0 0.0
      %836 = vmatpush1.xpose.msra.mxu0 0.0
      %837 = vmatprep.subr.mxu0 0.0
      %838 = vmatpush1.xpose.msra.mxu0 0.0
      %839 = vmatprep.subr.mxu0 0.0
      %840 = vmatpush1.xpose.msra.mxu0 0.0
      %841 = vmatprep.mubr.f32.mxu0 0.0
      %842 = vmatmul.mubr.f32.gmra.mrb[0].mxu0 %v775
      %v843 = vpop.f32.mrb[0].mxu0
      %v844 = vadd.f32 0.0, %v843
      %v845 = vpop.f32.mrb[0].mxu0
      %846 = vdwg.mxu0
      %v847 = vlaneseq
      %v848 = vshrl.u32 %v847, 7
      %v849 = vsub.s32 0, %v848
      %v850 = vrot.slane %v844, %v849
      %v851 = vmul.f32 %v600, %v850
      %v852 = vmul.f32 %v601, %v850
      %v853 = vmul.f32 %v602, %v850
      %v854 = vmul.f32 %v603, %v850
      %v855 = vmul.f32 %v604, %v850
      %v856 = vmul.f32 %v605, %v850
      %v857 = vmul.f32 %v606, %v850
      %v858 = vmul.f32 %v607, %v850
      %v859 = vmul.f32 %v608, %v850
      %v860 = vmul.f32 %v609, %v850
      %v861 = vmul.f32 %v610, %v850
      %v862 = vmul.f32 %v611, %v850
      %v863 = vmul.f32 %v612, %v850
      %v864 = vmul.f32 %v613, %v850
      %v865 = vmul.f32 %v614, %v850
      %v866 = vmul.f32 %v615, %v850
      %v867 = vmul.f32 %v616, %v850
      %v868 = vmul.f32 %v617, %v850
      %v869 = vmul.f32 %v618, %v850
      %v870 = vmul.f32 %v619, %v850
      %v871 = vmul.f32 %v620, %v850
      %v872 = vmul.f32 %v621, %v850
      %v873 = vmul.f32 %v622, %v850
      %v874 = vmul.f32 %v623, %v850
      %v875 = vmul.f32 %v624, %v850
      %v876 = vmul.f32 %v625, %v850
      %v877 = vmul.f32 %v626, %v850
      %v878 = vmul.f32 %v627, %v850
      %v879 = vmul.f32 %v628, %v850
      %v880 = vmul.f32 %v629, %v850
      %v881 = vmul.f32 %v630, %v850
      %v882 = vmul.f32 %v631, %v850
      %v883 = vpack.c.bf16 %v852, %v851
      %v884 = vpack.c.bf16 %v854, %v853
      %v885 = vpack.c.bf16 %v856, %v855
      %v886 = vpack.c.bf16 %v858, %v857
      %v887 = vpack.c.bf16 %v860, %v859
      %v888 = vpack.c.bf16 %v862, %v861
      %v889 = vpack.c.bf16 %v864, %v863
      %v890 = vpack.c.bf16 %v866, %v865
      %v891 = vpack.c.bf16 %v868, %v867
      %v892 = vpack.c.bf16 %v870, %v869
      %v893 = vpack.c.bf16 %v872, %v871
      %v894 = vpack.c.bf16 %v874, %v873
      %v895 = vpack.c.bf16 %v876, %v875
      %v896 = vpack.c.bf16 %v878, %v877
      %v897 = vpack.c.bf16 %v880, %v879
      %v898 = vpack.c.bf16 %v882, %v881
      %v899 = vld [vmem:[%s2] sm:$0xff]
      %v900 = vld [vmem:[%s2 + $0x8] sm:$0xf]
      %v901 = vld [vmem:[%s2 + $0xc] sm:$0xff]
      %v902 = vld [vmem:[%s2 + $0x14] sm:$0xf]
      %v903 = vld [vmem:[%s2 + $0x18] sm:$0xff]
      %v904 = vld [vmem:[%s2 + $0x20] sm:$0xf]
      %v905 = vld [vmem:[%s2 + $0x24] sm:$0xff]
      %v906 = vld [vmem:[%s2 + $0x2c] sm:$0xf]
      %v907 = vld [vmem:[%s2 + $0x30] sm:$0xff]
      %v908 = vld [vmem:[%s2 + $0x38] sm:$0xf]
      %v909 = vld [vmem:[%s2 + $0x3c] sm:$0xff]
      %v910 = vld [vmem:[%s2 + $0x44] sm:$0xf]
      %v911 = vld [vmem:[%s2 + $0x48] sm:$0xff]
      %v912 = vld [vmem:[%s2 + $0x50] sm:$0xf]
      %v913 = vld [vmem:[%s2 + $0x54] sm:$0xff]
      %v914 = vld [vmem:[%s2 + $0x5c] sm:$0xf]
      %v915 = vld [vmem:[%s2 + $0x60] sm:$0xff]
      %v916 = vld [vmem:[%s2 + $0x68] sm:$0xf]
      %v917 = vld [vmem:[%s2 + $0x6c] sm:$0xff]
      %v918 = vld [vmem:[%s2 + $0x74] sm:$0xf]
      %v919 = vld [vmem:[%s2 + $0x78] sm:$0xff]
      %v920 = vld [vmem:[%s2 + $0x80] sm:$0xf]
      %v921 = vld [vmem:[%s2 + $0x84] sm:$0xff]
      %v922 = vld [vmem:[%s2 + $0x8c] sm:$0xf]
      %v923 = vld [vmem:[%s2 + $0x90] sm:$0xff]
      %v924 = vld [vmem:[%s2 + $0x98] sm:$0xf]
      %v925 = vld [vmem:[%s2 + $0x9c] sm:$0xff]
      %v926 = vld [vmem:[%s2 + $0xa4] sm:$0xf]
      %v927 = vld [vmem:[%s2 + $0xa8] sm:$0xff]
      %v928 = vld [vmem:[%s2 + $0xb0] sm:$0xf]
      %v929 = vld [vmem:[%s2 + $0xb4] sm:$0xff]
      %v930 = vld [vmem:[%s2 + $0xbc] sm:$0xf]
      %v931 = vld [vmem:[%s3] sm:$0x7]
      %v933 = vlaneseq
      %v934 = vshrl.u32 %v933, 7
      %v935 = vsub.s32 0, %v934
      %v936 = vrot.slane %v931, %v935
      %v937 = vlaneseq
      %v938 = vshrl.u32 %v937, 7
      %v939 = vsub.s32 1, %v938
      %v940 = vrot.slane %v931, %v939
      %v941 = vlaneseq
      %v942 = vshrl.u32 %v941, 7
      %v943 = vsub.s32 2, %v942
      %v944 = vrot.slane %v931, %v943
      %v980 = vunpack.c.l.b16 %v899
      %v981 = vunpack.c.h.b16 %v899
      %v982 = vunpack.c.l.b16 %v900
      %v983 = vunpack.c.l.b16 %v901
      %v984 = vunpack.c.h.b16 %v901
      %v985 = vunpack.c.l.b16 %v902
      %v986 = vunpack.c.l.b16 %v903
      %v987 = vunpack.c.h.b16 %v903
      %v988 = vunpack.c.l.b16 %v904
      %v989 = vunpack.c.l.b16 %v905
      %v990 = vunpack.c.h.b16 %v905
      %v991 = vunpack.c.l.b16 %v906
      %v992 = vunpack.c.l.b16 %v907
      %v993 = vunpack.c.h.b16 %v907
      %v994 = vunpack.c.l.b16 %v908
      %v995 = vunpack.c.l.b16 %v909
      %v996 = vunpack.c.h.b16 %v909
      %v997 = vunpack.c.l.b16 %v910
      %v998 = vunpack.c.l.b16 %v911
      %v999 = vunpack.c.h.b16 %v911
      %v1000 = vunpack.c.l.b16 %v912
      %v1001 = vunpack.c.l.b16 %v913
      %v1002 = vunpack.c.h.b16 %v913
      %v1003 = vunpack.c.l.b16 %v914
      %v1004 = vunpack.c.l.b16 %v915
      %v1005 = vunpack.c.h.b16 %v915
      %v1006 = vunpack.c.l.b16 %v916
      %v1007 = vunpack.c.l.b16 %v917
      %v1008 = vunpack.c.h.b16 %v917
      %v1009 = vunpack.c.l.b16 %v918
      %v1010 = vunpack.c.l.b16 %v919
      %v1011 = vunpack.c.h.b16 %v919
      %v1012 = vunpack.c.l.b16 %v920
      %v1013 = vunpack.c.l.b16 %v921
      %v1014 = vunpack.c.h.b16 %v921
      %v1015 = vunpack.c.l.b16 %v922
      %v1016 = vunpack.c.l.b16 %v923
      %v1017 = vunpack.c.h.b16 %v923
      %v1018 = vunpack.c.l.b16 %v924
      %v1019 = vunpack.c.l.b16 %v925
      %v1020 = vunpack.c.h.b16 %v925
      %v1021 = vunpack.c.l.b16 %v926
      %v1022 = vunpack.c.l.b16 %v927
      %v1023 = vunpack.c.h.b16 %v927
      %v1024 = vunpack.c.l.b16 %v928
      %v1025 = vunpack.c.l.b16 %v929
      %v1026 = vunpack.c.h.b16 %v929
      %v1027 = vunpack.c.l.b16 %v930
      %v1028 = vpack.c.b16 %v983, %v980
      %v1029 = vpack.c.b16 %v984, %v981
      %v1030 = vpack.c.b16 %v985, %v982
      %v1031 = vpack.c.b16 %v989, %v986
      %v1032 = vpack.c.b16 %v990, %v987
      %v1033 = vpack.c.b16 %v991, %v988
      %v1034 = vpack.c.b16 %v995, %v992
      %v1035 = vpack.c.b16 %v996, %v993
      %v1036 = vpack.c.b16 %v997, %v994
      %v1037 = vpack.c.b16 %v1001, %v998
      %v1038 = vpack.c.b16 %v1002, %v999
      %v1039 = vpack.c.b16 %v1003, %v1000
      %v1040 = vpack.c.b16 %v1007, %v1004
      %v1041 = vpack.c.b16 %v1008, %v1005
      %v1042 = vpack.c.b16 %v1009, %v1006
      %v1043 = vpack.c.b16 %v1013, %v1010
      %v1044 = vpack.c.b16 %v1014, %v1011
      %v1045 = vpack.c.b16 %v1015, %v1012
      %v1046 = vpack.c.b16 %v1019, %v1016
      %v1047 = vpack.c.b16 %v1020, %v1017
      %v1048 = vpack.c.b16 %v1021, %v1018
      %v1049 = vpack.c.b16 %v1025, %v1022
      %v1050 = vpack.c.b16 %v1026, %v1023
      %v1051 = vpack.c.b16 %v1027, %v1024
      %1076 = vmatprep.subr.bf16.mxu0 %v1029
      %1077 = vmatpush1.bf16.msra.mxu0 %v1028
      %1078 = vmatprep.subr.bf16.mxu0 %v1032
      %1079 = vmatpush1.bf16.msra.mxu0 %v1031
      %1080 = vmatprep.subr.bf16.mxu0 %v1035
      %1081 = vmatpush1.bf16.msra.mxu0 %v1034
      %1082 = vmatprep.subr.bf16.mxu0 %v1038
      %1083 = vmatpush1.bf16.msra.mxu0 %v1037
      %1084 = vmatprep.subr.bf16.mxu0 %v1041
      %1085 = vmatpush1.bf16.msra.mxu0 %v1040
      %1086 = vmatprep.subr.bf16.mxu0 %v1044
      %1087 = vmatpush1.bf16.msra.mxu0 %v1043
      %1088 = vmatprep.subr.bf16.mxu0 %v1047
      %1089 = vmatpush1.bf16.msra.mxu0 %v1046
      %1090 = vmatprep.subr.bf16.mxu0 %v1050
      %1091 = vmatpush1.bf16.msra.mxu0 %v1049
      %1092 = vmatprep.subr.bf16.mxu0 0
      %1093 = vmatpush1.bf16.msra.mxu0 0
      %1094 = vmatprep.subr.bf16.mxu0 0
      %1095 = vmatpush1.bf16.msra.mxu0 0
      %1096 = vmatprep.subr.bf16.mxu0 0
      %1097 = vmatpush1.bf16.msra.mxu0 0
      %1098 = vmatprep.subr.bf16.mxu0 0
      %1099 = vmatpush1.bf16.msra.mxu0 0
      %1100 = vmatprep.subr.bf16.mxu0 0
      %1101 = vmatpush1.bf16.msra.mxu0 0
      %1102 = vmatprep.subr.bf16.mxu0 0
      %1103 = vmatpush1.bf16.msra.mxu0 0
      %1104 = vmatprep.subr.bf16.mxu0 0
      %1105 = vmatpush1.bf16.msra.mxu0 0
      %1106 = vmatprep.subr.bf16.mxu0 0
      %1107 = vmatpush1.bf16.msra.mxu0 0
      %1108 = vmatprep.mubr.bf16.mxu0 0
      %1109 = vmatmul.mubr.bf16.gmra.mrb[0].mxu0 %v883
      %v1110 = vpop.f32.mrb[0].mxu0
      %v1111 = vadd.f32 %v936, %v1110
      %v1112 = vpop.f32.mrb[0].mxu0
      %v1113 = vadd.f32 %v940, %v1112
      %v1114 = vpop.f32.mrb[0].mxu0
      %v1115 = vadd.f32 %v936, %v1114
      %v1116 = vpop.f32.mrb[0].mxu0
      %v1117 = vadd.f32 %v940, %v1116
      %1118 = vmatprep.mubr.bf16.mxu0 0
      %1119 = vmatmul.mubr.bf16.gmra.mrb[0].mxu0 %v884
      %v1120 = vpop.f32.mrb[0].mxu0
      %v1121 = vadd.f32 %v936, %v1120
      %v1122 = vpop.f32.mrb[0].mxu0
      %v1123 = vadd.f32 %v940, %v1122
      %v1124 = vpop.f32.mrb[0].mxu0
      %v1125 = vadd.f32 %v936, %v1124
      %v1126 = vpop.f32.mrb[0].mxu0
      %v1127 = vadd.f32 %v940, %v1126
      %1128 = vmatprep.mubr.bf16.mxu0 0
      %1129 = vmatmul.mubr.bf16.gmra.mrb[0].mxu0 %v885
      %v1130 = vpop.f32.mrb[0].mxu0
      %v1131 = vadd.f32 %v936, %v1130
      %v1132 = vpop.f32.mrb[0].mxu0
      %v1133 = vadd.f32 %v940, %v1132
      %v1134 = vpop.f32.mrb[0].mxu0
      %v1135 = vadd.f32 %v936, %v1134
      %v1136 = vpop.f32.mrb[0].mxu0
      %v1137 = vadd.f32 %v940, %v1136
      %1138 = vmatprep.mubr.bf16.mxu0 0
      %1139 = vmatmul.mubr.bf16.gmra.mrb[0].mxu0 %v886
      %v1140 = vpop.f32.mrb[0].mxu0
      %v1141 = vadd.f32 %v936, %v1140
      %v1142 = vpop.f32.mrb[0].mxu0
      %v1143 = vadd.f32 %v940, %v1142
      %v1144 = vpop.f32.mrb[0].mxu0
      %v1145 = vadd.f32 %v936, %v1144
      %v1146 = vpop.f32.mrb[0].mxu0
      %v1147 = vadd.f32 %v940, %v1146
      %1148 = vmatprep.mubr.bf16.mxu0 0
      %1149 = vmatmul.mubr.bf16.gmra.mrb[0].mxu0 %v887
      %v1150 = vpop.f32.mrb[0].mxu0
      %v1151 = vadd.f32 %v936, %v1150
      %v1152 = vpop.f32.mrb[0].mxu0
      %v1153 = vadd.f32 %v940, %v1152
      %v1154 = vpop.f32.mrb[0].mxu0
      %v1155 = vadd.f32 %v936, %v1154
      %v1156 = vpop.f32.mrb[0].mxu0
      %v1157 = vadd.f32 %v940, %v1156
      %1158 = vmatprep.mubr.bf16.mxu0 0
      %1159 = vmatmul.mubr.bf16.gmra.mrb[0].mxu0 %v888
      %v1160 = vpop.f32.mrb[0].mxu0
      %v1161 = vadd.f32 %v936, %v1160
      %v1162 = vpop.f32.mrb[0].mxu0
      %v1163 = vadd.f32 %v940, %v1162
      %v1164 = vpop.f32.mrb[0].mxu0
      %v1165 = vadd.f32 %v936, %v1164
      %v1166 = vpop.f32.mrb[0].mxu0
      %v1167 = vadd.f32 %v940, %v1166
      %1168 = vmatprep.mubr.bf16.mxu0 0
      %1169 = vmatmul.mubr.bf16.gmra.mrb[0].mxu0 %v889
      %v1170 = vpop.f32.mrb[0].mxu0
      %v1171 = vadd.f32 %v936, %v1170
      %v1172 = vpop.f32.mrb[0].mxu0
      %v1173 = vadd.f32 %v940, %v1172
      %v1174 = vpop.f32.mrb[0].mxu0
      %v1175 = vadd.f32 %v936, %v1174
      %v1176 = vpop.f32.mrb[0].mxu0
      %v1177 = vadd.f32 %v940, %v1176
      %1178 = vmatprep.mubr.bf16.mxu0 0
      %1179 = vmatmul.mubr.bf16.gmra.mrb[0].mxu0 %v890
      %v1180 = vpop.f32.mrb[0].mxu0
      %v1181 = vadd.f32 %v936, %v1180
      %v1182 = vpop.f32.mrb[0].mxu0
      %v1183 = vadd.f32 %v940, %v1182
      %v1184 = vpop.f32.mrb[0].mxu0
      %v1185 = vadd.f32 %v936, %v1184
      %v1186 = vpop.f32.mrb[0].mxu0
      %v1187 = vadd.f32 %v940, %v1186
      %1188 = vmatprep.mubr.bf16.mxu0 0
      %1189 = vmatmul.mubr.bf16.gmra.mrb[0].mxu0 %v891
      %v1190 = vpop.f32.mrb[0].mxu0
      %v1191 = vadd.f32 %v936, %v1190
      %v1192 = vpop.f32.mrb[0].mxu0
      %v1193 = vadd.f32 %v940, %v1192
      %v1194 = vpop.f32.mrb[0].mxu0
      %v1195 = vadd.f32 %v936, %v1194
      %v1196 = vpop.f32.mrb[0].mxu0
      %v1197 = vadd.f32 %v940, %v1196
      %1198 = vmatprep.mubr.bf16.mxu0 0
      %1199 = vmatmul.mubr.bf16.gmra.mrb[0].mxu0 %v892
      %v1200 = vpop.f32.mrb[0].mxu0
      %v1201 = vadd.f32 %v936, %v1200
      %v1202 = vpop.f32.mrb[0].mxu0
      %v1203 = vadd.f32 %v940, %v1202
      %v1204 = vpop.f32.mrb[0].mxu0
      %v1205 = vadd.f32 %v936, %v1204
      %v1206 = vpop.f32.mrb[0].mxu0
      %v1207 = vadd.f32 %v940, %v1206
      %1208 = vmatprep.mubr.bf16.mxu0 0
      %1209 = vmatmul.mubr.bf16.gmra.mrb[0].mxu0 %v893
      %v1210 = vpop.f32.mrb[0].mxu0
      %v1211 = vadd.f32 %v936, %v1210
      %v1212 = vpop.f32.mrb[0].mxu0
      %v1213 = vadd.f32 %v940, %v1212
      %v1214 = vpop.f32.mrb[0].mxu0
      %v1215 = vadd.f32 %v936, %v1214
      %v1216 = vpop.f32.mrb[0].mxu0
      %v1217 = vadd.f32 %v940, %v1216
      %1218 = vmatprep.mubr.bf16.mxu0 0
      %1219 = vmatmul.mubr.bf16.gmra.mrb[0].mxu0 %v894
      %v1220 = vpop.f32.mrb[0].mxu0
      %v1221 = vadd.f32 %v936, %v1220
      %v1222 = vpop.f32.mrb[0].mxu0
      %v1223 = vadd.f32 %v940, %v1222
      %v1224 = vpop.f32.mrb[0].mxu0
      %v1225 = vadd.f32 %v936, %v1224
      %v1226 = vpop.f32.mrb[0].mxu0
      %v1227 = vadd.f32 %v940, %v1226
      %1228 = vmatprep.mubr.bf16.mxu0 0
      %1229 = vmatmul.mubr.bf16.gmra.mrb[0].mxu0 %v895
      %v1230 = vpop.f32.mrb[0].mxu0
      %v1231 = vadd.f32 %v936, %v1230
      %v1232 = vpop.f32.mrb[0].mxu0
      %v1233 = vadd.f32 %v940, %v1232
      %v1234 = vpop.f32.mrb[0].mxu0
      %v1235 = vadd.f32 %v936, %v1234
      %v1236 = vpop.f32.mrb[0].mxu0
      %v1237 = vadd.f32 %v940, %v1236
      %1238 = vmatprep.mubr.bf16.mxu0 0
      %1239 = vmatmul.mubr.bf16.gmra.mrb[0].mxu0 %v896
      %v1240 = vpop.f32.mrb[0].mxu0
      %v1241 = vadd.f32 %v936, %v1240
      %v1242 = vpop.f32.mrb[0].mxu0
      %v1243 = vadd.f32 %v940, %v1242
      %v1244 = vpop.f32.mrb[0].mxu0
      %v1245 = vadd.f32 %v936, %v1244
      %v1246 = vpop.f32.mrb[0].mxu0
      %v1247 = vadd.f32 %v940, %v1246
      %1248 = vmatprep.mubr.bf16.mxu0 0
      %1249 = vmatmul.mubr.bf16.gmra.mrb[0].mxu0 %v897
      %v1250 = vpop.f32.mrb[0].mxu0
      %v1251 = vadd.f32 %v936, %v1250
      %v1252 = vpop.f32.mrb[0].mxu0
      %v1253 = vadd.f32 %v940, %v1252
      %v1254 = vpop.f32.mrb[0].mxu0
      %v1255 = vadd.f32 %v936, %v1254
      %v1256 = vpop.f32.mrb[0].mxu0
      %v1257 = vadd.f32 %v940, %v1256
      %1258 = vmatprep.mubr.bf16.mxu0 0
      %1259 = vmatmul.mubr.bf16.gmra.mrb[0].mxu0 %v898
      %v1260 = vpop.f32.mrb[0].mxu0
      %v1261 = vadd.f32 %v936, %v1260
      %v1262 = vpop.f32.mrb[0].mxu0
      %v1263 = vadd.f32 %v940, %v1262
      %v1264 = vpop.f32.mrb[0].mxu0
      %v1265 = vadd.f32 %v936, %v1264
      %v1266 = vpop.f32.mrb[0].mxu0
      %v1267 = vadd.f32 %v940, %v1266
      %1268 = vdwg.mxu0
      %1269 = vmatprep.subr.bf16.mxu0 0
      %1270 = vmatpush1.bf16.msra.mxu0 %v1030
      %1271 = vmatprep.subr.bf16.mxu0 0
      %1272 = vmatpush1.bf16.msra.mxu0 %v1033
      %1273 = vmatprep.subr.bf16.mxu0 0
      %1274 = vmatpush1.bf16.msra.mxu0 %v1036
      %1275 = vmatprep.subr.bf16.mxu0 0
      %1276 = vmatpush1.bf16.msra.mxu0 %v1039
      %1277 = vmatprep.subr.bf16.mxu0 0
      %1278 = vmatpush1.bf16.msra.mxu0 %v1042
      %1279 = vmatprep.subr.bf16.mxu0 0
      %1280 = vmatpush1.bf16.msra.mxu0 %v1045
      %1281 = vmatprep.subr.bf16.mxu0 0
      %1282 = vmatpush1.bf16.msra.mxu0 %v1048
      %1283 = vmatprep.subr.bf16.mxu0 0
      %1284 = vmatpush1.bf16.msra.mxu0 %v1051
      %1285 = vmatprep.subr.bf16.mxu0 0
      %1286 = vmatpush1.bf16.msra.mxu0 0
      %1287 = vmatprep.subr.bf16.mxu0 0
      %1288 = vmatpush1.bf16.msra.mxu0 0
      %1289 = vmatprep.subr.bf16.mxu0 0
      %1290 = vmatpush1.bf16.msra.mxu0 0
      %1291 = vmatprep.subr.bf16.mxu0 0
      %1292 = vmatpush1.bf16.msra.mxu0 0
      %1293 = vmatprep.subr.bf16.mxu0 0
      %1294 = vmatpush1.bf16.msra.mxu0 0
      %1295 = vmatprep.subr.bf16.mxu0 0
      %1296 = vmatpush1.bf16.msra.mxu0 0
      %1297 = vmatprep.subr.bf16.mxu0 0
      %1298 = vmatpush1.bf16.msra.mxu0 0
      %1299 = vmatprep.subr.bf16.mxu0 0
      %1300 = vmatpush1.bf16.msra.mxu0 0
      %1301 = vmatprep.mubr.bf16.mxu0 0
      %1302 = vmatmul.mubr.bf16.gmra.mrb[0].mxu0 %v883
      %v1303 = vpop.f32.mrb[0].mxu0
      %v1304 = vadd.f32 %v944, %v1303
      %v1305 = vpop.f32.mrb[0].mxu0
      %v1306 = vpop.f32.mrb[0].mxu0
      %v1307 = vadd.f32 %v944, %v1306
      %v1308 = vpop.f32.mrb[0].mxu0
      %1309 = vmatprep.mubr.bf16.mxu0 0
      %1310 = vmatmul.mubr.bf16.gmra.mrb[0].mxu0 %v884
      %v1311 = vpop.f32.mrb[0].mxu0
      %v1312 = vadd.f32 %v944, %v1311
      %v1313 = vpop.f32.mrb[0].mxu0
      %v1314 = vpop.f32.mrb[0].mxu0
      %v1315 = vadd.f32 %v944, %v1314
      %v1316 = vpop.f32.mrb[0].mxu0
      %1317 = vmatprep.mubr.bf16.mxu0 0
      %1318 = vmatmul.mubr.bf16.gmra.mrb[0].mxu0 %v885
      %v1319 = vpop.f32.mrb[0].mxu0
      %v1320 = vadd.f32 %v944, %v1319
      %v1321 = vpop.f32.mrb[0].mxu0
      %v1322 = vpop.f32.mrb[0].mxu0
      %v1323 = vadd.f32 %v944, %v1322
      %v1324 = vpop.f32.mrb[0].mxu0
      %1325 = vmatprep.mubr.bf16.mxu0 0
      %1326 = vmatmul.mubr.bf16.gmra.mrb[0].mxu0 %v886
      %v1327 = vpop.f32.mrb[0].mxu0
      %v1328 = vadd.f32 %v944, %v1327
      %v1329 = vpop.f32.mrb[0].mxu0
      %v1330 = vpop.f32.mrb[0].mxu0
      %v1331 = vadd.f32 %v944, %v1330
      %v1332 = vpop.f32.mrb[0].mxu0
      %1333 = vmatprep.mubr.bf16.mxu0 0
      %1334 = vmatmul.mubr.bf16.gmra.mrb[0].mxu0 %v887
      %v1335 = vpop.f32.mrb[0].mxu0
      %v1336 = vadd.f32 %v944, %v1335
      %v1337 = vpop.f32.mrb[0].mxu0
      %v1338 = vpop.f32.mrb[0].mxu0
      %v1339 = vadd.f32 %v944, %v1338
      %v1340 = vpop.f32.mrb[0].mxu0
      %1341 = vmatprep.mubr.bf16.mxu0 0
      %1342 = vmatmul.mubr.bf16.gmra.mrb[0].mxu0 %v888
      %v1343 = vpop.f32.mrb[0].mxu0
      %v1344 = vadd.f32 %v944, %v1343
      %v1345 = vpop.f32.mrb[0].mxu0
      %v1346 = vpop.f32.mrb[0].mxu0
      %v1347 = vadd.f32 %v944, %v1346
      %v1348 = vpop.f32.mrb[0].mxu0
      %1349 = vmatprep.mubr.bf16.mxu0 0
      %1350 = vmatmul.mubr.bf16.gmra.mrb[0].mxu0 %v889
      %v1351 = vpop.f32.mrb[0].mxu0
      %v1352 = vadd.f32 %v944, %v1351
      %v1353 = vpop.f32.mrb[0].mxu0
      %v1354 = vpop.f32.mrb[0].mxu0
      %v1355 = vadd.f32 %v944, %v1354
      %v1356 = vpop.f32.mrb[0].mxu0
      %1357 = vmatprep.mubr.bf16.mxu0 0
      %1358 = vmatmul.mubr.bf16.gmra.mrb[0].mxu0 %v890
      %v1359 = vpop.f32.mrb[0].mxu0
      %v1360 = vadd.f32 %v944, %v1359
      %v1361 = vpop.f32.mrb[0].mxu0
      %v1362 = vpop.f32.mrb[0].mxu0
      %v1363 = vadd.f32 %v944, %v1362
      %v1364 = vpop.f32.mrb[0].mxu0
      %1365 = vmatprep.mubr.bf16.mxu0 0
      %1366 = vmatmul.mubr.bf16.gmra.mrb[0].mxu0 %v891
      %v1367 = vpop.f32.mrb[0].mxu0
      %v1368 = vadd.f32 %v944, %v1367
      %v1369 = vpop.f32.mrb[0].mxu0
      %v1370 = vpop.f32.mrb[0].mxu0
      %v1371 = vadd.f32 %v944, %v1370
      %v1372 = vpop.f32.mrb[0].mxu0
      %1373 = vmatprep.mubr.bf16.mxu0 0
      %1374 = vmatmul.mubr.bf16.gmra.mrb[0].mxu0 %v892
      %v1375 = vpop.f32.mrb[0].mxu0
      %v1376 = vadd.f32 %v944, %v1375
      %v1377 = vpop.f32.mrb[0].mxu0
      %v1378 = vpop.f32.mrb[0].mxu0
      %v1379 = vadd.f32 %v944, %v1378
      %v1380 = vpop.f32.mrb[0].mxu0
      %1381 = vmatprep.mubr.bf16.mxu0 0
      %1382 = vmatmul.mubr.bf16.gmra.mrb[0].mxu0 %v893
      %v1383 = vpop.f32.mrb[0].mxu0
      %v1384 = vadd.f32 %v944, %v1383
      %v1385 = vpop.f32.mrb[0].mxu0
      %v1386 = vpop.f32.mrb[0].mxu0
      %v1387 = vadd.f32 %v944, %v1386
      %v1388 = vpop.f32.mrb[0].mxu0
      %1389 = vmatprep.mubr.bf16.mxu0 0
      %1390 = vmatmul.mubr.bf16.gmra.mrb[0].mxu0 %v894
      %v1391 = vpop.f32.mrb[0].mxu0
      %v1392 = vadd.f32 %v944, %v1391
      %v1393 = vpop.f32.mrb[0].mxu0
      %v1394 = vpop.f32.mrb[0].mxu0
      %v1395 = vadd.f32 %v944, %v1394
      %v1396 = vpop.f32.mrb[0].mxu0
      %1397 = vmatprep.mubr.bf16.mxu0 0
      %1398 = vmatmul.mubr.bf16.gmra.mrb[0].mxu0 %v895
      %v1399 = vpop.f32.mrb[0].mxu0
      %v1400 = vadd.f32 %v944, %v1399
      %v1401 = vpop.f32.mrb[0].mxu0
      %v1402 = vpop.f32.mrb[0].mxu0
      %v1403 = vadd.f32 %v944, %v1402
      %v1404 = vpop.f32.mrb[0].mxu0
      %1405 = vmatprep.mubr.bf16.mxu0 0
      %1406 = vmatmul.mubr.bf16.gmra.mrb[0].mxu0 %v896
      %v1407 = vpop.f32.mrb[0].mxu0
      %v1408 = vadd.f32 %v944, %v1407
      %v1409 = vpop.f32.mrb[0].mxu0
      %v1410 = vpop.f32.mrb[0].mxu0
      %v1411 = vadd.f32 %v944, %v1410
      %v1412 = vpop.f32.mrb[0].mxu0
      %1413 = vmatprep.mubr.bf16.mxu0 0
      %1414 = vmatmul.mubr.bf16.gmra.mrb[0].mxu0 %v897
      %v1415 = vpop.f32.mrb[0].mxu0
      %v1416 = vadd.f32 %v944, %v1415
      %v1417 = vpop.f32.mrb[0].mxu0
      %v1418 = vpop.f32.mrb[0].mxu0
      %v1419 = vadd.f32 %v944, %v1418
      %v1420 = vpop.f32.mrb[0].mxu0
      %1421 = vmatprep.mubr.bf16.mxu0 0
      %1422 = vmatmul.mubr.bf16.gmra.mrb[0].mxu0 %v898
      %v1423 = vpop.f32.mrb[0].mxu0
      %v1424 = vadd.f32 %v944, %v1423
      %v1425 = vpop.f32.mrb[0].mxu0
      %v1426 = vpop.f32.mrb[0].mxu0
      %v1427 = vadd.f32 %v944, %v1426
      %v1428 = vpop.f32.mrb[0].mxu0
      %1429 = vdwg.mxu0
      %v1430 = vpack.c.bf16 %v1115, %v1111
      %v1431 = vpack.c.bf16 %v1125, %v1121
      %v1432 = vpack.c.bf16 %v1135, %v1131
      %v1433 = vpack.c.bf16 %v1145, %v1141
      %v1434 = vpack.c.bf16 %v1155, %v1151
      %v1435 = vpack.c.bf16 %v1165, %v1161
      %v1436 = vpack.c.bf16 %v1175, %v1171
      %v1437 = vpack.c.bf16 %v1185, %v1181
      %v1438 = vpack.c.bf16 %v1195, %v1191
      %v1439 = vpack.c.bf16 %v1205, %v1201
      %v1440 = vpack.c.bf16 %v1215, %v1211
      %v1441 = vpack.c.bf16 %v1225, %v1221
      %v1442 = vpack.c.bf16 %v1235, %v1231
      %v1443 = vpack.c.bf16 %v1245, %v1241
      %v1444 = vpack.c.bf16 %v1255, %v1251
      %v1445 = vpack.c.bf16 %v1265, %v1261
      %1446 = vxpose.xlu0.b32.start [1/16] %v1113, 128
      %1447 = vxpose.xlu0.b32.cont [2/16] %v1117, 128
      %1448 = vxpose.xlu0.b32.cont [3/16] %v1123, 128
      %1449 = vxpose.xlu0.b32.cont [4/16] %v1127, 128
      %1450 = vxpose.xlu0.b32.cont [5/16] %v1133, 128
      %1451 = vxpose.xlu0.b32.cont [6/16] %v1137, 128
      %1452 = vxpose.xlu0.b32.cont [7/16] %v1143, 128
      %1453 = vxpose.xlu0.b32.cont [8/16] %v1147, 128
      %1454 = vxpose.xlu0.b32.cont [9/16] %v1153, 128
      %1455 = vxpose.xlu0.b32.cont [10/16] %v1157, 128
      %1456 = vxpose.xlu0.b32.cont [11/16] %v1163, 128
      %1457 = vxpose.xlu0.b32.cont [12/16] %v1167, 128
      %1458 = vxpose.xlu0.b32.cont [13/16] %v1173, 128
      %1459 = vxpose.xlu0.b32.cont [14/16] %v1177, 128
      %1460 = vxpose.xlu0.b32.cont [15/16] %v1183, 128
      %1461 = vxpose.xlu0.b32.end [16/16] %v1187, 128
      %v1462 = vpop.trf.xlu0
      %v1463 = vpop.trf.xlu0
      %v1464 = vpop.trf.xlu0
      %v1465 = vpop.trf.xlu0
      %v1466 = vpop.trf.xlu0
      %v1467 = vpop.trf.xlu0
      %v1468 = vpop.trf.xlu0
      %v1469 = vpop.trf.xlu0
      %v1470 = vpop.trf.xlu0
      %v1471 = vpop.trf.xlu0
      %v1472 = vpop.trf.xlu0
      %v1473 = vpop.trf.xlu0
      %v1474 = vpop.trf.xlu0
      %v1475 = vpop.trf.xlu0
      %v1476 = vpop.trf.xlu0
      %v1477 = vpop.trf.xlu0
      %1478 = vxpose.xlu0.b32.start [1/16] %v1193, 128
      %1479 = vxpose.xlu0.b32.cont [2/16] %v1197, 128
      %1480 = vxpose.xlu0.b32.cont [3/16] %v1203, 128
      %1481 = vxpose.xlu0.b32.cont [4/16] %v1207, 128
      %1482 = vxpose.xlu0.b32.cont [5/16] %v1213, 128
      %1483 = vxpose.xlu0.b32.cont [6/16] %v1217, 128
      %1484 = vxpose.xlu0.b32.cont [7/16] %v1223, 128
      %1485 = vxpose.xlu0.b32.cont [8/16] %v1227, 128
      %1486 = vxpose.xlu0.b32.cont [9/16] %v1233, 128
      %1487 = vxpose.xlu0.b32.cont [10/16] %v1237, 128
      %1488 = vxpose.xlu0.b32.cont [11/16] %v1243, 128
      %1489 = vxpose.xlu0.b32.cont [12/16] %v1247, 128
      %1490 = vxpose.xlu0.b32.cont [13/16] %v1253, 128
      %1491 = vxpose.xlu0.b32.cont [14/16] %v1257, 128
      %1492 = vxpose.xlu0.b32.cont [15/16] %v1263, 128
      %1493 = vxpose.xlu0.b32.end [16/16] %v1267, 128
      %v1494 = vpop.trf.xlu0
      %v1495 = vpop.trf.xlu0
      %v1496 = vpop.trf.xlu0
      %v1497 = vpop.trf.xlu0
      %v1498 = vpop.trf.xlu0
      %v1499 = vpop.trf.xlu0
      %v1500 = vpop.trf.xlu0
      %v1501 = vpop.trf.xlu0
      %v1502 = vpop.trf.xlu0
      %v1503 = vpop.trf.xlu0
      %v1504 = vpop.trf.xlu0
      %v1505 = vpop.trf.xlu0
      %v1506 = vpop.trf.xlu0
      %v1507 = vpop.trf.xlu0
      %v1508 = vpop.trf.xlu0
      %v1509 = vpop.trf.xlu0
      %v1510 = vpack.c.bf16 %v1463, %v1462
      %v1511 = vpack.c.bf16 %v1495, %v1494
      %v1512 = vpack.c.bf16 %v1465, %v1464
      %v1513 = vpack.c.bf16 %v1497, %v1496
      %v1514 = vpack.c.bf16 %v1467, %v1466
      %v1515 = vpack.c.bf16 %v1499, %v1498
      %v1516 = vpack.c.bf16 %v1469, %v1468
      %v1517 = vpack.c.bf16 %v1501, %v1500
      %v1518 = vpack.c.bf16 %v1471, %v1470
      %v1519 = vpack.c.bf16 %v1503, %v1502
      %v1520 = vpack.c.bf16 %v1473, %v1472
      %v1521 = vpack.c.bf16 %v1505, %v1504
      %v1522 = vpack.c.bf16 %v1475, %v1474
      %v1523 = vpack.c.bf16 %v1507, %v1506
      %v1524 = vpack.c.bf16 %v1477, %v1476
      %v1525 = vpack.c.bf16 %v1509, %v1508
      %v1526 = vpack.c.bf16 %v1307, %v1304
      %v1527 = vpack.c.bf16 %v1315, %v1312
      %v1528 = vpack.c.bf16 %v1323, %v1320
      %v1529 = vpack.c.bf16 %v1331, %v1328
      %v1530 = vpack.c.bf16 %v1339, %v1336
      %v1531 = vpack.c.bf16 %v1347, %v1344
      %v1532 = vpack.c.bf16 %v1355, %v1352
      %v1533 = vpack.c.bf16 %v1363, %v1360
      %v1534 = vpack.c.bf16 %v1371, %v1368
      %v1535 = vpack.c.bf16 %v1379, %v1376
      %v1536 = vpack.c.bf16 %v1387, %v1384
      %v1537 = vpack.c.bf16 %v1395, %v1392
      %v1538 = vpack.c.bf16 %v1403, %v1400
      %v1539 = vpack.c.bf16 %v1411, %v1408
      %v1540 = vpack.c.bf16 %v1419, %v1416
      %v1541 = vpack.c.bf16 %v1427, %v1424
      %v1542 = vld [vmem:[%s5] sm:$0x1]
      %v1544 = vlaneseq
      %v1545 = vshrl.u32 %v1544, 7
      %v1546 = vsub.s32 0, %v1545
      %v1547 = vrot.slane %v1542, %v1546
      %v1549 = vadd.f32 %v301, %v1547
      %v1550 = vadd.f32 %v302, %v1547
      %v1551 = vadd.f32 %v303, %v1547
      %v1552 = vadd.f32 %v304, %v1547
      %v1553 = vadd.f32 %v305, %v1547
      %v1554 = vadd.f32 %v306, %v1547
      %v1555 = vadd.f32 %v307, %v1547
      %v1556 = vadd.f32 %v308, %v1547
      %v1557 = vadd.f32 %v309, %v1547
      %v1558 = vadd.f32 %v310, %v1547
      %v1559 = vadd.f32 %v311, %v1547
      %v1560 = vadd.f32 %v312, %v1547
      %v1561 = vadd.f32 %v313, %v1547
      %v1562 = vadd.f32 %v314, %v1547
      %v1563 = vadd.f32 %v315, %v1547
      %v1564 = vadd.f32 %v316, %v1547
      %v1565 = vadd.f32 %v333, %v1547
      %v1566 = vadd.f32 %v334, %v1547
      %v1567 = vadd.f32 %v335, %v1547
      %v1568 = vadd.f32 %v336, %v1547
      %v1569 = vadd.f32 %v337, %v1547
      %v1570 = vadd.f32 %v338, %v1547
      %v1571 = vadd.f32 %v339, %v1547
      %v1572 = vadd.f32 %v340, %v1547
      %v1573 = vadd.f32 %v341, %v1547
      %v1574 = vadd.f32 %v342, %v1547
      %v1575 = vadd.f32 %v343, %v1547
      %v1576 = vadd.f32 %v344, %v1547
      %v1577 = vadd.f32 %v345, %v1547
      %v1578 = vadd.f32 %v346, %v1547
      %v1579 = vadd.f32 %v347, %v1547
      %v1580 = vadd.f32 %v348, %v1547
      %1581 = vst [vmem:[#allocation2] sm:$0xff] %v1549
      %1582 = vst [vmem:[#allocation2 + $0x8] sm:$0xff] %v1550
      %1583 = vst [vmem:[#allocation2 + $0x10] sm:$0xff] %v1551
      %1584 = vst [vmem:[#allocation2 + $0x18] sm:$0xff] %v1552
      %1585 = vst [vmem:[#allocation2 + $0x20] sm:$0xff] %v1553
      %1586 = vst [vmem:[#allocation2 + $0x28] sm:$0xff] %v1554
      %1587 = vst [vmem:[#allocation2 + $0x30] sm:$0xff] %v1555
      %1588 = vst [vmem:[#allocation2 + $0x38] sm:$0xff] %v1556
      %1589 = vst [vmem:[#allocation2 + $0x40] sm:$0xff] %v1557
      %1590 = vst [vmem:[#allocation2 + $0x48] sm:$0xff] %v1558
      %1591 = vst [vmem:[#allocation2 + $0x50] sm:$0xff] %v1559
      %1592 = vst [vmem:[#allocation2 + $0x58] sm:$0xff] %v1560
      %1593 = vst [vmem:[#allocation2 + $0x60] sm:$0xff] %v1561
      %1594 = vst [vmem:[#allocation2 + $0x68] sm:$0xff] %v1562
      %1595 = vst [vmem:[#allocation2 + $0x70] sm:$0xff] %v1563
      %1596 = vst [vmem:[#allocation2 + $0x78] sm:$0xff] %v1564
      %1597 = vst [vmem:[#allocation2 + $0x80] sm:$0xff] %v1565
      %1598 = vst [vmem:[#allocation2 + $0x88] sm:$0xff] %v1566
      %1599 = vst [vmem:[#allocation2 + $0x90] sm:$0xff] %v1567
      %1600 = vst [vmem:[#allocation2 + $0x98] sm:$0xff] %v1568
      %1601 = vst [vmem:[#allocation2 + $0xa0] sm:$0xff] %v1569
      %1602 = vst [vmem:[#allocation2 + $0xa8] sm:$0xff] %v1570
      %1603 = vst [vmem:[#allocation2 + $0xb0] sm:$0xff] %v1571
      %1604 = vst [vmem:[#allocation2 + $0xb8] sm:$0xff] %v1572
      %1605 = vst [vmem:[#allocation2 + $0xc0] sm:$0xff] %v1573
      %1606 = vst [vmem:[#allocation2 + $0xc8] sm:$0xff] %v1574
      %1607 = vst [vmem:[#allocation2 + $0xd0] sm:$0xff] %v1575
      %1608 = vst [vmem:[#allocation2 + $0xd8] sm:$0xff] %v1576
      %1609 = vst [vmem:[#allocation2 + $0xe0] sm:$0xff] %v1577
      %1610 = vst [vmem:[#allocation2 + $0xe8] sm:$0xff] %v1578
      %1611 = vst [vmem:[#allocation2 + $0xf0] sm:$0xff] %v1579
      %1612 = vst [vmem:[#allocation2 + $0xf8] sm:$0xff] %v1580
      %vm1613 = vcmask 261120
      %v1615 = vsel %vm1613, %v1430, 0
      %v1618 = vsel %vm1613, %v1431, 0
      %v1621 = vsel %vm1613, %v1432, 0
      %v1624 = vsel %vm1613, %v1433, 0
      %v1627 = vsel %vm1613, %v1434, 0
      %v1630 = vsel %vm1613, %v1435, 0
      %v1633 = vsel %vm1613, %v1436, 0
      %v1636 = vsel %vm1613, %v1437, 0
      %v1639 = vsel %vm1613, %v1438, 0
      %v1642 = vsel %vm1613, %v1439, 0
      %v1645 = vsel %vm1613, %v1440, 0
      %v1648 = vsel %vm1613, %v1441, 0
      %v1651 = vsel %vm1613, %v1442, 0
      %v1654 = vsel %vm1613, %v1443, 0
      %v1657 = vsel %vm1613, %v1444, 0
      %v1660 = vsel %vm1613, %v1445, 0
      %1662 = vmatprep.subr.bf16.mxu0 %v1511
      %1663 = vmatpush1.bf16.msra.mxu0 %v1510
      %1664 = vmatprep.subr.bf16.mxu0 %v1513
      %1665 = vmatpush1.bf16.msra.mxu0 %v1512
      %1666 = vmatprep.subr.bf16.mxu0 0
      %1667 = vmatpush1.bf16.msra.mxu0 0
      %1668 = vmatprep.subr.bf16.mxu0 0
      %1669 = vmatpush1.bf16.msra.mxu0 0
      %1670 = vmatprep.subr.bf16.mxu0 0
      %1671 = vmatpush1.bf16.msra.mxu0 0
      %1672 = vmatprep.subr.bf16.mxu0 0
      %1673 = vmatpush1.bf16.msra.mxu0 0
      %1674 = vmatprep.subr.bf16.mxu0 0
      %1675 = vmatpush1.bf16.msra.mxu0 0
      %1676 = vmatprep.subr.bf16.mxu0 0
      %1677 = vmatpush1.bf16.msra.mxu0 0
      %1678 = vmatprep.subr.bf16.mxu0 0
      %1679 = vmatpush1.bf16.msra.mxu0 0
      %1680 = vmatprep.subr.bf16.mxu0 0
      %1681 = vmatpush1.bf16.msra.mxu0 0
      %1682 = vmatprep.subr.bf16.mxu0 0
      %1683 = vmatpush1.bf16.msra.mxu0 0
      %1684 = vmatprep.subr.bf16.mxu0 0
      %1685 = vmatpush1.bf16.msra.mxu0 0
      %1686 = vmatprep.subr.bf16.mxu0 0
      %1687 = vmatpush1.bf16.msra.mxu0 0
      %1688 = vmatprep.subr.bf16.mxu0 0
      %1689 = vmatpush1.bf16.msra.mxu0 0
      %1690 = vmatprep.subr.bf16.mxu0 0
      %1691 = vmatpush1.bf16.msra.mxu0 0
      %1692 = vmatprep.subr.bf16.mxu0 0
      %1693 = vmatpush1.bf16.msra.mxu0 0
      %1694 = vmatprep.mubr.bf16.mxu0 0
      %1695 = vmatmul.mubr.bf16.gmra.mrb[0].mxu0 %v1615
      %v1696 = vpop.f32.mrb[0].mxu0
      %v1697 = vadd.f32 0.0, %v1696
      %v1698 = vpop.f32.mrb[0].mxu0
      %v1699 = vadd.f32 0.0, %v1698
      %v1700 = vpop.f32.mrb[0].mxu0
      %v1701 = vadd.f32 0.0, %v1700
      %v1702 = vpop.f32.mrb[0].mxu0
      %v1703 = vadd.f32 0.0, %v1702
      %1704 = vmatprep.mubr.bf16.mxu0 0
      %1705 = vmatmul.mubr.bf16.gmra.mrb[0].mxu0 %v1618
      %v1706 = vpop.f32.mrb[0].mxu0
      %v1707 = vadd.f32 0.0, %v1706
      %v1708 = vpop.f32.mrb[0].mxu0
      %v1709 = vadd.f32 0.0, %v1708
      %v1710 = vpop.f32.mrb[0].mxu0
      %v1711 = vadd.f32 0.0, %v1710
      %v1712 = vpop.f32.mrb[0].mxu0
      %v1713 = vadd.f32 0.0, %v1712
      %1714 = vmatprep.mubr.bf16.mxu0 0
      %1715 = vmatmul.mubr.bf16.gmra.mrb[0].mxu0 %v1621
      %v1716 = vpop.f32.mrb[0].mxu0
      %v1717 = vadd.f32 0.0, %v1716
      %v1718 = vpop.f32.mrb[0].mxu0
      %v1719 = vadd.f32 0.0, %v1718
      %v1720 = vpop.f32.mrb[0].mxu0
      %v1721 = vadd.f32 0.0, %v1720
      %v1722 = vpop.f32.mrb[0].mxu0
      %v1723 = vadd.f32 0.0, %v1722
      %1724 = vmatprep.mubr.bf16.mxu0 0
      %1725 = vmatmul.mubr.bf16.gmra.mrb[0].mxu0 %v1624
      %v1726 = vpop.f32.mrb[0].mxu0
      %v1727 = vadd.f32 0.0, %v1726
      %v1728 = vpop.f32.mrb[0].mxu0
      %v1729 = vadd.f32 0.0, %v1728
      %v1730 = vpop.f32.mrb[0].mxu0
      %v1731 = vadd.f32 0.0, %v1730
      %v1732 = vpop.f32.mrb[0].mxu0
      %v1733 = vadd.f32 0.0, %v1732
      %1734 = vmatprep.mubr.bf16.mxu0 0
      %1735 = vmatmul.mubr.bf16.gmra.mrb[0].mxu0 %v1627
      %v1736 = vpop.f32.mrb[0].mxu0
      %v1737 = vadd.f32 0.0, %v1736
      %v1738 = vpop.f32.mrb[0].mxu0
      %v1739 = vadd.f32 0.0, %v1738
      %v1740 = vpop.f32.mrb[0].mxu0
      %v1741 = vadd.f32 0.0, %v1740
      %v1742 = vpop.f32.mrb[0].mxu0
      %v1743 = vadd.f32 0.0, %v1742
      %1744 = vmatprep.mubr.bf16.mxu0 0
      %1745 = vmatmul.mubr.bf16.gmra.mrb[0].mxu0 %v1630
      %v1746 = vpop.f32.mrb[0].mxu0
      %v1747 = vadd.f32 0.0, %v1746
      %v1748 = vpop.f32.mrb[0].mxu0
      %v1749 = vadd.f32 0.0, %v1748
      %v1750 = vpop.f32.mrb[0].mxu0
      %v1751 = vadd.f32 0.0, %v1750
      %v1752 = vpop.f32.mrb[0].mxu0
      %v1753 = vadd.f32 0.0, %v1752
      %1754 = vmatprep.mubr.bf16.mxu0 0
      %1755 = vmatmul.mubr.bf16.gmra.mrb[0].mxu0 %v1633
      %v1756 = vpop.f32.mrb[0].mxu0
      %v1757 = vadd.f32 0.0, %v1756
      %v1758 = vpop.f32.mrb[0].mxu0
      %v1759 = vadd.f32 0.0, %v1758
      %v1760 = vpop.f32.mrb[0].mxu0
      %v1761 = vadd.f32 0.0, %v1760
      %v1762 = vpop.f32.mrb[0].mxu0
      %v1763 = vadd.f32 0.0, %v1762
      %1764 = vmatprep.mubr.bf16.mxu0 0
      %1765 = vmatmul.mubr.bf16.gmra.mrb[0].mxu0 %v1636
      %v1766 = vpop.f32.mrb[0].mxu0
      %v1767 = vadd.f32 0.0, %v1766
      %v1768 = vpop.f32.mrb[0].mxu0
      %v1769 = vadd.f32 0.0, %v1768
      %v1770 = vpop.f32.mrb[0].mxu0
      %v1771 = vadd.f32 0.0, %v1770
      %v1772 = vpop.f32.mrb[0].mxu0
      %v1773 = vadd.f32 0.0, %v1772
      %1774 = vmatprep.mubr.bf16.mxu0 0
      %1775 = vmatmul.mubr.bf16.gmra.mrb[0].mxu0 %v1639
      %v1776 = vpop.f32.mrb[0].mxu0
      %v1777 = vadd.f32 0.0, %v1776
      %v1778 = vpop.f32.mrb[0].mxu0
      %v1779 = vadd.f32 0.0, %v1778
      %v1780 = vpop.f32.mrb[0].mxu0
      %v1781 = vadd.f32 0.0, %v1780
      %v1782 = vpop.f32.mrb[0].mxu0
      %v1783 = vadd.f32 0.0, %v1782
      %1784 = vmatprep.mubr.bf16.mxu0 0
      %1785 = vmatmul.mubr.bf16.gmra.mrb[0].mxu0 %v1642
      %v1786 = vpop.f32.mrb[0].mxu0
      %v1787 = vadd.f32 0.0, %v1786
      %v1788 = vpop.f32.mrb[0].mxu0
      %v1789 = vadd.f32 0.0, %v1788
      %v1790 = vpop.f32.mrb[0].mxu0
      %v1791 = vadd.f32 0.0, %v1790
      %v1792 = vpop.f32.mrb[0].mxu0
      %v1793 = vadd.f32 0.0, %v1792
      %1794 = vmatprep.mubr.bf16.mxu0 0
      %1795 = vmatmul.mubr.bf16.gmra.mrb[0].mxu0 %v1645
      %v1796 = vpop.f32.mrb[0].mxu0
      %v1797 = vadd.f32 0.0, %v1796
      %v1798 = vpop.f32.mrb[0].mxu0
      %v1799 = vadd.f32 0.0, %v1798
      %v1800 = vpop.f32.mrb[0].mxu0
      %v1801 = vadd.f32 0.0, %v1800
      %v1802 = vpop.f32.mrb[0].mxu0
      %v1803 = vadd.f32 0.0, %v1802
      %1804 = vmatprep.mubr.bf16.mxu0 0
      %1805 = vmatmul.mubr.bf16.gmra.mrb[0].mxu0 %v1648
      %v1806 = vpop.f32.mrb[0].mxu0
      %v1807 = vadd.f32 0.0, %v1806
      %v1808 = vpop.f32.mrb[0].mxu0
      %v1809 = vadd.f32 0.0, %v1808
      %v1810 = vpop.f32.mrb[0].mxu0
      %v1811 = vadd.f32 0.0, %v1810
      %v1812 = vpop.f32.mrb[0].mxu0
      %v1813 = vadd.f32 0.0, %v1812
      %1814 = vmatprep.mubr.bf16.mxu0 0
      %1815 = vmatmul.mubr.bf16.gmra.mrb[0].mxu0 %v1651
      %v1816 = vpop.f32.mrb[0].mxu0
      %v1817 = vadd.f32 0.0, %v1816
      %v1818 = vpop.f32.mrb[0].mxu0
      %v1819 = vadd.f32 0.0, %v1818
      %v1820 = vpop.f32.mrb[0].mxu0
      %v1821 = vadd.f32 0.0, %v1820
      %v1822 = vpop.f32.mrb[0].mxu0
      %v1823 = vadd.f32 0.0, %v1822
      %1824 = vmatprep.mubr.bf16.mxu0 0
      %1825 = vmatmul.mubr.bf16.gmra.mrb[0].mxu0 %v1654
      %v1826 = vpop.f32.mrb[0].mxu0
      %v1827 = vadd.f32 0.0, %v1826
      %v1828 = vpop.f32.mrb[0].mxu0
      %v1829 = vadd.f32 0.0, %v1828
      %v1830 = vpop.f32.mrb[0].mxu0
      %v1831 = vadd.f32 0.0, %v1830
      %v1832 = vpop.f32.mrb[0].mxu0
      %v1833 = vadd.f32 0.0, %v1832
      %1834 = vmatprep.mubr.bf16.mxu0 0
      %1835 = vmatmul.mubr.bf16.gmra.mrb[0].mxu0 %v1657
      %v1836 = vpop.f32.mrb[0].mxu0
      %v1837 = vadd.f32 0.0, %v1836
      %v1838 = vpop.f32.mrb[0].mxu0
      %v1839 = vadd.f32 0.0, %v1838
      %v1840 = vpop.f32.mrb[0].mxu0
      %v1841 = vadd.f32 0.0, %v1840
      %v1842 = vpop.f32.mrb[0].mxu0
      %v1843 = vadd.f32 0.0, %v1842
      %1844 = vmatprep.mubr.bf16.mxu0 0
      %1845 = vmatmul.mubr.bf16.gmra.mrb[0].mxu0 %v1660
      %v1846 = vpop.f32.mrb[0].mxu0
      %v1847 = vadd.f32 0.0, %v1846
      %v1848 = vpop.f32.mrb[0].mxu0
      %v1849 = vadd.f32 0.0, %v1848
      %v1850 = vpop.f32.mrb[0].mxu0
      %v1851 = vadd.f32 0.0, %v1850
      %v1852 = vpop.f32.mrb[0].mxu0
      %v1853 = vadd.f32 0.0, %v1852
      %1854 = vdwg.mxu0
      %v1855 = vmax.f32 %v1697, %v1699
      %1856 = vmax.xlane.f32.xlu0 %v1855
      %v1857 = vpop.xlane.xlu0 %1856
      %v1858 = vmax.f32 %v1701, %v1703
      %1859 = vmax.xlane.f32.xlu0 %v1858
      %v1860 = vpop.xlane.xlu0 %1859
      %v1861 = vmax.f32 %v1707, %v1709
      %1862 = vmax.xlane.f32.xlu0 %v1861
      %v1863 = vpop.xlane.xlu0 %1862
      %v1864 = vmax.f32 %v1711, %v1713
      %1865 = vmax.xlane.f32.xlu0 %v1864
      %v1866 = vpop.xlane.xlu0 %1865
      %v1867 = vmax.f32 %v1717, %v1719
      %1868 = vmax.xlane.f32.xlu0 %v1867
      %v1869 = vpop.xlane.xlu0 %1868
      %v1870 = vmax.f32 %v1721, %v1723
      %1871 = vmax.xlane.f32.xlu0 %v1870
      %v1872 = vpop.xlane.xlu0 %1871
      %v1873 = vmax.f32 %v1727, %v1729
      %1874 = vmax.xlane.f32.xlu0 %v1873
      %v1875 = vpop.xlane.xlu0 %1874
      %v1876 = vmax.f32 %v1731, %v1733
      %1877 = vmax.xlane.f32.xlu0 %v1876
      %v1878 = vpop.xlane.xlu0 %1877
      %v1879 = vmax.f32 %v1737, %v1739
      %1880 = vmax.xlane.f32.xlu0 %v1879
      %v1881 = vpop.xlane.xlu0 %1880
      %v1882 = vmax.f32 %v1741, %v1743
      %1883 = vmax.xlane.f32.xlu0 %v1882
      %v1884 = vpop.xlane.xlu0 %1883
      %v1885 = vmax.f32 %v1747, %v1749
      %1886 = vmax.xlane.f32.xlu0 %v1885
      %v1887 = vpop.xlane.xlu0 %1886
      %v1888 = vmax.f32 %v1751, %v1753
      %1889 = vmax.xlane.f32.xlu0 %v1888
      %v1890 = vpop.xlane.xlu0 %1889
      %v1891 = vmax.f32 %v1757, %v1759
      %1892 = vmax.xlane.f32.xlu0 %v1891
      %v1893 = vpop.xlane.xlu0 %1892
      %v1894 = vmax.f32 %v1761, %v1763
      %1895 = vmax.xlane.f32.xlu0 %v1894
      %v1896 = vpop.xlane.xlu0 %1895
      %v1897 = vmax.f32 %v1767, %v1769
      %1898 = vmax.xlane.f32.xlu0 %v1897
      %v1899 = vpop.xlane.xlu0 %1898
      %v1900 = vmax.f32 %v1771, %v1773
      %1901 = vmax.xlane.f32.xlu0 %v1900
      %v1902 = vpop.xlane.xlu0 %1901
      %v1903 = vmax.f32 %v1777, %v1779
      %1904 = vmax.xlane.f32.xlu0 %v1903
      %v1905 = vpop.xlane.xlu0 %1904
      %v1906 = vmax.f32 %v1781, %v1783
      %1907 = vmax.xlane.f32.xlu0 %v1906
      %v1908 = vpop.xlane.xlu0 %1907
      %v1909 = vmax.f32 %v1787, %v1789
      %1910 = vmax.xlane.f32.xlu0 %v1909
      %v1911 = vpop.xlane.xlu0 %1910
      %v1912 = vmax.f32 %v1791, %v1793
      %1913 = vmax.xlane.f32.xlu0 %v1912
      %v1914 = vpop.xlane.xlu0 %1913
      %v1915 = vmax.f32 %v1797, %v1799
      %1916 = vmax.xlane.f32.xlu0 %v1915
      %v1917 = vpop.xlane.xlu0 %1916
      %v1918 = vmax.f32 %v1801, %v1803
      %1919 = vmax.xlane.f32.xlu0 %v1918
      %v1920 = vpop.xlane.xlu0 %1919
      %v1921 = vmax.f32 %v1807, %v1809
      %1922 = vmax.xlane.f32.xlu0 %v1921
      %v1923 = vpop.xlane.xlu0 %1922
      %v1924 = vmax.f32 %v1811, %v1813
      %1925 = vmax.xlane.f32.xlu0 %v1924
      %v1926 = vpop.xlane.xlu0 %1925
      %v1927 = vmax.f32 %v1817, %v1819
      %1928 = vmax.xlane.f32.xlu0 %v1927
      %v1929 = vpop.xlane.xlu0 %1928
      %v1930 = vmax.f32 %v1821, %v1823
      %1931 = vmax.xlane.f32.xlu0 %v1930
      %v1932 = vpop.xlane.xlu0 %1931
      %v1933 = vmax.f32 %v1827, %v1829
      %1934 = vmax.xlane.f32.xlu0 %v1933
      %v1935 = vpop.xlane.xlu0 %1934
      %v1936 = vmax.f32 %v1831, %v1833
      %1937 = vmax.xlane.f32.xlu0 %v1936
      %v1938 = vpop.xlane.xlu0 %1937
      %v1939 = vmax.f32 %v1837, %v1839
      %1940 = vmax.xlane.f32.xlu0 %v1939
      %v1941 = vpop.xlane.xlu0 %1940
      %v1942 = vmax.f32 %v1841, %v1843
      %1943 = vmax.xlane.f32.xlu0 %v1942
      %v1944 = vpop.xlane.xlu0 %1943
      %v1945 = vmax.f32 %v1847, %v1849
      %1946 = vmax.xlane.f32.xlu0 %v1945
      %v1947 = vpop.xlane.xlu0 %1946
      %v1948 = vmax.f32 %v1851, %v1853
      %1949 = vmax.xlane.f32.xlu0 %v1948
      %v1950 = vpop.xlane.xlu0 %1949
      %v1951 = vsub.f32 %v1697, %v1857
      %v1952 = vsub.f32 %v1699, %v1857
      %v1953 = vsub.f32 %v1701, %v1860
      %v1954 = vsub.f32 %v1703, %v1860
      %v1955 = vsub.f32 %v1707, %v1863
      %v1956 = vsub.f32 %v1709, %v1863
      %v1957 = vsub.f32 %v1711, %v1866
      %v1958 = vsub.f32 %v1713, %v1866
      %v1959 = vsub.f32 %v1717, %v1869
      %v1960 = vsub.f32 %v1719, %v1869
      %v1961 = vsub.f32 %v1721, %v1872
      %v1962 = vsub.f32 %v1723, %v1872
      %v1963 = vsub.f32 %v1727, %v1875
      %v1964 = vsub.f32 %v1729, %v1875
      %v1965 = vsub.f32 %v1731, %v1878
      %v1966 = vsub.f32 %v1733, %v1878
      %v1967 = vsub.f32 %v1737, %v1881
      %v1968 = vsub.f32 %v1739, %v1881
      %v1969 = vsub.f32 %v1741, %v1884
      %v1970 = vsub.f32 %v1743, %v1884
      %v1971 = vsub.f32 %v1747, %v1887
      %v1972 = vsub.f32 %v1749, %v1887
      %v1973 = vsub.f32 %v1751, %v1890
      %v1974 = vsub.f32 %v1753, %v1890
      %v1975 = vsub.f32 %v1757, %v1893
      %v1976 = vsub.f32 %v1759, %v1893
      %v1977 = vsub.f32 %v1761, %v1896
      %v1978 = vsub.f32 %v1763, %v1896
      %v1979 = vsub.f32 %v1767, %v1899
      %v1980 = vsub.f32 %v1769, %v1899
      %v1981 = vsub.f32 %v1771, %v1902
      %v1982 = vsub.f32 %v1773, %v1902
      %v1983 = vsub.f32 %v1777, %v1905
      %v1984 = vsub.f32 %v1779, %v1905
      %v1985 = vsub.f32 %v1781, %v1908
      %v1986 = vsub.f32 %v1783, %v1908
      %v1987 = vsub.f32 %v1787, %v1911
      %v1988 = vsub.f32 %v1789, %v1911
      %v1989 = vsub.f32 %v1791, %v1914
      %v1990 = vsub.f32 %v1793, %v1914
      %v1991 = vsub.f32 %v1797, %v1917
      %v1992 = vsub.f32 %v1799, %v1917
      %v1993 = vsub.f32 %v1801, %v1920
      %v1994 = vsub.f32 %v1803, %v1920
      %v1995 = vsub.f32 %v1807, %v1923
      %v1996 = vsub.f32 %v1809, %v1923
      %v1997 = vsub.f32 %v1811, %v1926
      %v1998 = vsub.f32 %v1813, %v1926
      %v1999 = vsub.f32 %v1817, %v1929
      %v2000 = vsub.f32 %v1819, %v1929
      %v2001 = vsub.f32 %v1821, %v1932
      %v2002 = vsub.f32 %v1823, %v1932
      %v2003 = vsub.f32 %v1827, %v1935
      %v2004 = vsub.f32 %v1829, %v1935
      %v2005 = vsub.f32 %v1831, %v1938
      %v2006 = vsub.f32 %v1833, %v1938
      %v2007 = vsub.f32 %v1837, %v1941
      %v2008 = vsub.f32 %v1839, %v1941
      %v2009 = vsub.f32 %v1841, %v1944
      %v2010 = vsub.f32 %v1843, %v1944
      %v2011 = vsub.f32 %v1847, %v1947
      %v2012 = vsub.f32 %v1849, %v1947
      %v2013 = vsub.f32 %v1851, %v1950
      %v2014 = vsub.f32 %v1853, %v1950
      %v2015 = vmul.f32 %v1951, 1.442695
      %v2016 = vpow.pop %v2015
      %v2017 = vmul.f32 %v1952, 1.442695
      %v2018 = vpow.pop %v2017
      %v2019 = vmul.f32 %v1953, 1.442695
      %v2020 = vpow.pop %v2019
      %v2021 = vmul.f32 %v1954, 1.442695
      %v2022 = vpow.pop %v2021
      %v2023 = vmul.f32 %v1955, 1.442695
      %v2024 = vpow.pop %v2023
      %v2025 = vmul.f32 %v1956, 1.442695
      %v2026 = vpow.pop %v2025
      %v2027 = vmul.f32 %v1957, 1.442695
      %v2028 = vpow.pop %v2027
      %v2029 = vmul.f32 %v1958, 1.442695
      %v2030 = vpow.pop %v2029
      %v2031 = vmul.f32 %v1959, 1.442695
      %v2032 = vpow.pop %v2031
      %v2033 = vmul.f32 %v1960, 1.442695
      %v2034 = vpow.pop %v2033
      %v2035 = vmul.f32 %v1961, 1.442695
      %v2036 = vpow.pop %v2035
      %v2037 = vmul.f32 %v1962, 1.442695
      %v2038 = vpow.pop %v2037
      %v2039 = vmul.f32 %v1963, 1.442695
      %v2040 = vpow.pop %v2039
      %v2041 = vmul.f32 %v1964, 1.442695
      %v2042 = vpow.pop %v2041
      %v2043 = vmul.f32 %v1965, 1.442695
      %v2044 = vpow.pop %v2043
      %v2045 = vmul.f32 %v1966, 1.442695
      %v2046 = vpow.pop %v2045
      %v2047 = vmul.f32 %v1967, 1.442695
      %v2048 = vpow.pop %v2047
      %v2049 = vmul.f32 %v1968, 1.442695
      %v2050 = vpow.pop %v2049
      %v2051 = vmul.f32 %v1969, 1.442695
      %v2052 = vpow.pop %v2051
      %v2053 = vmul.f32 %v1970, 1.442695
      %v2054 = vpow.pop %v2053
      %v2055 = vmul.f32 %v1971, 1.442695
      %v2056 = vpow.pop %v2055
      %v2057 = vmul.f32 %v1972, 1.442695
      %v2058 = vpow.pop %v2057
      %v2059 = vmul.f32 %v1973, 1.442695
      %v2060 = vpow.pop %v2059
      %v2061 = vmul.f32 %v1974, 1.442695
      %v2062 = vpow.pop %v2061
      %v2063 = vmul.f32 %v1975, 1.442695
      %v2064 = vpow.pop %v2063
      %v2065 = vmul.f32 %v1976, 1.442695
      %v2066 = vpow.pop %v2065
      %v2067 = vmul.f32 %v1977, 1.442695
      %v2068 = vpow.pop %v2067
      %v2069 = vmul.f32 %v1978, 1.442695
      %v2070 = vpow.pop %v2069
      %v2071 = vmul.f32 %v1979, 1.442695
      %v2072 = vpow.pop %v2071
      %v2073 = vmul.f32 %v1980, 1.442695
      %v2074 = vpow.pop %v2073
      %v2075 = vmul.f32 %v1981, 1.442695
      %v2076 = vpow.pop %v2075
      %v2077 = vmul.f32 %v1982, 1.442695
      %v2078 = vpow.pop %v2077
      %v2079 = vmul.f32 %v1983, 1.442695
      %v2080 = vpow.pop %v2079
      %v2081 = vmul.f32 %v1984, 1.442695
      %v2082 = vpow.pop %v2081
      %v2083 = vmul.f32 %v1985, 1.442695
      %v2084 = vpow.pop %v2083
      %v2085 = vmul.f32 %v1986, 1.442695
      %v2086 = vpow.pop %v2085
      %v2087 = vmul.f32 %v1987, 1.442695
      %v2088 = vpow.pop %v2087
      %v2089 = vmul.f32 %v1988, 1.442695
      %v2090 = vpow.pop %v2089
      %v2091 = vmul.f32 %v1989, 1.442695
      %v2092 = vpow.pop %v2091
      %v2093 = vmul.f32 %v1990, 1.442695
      %v2094 = vpow.pop %v2093
      %v2095 = vmul.f32 %v1991, 1.442695
      %v2096 = vpow.pop %v2095
      %v2097 = vmul.f32 %v1992, 1.442695
      %v2098 = vpow.pop %v2097
      %v2099 = vmul.f32 %v1993, 1.442695
      %v2100 = vpow.pop %v2099
      %v2101 = vmul.f32 %v1994, 1.442695
      %v2102 = vpow.pop %v2101
      %v2103 = vmul.f32 %v1995, 1.442695
      %v2104 = vpow.pop %v2103
      %v2105 = vmul.f32 %v1996, 1.442695
      %v2106 = vpow.pop %v2105
      %v2107 = vmul.f32 %v1997, 1.442695
      %v2108 = vpow.pop %v2107
      %v2109 = vmul.f32 %v1998, 1.442695
      %v2110 = vpow.pop %v2109
      %v2111 = vmul.f32 %v1999, 1.442695
      %v2112 = vpow.pop %v2111
      %v2113 = vmul.f32 %v2000, 1.442695
      %v2114 = vpow.pop %v2113
      %v2115 = vmul.f32 %v2001, 1.442695
      %v2116 = vpow.pop %v2115
      %v2117 = vmul.f32 %v2002, 1.442695
      %v2118 = vpow.pop %v2117
      %v2119 = vmul.f32 %v2003, 1.442695
      %v2120 = vpow.pop %v2119
      %v2121 = vmul.f32 %v2004, 1.442695
      %v2122 = vpow.pop %v2121
      %v2123 = vmul.f32 %v2005, 1.442695
      %v2124 = vpow.pop %v2123
      %v2125 = vmul.f32 %v2006, 1.442695
      %v2126 = vpow.pop %v2125
      %v2127 = vmul.f32 %v2007, 1.442695
      %v2128 = vpow.pop %v2127
      %v2129 = vmul.f32 %v2008, 1.442695
      %v2130 = vpow.pop %v2129
      %v2131 = vmul.f32 %v2009, 1.442695
      %v2132 = vpow.pop %v2131
      %v2133 = vmul.f32 %v2010, 1.442695
      %v2134 = vpow.pop %v2133
      %v2135 = vmul.f32 %v2011, 1.442695
      %v2136 = vpow.pop %v2135
      %v2137 = vmul.f32 %v2012, 1.442695
      %v2138 = vpow.pop %v2137
      %v2139 = vmul.f32 %v2013, 1.442695
      %v2140 = vpow.pop %v2139
      %v2141 = vmul.f32 %v2014, 1.442695
      %v2142 = vpow.pop %v2141
      %v2143 = vadd.f32 %v2016, %v2018
      %2144 = vadd.xlane.f32.xlu0 %v2143
      %v2145 = vpop.xlane.xlu0 %2144
      %v2146 = vadd.f32 %v2020, %v2022
      %2147 = vadd.xlane.f32.xlu0 %v2146
      %v2148 = vpop.xlane.xlu0 %2147
      %v2149 = vadd.f32 %v2024, %v2026
      %2150 = vadd.xlane.f32.xlu0 %v2149
      %v2151 = vpop.xlane.xlu0 %2150
      %v2152 = vadd.f32 %v2028, %v2030
      %2153 = vadd.xlane.f32.xlu0 %v2152
      %v2154 = vpop.xlane.xlu0 %2153
      %v2155 = vadd.f32 %v2032, %v2034
      %2156 = vadd.xlane.f32.xlu0 %v2155
      %v2157 = vpop.xlane.xlu0 %2156
      %v2158 = vadd.f32 %v2036, %v2038
      %2159 = vadd.xlane.f32.xlu0 %v2158
      %v2160 = vpop.xlane.xlu0 %2159
      %v2161 = vadd.f32 %v2040, %v2042
      %2162 = vadd.xlane.f32.xlu0 %v2161
      %v2163 = vpop.xlane.xlu0 %2162
      %v2164 = vadd.f32 %v2044, %v2046
      %2165 = vadd.xlane.f32.xlu0 %v2164
      %v2166 = vpop.xlane.xlu0 %2165
      %v2167 = vadd.f32 %v2048, %v2050
      %2168 = vadd.xlane.f32.xlu0 %v2167
      %v2169 = vpop.xlane.xlu0 %2168
      %v2170 = vadd.f32 %v2052, %v2054
      %2171 = vadd.xlane.f32.xlu0 %v2170
      %v2172 = vpop.xlane.xlu0 %2171
      %v2173 = vadd.f32 %v2056, %v2058
      %2174 = vadd.xlane.f32.xlu0 %v2173
      %v2175 = vpop.xlane.xlu0 %2174
      %v2176 = vadd.f32 %v2060, %v2062
      %2177 = vadd.xlane.f32.xlu0 %v2176
      %v2178 = vpop.xlane.xlu0 %2177
      %v2179 = vadd.f32 %v2064, %v2066
      %2180 = vadd.xlane.f32.xlu0 %v2179
      %v2181 = vpop.xlane.xlu0 %2180
      %v2182 = vadd.f32 %v2068, %v2070
      %2183 = vadd.xlane.f32.xlu0 %v2182
      %v2184 = vpop.xlane.xlu0 %2183
      %v2185 = vadd.f32 %v2072, %v2074
      %2186 = vadd.xlane.f32.xlu0 %v2185
      %v2187 = vpop.xlane.xlu0 %2186
      %v2188 = vadd.f32 %v2076, %v2078
      %2189 = vadd.xlane.f32.xlu0 %v2188
      %v2190 = vpop.xlane.xlu0 %2189
      %v2191 = vadd.f32 %v2080, %v2082
      %2192 = vadd.xlane.f32.xlu0 %v2191
      %v2193 = vpop.xlane.xlu0 %2192
      %v2194 = vadd.f32 %v2084, %v2086
      %2195 = vadd.xlane.f32.xlu0 %v2194
      %v2196 = vpop.xlane.xlu0 %2195
      %v2197 = vadd.f32 %v2088, %v2090
      %2198 = vadd.xlane.f32.xlu0 %v2197
      %v2199 = vpop.xlane.xlu0 %2198
      %v2200 = vadd.f32 %v2092, %v2094
      %2201 = vadd.xlane.f32.xlu0 %v2200
      %v2202 = vpop.xlane.xlu0 %2201
      %v2203 = vadd.f32 %v2096, %v2098
      %2204 = vadd.xlane.f32.xlu0 %v2203
      %v2205 = vpop.xlane.xlu0 %2204
      %v2206 = vadd.f32 %v2100, %v2102
      %2207 = vadd.xlane.f32.xlu0 %v2206
      %v2208 = vpop.xlane.xlu0 %2207
      %v2209 = vadd.f32 %v2104, %v2106
      %2210 = vadd.xlane.f32.xlu0 %v2209
      %v2211 = vpop.xlane.xlu0 %2210
      %v2212 = vadd.f32 %v2108, %v2110
      %2213 = vadd.xlane.f32.xlu0 %v2212
      %v2214 = vpop.xlane.xlu0 %2213
      %v2215 = vadd.f32 %v2112, %v2114
      %2216 = vadd.xlane.f32.xlu0 %v2215
      %v2217 = vpop.xlane.xlu0 %2216
      %v2218 = vadd.f32 %v2116, %v2118
      %2219 = vadd.xlane.f32.xlu0 %v2218
      %v2220 = vpop.xlane.xlu0 %2219
      %v2221 = vadd.f32 %v2120, %v2122
      %2222 = vadd.xlane.f32.xlu0 %v2221
      %v2223 = vpop.xlane.xlu0 %2222
      %v2224 = vadd.f32 %v2124, %v2126
      %2225 = vadd.xlane.f32.xlu0 %v2224
      %v2226 = vpop.xlane.xlu0 %2225
      %v2227 = vadd.f32 %v2128, %v2130
      %2228 = vadd.xlane.f32.xlu0 %v2227
      %v2229 = vpop.xlane.xlu0 %2228
      %v2230 = vadd.f32 %v2132, %v2134
      %2231 = vadd.xlane.f32.xlu0 %v2230
      %v2232 = vpop.xlane.xlu0 %2231
      %v2233 = vadd.f32 %v2136, %v2138
      %2234 = vadd.xlane.f32.xlu0 %v2233
      %v2235 = vpop.xlane.xlu0 %2234
      %v2236 = vadd.f32 %v2140, %v2142
      %2237 = vadd.xlane.f32.xlu0 %v2236
      %v2238 = vpop.xlane.xlu0 %2237
      %v2239 = vrcp.pop %v2145
      %v2240 = vrcp.pop %v2148
      %v2241 = vrcp.pop %v2151
      %v2242 = vrcp.pop %v2154
      %v2243 = vrcp.pop %v2157
      %v2244 = vrcp.pop %v2160
      %v2245 = vrcp.pop %v2163
      %v2246 = vrcp.pop %v2166
      %v2247 = vrcp.pop %v2169
      %v2248 = vrcp.pop %v2172
      %v2249 = vrcp.pop %v2175
      %v2250 = vrcp.pop %v2178
      %v2251 = vrcp.pop %v2181
      %v2252 = vrcp.pop %v2184
      %v2253 = vrcp.pop %v2187
      %v2254 = vrcp.pop %v2190
      %v2255 = vrcp.pop %v2193
      %v2256 = vrcp.pop %v2196
      %v2257 = vrcp.pop %v2199
      %v2258 = vrcp.pop %v2202
      %v2259 = vrcp.pop %v2205
      %v2260 = vrcp.pop %v2208
      %v2261 = vrcp.pop %v2211
      %v2262 = vrcp.pop %v2214
      %v2263 = vrcp.pop %v2217
      %v2264 = vrcp.pop %v2220
      %v2265 = vrcp.pop %v2223
      %v2266 = vrcp.pop %v2226
      %v2267 = vrcp.pop %v2229
      %v2268 = vrcp.pop %v2232
      %v2269 = vrcp.pop %v2235
      %v2270 = vrcp.pop %v2238
      %v2271 = vmul.f32 %v2016, %v2239
      %v2272 = vmul.f32 %v2018, %v2239
      %v2273 = vmul.f32 %v2020, %v2240
      %v2274 = vmul.f32 %v2022, %v2240
      %v2275 = vmul.f32 %v2024, %v2241
      %v2276 = vmul.f32 %v2026, %v2241
      %v2277 = vmul.f32 %v2028, %v2242
      %v2278 = vmul.f32 %v2030, %v2242
      %v2279 = vmul.f32 %v2032, %v2243
      %v2280 = vmul.f32 %v2034, %v2243
      %v2281 = vmul.f32 %v2036, %v2244
      %v2282 = vmul.f32 %v2038, %v2244
      %v2283 = vmul.f32 %v2040, %v2245
      %v2284 = vmul.f32 %v2042, %v2245
      %v2285 = vmul.f32 %v2044, %v2246
      %v2286 = vmul.f32 %v2046, %v2246
      %v2287 = vmul.f32 %v2048, %v2247
      %v2288 = vmul.f32 %v2050, %v2247
      %v2289 = vmul.f32 %v2052, %v2248
      %v2290 = vmul.f32 %v2054, %v2248
      %v2291 = vmul.f32 %v2056, %v2249
      %v2292 = vmul.f32 %v2058, %v2249
      %v2293 = vmul.f32 %v2060, %v2250
      %v2294 = vmul.f32 %v2062, %v2250
      %v2295 = vmul.f32 %v2064, %v2251
      %v2296 = vmul.f32 %v2066, %v2251
      %v2297 = vmul.f32 %v2068, %v2252
      %v2298 = vmul.f32 %v2070, %v2252
      %v2299 = vmul.f32 %v2072, %v2253
      %v2300 = vmul.f32 %v2074, %v2253
      %v2301 = vmul.f32 %v2076, %v2254
      %v2302 = vmul.f32 %v2078, %v2254
      %v2303 = vmul.f32 %v2080, %v2255
      %v2304 = vmul.f32 %v2082, %v2255
      %v2305 = vmul.f32 %v2084, %v2256
      %v2306 = vmul.f32 %v2086, %v2256
      %v2307 = vmul.f32 %v2088, %v2257
      %v2308 = vmul.f32 %v2090, %v2257
      %v2309 = vmul.f32 %v2092, %v2258
      %v2310 = vmul.f32 %v2094, %v2258
      %v2311 = vmul.f32 %v2096, %v2259
      %v2312 = vmul.f32 %v2098, %v2259
      %v2313 = vmul.f32 %v2100, %v2260
      %v2314 = vmul.f32 %v2102, %v2260
      %v2315 = vmul.f32 %v2104, %v2261
      %v2316 = vmul.f32 %v2106, %v2261
      %v2317 = vmul.f32 %v2108, %v2262
      %v2318 = vmul.f32 %v2110, %v2262
      %v2319 = vmul.f32 %v2112, %v2263
      %v2320 = vmul.f32 %v2114, %v2263
      %v2321 = vmul.f32 %v2116, %v2264
      %v2322 = vmul.f32 %v2118, %v2264
      %v2323 = vmul.f32 %v2120, %v2265
      %v2324 = vmul.f32 %v2122, %v2265
      %v2325 = vmul.f32 %v2124, %v2266
      %v2326 = vmul.f32 %v2126, %v2266
      %v2327 = vmul.f32 %v2128, %v2267
      %v2328 = vmul.f32 %v2130, %v2267
      %v2329 = vmul.f32 %v2132, %v2268
      %v2330 = vmul.f32 %v2134, %v2268
      %v2331 = vmul.f32 %v2136, %v2269
      %v2332 = vmul.f32 %v2138, %v2269
      %v2333 = vmul.f32 %v2140, %v2270
      %v2334 = vmul.f32 %v2142, %v2270
      %v2335 = vpack.c.bf16 %v2273, %v2271
      %v2336 = vpack.c.bf16 %v2274, %v2272
      %v2337 = vpack.c.bf16 %v2277, %v2275
      %v2338 = vpack.c.bf16 %v2278, %v2276
      %v2339 = vpack.c.bf16 %v2281, %v2279
      %v2340 = vpack.c.bf16 %v2282, %v2280
      %v2341 = vpack.c.bf16 %v2285, %v2283
      %v2342 = vpack.c.bf16 %v2286, %v2284
      %v2343 = vpack.c.bf16 %v2289, %v2287
      %v2344 = vpack.c.bf16 %v2290, %v2288
      %v2345 = vpack.c.bf16 %v2293, %v2291
      %v2346 = vpack.c.bf16 %v2294, %v2292
      %v2347 = vpack.c.bf16 %v2297, %v2295
      %v2348 = vpack.c.bf16 %v2298, %v2296
      %v2349 = vpack.c.bf16 %v2301, %v2299
      %v2350 = vpack.c.bf16 %v2302, %v2300
      %v2351 = vpack.c.bf16 %v2305, %v2303
      %v2352 = vpack.c.bf16 %v2306, %v2304
      %v2353 = vpack.c.bf16 %v2309, %v2307
      %v2354 = vpack.c.bf16 %v2310, %v2308
      %v2355 = vpack.c.bf16 %v2313, %v2311
      %v2356 = vpack.c.bf16 %v2314, %v2312
      %v2357 = vpack.c.bf16 %v2317, %v2315
      %v2358 = vpack.c.bf16 %v2318, %v2316
      %v2359 = vpack.c.bf16 %v2321, %v2319
      %v2360 = vpack.c.bf16 %v2322, %v2320
      %v2361 = vpack.c.bf16 %v2325, %v2323
      %v2362 = vpack.c.bf16 %v2326, %v2324
      %v2363 = vpack.c.bf16 %v2329, %v2327
      %v2364 = vpack.c.bf16 %v2330, %v2328
      %v2365 = vpack.c.bf16 %v2333, %v2331
      %v2366 = vpack.c.bf16 %v2334, %v2332
      %2367 = vmatprep.subr.bf16.mxu0 0
      %2368 = vmatpush1.bf16.msra.mxu0 %v1526
      %2369 = vmatprep.subr.bf16.mxu0 0
      %2370 = vmatpush1.bf16.msra.mxu0 %v1527
      %2371 = vmatprep.subr.bf16.mxu0 0
      %2372 = vmatpush1.bf16.msra.mxu0 %v1528
      %2373 = vmatprep.subr.bf16.mxu0 0
      %2374 = vmatpush1.bf16.msra.mxu0 %v1529
      %2375 = vmatprep.subr.bf16.mxu0 0
      %2376 = vmatpush1.bf16.msra.mxu0 %v1530
      %2377 = vmatprep.subr.bf16.mxu0 0
      %2378 = vmatpush1.bf16.msra.mxu0 %v1531
      %2379 = vmatprep.subr.bf16.mxu0 0
      %2380 = vmatpush1.bf16.msra.mxu0 %v1532
      %2381 = vmatprep.subr.bf16.mxu0 0
      %2382 = vmatpush1.bf16.msra.mxu0 %v1533
      %2383 = vmatprep.subr.bf16.mxu0 0
      %2384 = vmatpush1.bf16.msra.mxu0 %v1534
      %2385 = vmatprep.subr.bf16.mxu0 0
      %2386 = vmatpush1.bf16.msra.mxu0 %v1535
      %2387 = vmatprep.subr.bf16.mxu0 0
      %2388 = vmatpush1.bf16.msra.mxu0 %v1536
      %2389 = vmatprep.subr.bf16.mxu0 0
      %2390 = vmatpush1.bf16.msra.mxu0 %v1537
      %2391 = vmatprep.subr.bf16.mxu0 0
      %2392 = vmatpush1.bf16.msra.mxu0 %v1538
      %2393 = vmatprep.subr.bf16.mxu0 0
      %2394 = vmatpush1.bf16.msra.mxu0 %v1539
      %2395 = vmatprep.subr.bf16.mxu0 0
      %2396 = vmatpush1.bf16.msra.mxu0 %v1540
      %2397 = vmatprep.subr.bf16.mxu0 0
      %2398 = vmatpush1.bf16.msra.mxu0 %v1541
      %2399 = vmatprep.mubr.bf16.mxu0 %v2336
      %2400 = vmatmul.mubr.bf16.gmra.mrb[0].mxu0 %v2335
      %v2401 = vpop.f32.mrb[0].mxu0
      %v2402 = vadd.f32 0.0, %v2401
      %v2403 = vpop.f32.mrb[0].mxu0
      %v2404 = vpop.f32.mrb[0].mxu0
      %v2405 = vadd.f32 0.0, %v2404
      %v2406 = vpop.f32.mrb[0].mxu0
      %2407 = vmatprep.mubr.bf16.mxu0 %v2338
      %2408 = vmatmul.mubr.bf16.gmra.mrb[0].mxu0 %v2337
      %v2409 = vpop.f32.mrb[0].mxu0
      %v2410 = vadd.f32 0.0, %v2409
      %v2411 = vpop.f32.mrb[0].mxu0
      %v2412 = vpop.f32.mrb[0].mxu0
      %v2413 = vadd.f32 0.0, %v2412
      %v2414 = vpop.f32.mrb[0].mxu0
      %2415 = vmatprep.mubr.bf16.mxu0 %v2340
      %2416 = vmatmul.mubr.bf16.gmra.mrb[0].mxu0 %v2339
      %v2417 = vpop.f32.mrb[0].mxu0
      %v2418 = vadd.f32 0.0, %v2417
      %v2419 = vpop.f32.mrb[0].mxu0
      %v2420 = vpop.f32.mrb[0].mxu0
      %v2421 = vadd.f32 0.0, %v2420
      %v2422 = vpop.f32.mrb[0].mxu0
      %2423 = vmatprep.mubr.bf16.mxu0 %v2342
      %2424 = vmatmul.mubr.bf16.gmra.mrb[0].mxu0 %v2341
      %v2425 = vpop.f32.mrb[0].mxu0
      %v2426 = vadd.f32 0.0, %v2425
      %v2427 = vpop.f32.mrb[0].mxu0
      %v2428 = vpop.f32.mrb[0].mxu0
      %v2429 = vadd.f32 0.0, %v2428
      %v2430 = vpop.f32.mrb[0].mxu0
      %2431 = vmatprep.mubr.bf16.mxu0 %v2344
      %2432 = vmatmul.mubr.bf16.gmra.mrb[0].mxu0 %v2343
      %v2433 = vpop.f32.mrb[0].mxu0
      %v2434 = vadd.f32 0.0, %v2433
      %v2435 = vpop.f32.mrb[0].mxu0
      %v2436 = vpop.f32.mrb[0].mxu0
      %v2437 = vadd.f32 0.0, %v2436
      %v2438 = vpop.f32.mrb[0].mxu0
      %2439 = vmatprep.mubr.bf16.mxu0 %v2346
      %2440 = vmatmul.mubr.bf16.gmra.mrb[0].mxu0 %v2345
      %v2441 = vpop.f32.mrb[0].mxu0
      %v2442 = vadd.f32 0.0, %v2441
      %v2443 = vpop.f32.mrb[0].mxu0
      %v2444 = vpop.f32.mrb[0].mxu0
      %v2445 = vadd.f32 0.0, %v2444
      %v2446 = vpop.f32.mrb[0].mxu0
      %2447 = vmatprep.mubr.bf16.mxu0 %v2348
      %2448 = vmatmul.mubr.bf16.gmra.mrb[0].mxu0 %v2347
      %v2449 = vpop.f32.mrb[0].mxu0
      %v2450 = vadd.f32 0.0, %v2449
      %v2451 = vpop.f32.mrb[0].mxu0
      %v2452 = vpop.f32.mrb[0].mxu0
      %v2453 = vadd.f32 0.0, %v2452
      %v2454 = vpop.f32.mrb[0].mxu0
      %2455 = vmatprep.mubr.bf16.mxu0 %v2350
      %2456 = vmatmul.mubr.bf16.gmra.mrb[0].mxu0 %v2349
      %v2457 = vpop.f32.mrb[0].mxu0
      %v2458 = vadd.f32 0.0, %v2457
      %v2459 = vpop.f32.mrb[0].mxu0
      %v2460 = vpop.f32.mrb[0].mxu0
      %v2461 = vadd.f32 0.0, %v2460
      %v2462 = vpop.f32.mrb[0].mxu0
      %2463 = vmatprep.mubr.bf16.mxu0 %v2352
      %2464 = vmatmul.mubr.bf16.gmra.mrb[0].mxu0 %v2351
      %v2465 = vpop.f32.mrb[0].mxu0
      %v2466 = vadd.f32 0.0, %v2465
      %v2467 = vpop.f32.mrb[0].mxu0
      %v2468 = vpop.f32.mrb[0].mxu0
      %v2469 = vadd.f32 0.0, %v2468
      %v2470 = vpop.f32.mrb[0].mxu0
      %2471 = vmatprep.mubr.bf16.mxu0 %v2354
      %2472 = vmatmul.mubr.bf16.gmra.mrb[0].mxu0 %v2353
      %v2473 = vpop.f32.mrb[0].mxu0
      %v2474 = vadd.f32 0.0, %v2473
      %v2475 = vpop.f32.mrb[0].mxu0
      %v2476 = vpop.f32.mrb[0].mxu0
      %v2477 = vadd.f32 0.0, %v2476
      %v2478 = vpop.f32.mrb[0].mxu0
      %2479 = vmatprep.mubr.bf16.mxu0 %v2356
      %2480 = vmatmul.mubr.bf16.gmra.mrb[0].mxu0 %v2355
      %v2481 = vpop.f32.mrb[0].mxu0
      %v2482 = vadd.f32 0.0, %v2481
      %v2483 = vpop.f32.mrb[0].mxu0
      %v2484 = vpop.f32.mrb[0].mxu0
      %v2485 = vadd.f32 0.0, %v2484
      %v2486 = vpop.f32.mrb[0].mxu0
      %2487 = vmatprep.mubr.bf16.mxu0 %v2358
      %2488 = vmatmul.mubr.bf16.gmra.mrb[0].mxu0 %v2357
      %v2489 = vpop.f32.mrb[0].mxu0
      %v2490 = vadd.f32 0.0, %v2489
      %v2491 = vpop.f32.mrb[0].mxu0
      %v2492 = vpop.f32.mrb[0].mxu0
      %v2493 = vadd.f32 0.0, %v2492
      %v2494 = vpop.f32.mrb[0].mxu0
      %2495 = vmatprep.mubr.bf16.mxu0 %v2360
      %2496 = vmatmul.mubr.bf16.gmra.mrb[0].mxu0 %v2359
      %v2497 = vpop.f32.mrb[0].mxu0
      %v2498 = vadd.f32 0.0, %v2497
      %v2499 = vpop.f32.mrb[0].mxu0
      %v2500 = vpop.f32.mrb[0].mxu0
      %v2501 = vadd.f32 0.0, %v2500
      %v2502 = vpop.f32.mrb[0].mxu0
      %2503 = vmatprep.mubr.bf16.mxu0 %v2362
      %2504 = vmatmul.mubr.bf16.gmra.mrb[0].mxu0 %v2361
      %v2505 = vpop.f32.mrb[0].mxu0
      %v2506 = vadd.f32 0.0, %v2505
      %v2507 = vpop.f32.mrb[0].mxu0
      %v2508 = vpop.f32.mrb[0].mxu0
      %v2509 = vadd.f32 0.0, %v2508
      %v2510 = vpop.f32.mrb[0].mxu0
      %2511 = vmatprep.mubr.bf16.mxu0 %v2364
      %2512 = vmatmul.mubr.bf16.gmra.mrb[0].mxu0 %v2363
      %v2513 = vpop.f32.mrb[0].mxu0
      %v2514 = vadd.f32 0.0, %v2513
      %v2515 = vpop.f32.mrb[0].mxu0
      %v2516 = vpop.f32.mrb[0].mxu0
      %v2517 = vadd.f32 0.0, %v2516
      %v2518 = vpop.f32.mrb[0].mxu0
      %2519 = vmatprep.mubr.bf16.mxu0 %v2366
      %2520 = vmatmul.mubr.bf16.gmra.mrb[0].mxu0 %v2365
      %v2521 = vpop.f32.mrb[0].mxu0
      %v2522 = vadd.f32 0.0, %v2521
      %v2523 = vpop.f32.mrb[0].mxu0
      %v2524 = vpop.f32.mrb[0].mxu0
      %v2525 = vadd.f32 0.0, %v2524
      %v2526 = vpop.f32.mrb[0].mxu0
      %2527 = vdwg.mxu0
      %v2528 = vld [vmem:[#allocation2] sm:$0xff]
      %v2529 = vld [vmem:[#allocation2 + $0x8] sm:$0xff]
      %v2530 = vld [vmem:[#allocation2 + $0x10] sm:$0xff]
      %v2531 = vld [vmem:[#allocation2 + $0x18] sm:$0xff]
      %v2532 = vld [vmem:[#allocation2 + $0x20] sm:$0xff]
      %v2533 = vld [vmem:[#allocation2 + $0x28] sm:$0xff]
      %v2534 = vld [vmem:[#allocation2 + $0x30] sm:$0xff]
      %v2535 = vld [vmem:[#allocation2 + $0x38] sm:$0xff]
      %v2536 = vld [vmem:[#allocation2 + $0x40] sm:$0xff]
      %v2537 = vld [vmem:[#allocation2 + $0x48] sm:$0xff]
      %v2538 = vld [vmem:[#allocation2 + $0x50] sm:$0xff]
      %v2539 = vld [vmem:[#allocation2 + $0x58] sm:$0xff]
      %v2540 = vld [vmem:[#allocation2 + $0x60] sm:$0xff]
      %v2541 = vld [vmem:[#allocation2 + $0x68] sm:$0xff]
      %v2542 = vld [vmem:[#allocation2 + $0x70] sm:$0xff]
      %v2543 = vld [vmem:[#allocation2 + $0x78] sm:$0xff]
      %v2544 = vld [vmem:[#allocation2 + $0x80] sm:$0xff]
      %v2545 = vld [vmem:[#allocation2 + $0x88] sm:$0xff]
      %v2546 = vld [vmem:[#allocation2 + $0x90] sm:$0xff]
      %v2547 = vld [vmem:[#allocation2 + $0x98] sm:$0xff]
      %v2548 = vld [vmem:[#allocation2 + $0xa0] sm:$0xff]
      %v2549 = vld [vmem:[#allocation2 + $0xa8] sm:$0xff]
      %v2550 = vld [vmem:[#allocation2 + $0xb0] sm:$0xff]
      %v2551 = vld [vmem:[#allocation2 + $0xb8] sm:$0xff]
      %v2552 = vld [vmem:[#allocation2 + $0xc0] sm:$0xff]
      %v2553 = vld [vmem:[#allocation2 + $0xc8] sm:$0xff]
      %v2554 = vld [vmem:[#allocation2 + $0xd0] sm:$0xff]
      %v2555 = vld [vmem:[#allocation2 + $0xd8] sm:$0xff]
      %v2556 = vld [vmem:[#allocation2 + $0xe0] sm:$0xff]
      %v2557 = vld [vmem:[#allocation2 + $0xe8] sm:$0xff]
      %v2558 = vld [vmem:[#allocation2 + $0xf0] sm:$0xff]
      %v2559 = vld [vmem:[#allocation2 + $0xf8] sm:$0xff]
      %v2560 = vpack.c.bf16 %v2405, %v2402
      %v2561 = vpack.c.bf16 %v2413, %v2410
      %v2562 = vpack.c.bf16 %v2421, %v2418
      %v2563 = vpack.c.bf16 %v2429, %v2426
      %v2564 = vpack.c.bf16 %v2437, %v2434
      %v2565 = vpack.c.bf16 %v2445, %v2442
      %v2566 = vpack.c.bf16 %v2453, %v2450
      %v2567 = vpack.c.bf16 %v2461, %v2458
      %v2568 = vpack.c.bf16 %v2469, %v2466
      %v2569 = vpack.c.bf16 %v2477, %v2474
      %v2570 = vpack.c.bf16 %v2485, %v2482
      %v2571 = vpack.c.bf16 %v2493, %v2490
      %v2572 = vpack.c.bf16 %v2501, %v2498
      %v2573 = vpack.c.bf16 %v2509, %v2506
      %v2574 = vpack.c.bf16 %v2517, %v2514
      %v2575 = vpack.c.bf16 %v2525, %v2522
      %v2576 = vld [vmem:[%s4] sm:$0xf]
      %v2577 = vld [vmem:[%s4 + $0x4] sm:$0xf]
      %v2578 = vld [vmem:[%s4 + $0x8] sm:$0xf]
      %v2579 = vld [vmem:[%s4 + $0xc] sm:$0xf]
      %v2584 = vunpack.c.l.b16 %v2576
      %v2585 = vunpack.c.l.b16 %v2577
      %v2586 = vunpack.c.l.b16 %v2578
      %v2587 = vunpack.c.l.b16 %v2579
      %v2588 = vpack.c.b16 %v2585, %v2584
      %v2589 = vpack.c.b16 %v2587, %v2586
      %v2593 = vsel %vm1613, %v2560, 0
      %v2596 = vsel %vm1613, %v2561, 0
      %v2599 = vsel %vm1613, %v2562, 0
      %v2602 = vsel %vm1613, %v2563, 0
      %v2605 = vsel %vm1613, %v2564, 0
      %v2608 = vsel %vm1613, %v2565, 0
      %v2611 = vsel %vm1613, %v2566, 0
      %v2614 = vsel %vm1613, %v2567, 0
      %v2617 = vsel %vm1613, %v2568, 0
      %v2620 = vsel %vm1613, %v2569, 0
      %v2623 = vsel %vm1613, %v2570, 0
      %v2626 = vsel %vm1613, %v2571, 0
      %v2629 = vsel %vm1613, %v2572, 0
      %v2632 = vsel %vm1613, %v2573, 0
      %v2635 = vsel %vm1613, %v2574, 0
      %v2638 = vsel %vm1613, %v2575, 0
      %2640 = vmatprep.subr.bf16.mxu0 0
      %2641 = vmatpush1.bf16.msra.mxu0 %v2588
      %2642 = vmatprep.subr.bf16.mxu0 0
      %2643 = vmatpush1.bf16.msra.mxu0 %v2589
      %2644 = vmatprep.subr.bf16.mxu0 0
      %2645 = vmatpush1.bf16.msra.mxu0 0
      %2646 = vmatprep.subr.bf16.mxu0 0
      %2647 = vmatpush1.bf16.msra.mxu0 0
      %2648 = vmatprep.subr.bf16.mxu0 0
      %2649 = vmatpush1.bf16.msra.mxu0 0
      %2650 = vmatprep.subr.bf16.mxu0 0
      %2651 = vmatpush1.bf16.msra.mxu0 0
      %2652 = vmatprep.subr.bf16.mxu0 0
      %2653 = vmatpush1.bf16.msra.mxu0 0
      %2654 = vmatprep.subr.bf16.mxu0 0
      %2655 = vmatpush1.bf16.msra.mxu0 0
      %2656 = vmatprep.subr.bf16.mxu0 0
      %2657 = vmatpush1.bf16.msra.mxu0 0
      %2658 = vmatprep.subr.bf16.mxu0 0
      %2659 = vmatpush1.bf16.msra.mxu0 0
      %2660 = vmatprep.subr.bf16.mxu0 0
      %2661 = vmatpush1.bf16.msra.mxu0 0
      %2662 = vmatprep.subr.bf16.mxu0 0
      %2663 = vmatpush1.bf16.msra.mxu0 0
      %2664 = vmatprep.subr.bf16.mxu0 0
      %2665 = vmatpush1.bf16.msra.mxu0 0
      %2666 = vmatprep.subr.bf16.mxu0 0
      %2667 = vmatpush1.bf16.msra.mxu0 0
      %2668 = vmatprep.subr.bf16.mxu0 0
      %2669 = vmatpush1.bf16.msra.mxu0 0
      %2670 = vmatprep.subr.bf16.mxu0 0
      %2671 = vmatpush1.bf16.msra.mxu0 0
      %2672 = vmatprep.mubr.bf16.mxu0 0
      %2673 = vmatmul.mubr.bf16.gmra.mrb[0].mxu0 %v2593
      %v2674 = vpop.f32.mrb[0].mxu0
      %v2675 = vadd.f32 0.0, %v2674
      %v2676 = vpop.f32.mrb[0].mxu0
      %v2677 = vpop.f32.mrb[0].mxu0
      %v2678 = vadd.f32 0.0, %v2677
      %v2679 = vpop.f32.mrb[0].mxu0
      %2680 = vmatprep.mubr.bf16.mxu0 0
      %2681 = vmatmul.mubr.bf16.gmra.mrb[0].mxu0 %v2596
      %v2682 = vpop.f32.mrb[0].mxu0
      %v2683 = vadd.f32 0.0, %v2682
      %v2684 = vpop.f32.mrb[0].mxu0
      %v2685 = vpop.f32.mrb[0].mxu0
      %v2686 = vadd.f32 0.0, %v2685
      %v2687 = vpop.f32.mrb[0].mxu0
      %2688 = vmatprep.mubr.bf16.mxu0 0
      %2689 = vmatmul.mubr.bf16.gmra.mrb[0].mxu0 %v2599
      %v2690 = vpop.f32.mrb[0].mxu0
      %v2691 = vadd.f32 0.0, %v2690
      %v2692 = vpop.f32.mrb[0].mxu0
      %v2693 = vpop.f32.mrb[0].mxu0
      %v2694 = vadd.f32 0.0, %v2693
      %v2695 = vpop.f32.mrb[0].mxu0
      %2696 = vmatprep.mubr.bf16.mxu0 0
      %2697 = vmatmul.mubr.bf16.gmra.mrb[0].mxu0 %v2602
      %v2698 = vpop.f32.mrb[0].mxu0
      %v2699 = vadd.f32 0.0, %v2698
      %v2700 = vpop.f32.mrb[0].mxu0
      %v2701 = vpop.f32.mrb[0].mxu0
      %v2702 = vadd.f32 0.0, %v2701
      %v2703 = vpop.f32.mrb[0].mxu0
      %2704 = vmatprep.mubr.bf16.mxu0 0
      %2705 = vmatmul.mubr.bf16.gmra.mrb[0].mxu0 %v2605
      %v2706 = vpop.f32.mrb[0].mxu0
      %v2707 = vadd.f32 0.0, %v2706
      %v2708 = vpop.f32.mrb[0].mxu0
      %v2709 = vpop.f32.mrb[0].mxu0
      %v2710 = vadd.f32 0.0, %v2709
      %v2711 = vpop.f32.mrb[0].mxu0
      %2712 = vmatprep.mubr.bf16.mxu0 0
      %2713 = vmatmul.mubr.bf16.gmra.mrb[0].mxu0 %v2608
      %v2714 = vpop.f32.mrb[0].mxu0
      %v2715 = vadd.f32 0.0, %v2714
      %v2716 = vpop.f32.mrb[0].mxu0
      %v2717 = vpop.f32.mrb[0].mxu0
      %v2718 = vadd.f32 0.0, %v2717
      %v2719 = vpop.f32.mrb[0].mxu0
      %2720 = vmatprep.mubr.bf16.mxu0 0
      %2721 = vmatmul.mubr.bf16.gmra.mrb[0].mxu0 %v2611
      %v2722 = vpop.f32.mrb[0].mxu0
      %v2723 = vadd.f32 0.0, %v2722
      %v2724 = vpop.f32.mrb[0].mxu0
      %v2725 = vpop.f32.mrb[0].mxu0
      %v2726 = vadd.f32 0.0, %v2725
      %v2727 = vpop.f32.mrb[0].mxu0
      %2728 = vmatprep.mubr.bf16.mxu0 0
      %2729 = vmatmul.mubr.bf16.gmra.mrb[0].mxu0 %v2614
      %v2730 = vpop.f32.mrb[0].mxu0
      %v2731 = vadd.f32 0.0, %v2730
      %v2732 = vpop.f32.mrb[0].mxu0
      %v2733 = vpop.f32.mrb[0].mxu0
      %v2734 = vadd.f32 0.0, %v2733
      %v2735 = vpop.f32.mrb[0].mxu0
      %2736 = vmatprep.mubr.bf16.mxu0 0
      %2737 = vmatmul.mubr.bf16.gmra.mrb[0].mxu0 %v2617
      %v2738 = vpop.f32.mrb[0].mxu0
      %v2739 = vadd.f32 0.0, %v2738
      %v2740 = vpop.f32.mrb[0].mxu0
      %v2741 = vpop.f32.mrb[0].mxu0
      %v2742 = vadd.f32 0.0, %v2741
      %v2743 = vpop.f32.mrb[0].mxu0
      %2744 = vmatprep.mubr.bf16.mxu0 0
      %2745 = vmatmul.mubr.bf16.gmra.mrb[0].mxu0 %v2620
      %v2746 = vpop.f32.mrb[0].mxu0
      %v2747 = vadd.f32 0.0, %v2746
      %v2748 = vpop.f32.mrb[0].mxu0
      %v2749 = vpop.f32.mrb[0].mxu0
      %v2750 = vadd.f32 0.0, %v2749
      %v2751 = vpop.f32.mrb[0].mxu0
      %2752 = vmatprep.mubr.bf16.mxu0 0
      %2753 = vmatmul.mubr.bf16.gmra.mrb[0].mxu0 %v2623
      %v2754 = vpop.f32.mrb[0].mxu0
      %v2755 = vadd.f32 0.0, %v2754
      %v2756 = vpop.f32.mrb[0].mxu0
      %v2757 = vpop.f32.mrb[0].mxu0
      %v2758 = vadd.f32 0.0, %v2757
      %v2759 = vpop.f32.mrb[0].mxu0
      %2760 = vmatprep.mubr.bf16.mxu0 0
      %2761 = vmatmul.mubr.bf16.gmra.mrb[0].mxu0 %v2626
      %v2762 = vpop.f32.mrb[0].mxu0
      %v2763 = vadd.f32 0.0, %v2762
      %v2764 = vpop.f32.mrb[0].mxu0
      %v2765 = vpop.f32.mrb[0].mxu0
      %v2766 = vadd.f32 0.0, %v2765
      %v2767 = vpop.f32.mrb[0].mxu0
      %2768 = vmatprep.mubr.bf16.mxu0 0
      %2769 = vmatmul.mubr.bf16.gmra.mrb[0].mxu0 %v2629
      %v2770 = vpop.f32.mrb[0].mxu0
      %v2771 = vadd.f32 0.0, %v2770
      %v2772 = vpop.f32.mrb[0].mxu0
      %v2773 = vpop.f32.mrb[0].mxu0
      %v2774 = vadd.f32 0.0, %v2773
      %v2775 = vpop.f32.mrb[0].mxu0
      %2776 = vmatprep.mubr.bf16.mxu0 0
      %2777 = vmatmul.mubr.bf16.gmra.mrb[0].mxu0 %v2632
      %v2778 = vpop.f32.mrb[0].mxu0
      %v2779 = vadd.f32 0.0, %v2778
      %v2780 = vpop.f32.mrb[0].mxu0
      %v2781 = vpop.f32.mrb[0].mxu0
      %v2782 = vadd.f32 0.0, %v2781
      %v2783 = vpop.f32.mrb[0].mxu0
      %2784 = vmatprep.mubr.bf16.mxu0 0
      %2785 = vmatmul.mubr.bf16.gmra.mrb[0].mxu0 %v2635
      %v2786 = vpop.f32.mrb[0].mxu0
      %v2787 = vadd.f32 0.0, %v2786
      %v2788 = vpop.f32.mrb[0].mxu0
      %v2789 = vpop.f32.mrb[0].mxu0
      %v2790 = vadd.f32 0.0, %v2789
      %v2791 = vpop.f32.mrb[0].mxu0
      %2792 = vmatprep.mubr.bf16.mxu0 0
      %2793 = vmatmul.mubr.bf16.gmra.mrb[0].mxu0 %v2638
      %v2794 = vpop.f32.mrb[0].mxu0
      %v2795 = vadd.f32 0.0, %v2794
      %v2796 = vpop.f32.mrb[0].mxu0
      %v2797 = vpop.f32.mrb[0].mxu0
      %v2798 = vadd.f32 0.0, %v2797
      %v2799 = vpop.f32.mrb[0].mxu0
      %2800 = vdwg.mxu0
      %v2801 = vadd.f32 %v2528, %v2675
      %v2802 = vadd.f32 %v2529, %v2678
      %v2803 = vadd.f32 %v2530, %v2683
      %v2804 = vadd.f32 %v2531, %v2686
      %v2805 = vadd.f32 %v2532, %v2691
      %v2806 = vadd.f32 %v2533, %v2694
      %v2807 = vadd.f32 %v2534, %v2699
      %v2808 = vadd.f32 %v2535, %v2702
      %v2809 = vadd.f32 %v2536, %v2707
      %v2810 = vadd.f32 %v2537, %v2710
      %v2811 = vadd.f32 %v2538, %v2715
      %v2812 = vadd.f32 %v2539, %v2718
      %v2813 = vadd.f32 %v2540, %v2723
      %v2814 = vadd.f32 %v2541, %v2726
      %v2815 = vadd.f32 %v2542, %v2731
      %v2816 = vadd.f32 %v2543, %v2734
      %v2817 = vadd.f32 %v2544, %v2739
      %v2818 = vadd.f32 %v2545, %v2742
      %v2819 = vadd.f32 %v2546, %v2747
      %v2820 = vadd.f32 %v2547, %v2750
      %v2821 = vadd.f32 %v2548, %v2755
      %v2822 = vadd.f32 %v2549, %v2758
      %v2823 = vadd.f32 %v2550, %v2763
      %v2824 = vadd.f32 %v2551, %v2766
      %v2825 = vadd.f32 %v2552, %v2771
      %v2826 = vadd.f32 %v2553, %v2774
      %v2827 = vadd.f32 %v2554, %v2779
      %v2828 = vadd.f32 %v2555, %v2782
      %v2829 = vadd.f32 %v2556, %v2787
      %v2830 = vadd.f32 %v2557, %v2790
      %v2831 = vadd.f32 %v2558, %v2795
      %v2832 = vadd.f32 %v2559, %v2798
      %2833 = vst [vmem:[#allocation2] sm:$0xff] %v2801
      %2834 = vst [vmem:[#allocation2 + $0x8] sm:$0xff] %v2802
      %2835 = vst [vmem:[#allocation2 + $0x10] sm:$0xff] %v2803
      %2836 = vst [vmem:[#allocation2 + $0x18] sm:$0xff] %v2804
      %2837 = vst [vmem:[#allocation2 + $0x20] sm:$0xff] %v2805
      %2838 = vst [vmem:[#allocation2 + $0x28] sm:$0xff] %v2806
      %2839 = vst [vmem:[#allocation2 + $0x30] sm:$0xff] %v2807
      %2840 = vst [vmem:[#allocation2 + $0x38] sm:$0xff] %v2808
      %2841 = vst [vmem:[#allocation2 + $0x40] sm:$0xff] %v2809
      %2842 = vst [vmem:[#allocation2 + $0x48] sm:$0xff] %v2810
      %2843 = vst [vmem:[#allocation2 + $0x50] sm:$0xff] %v2811
      %2844 = vst [vmem:[#allocation2 + $0x58] sm:$0xff] %v2812
      %2845 = vst [vmem:[#allocation2 + $0x60] sm:$0xff] %v2813
      %2846 = vst [vmem:[#allocation2 + $0x68] sm:$0xff] %v2814
      %2847 = vst [vmem:[#allocation2 + $0x70] sm:$0xff] %v2815
      %2848 = vst [vmem:[#allocation2 + $0x78] sm:$0xff] %v2816
      %2849 = vst [vmem:[#allocation2 + $0x80] sm:$0xff] %v2817
      %2850 = vst [vmem:[#allocation2 + $0x88] sm:$0xff] %v2818
      %2851 = vst [vmem:[#allocation2 + $0x90] sm:$0xff] %v2819
      %2852 = vst [vmem:[#allocation2 + $0x98] sm:$0xff] %v2820
      %2853 = vst [vmem:[#allocation2 + $0xa0] sm:$0xff] %v2821
      %2854 = vst [vmem:[#allocation2 + $0xa8] sm:$0xff] %v2822
      %2855 = vst [vmem:[#allocation2 + $0xb0] sm:$0xff] %v2823
      %2856 = vst [vmem:[#allocation2 + $0xb8] sm:$0xff] %v2824
      %2857 = vst [vmem:[#allocation2 + $0xc0] sm:$0xff] %v2825
      %2858 = vst [vmem:[#allocation2 + $0xc8] sm:$0xff] %v2826
      %2859 = vst [vmem:[#allocation2 + $0xd0] sm:$0xff] %v2827
      %2860 = vst [vmem:[#allocation2 + $0xd8] sm:$0xff] %v2828
      %2861 = vst [vmem:[#allocation2 + $0xe0] sm:$0xff] %v2829
      %2862 = vst [vmem:[#allocation2 + $0xe8] sm:$0xff] %v2830
      %2863 = vst [vmem:[#allocation2 + $0xf0] sm:$0xff] %v2831
      %2864 = vst [vmem:[#allocation2 + $0xf8] sm:$0xff] %v2832
      %2881 = vrot.lane.b32.xlu0 %v1430, 96
      %v2882 = vpop.permute.xlu0 %2881
      %2883 = vrot.lane.b32.xlu0 %v1431, 96
      %v2884 = vpop.permute.xlu0 %2883
      %2885 = vrot.lane.b32.xlu0 %v1432, 96
      %v2886 = vpop.permute.xlu0 %2885
      %2887 = vrot.lane.b32.xlu0 %v1433, 96
      %v2888 = vpop.permute.xlu0 %2887
      %2889 = vrot.lane.b32.xlu0 %v1434, 96
      %v2890 = vpop.permute.xlu0 %2889
      %2891 = vrot.lane.b32.xlu0 %v1435, 96
      %v2892 = vpop.permute.xlu0 %2891
      %2893 = vrot.lane.b32.xlu0 %v1436, 96
      %v2894 = vpop.permute.xlu0 %2893
      %2895 = vrot.lane.b32.xlu0 %v1437, 96
      %v2896 = vpop.permute.xlu0 %2895
      %2897 = vrot.lane.b32.xlu0 %v1438, 96
      %v2898 = vpop.permute.xlu0 %2897
      %2899 = vrot.lane.b32.xlu0 %v1439, 96
      %v2900 = vpop.permute.xlu0 %2899
      %2901 = vrot.lane.b32.xlu0 %v1440, 96
      %v2902 = vpop.permute.xlu0 %2901
      %2903 = vrot.lane.b32.xlu0 %v1441, 96
      %v2904 = vpop.permute.xlu0 %2903
      %2905 = vrot.lane.b32.xlu0 %v1442, 96
      %v2906 = vpop.permute.xlu0 %2905
      %2907 = vrot.lane.b32.xlu0 %v1443, 96
      %v2908 = vpop.permute.xlu0 %2907
      %2909 = vrot.lane.b32.xlu0 %v1444, 96
      %v2910 = vpop.permute.xlu0 %2909
      %2911 = vrot.lane.b32.xlu0 %v1445, 96
      %v2912 = vpop.permute.xlu0 %2911
      %v2914 = vsel %vm1613, %v2882, 0
      %v2917 = vsel %vm1613, %v2884, 0
      %v2920 = vsel %vm1613, %v2886, 0
      %v2923 = vsel %vm1613, %v2888, 0
      %v2926 = vsel %vm1613, %v2890, 0
      %v2929 = vsel %vm1613, %v2892, 0
      %v2932 = vsel %vm1613, %v2894, 0
      %v2935 = vsel %vm1613, %v2896, 0
      %v2938 = vsel %vm1613, %v2898, 0
      %v2941 = vsel %vm1613, %v2900, 0
      %v2944 = vsel %vm1613, %v2902, 0
      %v2947 = vsel %vm1613, %v2904, 0
      %v2950 = vsel %vm1613, %v2906, 0
      %v2953 = vsel %vm1613, %v2908, 0
      %v2956 = vsel %vm1613, %v2910, 0
      %v2959 = vsel %vm1613, %v2912, 0
      %2961 = vmatprep.subr.bf16.mxu0 %v1515
      %2962 = vmatpush1.bf16.msra.mxu0 %v1514
      %2963 = vmatprep.subr.bf16.mxu0 %v1517
      %2964 = vmatpush1.bf16.msra.mxu0 %v1516
      %2965 = vmatprep.subr.bf16.mxu0 0
      %2966 = vmatpush1.bf16.msra.mxu0 0
      %2967 = vmatprep.subr.bf16.mxu0 0
      %2968 = vmatpush1.bf16.msra.mxu0 0
      %2969 = vmatprep.subr.bf16.mxu0 0
      %2970 = vmatpush1.bf16.msra.mxu0 0
      %2971 = vmatprep.subr.bf16.mxu0 0
      %2972 = vmatpush1.bf16.msra.mxu0 0
      %2973 = vmatprep.subr.bf16.mxu0 0
      %2974 = vmatpush1.bf16.msra.mxu0 0
      %2975 = vmatprep.subr.bf16.mxu0 0
      %2976 = vmatpush1.bf16.msra.mxu0 0
      %2977 = vmatprep.subr.bf16.mxu0 0
      %2978 = vmatpush1.bf16.msra.mxu0 0
      %2979 = vmatprep.subr.bf16.mxu0 0
      %2980 = vmatpush1.bf16.msra.mxu0 0
      %2981 = vmatprep.subr.bf16.mxu0 0
      %2982 = vmatpush1.bf16.msra.mxu0 0
      %2983 = vmatprep.subr.bf16.mxu0 0
      %2984 = vmatpush1.bf16.msra.mxu0 0
      %2985 = vmatprep.subr.bf16.mxu0 0
      %2986 = vmatpush1.bf16.msra.mxu0 0
      %2987 = vmatprep.subr.bf16.mxu0 0
      %2988 = vmatpush1.bf16.msra.mxu0 0
      %2989 = vmatprep.subr.bf16.mxu0 0
      %2990 = vmatpush1.bf16.msra.mxu0 0
      %2991 = vmatprep.subr.bf16.mxu0 0
      %2992 = vmatpush1.bf16.msra.mxu0 0
      %2993 = vmatprep.mubr.bf16.mxu0 0
      %2994 = vmatmul.mubr.bf16.gmra.mrb[0].mxu0 %v2914
      %v2995 = vpop.f32.mrb[0].mxu0
      %v2996 = vadd.f32 0.0, %v2995
      %v2997 = vpop.f32.mrb[0].mxu0
      %v2998 = vadd.f32 0.0, %v2997
      %v2999 = vpop.f32.mrb[0].mxu0
      %v3000 = vadd.f32 0.0, %v2999
      %v3001 = vpop.f32.mrb[0].mxu0
      %v3002 = vadd.f32 0.0, %v3001
      %3003 = vmatprep.mubr.bf16.mxu0 0
      %3004 = vmatmul.mubr.bf16.gmra.mrb[0].mxu0 %v2917
      %v3005 = vpop.f32.mrb[0].mxu0
      %v3006 = vadd.f32 0.0, %v3005
      %v3007 = vpop.f32.mrb[0].mxu0
      %v3008 = vadd.f32 0.0, %v3007
      %v3009 = vpop.f32.mrb[0].mxu0
      %v3010 = vadd.f32 0.0, %v3009
      %v3011 = vpop.f32.mrb[0].mxu0
      %v3012 = vadd.f32 0.0, %v3011
      %3013 = vmatprep.mubr.bf16.mxu0 0
      %3014 = vmatmul.mubr.bf16.gmra.mrb[0].mxu0 %v2920
      %v3015 = vpop.f32.mrb[0].mxu0
      %v3016 = vadd.f32 0.0, %v3015
      %v3017 = vpop.f32.mrb[0].mxu0
      %v3018 = vadd.f32 0.0, %v3017
      %v3019 = vpop.f32.mrb[0].mxu0
      %v3020 = vadd.f32 0.0, %v3019
      %v3021 = vpop.f32.mrb[0].mxu0
      %v3022 = vadd.f32 0.0, %v3021
      %3023 = vmatprep.mubr.bf16.mxu0 0
      %3024 = vmatmul.mubr.bf16.gmra.mrb[0].mxu0 %v2923
      %v3025 = vpop.f32.mrb[0].mxu0
      %v3026 = vadd.f32 0.0, %v3025
      %v3027 = vpop.f32.mrb[0].mxu0
      %v3028 = vadd.f32 0.0, %v3027
      %v3029 = vpop.f32.mrb[0].mxu0
      %v3030 = vadd.f32 0.0, %v3029
      %v3031 = vpop.f32.mrb[0].mxu0
      %v3032 = vadd.f32 0.0, %v3031
      %3033 = vmatprep.mubr.bf16.mxu0 0
      %3034 = vmatmul.mubr.bf16.gmra.mrb[0].mxu0 %v2926
      %v3035 = vpop.f32.mrb[0].mxu0
      %v3036 = vadd.f32 0.0, %v3035
      %v3037 = vpop.f32.mrb[0].mxu0
      %v3038 = vadd.f32 0.0, %v3037
      %v3039 = vpop.f32.mrb[0].mxu0
      %v3040 = vadd.f32 0.0, %v3039
      %v3041 = vpop.f32.mrb[0].mxu0
      %v3042 = vadd.f32 0.0, %v3041
      %3043 = vmatprep.mubr.bf16.mxu0 0
      %3044 = vmatmul.mubr.bf16.gmra.mrb[0].mxu0 %v2929
      %v3045 = vpop.f32.mrb[0].mxu0
      %v3046 = vadd.f32 0.0, %v3045
      %v3047 = vpop.f32.mrb[0].mxu0
      %v3048 = vadd.f32 0.0, %v3047
      %v3049 = vpop.f32.mrb[0].mxu0
      %v3050 = vadd.f32 0.0, %v3049
      %v3051 = vpop.f32.mrb[0].mxu0
      %v3052 = vadd.f32 0.0, %v3051
      %3053 = vmatprep.mubr.bf16.mxu0 0
      %3054 = vmatmul.mubr.bf16.gmra.mrb[0].mxu0 %v2932
      %v3055 = vpop.f32.mrb[0].mxu0
      %v3056 = vadd.f32 0.0, %v3055
      %v3057 = vpop.f32.mrb[0].mxu0
      %v3058 = vadd.f32 0.0, %v3057
      %v3059 = vpop.f32.mrb[0].mxu0
      %v3060 = vadd.f32 0.0, %v3059
      %v3061 = vpop.f32.mrb[0].mxu0
      %v3062 = vadd.f32 0.0, %v3061
      %3063 = vmatprep.mubr.bf16.mxu0 0
      %3064 = vmatmul.mubr.bf16.gmra.mrb[0].mxu0 %v2935
      %v3065 = vpop.f32.mrb[0].mxu0
      %v3066 = vadd.f32 0.0, %v3065
      %v3067 = vpop.f32.mrb[0].mxu0
      %v3068 = vadd.f32 0.0, %v3067
      %v3069 = vpop.f32.mrb[0].mxu0
      %v3070 = vadd.f32 0.0, %v3069
      %v3071 = vpop.f32.mrb[0].mxu0
      %v3072 = vadd.f32 0.0, %v3071
      %3073 = vmatprep.mubr.bf16.mxu0 0
      %3074 = vmatmul.mubr.bf16.gmra.mrb[0].mxu0 %v2938
      %v3075 = vpop.f32.mrb[0].mxu0
      %v3076 = vadd.f32 0.0, %v3075
      %v3077 = vpop.f32.mrb[0].mxu0
      %v3078 = vadd.f32 0.0, %v3077
      %v3079 = vpop.f32.mrb[0].mxu0
      %v3080 = vadd.f32 0.0, %v3079
      %v3081 = vpop.f32.mrb[0].mxu0
      %v3082 = vadd.f32 0.0, %v3081
      %3083 = vmatprep.mubr.bf16.mxu0 0
      %3084 = vmatmul.mubr.bf16.gmra.mrb[0].mxu0 %v2941
      %v3085 = vpop.f32.mrb[0].mxu0
      %v3086 = vadd.f32 0.0, %v3085
      %v3087 = vpop.f32.mrb[0].mxu0
      %v3088 = vadd.f32 0.0, %v3087
      %v3089 = vpop.f32.mrb[0].mxu0
      %v3090 = vadd.f32 0.0, %v3089
      %v3091 = vpop.f32.mrb[0].mxu0
      %v3092 = vadd.f32 0.0, %v3091
      %3093 = vmatprep.mubr.bf16.mxu0 0
      %3094 = vmatmul.mubr.bf16.gmra.mrb[0].mxu0 %v2944
      %v3095 = vpop.f32.mrb[0].mxu0
      %v3096 = vadd.f32 0.0, %v3095
      %v3097 = vpop.f32.mrb[0].mxu0
      %v3098 = vadd.f32 0.0, %v3097
      %v3099 = vpop.f32.mrb[0].mxu0
      %v3100 = vadd.f32 0.0, %v3099
      %v3101 = vpop.f32.mrb[0].mxu0
      %v3102 = vadd.f32 0.0, %v3101
      %3103 = vmatprep.mubr.bf16.mxu0 0
      %3104 = vmatmul.mubr.bf16.gmra.mrb[0].mxu0 %v2947
      %v3105 = vpop.f32.mrb[0].mxu0
      %v3106 = vadd.f32 0.0, %v3105
      %v3107 = vpop.f32.mrb[0].mxu0
      %v3108 = vadd.f32 0.0, %v3107
      %v3109 = vpop.f32.mrb[0].mxu0
      %v3110 = vadd.f32 0.0, %v3109
      %v3111 = vpop.f32.mrb[0].mxu0
      %v3112 = vadd.f32 0.0, %v3111
      %3113 = vmatprep.mubr.bf16.mxu0 0
      %3114 = vmatmul.mubr.bf16.gmra.mrb[0].mxu0 %v2950
      %v3115 = vpop.f32.mrb[0].mxu0
      %v3116 = vadd.f32 0.0, %v3115
      %v3117 = vpop.f32.mrb[0].mxu0
      %v3118 = vadd.f32 0.0, %v3117
      %v3119 = vpop.f32.mrb[0].mxu0
      %v3120 = vadd.f32 0.0, %v3119
      %v3121 = vpop.f32.mrb[0].mxu0
      %v3122 = vadd.f32 0.0, %v3121
      %3123 = vmatprep.mubr.bf16.mxu0 0
      %3124 = vmatmul.mubr.bf16.gmra.mrb[0].mxu0 %v2953
      %v3125 = vpop.f32.mrb[0].mxu0
      %v3126 = vadd.f32 0.0, %v3125
      %v3127 = vpop.f32.mrb[0].mxu0
      %v3128 = vadd.f32 0.0, %v3127
      %v3129 = vpop.f32.mrb[0].mxu0
      %v3130 = vadd.f32 0.0, %v3129
      %v3131 = vpop.f32.mrb[0].mxu0
      %v3132 = vadd.f32 0.0, %v3131
      %3133 = vmatprep.mubr.bf16.mxu0 0
      %3134 = vmatmul.mubr.bf16.gmra.mrb[0].mxu0 %v2956
      %v3135 = vpop.f32.mrb[0].mxu0
      %v3136 = vadd.f32 0.0, %v3135
      %v3137 = vpop.f32.mrb[0].mxu0
      %v3138 = vadd.f32 0.0, %v3137
      %v3139 = vpop.f32.mrb[0].mxu0
      %v3140 = vadd.f32 0.0, %v3139
      %v3141 = vpop.f32.mrb[0].mxu0
      %v3142 = vadd.f32 0.0, %v3141
      %3143 = vmatprep.mubr.bf16.mxu0 0
      %3144 = vmatmul.mubr.bf16.gmra.mrb[0].mxu0 %v2959
      %v3145 = vpop.f32.mrb[0].mxu0
      %v3146 = vadd.f32 0.0, %v3145
      %v3147 = vpop.f32.mrb[0].mxu0
      %v3148 = vadd.f32 0.0, %v3147
      %v3149 = vpop.f32.mrb[0].mxu0
      %v3150 = vadd.f32 0.0, %v3149
      %v3151 = vpop.f32.mrb[0].mxu0
      %v3152 = vadd.f32 0.0, %v3151
      %3153 = vdwg.mxu0
      %v3154 = vmax.f32 %v2996, %v2998
      %3155 = vmax.xlane.f32.xlu0 %v3154
      %v3156 = vpop.xlane.xlu0 %3155
      %v3157 = vmax.f32 %v3000, %v3002
      %3158 = vmax.xlane.f32.xlu0 %v3157
      %v3159 = vpop.xlane.xlu0 %3158
      %v3160 = vmax.f32 %v3006, %v3008
      %3161 = vmax.xlane.f32.xlu0 %v3160
      %v3162 = vpop.xlane.xlu0 %3161
      %v3163 = vmax.f32 %v3010, %v3012
      %3164 = vmax.xlane.f32.xlu0 %v3163
      %v3165 = vpop.xlane.xlu0 %3164
      %v3166 = vmax.f32 %v3016, %v3018
      %3167 = vmax.xlane.f32.xlu0 %v3166
      %v3168 = vpop.xlane.xlu0 %3167
      %v3169 = vmax.f32 %v3020, %v3022
      %3170 = vmax.xlane.f32.xlu0 %v3169
      %v3171 = vpop.xlane.xlu0 %3170
      %v3172 = vmax.f32 %v3026, %v3028
      %3173 = vmax.xlane.f32.xlu0 %v3172
      %v3174 = vpop.xlane.xlu0 %3173
      %v3175 = vmax.f32 %v3030, %v3032
      %3176 = vmax.xlane.f32.xlu0 %v3175
      %v3177 = vpop.xlane.xlu0 %3176
      %v3178 = vmax.f32 %v3036, %v3038
      %3179 = vmax.xlane.f32.xlu0 %v3178
      %v3180 = vpop.xlane.xlu0 %3179
      %v3181 = vmax.f32 %v3040, %v3042
      %3182 = vmax.xlane.f32.xlu0 %v3181
      %v3183 = vpop.xlane.xlu0 %3182
      %v3184 = vmax.f32 %v3046, %v3048
      %3185 = vmax.xlane.f32.xlu0 %v3184
      %v3186 = vpop.xlane.xlu0 %3185
      %v3187 = vmax.f32 %v3050, %v3052
      %3188 = vmax.xlane.f32.xlu0 %v3187
      %v3189 = vpop.xlane.xlu0 %3188
      %v3190 = vmax.f32 %v3056, %v3058
      %3191 = vmax.xlane.f32.xlu0 %v3190
      %v3192 = vpop.xlane.xlu0 %3191
      %v3193 = vmax.f32 %v3060, %v3062
      %3194 = vmax.xlane.f32.xlu0 %v3193
      %v3195 = vpop.xlane.xlu0 %3194
      %v3196 = vmax.f32 %v3066, %v3068
      %3197 = vmax.xlane.f32.xlu0 %v3196
      %v3198 = vpop.xlane.xlu0 %3197
      %v3199 = vmax.f32 %v3070, %v3072
      %3200 = vmax.xlane.f32.xlu0 %v3199
      %v3201 = vpop.xlane.xlu0 %3200
      %v3202 = vmax.f32 %v3076, %v3078
      %3203 = vmax.xlane.f32.xlu0 %v3202
      %v3204 = vpop.xlane.xlu0 %3203
      %v3205 = vmax.f32 %v3080, %v3082
      %3206 = vmax.xlane.f32.xlu0 %v3205
      %v3207 = vpop.xlane.xlu0 %3206
      %v3208 = vmax.f32 %v3086, %v3088
      %3209 = vmax.xlane.f32.xlu0 %v3208
      %v3210 = vpop.xlane.xlu0 %3209
      %v3211 = vmax.f32 %v3090, %v3092
      %3212 = vmax.xlane.f32.xlu0 %v3211
      %v3213 = vpop.xlane.xlu0 %3212
      %v3214 = vmax.f32 %v3096, %v3098
      %3215 = vmax.xlane.f32.xlu0 %v3214
      %v3216 = vpop.xlane.xlu0 %3215
      %v3217 = vmax.f32 %v3100, %v3102
      %3218 = vmax.xlane.f32.xlu0 %v3217
      %v3219 = vpop.xlane.xlu0 %3218
      %v3220 = vmax.f32 %v3106, %v3108
      %3221 = vmax.xlane.f32.xlu0 %v3220
      %v3222 = vpop.xlane.xlu0 %3221
      %v3223 = vmax.f32 %v3110, %v3112
      %3224 = vmax.xlane.f32.xlu0 %v3223
      %v3225 = vpop.xlane.xlu0 %3224
      %v3226 = vmax.f32 %v3116, %v3118
      %3227 = vmax.xlane.f32.xlu0 %v3226
      %v3228 = vpop.xlane.xlu0 %3227
      %v3229 = vmax.f32 %v3120, %v3122
      %3230 = vmax.xlane.f32.xlu0 %v3229
      %v3231 = vpop.xlane.xlu0 %3230
      %v3232 = vmax.f32 %v3126, %v3128
      %3233 = vmax.xlane.f32.xlu0 %v3232
      %v3234 = vpop.xlane.xlu0 %3233
      %v3235 = vmax.f32 %v3130, %v3132
      %3236 = vmax.xlane.f32.xlu0 %v3235
      %v3237 = vpop.xlane.xlu0 %3236
      %v3238 = vmax.f32 %v3136, %v3138
      %3239 = vmax.xlane.f32.xlu0 %v3238
      %v3240 = vpop.xlane.xlu0 %3239
      %v3241 = vmax.f32 %v3140, %v3142
      %3242 = vmax.xlane.f32.xlu0 %v3241
      %v3243 = vpop.xlane.xlu0 %3242
      %v3244 = vmax.f32 %v3146, %v3148
      %3245 = vmax.xlane.f32.xlu0 %v3244
      %v3246 = vpop.xlane.xlu0 %3245
      %v3247 = vmax.f32 %v3150, %v3152
      %3248 = vmax.xlane.f32.xlu0 %v3247
      %v3249 = vpop.xlane.xlu0 %3248
      %v3250 = vsub.f32 %v2996, %v3156
      %v3251 = vsub.f32 %v2998, %v3156
      %v3252 = vsub.f32 %v3000, %v3159
      %v3253 = vsub.f32 %v3002, %v3159
      %v3254 = vsub.f32 %v3006, %v3162
      %v3255 = vsub.f32 %v3008, %v3162
      %v3256 = vsub.f32 %v3010, %v3165
      %v3257 = vsub.f32 %v3012, %v3165
      %v3258 = vsub.f32 %v3016, %v3168
      %v3259 = vsub.f32 %v3018, %v3168
      %v3260 = vsub.f32 %v3020, %v3171
      %v3261 = vsub.f32 %v3022, %v3171
      %v3262 = vsub.f32 %v3026, %v3174
      %v3263 = vsub.f32 %v3028, %v3174
      %v3264 = vsub.f32 %v3030, %v3177
      %v3265 = vsub.f32 %v3032, %v3177
      %v3266 = vsub.f32 %v3036, %v3180
      %v3267 = vsub.f32 %v3038, %v3180
      %v3268 = vsub.f32 %v3040, %v3183
      %v3269 = vsub.f32 %v3042, %v3183
      %v3270 = vsub.f32 %v3046, %v3186
      %v3271 = vsub.f32 %v3048, %v3186
      %v3272 = vsub.f32 %v3050, %v3189
      %v3273 = vsub.f32 %v3052, %v3189
      %v3274 = vsub.f32 %v3056, %v3192
      %v3275 = vsub.f32 %v3058, %v3192
      %v3276 = vsub.f32 %v3060, %v3195
      %v3277 = vsub.f32 %v3062, %v3195
      %v3278 = vsub.f32 %v3066, %v3198
      %v3279 = vsub.f32 %v3068, %v3198
      %v3280 = vsub.f32 %v3070, %v3201
      %v3281 = vsub.f32 %v3072, %v3201
      %v3282 = vsub.f32 %v3076, %v3204
      %v3283 = vsub.f32 %v3078, %v3204
      %v3284 = vsub.f32 %v3080, %v3207
      %v3285 = vsub.f32 %v3082, %v3207
      %v3286 = vsub.f32 %v3086, %v3210
      %v3287 = vsub.f32 %v3088, %v3210
      %v3288 = vsub.f32 %v3090, %v3213
      %v3289 = vsub.f32 %v3092, %v3213
      %v3290 = vsub.f32 %v3096, %v3216
      %v3291 = vsub.f32 %v3098, %v3216
      %v3292 = vsub.f32 %v3100, %v3219
      %v3293 = vsub.f32 %v3102, %v3219
      %v3294 = vsub.f32 %v3106, %v3222
      %v3295 = vsub.f32 %v3108, %v3222
      %v3296 = vsub.f32 %v3110, %v3225
      %v3297 = vsub.f32 %v3112, %v3225
      %v3298 = vsub.f32 %v3116, %v3228
      %v3299 = vsub.f32 %v3118, %v3228
      %v3300 = vsub.f32 %v3120, %v3231
      %v3301 = vsub.f32 %v3122, %v3231
      %v3302 = vsub.f32 %v3126, %v3234
      %v3303 = vsub.f32 %v3128, %v3234
      %v3304 = vsub.f32 %v3130, %v3237
      %v3305 = vsub.f32 %v3132, %v3237
      %v3306 = vsub.f32 %v3136, %v3240
      %v3307 = vsub.f32 %v3138, %v3240
      %v3308 = vsub.f32 %v3140, %v3243
      %v3309 = vsub.f32 %v3142, %v3243
      %v3310 = vsub.f32 %v3146, %v3246
      %v3311 = vsub.f32 %v3148, %v3246
      %v3312 = vsub.f32 %v3150, %v3249
      %v3313 = vsub.f32 %v3152, %v3249
      %v3314 = vmul.f32 %v3250, 1.442695
      %v3315 = vpow.pop %v3314
      %v3316 = vmul.f32 %v3251, 1.442695
      %v3317 = vpow.pop %v3316
      %v3318 = vmul.f32 %v3252, 1.442695
      %v3319 = vpow.pop %v3318
      %v3320 = vmul.f32 %v3253, 1.442695
      %v3321 = vpow.pop %v3320
      %v3322 = vmul.f32 %v3254, 1.442695
      %v3323 = vpow.pop %v3322
      %v3324 = vmul.f32 %v3255, 1.442695
      %v3325 = vpow.pop %v3324
      %v3326 = vmul.f32 %v3256, 1.442695
      %v3327 = vpow.pop %v3326
      %v3328 = vmul.f32 %v3257, 1.442695
      %v3329 = vpow.pop %v3328
      %v3330 = vmul.f32 %v3258, 1.442695
      %v3331 = vpow.pop %v3330
      %v3332 = vmul.f32 %v3259, 1.442695
      %v3333 = vpow.pop %v3332
      %v3334 = vmul.f32 %v3260, 1.442695
      %v3335 = vpow.pop %v3334
      %v3336 = vmul.f32 %v3261, 1.442695
      %v3337 = vpow.pop %v3336
      %v3338 = vmul.f32 %v3262, 1.442695
      %v3339 = vpow.pop %v3338
      %v3340 = vmul.f32 %v3263, 1.442695
      %v3341 = vpow.pop %v3340
      %v3342 = vmul.f32 %v3264, 1.442695
      %v3343 = vpow.pop %v3342
      %v3344 = vmul.f32 %v3265, 1.442695
      %v3345 = vpow.pop %v3344
      %v3346 = vmul.f32 %v3266, 1.442695
      %v3347 = vpow.pop %v3346
      %v3348 = vmul.f32 %v3267, 1.442695
      %v3349 = vpow.pop %v3348
      %v3350 = vmul.f32 %v3268, 1.442695
      %v3351 = vpow.pop %v3350
      %v3352 = vmul.f32 %v3269, 1.442695
      %v3353 = vpow.pop %v3352
      %v3354 = vmul.f32 %v3270, 1.442695
      %v3355 = vpow.pop %v3354
      %v3356 = vmul.f32 %v3271, 1.442695
      %v3357 = vpow.pop %v3356
      %v3358 = vmul.f32 %v3272, 1.442695
      %v3359 = vpow.pop %v3358
      %v3360 = vmul.f32 %v3273, 1.442695
      %v3361 = vpow.pop %v3360
      %v3362 = vmul.f32 %v3274, 1.442695
      %v3363 = vpow.pop %v3362
      %v3364 = vmul.f32 %v3275, 1.442695
      %v3365 = vpow.pop %v3364
      %v3366 = vmul.f32 %v3276, 1.442695
      %v3367 = vpow.pop %v3366
      %v3368 = vmul.f32 %v3277, 1.442695
      %v3369 = vpow.pop %v3368
      %v3370 = vmul.f32 %v3278, 1.442695
      %v3371 = vpow.pop %v3370
      %v3372 = vmul.f32 %v3279, 1.442695
      %v3373 = vpow.pop %v3372
      %v3374 = vmul.f32 %v3280, 1.442695
      %v3375 = vpow.pop %v3374
      %v3376 = vmul.f32 %v3281, 1.442695
      %v3377 = vpow.pop %v3376
      %v3378 = vmul.f32 %v3282, 1.442695
      %v3379 = vpow.pop %v3378
      %v3380 = vmul.f32 %v3283, 1.442695
      %v3381 = vpow.pop %v3380
      %v3382 = vmul.f32 %v3284, 1.442695
      %v3383 = vpow.pop %v3382
      %v3384 = vmul.f32 %v3285, 1.442695
      %v3385 = vpow.pop %v3384
      %v3386 = vmul.f32 %v3286, 1.442695
      %v3387 = vpow.pop %v3386
      %v3388 = vmul.f32 %v3287, 1.442695
      %v3389 = vpow.pop %v3388
      %v3390 = vmul.f32 %v3288, 1.442695
      %v3391 = vpow.pop %v3390
      %v3392 = vmul.f32 %v3289, 1.442695
      %v3393 = vpow.pop %v3392
      %v3394 = vmul.f32 %v3290, 1.442695
      %v3395 = vpow.pop %v3394
      %v3396 = vmul.f32 %v3291, 1.442695
      %v3397 = vpow.pop %v3396
      %v3398 = vmul.f32 %v3292, 1.442695
      %v3399 = vpow.pop %v3398
      %v3400 = vmul.f32 %v3293, 1.442695
      %v3401 = vpow.pop %v3400
      %v3402 = vmul.f32 %v3294, 1.442695
      %v3403 = vpow.pop %v3402
      %v3404 = vmul.f32 %v3295, 1.442695
      %v3405 = vpow.pop %v3404
      %v3406 = vmul.f32 %v3296, 1.442695
      %v3407 = vpow.pop %v3406
      %v3408 = vmul.f32 %v3297, 1.442695
      %v3409 = vpow.pop %v3408
      %v3410 = vmul.f32 %v3298, 1.442695
      %v3411 = vpow.pop %v3410
      %v3412 = vmul.f32 %v3299, 1.442695
      %v3413 = vpow.pop %v3412
      %v3414 = vmul.f32 %v3300, 1.442695
      %v3415 = vpow.pop %v3414
      %v3416 = vmul.f32 %v3301, 1.442695
      %v3417 = vpow.pop %v3416
      %v3418 = vmul.f32 %v3302, 1.442695
      %v3419 = vpow.pop %v3418
      %v3420 = vmul.f32 %v3303, 1.442695
      %v3421 = vpow.pop %v3420
      %v3422 = vmul.f32 %v3304, 1.442695
      %v3423 = vpow.pop %v3422
      %v3424 = vmul.f32 %v3305, 1.442695
      %v3425 = vpow.pop %v3424
      %v3426 = vmul.f32 %v3306, 1.442695
      %v3427 = vpow.pop %v3426
      %v3428 = vmul.f32 %v3307, 1.442695
      %v3429 = vpow.pop %v3428
      %v3430 = vmul.f32 %v3308, 1.442695
      %v3431 = vpow.pop %v3430
      %v3432 = vmul.f32 %v3309, 1.442695
      %v3433 = vpow.pop %v3432
      %v3434 = vmul.f32 %v3310, 1.442695
      %v3435 = vpow.pop %v3434
      %v3436 = vmul.f32 %v3311, 1.442695
      %v3437 = vpow.pop %v3436
      %v3438 = vmul.f32 %v3312, 1.442695
      %v3439 = vpow.pop %v3438
      %v3440 = vmul.f32 %v3313, 1.442695
      %v3441 = vpow.pop %v3440
      %v3442 = vadd.f32 %v3315, %v3317
      %3443 = vadd.xlane.f32.xlu0 %v3442
      %v3444 = vpop.xlane.xlu0 %3443
      %v3445 = vadd.f32 %v3319, %v3321
      %3446 = vadd.xlane.f32.xlu0 %v3445
      %v3447 = vpop.xlane.xlu0 %3446
      %v3448 = vadd.f32 %v3323, %v3325
      %3449 = vadd.xlane.f32.xlu0 %v3448
      %v3450 = vpop.xlane.xlu0 %3449
      %v3451 = vadd.f32 %v3327, %v3329
      %3452 = vadd.xlane.f32.xlu0 %v3451
      %v3453 = vpop.xlane.xlu0 %3452
      %v3454 = vadd.f32 %v3331, %v3333
      %3455 = vadd.xlane.f32.xlu0 %v3454
      %v3456 = vpop.xlane.xlu0 %3455
      %v3457 = vadd.f32 %v3335, %v3337
      %3458 = vadd.xlane.f32.xlu0 %v3457
      %v3459 = vpop.xlane.xlu0 %3458
      %v3460 = vadd.f32 %v3339, %v3341
      %3461 = vadd.xlane.f32.xlu0 %v3460
      %v3462 = vpop.xlane.xlu0 %3461
      %v3463 = vadd.f32 %v3343, %v3345
      %3464 = vadd.xlane.f32.xlu0 %v3463
      %v3465 = vpop.xlane.xlu0 %3464
      %v3466 = vadd.f32 %v3347, %v3349
      %3467 = vadd.xlane.f32.xlu0 %v3466
      %v3468 = vpop.xlane.xlu0 %3467
      %v3469 = vadd.f32 %v3351, %v3353
      %3470 = vadd.xlane.f32.xlu0 %v3469
      %v3471 = vpop.xlane.xlu0 %3470
      %v3472 = vadd.f32 %v3355, %v3357
      %3473 = vadd.xlane.f32.xlu0 %v3472
      %v3474 = vpop.xlane.xlu0 %3473
      %v3475 = vadd.f32 %v3359, %v3361
      %3476 = vadd.xlane.f32.xlu0 %v3475
      %v3477 = vpop.xlane.xlu0 %3476
      %v3478 = vadd.f32 %v3363, %v3365
      %3479 = vadd.xlane.f32.xlu0 %v3478
      %v3480 = vpop.xlane.xlu0 %3479
      %v3481 = vadd.f32 %v3367, %v3369
      %3482 = vadd.xlane.f32.xlu0 %v3481
      %v3483 = vpop.xlane.xlu0 %3482
      %v3484 = vadd.f32 %v3371, %v3373
      %3485 = vadd.xlane.f32.xlu0 %v3484
      %v3486 = vpop.xlane.xlu0 %3485
      %v3487 = vadd.f32 %v3375, %v3377
      %3488 = vadd.xlane.f32.xlu0 %v3487
      %v3489 = vpop.xlane.xlu0 %3488
      %v3490 = vadd.f32 %v3379, %v3381
      %3491 = vadd.xlane.f32.xlu0 %v3490
      %v3492 = vpop.xlane.xlu0 %3491
      %v3493 = vadd.f32 %v3383, %v3385
      %3494 = vadd.xlane.f32.xlu0 %v3493
      %v3495 = vpop.xlane.xlu0 %3494
      %v3496 = vadd.f32 %v3387, %v3389
      %3497 = vadd.xlane.f32.xlu0 %v3496
      %v3498 = vpop.xlane.xlu0 %3497
      %v3499 = vadd.f32 %v3391, %v3393
      %3500 = vadd.xlane.f32.xlu0 %v3499
      %v3501 = vpop.xlane.xlu0 %3500
      %v3502 = vadd.f32 %v3395, %v3397
      %3503 = vadd.xlane.f32.xlu0 %v3502
      %v3504 = vpop.xlane.xlu0 %3503
      %v3505 = vadd.f32 %v3399, %v3401
      %3506 = vadd.xlane.f32.xlu0 %v3505
      %v3507 = vpop.xlane.xlu0 %3506
      %v3508 = vadd.f32 %v3403, %v3405
      %3509 = vadd.xlane.f32.xlu0 %v3508
      %v3510 = vpop.xlane.xlu0 %3509
      %v3511 = vadd.f32 %v3407, %v3409
      %3512 = vadd.xlane.f32.xlu0 %v3511
      %v3513 = vpop.xlane.xlu0 %3512
      %v3514 = vadd.f32 %v3411, %v3413
      %3515 = vadd.xlane.f32.xlu0 %v3514
      %v3516 = vpop.xlane.xlu0 %3515
      %v3517 = vadd.f32 %v3415, %v3417
      %3518 = vadd.xlane.f32.xlu0 %v3517
      %v3519 = vpop.xlane.xlu0 %3518
      %v3520 = vadd.f32 %v3419, %v3421
      %3521 = vadd.xlane.f32.xlu0 %v3520
      %v3522 = vpop.xlane.xlu0 %3521
      %v3523 = vadd.f32 %v3423, %v3425
      %3524 = vadd.xlane.f32.xlu0 %v3523
      %v3525 = vpop.xlane.xlu0 %3524
      %v3526 = vadd.f32 %v3427, %v3429
      %3527 = vadd.xlane.f32.xlu0 %v3526
      %v3528 = vpop.xlane.xlu0 %3527
      %v3529 = vadd.f32 %v3431, %v3433
      %3530 = vadd.xlane.f32.xlu0 %v3529
      %v3531 = vpop.xlane.xlu0 %3530
      %v3532 = vadd.f32 %v3435, %v3437
      %3533 = vadd.xlane.f32.xlu0 %v3532
      %v3534 = vpop.xlane.xlu0 %3533
      %v3535 = vadd.f32 %v3439, %v3441
      %3536 = vadd.xlane.f32.xlu0 %v3535
      %v3537 = vpop.xlane.xlu0 %3536
      %v3538 = vrcp.pop %v3444
      %v3539 = vrcp.pop %v3447
      %v3540 = vrcp.pop %v3450
      %v3541 = vrcp.pop %v3453
      %v3542 = vrcp.pop %v3456
      %v3543 = vrcp.pop %v3459
      %v3544 = vrcp.pop %v3462
      %v3545 = vrcp.pop %v3465
      %v3546 = vrcp.pop %v3468
      %v3547 = vrcp.pop %v3471
      %v3548 = vrcp.pop %v3474
      %v3549 = vrcp.pop %v3477
      %v3550 = vrcp.pop %v3480
      %v3551 = vrcp.pop %v3483
      %v3552 = vrcp.pop %v3486
      %v3553 = vrcp.pop %v3489
      %v3554 = vrcp.pop %v3492
      %v3555 = vrcp.pop %v3495
      %v3556 = vrcp.pop %v3498
      %v3557 = vrcp.pop %v3501
      %v3558 = vrcp.pop %v3504
      %v3559 = vrcp.pop %v3507
      %v3560 = vrcp.pop %v3510
      %v3561 = vrcp.pop %v3513
      %v3562 = vrcp.pop %v3516
      %v3563 = vrcp.pop %v3519
      %v3564 = vrcp.pop %v3522
      %v3565 = vrcp.pop %v3525
      %v3566 = vrcp.pop %v3528
      %v3567 = vrcp.pop %v3531
      %v3568 = vrcp.pop %v3534
      %v3569 = vrcp.pop %v3537
      %v3570 = vmul.f32 %v3315, %v3538
      %v3571 = vmul.f32 %v3317, %v3538
      %v3572 = vmul.f32 %v3319, %v3539
      %v3573 = vmul.f32 %v3321, %v3539
      %v3574 = vmul.f32 %v3323, %v3540
      %v3575 = vmul.f32 %v3325, %v3540
      %v3576 = vmul.f32 %v3327, %v3541
      %v3577 = vmul.f32 %v3329, %v3541
      %v3578 = vmul.f32 %v3331, %v3542
      %v3579 = vmul.f32 %v3333, %v3542
      %v3580 = vmul.f32 %v3335, %v3543
      %v3581 = vmul.f32 %v3337, %v3543
      %v3582 = vmul.f32 %v3339, %v3544
      %v3583 = vmul.f32 %v3341, %v3544
      %v3584 = vmul.f32 %v3343, %v3545
      %v3585 = vmul.f32 %v3345, %v3545
      %v3586 = vmul.f32 %v3347, %v3546
      %v3587 = vmul.f32 %v3349, %v3546
      %v3588 = vmul.f32 %v3351, %v3547
      %v3589 = vmul.f32 %v3353, %v3547
      %v3590 = vmul.f32 %v3355, %v3548
      %v3591 = vmul.f32 %v3357, %v3548
      %v3592 = vmul.f32 %v3359, %v3549
      %v3593 = vmul.f32 %v3361, %v3549
      %v3594 = vmul.f32 %v3363, %v3550
      %v3595 = vmul.f32 %v3365, %v3550
      %v3596 = vmul.f32 %v3367, %v3551
      %v3597 = vmul.f32 %v3369, %v3551
      %v3598 = vmul.f32 %v3371, %v3552
      %v3599 = vmul.f32 %v3373, %v3552
      %v3600 = vmul.f32 %v3375, %v3553
      %v3601 = vmul.f32 %v3377, %v3553
      %v3602 = vmul.f32 %v3379, %v3554
      %v3603 = vmul.f32 %v3381, %v3554
      %v3604 = vmul.f32 %v3383, %v3555
      %v3605 = vmul.f32 %v3385, %v3555
      %v3606 = vmul.f32 %v3387, %v3556
      %v3607 = vmul.f32 %v3389, %v3556
      %v3608 = vmul.f32 %v3391, %v3557
      %v3609 = vmul.f32 %v3393, %v3557
      %v3610 = vmul.f32 %v3395, %v3558
      %v3611 = vmul.f32 %v3397, %v3558
      %v3612 = vmul.f32 %v3399, %v3559
      %v3613 = vmul.f32 %v3401, %v3559
      %v3614 = vmul.f32 %v3403, %v3560
      %v3615 = vmul.f32 %v3405, %v3560
      %v3616 = vmul.f32 %v3407, %v3561
      %v3617 = vmul.f32 %v3409, %v3561
      %v3618 = vmul.f32 %v3411, %v3562
      %v3619 = vmul.f32 %v3413, %v3562
      %v3620 = vmul.f32 %v3415, %v3563
      %v3621 = vmul.f32 %v3417, %v3563
      %v3622 = vmul.f32 %v3419, %v3564
      %v3623 = vmul.f32 %v3421, %v3564
      %v3624 = vmul.f32 %v3423, %v3565
      %v3625 = vmul.f32 %v3425, %v3565
      %v3626 = vmul.f32 %v3427, %v3566
      %v3627 = vmul.f32 %v3429, %v3566
      %v3628 = vmul.f32 %v3431, %v3567
      %v3629 = vmul.f32 %v3433, %v3567
      %v3630 = vmul.f32 %v3435, %v3568
      %v3631 = vmul.f32 %v3437, %v3568
      %v3632 = vmul.f32 %v3439, %v3569
      %v3633 = vmul.f32 %v3441, %v3569
      %v3634 = vpack.c.bf16 %v3572, %v3570
      %v3635 = vpack.c.bf16 %v3573, %v3571
      %v3636 = vpack.c.bf16 %v3576, %v3574
      %v3637 = vpack.c.bf16 %v3577, %v3575
      %v3638 = vpack.c.bf16 %v3580, %v3578
      %v3639 = vpack.c.bf16 %v3581, %v3579
      %v3640 = vpack.c.bf16 %v3584, %v3582
      %v3641 = vpack.c.bf16 %v3585, %v3583
      %v3642 = vpack.c.bf16 %v3588, %v3586
      %v3643 = vpack.c.bf16 %v3589, %v3587
      %v3644 = vpack.c.bf16 %v3592, %v3590
      %v3645 = vpack.c.bf16 %v3593, %v3591
      %v3646 = vpack.c.bf16 %v3596, %v3594
      %v3647 = vpack.c.bf16 %v3597, %v3595
      %v3648 = vpack.c.bf16 %v3600, %v3598
      %v3649 = vpack.c.bf16 %v3601, %v3599
      %v3650 = vpack.c.bf16 %v3604, %v3602
      %v3651 = vpack.c.bf16 %v3605, %v3603
      %v3652 = vpack.c.bf16 %v3608, %v3606
      %v3653 = vpack.c.bf16 %v3609, %v3607
      %v3654 = vpack.c.bf16 %v3612, %v3610
      %v3655 = vpack.c.bf16 %v3613, %v3611
      %v3656 = vpack.c.bf16 %v3616, %v3614
      %v3657 = vpack.c.bf16 %v3617, %v3615
      %v3658 = vpack.c.bf16 %v3620, %v3618
      %v3659 = vpack.c.bf16 %v3621, %v3619
      %v3660 = vpack.c.bf16 %v3624, %v3622
      %v3661 = vpack.c.bf16 %v3625, %v3623
      %v3662 = vpack.c.bf16 %v3628, %v3626
      %v3663 = vpack.c.bf16 %v3629, %v3627
      %v3664 = vpack.c.bf16 %v3632, %v3630
      %v3665 = vpack.c.bf16 %v3633, %v3631
      %3682 = vrot.lane.b32.xlu0 %v1526, 96
      %v3683 = vpop.permute.xlu0 %3682
      %3684 = vrot.lane.b32.xlu0 %v1527, 96
      %v3685 = vpop.permute.xlu0 %3684
      %3686 = vrot.lane.b32.xlu0 %v1528, 96
      %v3687 = vpop.permute.xlu0 %3686
      %3688 = vrot.lane.b32.xlu0 %v1529, 96
      %v3689 = vpop.permute.xlu0 %3688
      %3690 = vrot.lane.b32.xlu0 %v1530, 96
      %v3691 = vpop.permute.xlu0 %3690
      %3692 = vrot.lane.b32.xlu0 %v1531, 96
      %v3693 = vpop.permute.xlu0 %3692
      %3694 = vrot.lane.b32.xlu0 %v1532, 96
      %v3695 = vpop.permute.xlu0 %3694
      %3696 = vrot.lane.b32.xlu0 %v1533, 96
      %v3697 = vpop.permute.xlu0 %3696
      %3698 = vrot.lane.b32.xlu0 %v1534, 96
      %v3699 = vpop.permute.xlu0 %3698
      %3700 = vrot.lane.b32.xlu0 %v1535, 96
      %v3701 = vpop.permute.xlu0 %3700
      %3702 = vrot.lane.b32.xlu0 %v1536, 96
      %v3703 = vpop.permute.xlu0 %3702
      %3704 = vrot.lane.b32.xlu0 %v1537, 96
      %v3705 = vpop.permute.xlu0 %3704
      %3706 = vrot.lane.b32.xlu0 %v1538, 96
      %v3707 = vpop.permute.xlu0 %3706
      %3708 = vrot.lane.b32.xlu0 %v1539, 96
      %v3709 = vpop.permute.xlu0 %3708
      %3710 = vrot.lane.b32.xlu0 %v1540, 96
      %v3711 = vpop.permute.xlu0 %3710
      %3712 = vrot.lane.b32.xlu0 %v1541, 96
      %v3713 = vpop.permute.xlu0 %3712
      %3730 = vmatprep.subr.bf16.mxu0 0
      %3731 = vmatpush1.bf16.msra.mxu0 %v3683
      %3732 = vmatprep.subr.bf16.mxu0 0
      %3733 = vmatpush1.bf16.msra.mxu0 %v3685
      %3734 = vmatprep.subr.bf16.mxu0 0
      %3735 = vmatpush1.bf16.msra.mxu0 %v3687
      %3736 = vmatprep.subr.bf16.mxu0 0
      %3737 = vmatpush1.bf16.msra.mxu0 %v3689
      %3738 = vmatprep.subr.bf16.mxu0 0
      %3739 = vmatpush1.bf16.msra.mxu0 %v3691
      %3740 = vmatprep.subr.bf16.mxu0 0
      %3741 = vmatpush1.bf16.msra.mxu0 %v3693
      %3742 = vmatprep.subr.bf16.mxu0 0
      %3743 = vmatpush1.bf16.msra.mxu0 %v3695
      %3744 = vmatprep.subr.bf16.mxu0 0
      %3745 = vmatpush1.bf16.msra.mxu0 %v3697
      %3746 = vmatprep.subr.bf16.mxu0 0
      %3747 = vmatpush1.bf16.msra.mxu0 %v3699
      %3748 = vmatprep.subr.bf16.mxu0 0
      %3749 = vmatpush1.bf16.msra.mxu0 %v3701
      %3750 = vmatprep.subr.bf16.mxu0 0
      %3751 = vmatpush1.bf16.msra.mxu0 %v3703
      %3752 = vmatprep.subr.bf16.mxu0 0
      %3753 = vmatpush1.bf16.msra.mxu0 %v3705
      %3754 = vmatprep.subr.bf16.mxu0 0
      %3755 = vmatpush1.bf16.msra.mxu0 %v3707
      %3756 = vmatprep.subr.bf16.mxu0 0
      %3757 = vmatpush1.bf16.msra.mxu0 %v3709
      %3758 = vmatprep.subr.bf16.mxu0 0
      %3759 = vmatpush1.bf16.msra.mxu0 %v3711
      %3760 = vmatprep.subr.bf16.mxu0 0
      %3761 = vmatpush1.bf16.msra.mxu0 %v3713
      %3762 = vmatprep.mubr.bf16.mxu0 %v3635
      %3763 = vmatmul.mubr.bf16.gmra.mrb[0].mxu0 %v3634
      %v3764 = vpop.f32.mrb[0].mxu0
      %v3765 = vadd.f32 0.0, %v3764
      %v3766 = vpop.f32.mrb[0].mxu0
      %v3767 = vpop.f32.mrb[0].mxu0
      %v3768 = vadd.f32 0.0, %v3767
      %v3769 = vpop.f32.mrb[0].mxu0
      %3770 = vmatprep.mubr.bf16.mxu0 %v3637
      %3771 = vmatmul.mubr.bf16.gmra.mrb[0].mxu0 %v3636
      %v3772 = vpop.f32.mrb[0].mxu0
      %v3773 = vadd.f32 0.0, %v3772
      %v3774 = vpop.f32.mrb[0].mxu0
      %v3775 = vpop.f32.mrb[0].mxu0
      %v3776 = vadd.f32 0.0, %v3775
      %v3777 = vpop.f32.mrb[0].mxu0
      %3778 = vmatprep.mubr.bf16.mxu0 %v3639
      %3779 = vmatmul.mubr.bf16.gmra.mrb[0].mxu0 %v3638
      %v3780 = vpop.f32.mrb[0].mxu0
      %v3781 = vadd.f32 0.0, %v3780
      %v3782 = vpop.f32.mrb[0].mxu0
      %v3783 = vpop.f32.mrb[0].mxu0
      %v3784 = vadd.f32 0.0, %v3783
      %v3785 = vpop.f32.mrb[0].mxu0
      %3786 = vmatprep.mubr.bf16.mxu0 %v3641
      %3787 = vmatmul.mubr.bf16.gmra.mrb[0].mxu0 %v3640
      %v3788 = vpop.f32.mrb[0].mxu0
      %v3789 = vadd.f32 0.0, %v3788
      %v3790 = vpop.f32.mrb[0].mxu0
      %v3791 = vpop.f32.mrb[0].mxu0
      %v3792 = vadd.f32 0.0, %v3791
      %v3793 = vpop.f32.mrb[0].mxu0
      %3794 = vmatprep.mubr.bf16.mxu0 %v3643
      %3795 = vmatmul.mubr.bf16.gmra.mrb[0].mxu0 %v3642
      %v3796 = vpop.f32.mrb[0].mxu0
      %v3797 = vadd.f32 0.0, %v3796
      %v3798 = vpop.f32.mrb[0].mxu0
      %v3799 = vpop.f32.mrb[0].mxu0
      %v3800 = vadd.f32 0.0, %v3799
      %v3801 = vpop.f32.mrb[0].mxu0
      %3802 = vmatprep.mubr.bf16.mxu0 %v3645
      %3803 = vmatmul.mubr.bf16.gmra.mrb[0].mxu0 %v3644
      %v3804 = vpop.f32.mrb[0].mxu0
      %v3805 = vadd.f32 0.0, %v3804
      %v3806 = vpop.f32.mrb[0].mxu0
      %v3807 = vpop.f32.mrb[0].mxu0
      %v3808 = vadd.f32 0.0, %v3807
      %v3809 = vpop.f32.mrb[0].mxu0
      %3810 = vmatprep.mubr.bf16.mxu0 %v3647
      %3811 = vmatmul.mubr.bf16.gmra.mrb[0].mxu0 %v3646
      %v3812 = vpop.f32.mrb[0].mxu0
      %v3813 = vadd.f32 0.0, %v3812
      %v3814 = vpop.f32.mrb[0].mxu0
      %v3815 = vpop.f32.mrb[0].mxu0
      %v3816 = vadd.f32 0.0, %v3815
      %v3817 = vpop.f32.mrb[0].mxu0
      %3818 = vmatprep.mubr.bf16.mxu0 %v3649
      %3819 = vmatmul.mubr.bf16.gmra.mrb[0].mxu0 %v3648
      %v3820 = vpop.f32.mrb[0].mxu0
      %v3821 = vadd.f32 0.0, %v3820
      %v3822 = vpop.f32.mrb[0].mxu0
      %v3823 = vpop.f32.mrb[0].mxu0
      %v3824 = vadd.f32 0.0, %v3823
      %v3825 = vpop.f32.mrb[0].mxu0
      %3826 = vmatprep.mubr.bf16.mxu0 %v3651
      %3827 = vmatmul.mubr.bf16.gmra.mrb[0].mxu0 %v3650
      %v3828 = vpop.f32.mrb[0].mxu0
      %v3829 = vadd.f32 0.0, %v3828
      %v3830 = vpop.f32.mrb[0].mxu0
      %v3831 = vpop.f32.mrb[0].mxu0
      %v3832 = vadd.f32 0.0, %v3831
      %v3833 = vpop.f32.mrb[0].mxu0
      %3834 = vmatprep.mubr.bf16.mxu0 %v3653
      %3835 = vmatmul.mubr.bf16.gmra.mrb[0].mxu0 %v3652
      %v3836 = vpop.f32.mrb[0].mxu0
      %v3837 = vadd.f32 0.0, %v3836
      %v3838 = vpop.f32.mrb[0].mxu0
      %v3839 = vpop.f32.mrb[0].mxu0
      %v3840 = vadd.f32 0.0, %v3839
      %v3841 = vpop.f32.mrb[0].mxu0
      %3842 = vmatprep.mubr.bf16.mxu0 %v3655
      %3843 = vmatmul.mubr.bf16.gmra.mrb[0].mxu0 %v3654
      %v3844 = vpop.f32.mrb[0].mxu0
      %v3845 = vadd.f32 0.0, %v3844
      %v3846 = vpop.f32.mrb[0].mxu0
      %v3847 = vpop.f32.mrb[0].mxu0
      %v3848 = vadd.f32 0.0, %v3847
      %v3849 = vpop.f32.mrb[0].mxu0
      %3850 = vmatprep.mubr.bf16.mxu0 %v3657
      %3851 = vmatmul.mubr.bf16.gmra.mrb[0].mxu0 %v3656
      %v3852 = vpop.f32.mrb[0].mxu0
      %v3853 = vadd.f32 0.0, %v3852
      %v3854 = vpop.f32.mrb[0].mxu0
      %v3855 = vpop.f32.mrb[0].mxu0
      %v3856 = vadd.f32 0.0, %v3855
      %v3857 = vpop.f32.mrb[0].mxu0
      %3858 = vmatprep.mubr.bf16.mxu0 %v3659
      %3859 = vmatmul.mubr.bf16.gmra.mrb[0].mxu0 %v3658
      %v3860 = vpop.f32.mrb[0].mxu0
      %v3861 = vadd.f32 0.0, %v3860
      %v3862 = vpop.f32.mrb[0].mxu0
      %v3863 = vpop.f32.mrb[0].mxu0
      %v3864 = vadd.f32 0.0, %v3863
      %v3865 = vpop.f32.mrb[0].mxu0
      %3866 = vmatprep.mubr.bf16.mxu0 %v3661
      %3867 = vmatmul.mubr.bf16.gmra.mrb[0].mxu0 %v3660
      %v3868 = vpop.f32.mrb[0].mxu0
      %v3869 = vadd.f32 0.0, %v3868
      %v3870 = vpop.f32.mrb[0].mxu0
      %v3871 = vpop.f32.mrb[0].mxu0
      %v3872 = vadd.f32 0.0, %v3871
      %v3873 = vpop.f32.mrb[0].mxu0
      %3874 = vmatprep.mubr.bf16.mxu0 %v3663
      %3875 = vmatmul.mubr.bf16.gmra.mrb[0].mxu0 %v3662
      %v3876 = vpop.f32.mrb[0].mxu0
      %v3877 = vadd.f32 0.0, %v3876
      %v3878 = vpop.f32.mrb[0].mxu0
      %v3879 = vpop.f32.mrb[0].mxu0
      %v3880 = vadd.f32 0.0, %v3879
      %v3881 = vpop.f32.mrb[0].mxu0
      %3882 = vmatprep.mubr.bf16.mxu0 %v3665
      %3883 = vmatmul.mubr.bf16.gmra.mrb[0].mxu0 %v3664
      %v3884 = vpop.f32.mrb[0].mxu0
      %v3885 = vadd.f32 0.0, %v3884
      %v3886 = vpop.f32.mrb[0].mxu0
      %v3887 = vpop.f32.mrb[0].mxu0
      %v3888 = vadd.f32 0.0, %v3887
      %v3889 = vpop.f32.mrb[0].mxu0
      %3890 = vdwg.mxu0
      %v3891 = vld [vmem:[#allocation2] sm:$0xff]
      %v3892 = vld [vmem:[#allocation2 + $0x8] sm:$0xff]
      %v3893 = vld [vmem:[#allocation2 + $0x10] sm:$0xff]
      %v3894 = vld [vmem:[#allocation2 + $0x18] sm:$0xff]
      %v3895 = vld [vmem:[#allocation2 + $0x20] sm:$0xff]
      %v3896 = vld [vmem:[#allocation2 + $0x28] sm:$0xff]
      %v3897 = vld [vmem:[#allocation2 + $0x30] sm:$0xff]
      %v3898 = vld [vmem:[#allocation2 + $0x38] sm:$0xff]
      %v3899 = vld [vmem:[#allocation2 + $0x40] sm:$0xff]
      %v3900 = vld [vmem:[#allocation2 + $0x48] sm:$0xff]
      %v3901 = vld [vmem:[#allocation2 + $0x50] sm:$0xff]
      %v3902 = vld [vmem:[#allocation2 + $0x58] sm:$0xff]
      %v3903 = vld [vmem:[#allocation2 + $0x60] sm:$0xff]
      %v3904 = vld [vmem:[#allocation2 + $0x68] sm:$0xff]
      %v3905 = vld [vmem:[#allocation2 + $0x70] sm:$0xff]
      %v3906 = vld [vmem:[#allocation2 + $0x78] sm:$0xff]
      %v3907 = vld [vmem:[#allocation2 + $0x80] sm:$0xff]
      %v3908 = vld [vmem:[#allocation2 + $0x88] sm:$0xff]
      %v3909 = vld [vmem:[#allocation2 + $0x90] sm:$0xff]
      %v3910 = vld [vmem:[#allocation2 + $0x98] sm:$0xff]
      %v3911 = vld [vmem:[#allocation2 + $0xa0] sm:$0xff]
      %v3912 = vld [vmem:[#allocation2 + $0xa8] sm:$0xff]
      %v3913 = vld [vmem:[#allocation2 + $0xb0] sm:$0xff]
      %v3914 = vld [vmem:[#allocation2 + $0xb8] sm:$0xff]
      %v3915 = vld [vmem:[#allocation2 + $0xc0] sm:$0xff]
      %v3916 = vld [vmem:[#allocation2 + $0xc8] sm:$0xff]
      %v3917 = vld [vmem:[#allocation2 + $0xd0] sm:$0xff]
      %v3918 = vld [vmem:[#allocation2 + $0xd8] sm:$0xff]
      %v3919 = vld [vmem:[#allocation2 + $0xe0] sm:$0xff]
      %v3920 = vld [vmem:[#allocation2 + $0xe8] sm:$0xff]
      %v3921 = vld [vmem:[#allocation2 + $0xf0] sm:$0xff]
      %v3922 = vld [vmem:[#allocation2 + $0xf8] sm:$0xff]
      %v3923 = vpack.c.bf16 %v3768, %v3765
      %v3924 = vpack.c.bf16 %v3776, %v3773
      %v3925 = vpack.c.bf16 %v3784, %v3781
      %v3926 = vpack.c.bf16 %v3792, %v3789
      %v3927 = vpack.c.bf16 %v3800, %v3797
      %v3928 = vpack.c.bf16 %v3808, %v3805
      %v3929 = vpack.c.bf16 %v3816, %v3813
      %v3930 = vpack.c.bf16 %v3824, %v3821
      %v3931 = vpack.c.bf16 %v3832, %v3829
      %v3932 = vpack.c.bf16 %v3840, %v3837
      %v3933 = vpack.c.bf16 %v3848, %v3845
      %v3934 = vpack.c.bf16 %v3856, %v3853
      %v3935 = vpack.c.bf16 %v3864, %v3861
      %v3936 = vpack.c.bf16 %v3872, %v3869
      %v3937 = vpack.c.bf16 %v3880, %v3877
      %v3938 = vpack.c.bf16 %v3888, %v3885
      %v3939 = vld [vmem:[%s4 + $0x10] sm:$0xf]
      %v3940 = vld [vmem:[%s4 + $0x14] sm:$0xf]
      %v3941 = vld [vmem:[%s4 + $0x18] sm:$0xf]
      %v3942 = vld [vmem:[%s4 + $0x1c] sm:$0xf]
      %v3947 = vunpack.c.l.b16 %v3939
      %v3948 = vunpack.c.l.b16 %v3940
      %v3949 = vunpack.c.l.b16 %v3941
      %v3950 = vunpack.c.l.b16 %v3942
      %v3951 = vpack.c.b16 %v3948, %v3947
      %v3952 = vpack.c.b16 %v3950, %v3949
      %v3956 = vsel %vm1613, %v3923, 0
      %v3959 = vsel %vm1613, %v3924, 0
      %v3962 = vsel %vm1613, %v3925, 0
      %v3965 = vsel %vm1613, %v3926, 0
      %v3968 = vsel %vm1613, %v3927, 0
      %v3971 = vsel %vm1613, %v3928, 0
      %v3974 = vsel %vm1613, %v3929, 0
      %v3977 = vsel %vm1613, %v3930, 0
      %v3980 = vsel %vm1613, %v3931, 0
      %v3983 = vsel %vm1613, %v3932, 0
      %v3986 = vsel %vm1613, %v3933, 0
      %v3989 = vsel %vm1613, %v3934, 0
      %v3992 = vsel %vm1613, %v3935, 0
      %v3995 = vsel %vm1613, %v3936, 0
      %v3998 = vsel %vm1613, %v3937, 0
      %v4001 = vsel %vm1613, %v3938, 0
      %4003 = vmatprep.subr.bf16.mxu0 0
      %4004 = vmatpush1.bf16.msra.mxu0 %v3951
      %4005 = vmatprep.subr.bf16.mxu0 0
      %4006 = vmatpush1.bf16.msra.mxu0 %v3952
      %4007 = vmatprep.subr.bf16.mxu0 0
      %4008 = vmatpush1.bf16.msra.mxu0 0
      %4009 = vmatprep.subr.bf16.mxu0 0
      %4010 = vmatpush1.bf16.msra.mxu0 0
      %4011 = vmatprep.subr.bf16.mxu0 0
      %4012 = vmatpush1.bf16.msra.mxu0 0
      %4013 = vmatprep.subr.bf16.mxu0 0
      %4014 = vmatpush1.bf16.msra.mxu0 0
      %4015 = vmatprep.subr.bf16.mxu0 0
      %4016 = vmatpush1.bf16.msra.mxu0 0
      %4017 = vmatprep.subr.bf16.mxu0 0
      %4018 = vmatpush1.bf16.msra.mxu0 0
      %4019 = vmatprep.subr.bf16.mxu0 0
      %4020 = vmatpush1.bf16.msra.mxu0 0
      %4021 = vmatprep.subr.bf16.mxu0 0
      %4022 = vmatpush1.bf16.msra.mxu0 0
      %4023 = vmatprep.subr.bf16.mxu0 0
      %4024 = vmatpush1.bf16.msra.mxu0 0
      %4025 = vmatprep.subr.bf16.mxu0 0
      %4026 = vmatpush1.bf16.msra.mxu0 0
      %4027 = vmatprep.subr.bf16.mxu0 0
      %4028 = vmatpush1.bf16.msra.mxu0 0
      %4029 = vmatprep.subr.bf16.mxu0 0
      %4030 = vmatpush1.bf16.msra.mxu0 0
      %4031 = vmatprep.subr.bf16.mxu0 0
      %4032 = vmatpush1.bf16.msra.mxu0 0
      %4033 = vmatprep.subr.bf16.mxu0 0
      %4034 = vmatpush1.bf16.msra.mxu0 0
      %4035 = vmatprep.mubr.bf16.mxu0 0
      %4036 = vmatmul.mubr.bf16.gmra.mrb[0].mxu0 %v3956
      %v4037 = vpop.f32.mrb[0].mxu0
      %v4038 = vadd.f32 0.0, %v4037
      %v4039 = vpop.f32.mrb[0].mxu0
      %v4040 = vpop.f32.mrb[0].mxu0
      %v4041 = vadd.f32 0.0, %v4040
      %v4042 = vpop.f32.mrb[0].mxu0
      %4043 = vmatprep.mubr.bf16.mxu0 0
      %4044 = vmatmul.mubr.bf16.gmra.mrb[0].mxu0 %v3959
      %v4045 = vpop.f32.mrb[0].mxu0
      %v4046 = vadd.f32 0.0, %v4045
      %v4047 = vpop.f32.mrb[0].mxu0
      %v4048 = vpop.f32.mrb[0].mxu0
      %v4049 = vadd.f32 0.0, %v4048
      %v4050 = vpop.f32.mrb[0].mxu0
      %4051 = vmatprep.mubr.bf16.mxu0 0
      %4052 = vmatmul.mubr.bf16.gmra.mrb[0].mxu0 %v3962
      %v4053 = vpop.f32.mrb[0].mxu0
      %v4054 = vadd.f32 0.0, %v4053
      %v4055 = vpop.f32.mrb[0].mxu0
      %v4056 = vpop.f32.mrb[0].mxu0
      %v4057 = vadd.f32 0.0, %v4056
      %v4058 = vpop.f32.mrb[0].mxu0
      %4059 = vmatprep.mubr.bf16.mxu0 0
      %4060 = vmatmul.mubr.bf16.gmra.mrb[0].mxu0 %v3965
      %v4061 = vpop.f32.mrb[0].mxu0
      %v4062 = vadd.f32 0.0, %v4061
      %v4063 = vpop.f32.mrb[0].mxu0
      %v4064 = vpop.f32.mrb[0].mxu0
      %v4065 = vadd.f32 0.0, %v4064
      %v4066 = vpop.f32.mrb[0].mxu0
      %4067 = vmatprep.mubr.bf16.mxu0 0
      %4068 = vmatmul.mubr.bf16.gmra.mrb[0].mxu0 %v3968
      %v4069 = vpop.f32.mrb[0].mxu0
      %v4070 = vadd.f32 0.0, %v4069
      %v4071 = vpop.f32.mrb[0].mxu0
      %v4072 = vpop.f32.mrb[0].mxu0
      %v4073 = vadd.f32 0.0, %v4072
      %v4074 = vpop.f32.mrb[0].mxu0
      %4075 = vmatprep.mubr.bf16.mxu0 0
      %4076 = vmatmul.mubr.bf16.gmra.mrb[0].mxu0 %v3971
      %v4077 = vpop.f32.mrb[0].mxu0
      %v4078 = vadd.f32 0.0, %v4077
      %v4079 = vpop.f32.mrb[0].mxu0
      %v4080 = vpop.f32.mrb[0].mxu0
      %v4081 = vadd.f32 0.0, %v4080
      %v4082 = vpop.f32.mrb[0].mxu0
      %4083 = vmatprep.mubr.bf16.mxu0 0
      %4084 = vmatmul.mubr.bf16.gmra.mrb[0].mxu0 %v3974
      %v4085 = vpop.f32.mrb[0].mxu0
      %v4086 = vadd.f32 0.0, %v4085
      %v4087 = vpop.f32.mrb[0].mxu0
      %v4088 = vpop.f32.mrb[0].mxu0
      %v4089 = vadd.f32 0.0, %v4088
      %v4090 = vpop.f32.mrb[0].mxu0
      %4091 = vmatprep.mubr.bf16.mxu0 0
      %4092 = vmatmul.mubr.bf16.gmra.mrb[0].mxu0 %v3977
      %v4093 = vpop.f32.mrb[0].mxu0
      %v4094 = vadd.f32 0.0, %v4093
      %v4095 = vpop.f32.mrb[0].mxu0
      %v4096 = vpop.f32.mrb[0].mxu0
      %v4097 = vadd.f32 0.0, %v4096
      %v4098 = vpop.f32.mrb[0].mxu0
      %4099 = vmatprep.mubr.bf16.mxu0 0
      %4100 = vmatmul.mubr.bf16.gmra.mrb[0].mxu0 %v3980
      %v4101 = vpop.f32.mrb[0].mxu0
      %v4102 = vadd.f32 0.0, %v4101
      %v4103 = vpop.f32.mrb[0].mxu0
      %v4104 = vpop.f32.mrb[0].mxu0
      %v4105 = vadd.f32 0.0, %v4104
      %v4106 = vpop.f32.mrb[0].mxu0
      %4107 = vmatprep.mubr.bf16.mxu0 0
      %4108 = vmatmul.mubr.bf16.gmra.mrb[0].mxu0 %v3983
      %v4109 = vpop.f32.mrb[0].mxu0
      %v4110 = vadd.f32 0.0, %v4109
      %v4111 = vpop.f32.mrb[0].mxu0
      %v4112 = vpop.f32.mrb[0].mxu0
      %v4113 = vadd.f32 0.0, %v4112
      %v4114 = vpop.f32.mrb[0].mxu0
      %4115 = vmatprep.mubr.bf16.mxu0 0
      %4116 = vmatmul.mubr.bf16.gmra.mrb[0].mxu0 %v3986
      %v4117 = vpop.f32.mrb[0].mxu0
      %v4118 = vadd.f32 0.0, %v4117
      %v4119 = vpop.f32.mrb[0].mxu0
      %v4120 = vpop.f32.mrb[0].mxu0
      %v4121 = vadd.f32 0.0, %v4120
      %v4122 = vpop.f32.mrb[0].mxu0
      %4123 = vmatprep.mubr.bf16.mxu0 0
      %4124 = vmatmul.mubr.bf16.gmra.mrb[0].mxu0 %v3989
      %v4125 = vpop.f32.mrb[0].mxu0
      %v4126 = vadd.f32 0.0, %v4125
      %v4127 = vpop.f32.mrb[0].mxu0
      %v4128 = vpop.f32.mrb[0].mxu0
      %v4129 = vadd.f32 0.0, %v4128
      %v4130 = vpop.f32.mrb[0].mxu0
      %4131 = vmatprep.mubr.bf16.mxu0 0
      %4132 = vmatmul.mubr.bf16.gmra.mrb[0].mxu0 %v3992
      %v4133 = vpop.f32.mrb[0].mxu0
      %v4134 = vadd.f32 0.0, %v4133
      %v4135 = vpop.f32.mrb[0].mxu0
      %v4136 = vpop.f32.mrb[0].mxu0
      %v4137 = vadd.f32 0.0, %v4136
      %v4138 = vpop.f32.mrb[0].mxu0
      %4139 = vmatprep.mubr.bf16.mxu0 0
      %4140 = vmatmul.mubr.bf16.gmra.mrb[0].mxu0 %v3995
      %v4141 = vpop.f32.mrb[0].mxu0
      %v4142 = vadd.f32 0.0, %v4141
      %v4143 = vpop.f32.mrb[0].mxu0
      %v4144 = vpop.f32.mrb[0].mxu0
      %v4145 = vadd.f32 0.0, %v4144
      %v4146 = vpop.f32.mrb[0].mxu0
      %4147 = vmatprep.mubr.bf16.mxu0 0
      %4148 = vmatmul.mubr.bf16.gmra.mrb[0].mxu0 %v3998
      %v4149 = vpop.f32.mrb[0].mxu0
      %v4150 = vadd.f32 0.0, %v4149
      %v4151 = vpop.f32.mrb[0].mxu0
      %v4152 = vpop.f32.mrb[0].mxu0
      %v4153 = vadd.f32 0.0, %v4152
      %v4154 = vpop.f32.mrb[0].mxu0
      %4155 = vmatprep.mubr.bf16.mxu0 0
      %4156 = vmatmul.mubr.bf16.gmra.mrb[0].mxu0 %v4001
      %v4157 = vpop.f32.mrb[0].mxu0
      %v4158 = vadd.f32 0.0, %v4157
      %v4159 = vpop.f32.mrb[0].mxu0
      %v4160 = vpop.f32.mrb[0].mxu0
      %v4161 = vadd.f32 0.0, %v4160
      %v4162 = vpop.f32.mrb[0].mxu0
      %4163 = vdwg.mxu0
      %v4164 = vadd.f32 %v3891, %v4038
      %v4165 = vadd.f32 %v3892, %v4041
      %v4166 = vadd.f32 %v3893, %v4046
      %v4167 = vadd.f32 %v3894, %v4049
      %v4168 = vadd.f32 %v3895, %v4054
      %v4169 = vadd.f32 %v3896, %v4057
      %v4170 = vadd.f32 %v3897, %v4062
      %v4171 = vadd.f32 %v3898, %v4065
      %v4172 = vadd.f32 %v3899, %v4070
      %v4173 = vadd.f32 %v3900, %v4073
      %v4174 = vadd.f32 %v3901, %v4078
      %v4175 = vadd.f32 %v3902, %v4081
      %v4176 = vadd.f32 %v3903, %v4086
      %v4177 = vadd.f32 %v3904, %v4089
      %v4178 = vadd.f32 %v3905, %v4094
      %v4179 = vadd.f32 %v3906, %v4097
      %v4180 = vadd.f32 %v3907, %v4102
      %v4181 = vadd.f32 %v3908, %v4105
      %v4182 = vadd.f32 %v3909, %v4110
      %v4183 = vadd.f32 %v3910, %v4113
      %v4184 = vadd.f32 %v3911, %v4118
      %v4185 = vadd.f32 %v3912, %v4121
      %v4186 = vadd.f32 %v3913, %v4126
      %v4187 = vadd.f32 %v3914, %v4129
      %v4188 = vadd.f32 %v3915, %v4134
      %v4189 = vadd.f32 %v3916, %v4137
      %v4190 = vadd.f32 %v3917, %v4142
      %v4191 = vadd.f32 %v3918, %v4145
      %v4192 = vadd.f32 %v3919, %v4150
      %v4193 = vadd.f32 %v3920, %v4153
      %v4194 = vadd.f32 %v3921, %v4158
      %v4195 = vadd.f32 %v3922, %v4161
      %4196 = vst [vmem:[#allocation2] sm:$0xff] %v4164
      %4197 = vst [vmem:[#allocation2 + $0x8] sm:$0xff] %v4165
      %4198 = vst [vmem:[#allocation2 + $0x10] sm:$0xff] %v4166
      %4199 = vst [vmem:[#allocation2 + $0x18] sm:$0xff] %v4167
      %4200 = vst [vmem:[#allocation2 + $0x20] sm:$0xff] %v4168
      %4201 = vst [vmem:[#allocation2 + $0x28] sm:$0xff] %v4169
      %4202 = vst [vmem:[#allocation2 + $0x30] sm:$0xff] %v4170
      %4203 = vst [vmem:[#allocation2 + $0x38] sm:$0xff] %v4171
      %4204 = vst [vmem:[#allocation2 + $0x40] sm:$0xff] %v4172
      %4205 = vst [vmem:[#allocation2 + $0x48] sm:$0xff] %v4173
      %4206 = vst [vmem:[#allocation2 + $0x50] sm:$0xff] %v4174
      %4207 = vst [vmem:[#allocation2 + $0x58] sm:$0xff] %v4175
      %4208 = vst [vmem:[#allocation2 + $0x60] sm:$0xff] %v4176
      %4209 = vst [vmem:[#allocation2 + $0x68] sm:$0xff] %v4177
      %4210 = vst [vmem:[#allocation2 + $0x70] sm:$0xff] %v4178
      %4211 = vst [vmem:[#allocation2 + $0x78] sm:$0xff] %v4179
      %4212 = vst [vmem:[#allocation2 + $0x80] sm:$0xff] %v4180
      %4213 = vst [vmem:[#allocation2 + $0x88] sm:$0xff] %v4181
      %4214 = vst [vmem:[#allocation2 + $0x90] sm:$0xff] %v4182
      %4215 = vst [vmem:[#allocation2 + $0x98] sm:$0xff] %v4183
      %4216 = vst [vmem:[#allocation2 + $0xa0] sm:$0xff] %v4184
      %4217 = vst [vmem:[#allocation2 + $0xa8] sm:$0xff] %v4185
      %4218 = vst [vmem:[#allocation2 + $0xb0] sm:$0xff] %v4186
      %4219 = vst [vmem:[#allocation2 + $0xb8] sm:$0xff] %v4187
      %4220 = vst [vmem:[#allocation2 + $0xc0] sm:$0xff] %v4188
      %4221 = vst [vmem:[#allocation2 + $0xc8] sm:$0xff] %v4189
      %4222 = vst [vmem:[#allocation2 + $0xd0] sm:$0xff] %v4190
      %4223 = vst [vmem:[#allocation2 + $0xd8] sm:$0xff] %v4191
      %4224 = vst [vmem:[#allocation2 + $0xe0] sm:$0xff] %v4192
      %4225 = vst [vmem:[#allocation2 + $0xe8] sm:$0xff] %v4193
      %4226 = vst [vmem:[#allocation2 + $0xf0] sm:$0xff] %v4194
      %4227 = vst [vmem:[#allocation2 + $0xf8] sm:$0xff] %v4195
      %4228 = vrot.lane.b32.xlu0 %v1430, 64
      %v4229 = vpop.permute.xlu0 %4228
      %4230 = vrot.lane.b32.xlu0 %v1431, 64
      %v4231 = vpop.permute.xlu0 %4230
      %4232 = vrot.lane.b32.xlu0 %v1432, 64
      %v4233 = vpop.permute.xlu0 %4232
      %4234 = vrot.lane.b32.xlu0 %v1433, 64
      %v4235 = vpop.permute.xlu0 %4234
      %4236 = vrot.lane.b32.xlu0 %v1434, 64
      %v4237 = vpop.permute.xlu0 %4236
      %4238 = vrot.lane.b32.xlu0 %v1435, 64
      %v4239 = vpop.permute.xlu0 %4238
      %4240 = vrot.lane.b32.xlu0 %v1436, 64
      %v4241 = vpop.permute.xlu0 %4240
      %4242 = vrot.lane.b32.xlu0 %v1437, 64
      %v4243 = vpop.permute.xlu0 %4242
      %4244 = vrot.lane.b32.xlu0 %v1438, 64
      %v4245 = vpop.permute.xlu0 %4244
      %4246 = vrot.lane.b32.xlu0 %v1439, 64
      %v4247 = vpop.permute.xlu0 %4246
      %4248 = vrot.lane.b32.xlu0 %v1440, 64
      %v4249 = vpop.permute.xlu0 %4248
      %4250 = vrot.lane.b32.xlu0 %v1441, 64
      %v4251 = vpop.permute.xlu0 %4250
      %4252 = vrot.lane.b32.xlu0 %v1442, 64
      %v4253 = vpop.permute.xlu0 %4252
      %4254 = vrot.lane.b32.xlu0 %v1443, 64
      %v4255 = vpop.permute.xlu0 %4254
      %4256 = vrot.lane.b32.xlu0 %v1444, 64
      %v4257 = vpop.permute.xlu0 %4256
      %4258 = vrot.lane.b32.xlu0 %v1445, 64
      %v4259 = vpop.permute.xlu0 %4258
      %v4261 = vsel %vm1613, %v4229, 0
      %v4264 = vsel %vm1613, %v4231, 0
      %v4267 = vsel %vm1613, %v4233, 0
      %v4270 = vsel %vm1613, %v4235, 0
      %v4273 = vsel %vm1613, %v4237, 0
      %v4276 = vsel %vm1613, %v4239, 0
      %v4279 = vsel %vm1613, %v4241, 0
      %v4282 = vsel %vm1613, %v4243, 0
      %v4285 = vsel %vm1613, %v4245, 0
      %v4288 = vsel %vm1613, %v4247, 0
      %v4291 = vsel %vm1613, %v4249, 0
      %v4294 = vsel %vm1613, %v4251, 0
      %v4297 = vsel %vm1613, %v4253, 0
      %v4300 = vsel %vm1613, %v4255, 0
      %v4303 = vsel %vm1613, %v4257, 0
      %v4306 = vsel %vm1613, %v4259, 0
      %4308 = vmatprep.subr.bf16.mxu0 %v1519
      %4309 = vmatpush1.bf16.msra.mxu0 %v1518
      %4310 = vmatprep.subr.bf16.mxu0 %v1521
      %4311 = vmatpush1.bf16.msra.mxu0 %v1520
      %4312 = vmatprep.subr.bf16.mxu0 0
      %4313 = vmatpush1.bf16.msra.mxu0 0
      %4314 = vmatprep.subr.bf16.mxu0 0
      %4315 = vmatpush1.bf16.msra.mxu0 0
      %4316 = vmatprep.subr.bf16.mxu0 0
      %4317 = vmatpush1.bf16.msra.mxu0 0
      %4318 = vmatprep.subr.bf16.mxu0 0
      %4319 = vmatpush1.bf16.msra.mxu0 0
      %4320 = vmatprep.subr.bf16.mxu0 0
      %4321 = vmatpush1.bf16.msra.mxu0 0
      %4322 = vmatprep.subr.bf16.mxu0 0
      %4323 = vmatpush1.bf16.msra.mxu0 0
      %4324 = vmatprep.subr.bf16.mxu0 0
      %4325 = vmatpush1.bf16.msra.mxu0 0
      %4326 = vmatprep.subr.bf16.mxu0 0
      %4327 = vmatpush1.bf16.msra.mxu0 0
      %4328 = vmatprep.subr.bf16.mxu0 0
      %4329 = vmatpush1.bf16.msra.mxu0 0
      %4330 = vmatprep.subr.bf16.mxu0 0
      %4331 = vmatpush1.bf16.msra.mxu0 0
      %4332 = vmatprep.subr.bf16.mxu0 0
      %4333 = vmatpush1.bf16.msra.mxu0 0
      %4334 = vmatprep.subr.bf16.mxu0 0
      %4335 = vmatpush1.bf16.msra.mxu0 0
      %4336 = vmatprep.subr.bf16.mxu0 0
      %4337 = vmatpush1.bf16.msra.mxu0 0
      %4338 = vmatprep.subr.bf16.mxu0 0
      %4339 = vmatpush1.bf16.msra.mxu0 0
      %4340 = vmatprep.mubr.bf16.mxu0 0
      %4341 = vmatmul.mubr.bf16.gmra.mrb[0].mxu0 %v4261
      %v4342 = vpop.f32.mrb[0].mxu0
      %v4343 = vadd.f32 0.0, %v4342
      %v4344 = vpop.f32.mrb[0].mxu0
      %v4345 = vadd.f32 0.0, %v4344
      %v4346 = vpop.f32.mrb[0].mxu0
      %v4347 = vadd.f32 0.0, %v4346
      %v4348 = vpop.f32.mrb[0].mxu0
      %v4349 = vadd.f32 0.0, %v4348
      %4350 = vmatprep.mubr.bf16.mxu0 0
      %4351 = vmatmul.mubr.bf16.gmra.mrb[0].mxu0 %v4264
      %v4352 = vpop.f32.mrb[0].mxu0
      %v4353 = vadd.f32 0.0, %v4352
      %v4354 = vpop.f32.mrb[0].mxu0
      %v4355 = vadd.f32 0.0, %v4354
      %v4356 = vpop.f32.mrb[0].mxu0
      %v4357 = vadd.f32 0.0, %v4356
      %v4358 = vpop.f32.mrb[0].mxu0
      %v4359 = vadd.f32 0.0, %v4358
      %4360 = vmatprep.mubr.bf16.mxu0 0
      %4361 = vmatmul.mubr.bf16.gmra.mrb[0].mxu0 %v4267
      %v4362 = vpop.f32.mrb[0].mxu0
      %v4363 = vadd.f32 0.0, %v4362
      %v4364 = vpop.f32.mrb[0].mxu0
      %v4365 = vadd.f32 0.0, %v4364
      %v4366 = vpop.f32.mrb[0].mxu0
      %v4367 = vadd.f32 0.0, %v4366
      %v4368 = vpop.f32.mrb[0].mxu0
      %v4369 = vadd.f32 0.0, %v4368
      %4370 = vmatprep.mubr.bf16.mxu0 0
      %4371 = vmatmul.mubr.bf16.gmra.mrb[0].mxu0 %v4270
      %v4372 = vpop.f32.mrb[0].mxu0
      %v4373 = vadd.f32 0.0, %v4372
      %v4374 = vpop.f32.mrb[0].mxu0
      %v4375 = vadd.f32 0.0, %v4374
      %v4376 = vpop.f32.mrb[0].mxu0
      %v4377 = vadd.f32 0.0, %v4376
      %v4378 = vpop.f32.mrb[0].mxu0
      %v4379 = vadd.f32 0.0, %v4378
      %4380 = vmatprep.mubr.bf16.mxu0 0
      %4381 = vmatmul.mubr.bf16.gmra.mrb[0].mxu0 %v4273
      %v4382 = vpop.f32.mrb[0].mxu0
      %v4383 = vadd.f32 0.0, %v4382
      %v4384 = vpop.f32.mrb[0].mxu0
      %v4385 = vadd.f32 0.0, %v4384
      %v4386 = vpop.f32.mrb[0].mxu0
      %v4387 = vadd.f32 0.0, %v4386
      %v4388 = vpop.f32.mrb[0].mxu0
      %v4389 = vadd.f32 0.0, %v4388
      %4390 = vmatprep.mubr.bf16.mxu0 0
      %4391 = vmatmul.mubr.bf16.gmra.mrb[0].mxu0 %v4276
      %v4392 = vpop.f32.mrb[0].mxu0
      %v4393 = vadd.f32 0.0, %v4392
      %v4394 = vpop.f32.mrb[0].mxu0
      %v4395 = vadd.f32 0.0, %v4394
      %v4396 = vpop.f32.mrb[0].mxu0
      %v4397 = vadd.f32 0.0, %v4396
      %v4398 = vpop.f32.mrb[0].mxu0
      %v4399 = vadd.f32 0.0, %v4398
      %4400 = vmatprep.mubr.bf16.mxu0 0
      %4401 = vmatmul.mubr.bf16.gmra.mrb[0].mxu0 %v4279
      %v4402 = vpop.f32.mrb[0].mxu0
      %v4403 = vadd.f32 0.0, %v4402
      %v4404 = vpop.f32.mrb[0].mxu0
      %v4405 = vadd.f32 0.0, %v4404
      %v4406 = vpop.f32.mrb[0].mxu0
      %v4407 = vadd.f32 0.0, %v4406
      %v4408 = vpop.f32.mrb[0].mxu0
      %v4409 = vadd.f32 0.0, %v4408
      %4410 = vmatprep.mubr.bf16.mxu0 0
      %4411 = vmatmul.mubr.bf16.gmra.mrb[0].mxu0 %v4282
      %v4412 = vpop.f32.mrb[0].mxu0
      %v4413 = vadd.f32 0.0, %v4412
      %v4414 = vpop.f32.mrb[0].mxu0
      %v4415 = vadd.f32 0.0, %v4414
      %v4416 = vpop.f32.mrb[0].mxu0
      %v4417 = vadd.f32 0.0, %v4416
      %v4418 = vpop.f32.mrb[0].mxu0
      %v4419 = vadd.f32 0.0, %v4418
      %4420 = vmatprep.mubr.bf16.mxu0 0
      %4421 = vmatmul.mubr.bf16.gmra.mrb[0].mxu0 %v4285
      %v4422 = vpop.f32.mrb[0].mxu0
      %v4423 = vadd.f32 0.0, %v4422
      %v4424 = vpop.f32.mrb[0].mxu0
      %v4425 = vadd.f32 0.0, %v4424
      %v4426 = vpop.f32.mrb[0].mxu0
      %v4427 = vadd.f32 0.0, %v4426
      %v4428 = vpop.f32.mrb[0].mxu0
      %v4429 = vadd.f32 0.0, %v4428
      %4430 = vmatprep.mubr.bf16.mxu0 0
      %4431 = vmatmul.mubr.bf16.gmra.mrb[0].mxu0 %v4288
      %v4432 = vpop.f32.mrb[0].mxu0
      %v4433 = vadd.f32 0.0, %v4432
      %v4434 = vpop.f32.mrb[0].mxu0
      %v4435 = vadd.f32 0.0, %v4434
      %v4436 = vpop.f32.mrb[0].mxu0
      %v4437 = vadd.f32 0.0, %v4436
      %v4438 = vpop.f32.mrb[0].mxu0
      %v4439 = vadd.f32 0.0, %v4438
      %4440 = vmatprep.mubr.bf16.mxu0 0
      %4441 = vmatmul.mubr.bf16.gmra.mrb[0].mxu0 %v4291
      %v4442 = vpop.f32.mrb[0].mxu0
      %v4443 = vadd.f32 0.0, %v4442
      %v4444 = vpop.f32.mrb[0].mxu0
      %v4445 = vadd.f32 0.0, %v4444
      %v4446 = vpop.f32.mrb[0].mxu0
      %v4447 = vadd.f32 0.0, %v4446
      %v4448 = vpop.f32.mrb[0].mxu0
      %v4449 = vadd.f32 0.0, %v4448
      %4450 = vmatprep.mubr.bf16.mxu0 0
      %4451 = vmatmul.mubr.bf16.gmra.mrb[0].mxu0 %v4294
      %v4452 = vpop.f32.mrb[0].mxu0
      %v4453 = vadd.f32 0.0, %v4452
      %v4454 = vpop.f32.mrb[0].mxu0
      %v4455 = vadd.f32 0.0, %v4454
      %v4456 = vpop.f32.mrb[0].mxu0
      %v4457 = vadd.f32 0.0, %v4456
      %v4458 = vpop.f32.mrb[0].mxu0
      %v4459 = vadd.f32 0.0, %v4458
      %4460 = vmatprep.mubr.bf16.mxu0 0
      %4461 = vmatmul.mubr.bf16.gmra.mrb[0].mxu0 %v4297
      %v4462 = vpop.f32.mrb[0].mxu0
      %v4463 = vadd.f32 0.0, %v4462
      %v4464 = vpop.f32.mrb[0].mxu0
      %v4465 = vadd.f32 0.0, %v4464
      %v4466 = vpop.f32.mrb[0].mxu0
      %v4467 = vadd.f32 0.0, %v4466
      %v4468 = vpop.f32.mrb[0].mxu0
      %v4469 = vadd.f32 0.0, %v4468
      %4470 = vmatprep.mubr.bf16.mxu0 0
      %4471 = vmatmul.mubr.bf16.gmra.mrb[0].mxu0 %v4300
      %v4472 = vpop.f32.mrb[0].mxu0
      %v4473 = vadd.f32 0.0, %v4472
      %v4474 = vpop.f32.mrb[0].mxu0
      %v4475 = vadd.f32 0.0, %v4474
      %v4476 = vpop.f32.mrb[0].mxu0
      %v4477 = vadd.f32 0.0, %v4476
      %v4478 = vpop.f32.mrb[0].mxu0
      %v4479 = vadd.f32 0.0, %v4478
      %4480 = vmatprep.mubr.bf16.mxu0 0
      %4481 = vmatmul.mubr.bf16.gmra.mrb[0].mxu0 %v4303
      %v4482 = vpop.f32.mrb[0].mxu0
      %v4483 = vadd.f32 0.0, %v4482
      %v4484 = vpop.f32.mrb[0].mxu0
      %v4485 = vadd.f32 0.0, %v4484
      %v4486 = vpop.f32.mrb[0].mxu0
      %v4487 = vadd.f32 0.0, %v4486
      %v4488 = vpop.f32.mrb[0].mxu0
      %v4489 = vadd.f32 0.0, %v4488
      %4490 = vmatprep.mubr.bf16.mxu0 0
      %4491 = vmatmul.mubr.bf16.gmra.mrb[0].mxu0 %v4306
      %v4492 = vpop.f32.mrb[0].mxu0
      %v4493 = vadd.f32 0.0, %v4492
      %v4494 = vpop.f32.mrb[0].mxu0
      %v4495 = vadd.f32 0.0, %v4494
      %v4496 = vpop.f32.mrb[0].mxu0
      %v4497 = vadd.f32 0.0, %v4496
      %v4498 = vpop.f32.mrb[0].mxu0
      %v4499 = vadd.f32 0.0, %v4498
      %4500 = vdwg.mxu0
      %v4501 = vmax.f32 %v4343, %v4345
      %4502 = vmax.xlane.f32.xlu0 %v4501
      %v4503 = vpop.xlane.xlu0 %4502
      %v4504 = vmax.f32 %v4347, %v4349
      %4505 = vmax.xlane.f32.xlu0 %v4504
      %v4506 = vpop.xlane.xlu0 %4505
      %v4507 = vmax.f32 %v4353, %v4355
      %4508 = vmax.xlane.f32.xlu0 %v4507
      %v4509 = vpop.xlane.xlu0 %4508
      %v4510 = vmax.f32 %v4357, %v4359
      %4511 = vmax.xlane.f32.xlu0 %v4510
      %v4512 = vpop.xlane.xlu0 %4511
      %v4513 = vmax.f32 %v4363, %v4365
      %4514 = vmax.xlane.f32.xlu0 %v4513
      %v4515 = vpop.xlane.xlu0 %4514
      %v4516 = vmax.f32 %v4367, %v4369
      %4517 = vmax.xlane.f32.xlu0 %v4516
      %v4518 = vpop.xlane.xlu0 %4517
      %v4519 = vmax.f32 %v4373, %v4375
      %4520 = vmax.xlane.f32.xlu0 %v4519
      %v4521 = vpop.xlane.xlu0 %4520
      %v4522 = vmax.f32 %v4377, %v4379
      %4523 = vmax.xlane.f32.xlu0 %v4522
      %v4524 = vpop.xlane.xlu0 %4523
      %v4525 = vmax.f32 %v4383, %v4385
      %4526 = vmax.xlane.f32.xlu0 %v4525
      %v4527 = vpop.xlane.xlu0 %4526
      %v4528 = vmax.f32 %v4387, %v4389
      %4529 = vmax.xlane.f32.xlu0 %v4528
      %v4530 = vpop.xlane.xlu0 %4529
      %v4531 = vmax.f32 %v4393, %v4395
      %4532 = vmax.xlane.f32.xlu0 %v4531
      %v4533 = vpop.xlane.xlu0 %4532
      %v4534 = vmax.f32 %v4397, %v4399
      %4535 = vmax.xlane.f32.xlu0 %v4534
      %v4536 = vpop.xlane.xlu0 %4535
      %v4537 = vmax.f32 %v4403, %v4405
      %4538 = vmax.xlane.f32.xlu0 %v4537
      %v4539 = vpop.xlane.xlu0 %4538
      %v4540 = vmax.f32 %v4407, %v4409
      %4541 = vmax.xlane.f32.xlu0 %v4540
      %v4542 = vpop.xlane.xlu0 %4541
      %v4543 = vmax.f32 %v4413, %v4415
      %4544 = vmax.xlane.f32.xlu0 %v4543
      %v4545 = vpop.xlane.xlu0 %4544
      %v4546 = vmax.f32 %v4417, %v4419
      %4547 = vmax.xlane.f32.xlu0 %v4546
      %v4548 = vpop.xlane.xlu0 %4547
      %v4549 = vmax.f32 %v4423, %v4425
      %4550 = vmax.xlane.f32.xlu0 %v4549
      %v4551 = vpop.xlane.xlu0 %4550
      %v4552 = vmax.f32 %v4427, %v4429
      %4553 = vmax.xlane.f32.xlu0 %v4552
      %v4554 = vpop.xlane.xlu0 %4553
      %v4555 = vmax.f32 %v4433, %v4435
      %4556 = vmax.xlane.f32.xlu0 %v4555
      %v4557 = vpop.xlane.xlu0 %4556
      %v4558 = vmax.f32 %v4437, %v4439
      %4559 = vmax.xlane.f32.xlu0 %v4558
      %v4560 = vpop.xlane.xlu0 %4559
      %v4561 = vmax.f32 %v4443, %v4445
      %4562 = vmax.xlane.f32.xlu0 %v4561
      %v4563 = vpop.xlane.xlu0 %4562
      %v4564 = vmax.f32 %v4447, %v4449
      %4565 = vmax.xlane.f32.xlu0 %v4564
      %v4566 = vpop.xlane.xlu0 %4565
      %v4567 = vmax.f32 %v4453, %v4455
      %4568 = vmax.xlane.f32.xlu0 %v4567
      %v4569 = vpop.xlane.xlu0 %4568
      %v4570 = vmax.f32 %v4457, %v4459
      %4571 = vmax.xlane.f32.xlu0 %v4570
      %v4572 = vpop.xlane.xlu0 %4571
      %v4573 = vmax.f32 %v4463, %v4465
      %4574 = vmax.xlane.f32.xlu0 %v4573
      %v4575 = vpop.xlane.xlu0 %4574
      %v4576 = vmax.f32 %v4467, %v4469
      %4577 = vmax.xlane.f32.xlu0 %v4576
      %v4578 = vpop.xlane.xlu0 %4577
      %v4579 = vmax.f32 %v4473, %v4475
      %4580 = vmax.xlane.f32.xlu0 %v4579
      %v4581 = vpop.xlane.xlu0 %4580
      %v4582 = vmax.f32 %v4477, %v4479
      %4583 = vmax.xlane.f32.xlu0 %v4582
      %v4584 = vpop.xlane.xlu0 %4583
      %v4585 = vmax.f32 %v4483, %v4485
      %4586 = vmax.xlane.f32.xlu0 %v4585
      %v4587 = vpop.xlane.xlu0 %4586
      %v4588 = vmax.f32 %v4487, %v4489
      %4589 = vmax.xlane.f32.xlu0 %v4588
      %v4590 = vpop.xlane.xlu0 %4589
      %v4591 = vmax.f32 %v4493, %v4495
      %4592 = vmax.xlane.f32.xlu0 %v4591
      %v4593 = vpop.xlane.xlu0 %4592
      %v4594 = vmax.f32 %v4497, %v4499
      %4595 = vmax.xlane.f32.xlu0 %v4594
      %v4596 = vpop.xlane.xlu0 %4595
      %v4597 = vsub.f32 %v4343, %v4503
      %v4598 = vsub.f32 %v4345, %v4503
      %v4599 = vsub.f32 %v4347, %v4506
      %v4600 = vsub.f32 %v4349, %v4506
      %v4601 = vsub.f32 %v4353, %v4509
      %v4602 = vsub.f32 %v4355, %v4509
      %v4603 = vsub.f32 %v4357, %v4512
      %v4604 = vsub.f32 %v4359, %v4512
      %v4605 = vsub.f32 %v4363, %v4515
      %v4606 = vsub.f32 %v4365, %v4515
      %v4607 = vsub.f32 %v4367, %v4518
      %v4608 = vsub.f32 %v4369, %v4518
      %v4609 = vsub.f32 %v4373, %v4521
      %v4610 = vsub.f32 %v4375, %v4521
      %v4611 = vsub.f32 %v4377, %v4524
      %v4612 = vsub.f32 %v4379, %v4524
      %v4613 = vsub.f32 %v4383, %v4527
      %v4614 = vsub.f32 %v4385, %v4527
      %v4615 = vsub.f32 %v4387, %v4530
      %v4616 = vsub.f32 %v4389, %v4530
      %v4617 = vsub.f32 %v4393, %v4533
      %v4618 = vsub.f32 %v4395, %v4533
      %v4619 = vsub.f32 %v4397, %v4536
      %v4620 = vsub.f32 %v4399, %v4536
      %v4621 = vsub.f32 %v4403, %v4539
      %v4622 = vsub.f32 %v4405, %v4539
      %v4623 = vsub.f32 %v4407, %v4542
      %v4624 = vsub.f32 %v4409, %v4542
      %v4625 = vsub.f32 %v4413, %v4545
      %v4626 = vsub.f32 %v4415, %v4545
      %v4627 = vsub.f32 %v4417, %v4548
      %v4628 = vsub.f32 %v4419, %v4548
      %v4629 = vsub.f32 %v4423, %v4551
      %v4630 = vsub.f32 %v4425, %v4551
      %v4631 = vsub.f32 %v4427, %v4554
      %v4632 = vsub.f32 %v4429, %v4554
      %v4633 = vsub.f32 %v4433, %v4557
      %v4634 = vsub.f32 %v4435, %v4557
      %v4635 = vsub.f32 %v4437, %v4560
      %v4636 = vsub.f32 %v4439, %v4560
      %v4637 = vsub.f32 %v4443, %v4563
      %v4638 = vsub.f32 %v4445, %v4563
      %v4639 = vsub.f32 %v4447, %v4566
      %v4640 = vsub.f32 %v4449, %v4566
      %v4641 = vsub.f32 %v4453, %v4569
      %v4642 = vsub.f32 %v4455, %v4569
      %v4643 = vsub.f32 %v4457, %v4572
      %v4644 = vsub.f32 %v4459, %v4572
      %v4645 = vsub.f32 %v4463, %v4575
      %v4646 = vsub.f32 %v4465, %v4575
      %v4647 = vsub.f32 %v4467, %v4578
      %v4648 = vsub.f32 %v4469, %v4578
      %v4649 = vsub.f32 %v4473, %v4581
      %v4650 = vsub.f32 %v4475, %v4581
      %v4651 = vsub.f32 %v4477, %v4584
      %v4652 = vsub.f32 %v4479, %v4584
      %v4653 = vsub.f32 %v4483, %v4587
      %v4654 = vsub.f32 %v4485, %v4587
      %v4655 = vsub.f32 %v4487, %v4590
      %v4656 = vsub.f32 %v4489, %v4590
      %v4657 = vsub.f32 %v4493, %v4593
      %v4658 = vsub.f32 %v4495, %v4593
      %v4659 = vsub.f32 %v4497, %v4596
      %v4660 = vsub.f32 %v4499, %v4596
      %v4661 = vmul.f32 %v4597, 1.442695
      %v4662 = vpow.pop %v4661
      %v4663 = vmul.f32 %v4598, 1.442695
      %v4664 = vpow.pop %v4663
      %v4665 = vmul.f32 %v4599, 1.442695
      %v4666 = vpow.pop %v4665
      %v4667 = vmul.f32 %v4600, 1.442695
      %v4668 = vpow.pop %v4667
      %v4669 = vmul.f32 %v4601, 1.442695
      %v4670 = vpow.pop %v4669
      %v4671 = vmul.f32 %v4602, 1.442695
      %v4672 = vpow.pop %v4671
      %v4673 = vmul.f32 %v4603, 1.442695
      %v4674 = vpow.pop %v4673
      %v4675 = vmul.f32 %v4604, 1.442695
      %v4676 = vpow.pop %v4675
      %v4677 = vmul.f32 %v4605, 1.442695
      %v4678 = vpow.pop %v4677
      %v4679 = vmul.f32 %v4606, 1.442695
      %v4680 = vpow.pop %v4679
      %v4681 = vmul.f32 %v4607, 1.442695
      %v4682 = vpow.pop %v4681
      %v4683 = vmul.f32 %v4608, 1.442695
      %v4684 = vpow.pop %v4683
      %v4685 = vmul.f32 %v4609, 1.442695
      %v4686 = vpow.pop %v4685
      %v4687 = vmul.f32 %v4610, 1.442695
      %v4688 = vpow.pop %v4687
      %v4689 = vmul.f32 %v4611, 1.442695
      %v4690 = vpow.pop %v4689
      %v4691 = vmul.f32 %v4612, 1.442695
      %v4692 = vpow.pop %v4691
      %v4693 = vmul.f32 %v4613, 1.442695
      %v4694 = vpow.pop %v4693
      %v4695 = vmul.f32 %v4614, 1.442695
      %v4696 = vpow.pop %v4695
      %v4697 = vmul.f32 %v4615, 1.442695
      %v4698 = vpow.pop %v4697
      %v4699 = vmul.f32 %v4616, 1.442695
      %v4700 = vpow.pop %v4699
      %v4701 = vmul.f32 %v4617, 1.442695
      %v4702 = vpow.pop %v4701
      %v4703 = vmul.f32 %v4618, 1.442695
      %v4704 = vpow.pop %v4703
      %v4705 = vmul.f32 %v4619, 1.442695
      %v4706 = vpow.pop %v4705
      %v4707 = vmul.f32 %v4620, 1.442695
      %v4708 = vpow.pop %v4707
      %v4709 = vmul.f32 %v4621, 1.442695
      %v4710 = vpow.pop %v4709
      %v4711 = vmul.f32 %v4622, 1.442695
      %v4712 = vpow.pop %v4711
      %v4713 = vmul.f32 %v4623, 1.442695
      %v4714 = vpow.pop %v4713
      %v4715 = vmul.f32 %v4624, 1.442695
      %v4716 = vpow.pop %v4715
      %v4717 = vmul.f32 %v4625, 1.442695
      %v4718 = vpow.pop %v4717
      %v4719 = vmul.f32 %v4626, 1.442695
      %v4720 = vpow.pop %v4719
      %v4721 = vmul.f32 %v4627, 1.442695
      %v4722 = vpow.pop %v4721
      %v4723 = vmul.f32 %v4628, 1.442695
      %v4724 = vpow.pop %v4723
      %v4725 = vmul.f32 %v4629, 1.442695
      %v4726 = vpow.pop %v4725
      %v4727 = vmul.f32 %v4630, 1.442695
      %v4728 = vpow.pop %v4727
      %v4729 = vmul.f32 %v4631, 1.442695
      %v4730 = vpow.pop %v4729
      %v4731 = vmul.f32 %v4632, 1.442695
      %v4732 = vpow.pop %v4731
      %v4733 = vmul.f32 %v4633, 1.442695
      %v4734 = vpow.pop %v4733
      %v4735 = vmul.f32 %v4634, 1.442695
      %v4736 = vpow.pop %v4735
      %v4737 = vmul.f32 %v4635, 1.442695
      %v4738 = vpow.pop %v4737
      %v4739 = vmul.f32 %v4636, 1.442695
      %v4740 = vpow.pop %v4739
      %v4741 = vmul.f32 %v4637, 1.442695
      %v4742 = vpow.pop %v4741
      %v4743 = vmul.f32 %v4638, 1.442695
      %v4744 = vpow.pop %v4743
      %v4745 = vmul.f32 %v4639, 1.442695
      %v4746 = vpow.pop %v4745
      %v4747 = vmul.f32 %v4640, 1.442695
      %v4748 = vpow.pop %v4747
      %v4749 = vmul.f32 %v4641, 1.442695
      %v4750 = vpow.pop %v4749
      %v4751 = vmul.f32 %v4642, 1.442695
      %v4752 = vpow.pop %v4751
      %v4753 = vmul.f32 %v4643, 1.442695
      %v4754 = vpow.pop %v4753
      %v4755 = vmul.f32 %v4644, 1.442695
      %v4756 = vpow.pop %v4755
      %v4757 = vmul.f32 %v4645, 1.442695
      %v4758 = vpow.pop %v4757
      %v4759 = vmul.f32 %v4646, 1.442695
      %v4760 = vpow.pop %v4759
      %v4761 = vmul.f32 %v4647, 1.442695
      %v4762 = vpow.pop %v4761
      %v4763 = vmul.f32 %v4648, 1.442695
      %v4764 = vpow.pop %v4763
      %v4765 = vmul.f32 %v4649, 1.442695
      %v4766 = vpow.pop %v4765
      %v4767 = vmul.f32 %v4650, 1.442695
      %v4768 = vpow.pop %v4767
      %v4769 = vmul.f32 %v4651, 1.442695
      %v4770 = vpow.pop %v4769
      %v4771 = vmul.f32 %v4652, 1.442695
      %v4772 = vpow.pop %v4771
      %v4773 = vmul.f32 %v4653, 1.442695
      %v4774 = vpow.pop %v4773
      %v4775 = vmul.f32 %v4654, 1.442695
      %v4776 = vpow.pop %v4775
      %v4777 = vmul.f32 %v4655, 1.442695
      %v4778 = vpow.pop %v4777
      %v4779 = vmul.f32 %v4656, 1.442695
      %v4780 = vpow.pop %v4779
      %v4781 = vmul.f32 %v4657, 1.442695
      %v4782 = vpow.pop %v4781
      %v4783 = vmul.f32 %v4658, 1.442695
      %v4784 = vpow.pop %v4783
      %v4785 = vmul.f32 %v4659, 1.442695
      %v4786 = vpow.pop %v4785
      %v4787 = vmul.f32 %v4660, 1.442695
      %v4788 = vpow.pop %v4787
      %v4789 = vadd.f32 %v4662, %v4664
      %4790 = vadd.xlane.f32.xlu0 %v4789
      %v4791 = vpop.xlane.xlu0 %4790
      %v4792 = vadd.f32 %v4666, %v4668
      %4793 = vadd.xlane.f32.xlu0 %v4792
      %v4794 = vpop.xlane.xlu0 %4793
      %v4795 = vadd.f32 %v4670, %v4672
      %4796 = vadd.xlane.f32.xlu0 %v4795
      %v4797 = vpop.xlane.xlu0 %4796
      %v4798 = vadd.f32 %v4674, %v4676
      %4799 = vadd.xlane.f32.xlu0 %v4798
      %v4800 = vpop.xlane.xlu0 %4799
      %v4801 = vadd.f32 %v4678, %v4680
      %4802 = vadd.xlane.f32.xlu0 %v4801
      %v4803 = vpop.xlane.xlu0 %4802
      %v4804 = vadd.f32 %v4682, %v4684
      %4805 = vadd.xlane.f32.xlu0 %v4804
      %v4806 = vpop.xlane.xlu0 %4805
      %v4807 = vadd.f32 %v4686, %v4688
      %4808 = vadd.xlane.f32.xlu0 %v4807
      %v4809 = vpop.xlane.xlu0 %4808
      %v4810 = vadd.f32 %v4690, %v4692
      %4811 = vadd.xlane.f32.xlu0 %v4810
      %v4812 = vpop.xlane.xlu0 %4811
      %v4813 = vadd.f32 %v4694, %v4696
      %4814 = vadd.xlane.f32.xlu0 %v4813
      %v4815 = vpop.xlane.xlu0 %4814
      %v4816 = vadd.f32 %v4698, %v4700
      %4817 = vadd.xlane.f32.xlu0 %v4816
      %v4818 = vpop.xlane.xlu0 %4817
      %v4819 = vadd.f32 %v4702, %v4704
      %4820 = vadd.xlane.f32.xlu0 %v4819
      %v4821 = vpop.xlane.xlu0 %4820
      %v4822 = vadd.f32 %v4706, %v4708
      %4823 = vadd.xlane.f32.xlu0 %v4822
      %v4824 = vpop.xlane.xlu0 %4823
      %v4825 = vadd.f32 %v4710, %v4712
      %4826 = vadd.xlane.f32.xlu0 %v4825
      %v4827 = vpop.xlane.xlu0 %4826
      %v4828 = vadd.f32 %v4714, %v4716
      %4829 = vadd.xlane.f32.xlu0 %v4828
      %v4830 = vpop.xlane.xlu0 %4829
      %v4831 = vadd.f32 %v4718, %v4720
      %4832 = vadd.xlane.f32.xlu0 %v4831
      %v4833 = vpop.xlane.xlu0 %4832
      %v4834 = vadd.f32 %v4722, %v4724
      %4835 = vadd.xlane.f32.xlu0 %v4834
      %v4836 = vpop.xlane.xlu0 %4835
      %v4837 = vadd.f32 %v4726, %v4728
      %4838 = vadd.xlane.f32.xlu0 %v4837
      %v4839 = vpop.xlane.xlu0 %4838
      %v4840 = vadd.f32 %v4730, %v4732
      %4841 = vadd.xlane.f32.xlu0 %v4840
      %v4842 = vpop.xlane.xlu0 %4841
      %v4843 = vadd.f32 %v4734, %v4736
      %4844 = vadd.xlane.f32.xlu0 %v4843
      %v4845 = vpop.xlane.xlu0 %4844
      %v4846 = vadd.f32 %v4738, %v4740
      %4847 = vadd.xlane.f32.xlu0 %v4846
      %v4848 = vpop.xlane.xlu0 %4847
      %v4849 = vadd.f32 %v4742, %v4744
      %4850 = vadd.xlane.f32.xlu0 %v4849
      %v4851 = vpop.xlane.xlu0 %4850
      %v4852 = vadd.f32 %v4746, %v4748
      %4853 = vadd.xlane.f32.xlu0 %v4852
      %v4854 = vpop.xlane.xlu0 %4853
      %v4855 = vadd.f32 %v4750, %v4752
      %4856 = vadd.xlane.f32.xlu0 %v4855
      %v4857 = vpop.xlane.xlu0 %4856
      %v4858 = vadd.f32 %v4754, %v4756
      %4859 = vadd.xlane.f32.xlu0 %v4858
      %v4860 = vpop.xlane.xlu0 %4859
      %v4861 = vadd.f32 %v4758, %v4760
      %4862 = vadd.xlane.f32.xlu0 %v4861
      %v4863 = vpop.xlane.xlu0 %4862
      %v4864 = vadd.f32 %v4762, %v4764
      %4865 = vadd.xlane.f32.xlu0 %v4864
      %v4866 = vpop.xlane.xlu0 %4865
      %v4867 = vadd.f32 %v4766, %v4768
      %4868 = vadd.xlane.f32.xlu0 %v4867
      %v4869 = vpop.xlane.xlu0 %4868
      %v4870 = vadd.f32 %v4770, %v4772
      %4871 = vadd.xlane.f32.xlu0 %v4870
      %v4872 = vpop.xlane.xlu0 %4871
      %v4873 = vadd.f32 %v4774, %v4776
      %4874 = vadd.xlane.f32.xlu0 %v4873
      %v4875 = vpop.xlane.xlu0 %4874
      %v4876 = vadd.f32 %v4778, %v4780
      %4877 = vadd.xlane.f32.xlu0 %v4876
      %v4878 = vpop.xlane.xlu0 %4877
      %v4879 = vadd.f32 %v4782, %v4784
      %4880 = vadd.xlane.f32.xlu0 %v4879
      %v4881 = vpop.xlane.xlu0 %4880
      %v4882 = vadd.f32 %v4786, %v4788
      %4883 = vadd.xlane.f32.xlu0 %v4882
      %v4884 = vpop.xlane.xlu0 %4883
      %v4885 = vrcp.pop %v4791
      %v4886 = vrcp.pop %v4794
      %v4887 = vrcp.pop %v4797
      %v4888 = vrcp.pop %v4800
      %v4889 = vrcp.pop %v4803
      %v4890 = vrcp.pop %v4806
      %v4891 = vrcp.pop %v4809
      %v4892 = vrcp.pop %v4812
      %v4893 = vrcp.pop %v4815
      %v4894 = vrcp.pop %v4818
      %v4895 = vrcp.pop %v4821
      %v4896 = vrcp.pop %v4824
      %v4897 = vrcp.pop %v4827
      %v4898 = vrcp.pop %v4830
      %v4899 = vrcp.pop %v4833
      %v4900 = vrcp.pop %v4836
      %v4901 = vrcp.pop %v4839
      %v4902 = vrcp.pop %v4842
      %v4903 = vrcp.pop %v4845
      %v4904 = vrcp.pop %v4848
      %v4905 = vrcp.pop %v4851
      %v4906 = vrcp.pop %v4854
      %v4907 = vrcp.pop %v4857
      %v4908 = vrcp.pop %v4860
      %v4909 = vrcp.pop %v4863
      %v4910 = vrcp.pop %v4866
      %v4911 = vrcp.pop %v4869
      %v4912 = vrcp.pop %v4872
      %v4913 = vrcp.pop %v4875
      %v4914 = vrcp.pop %v4878
      %v4915 = vrcp.pop %v4881
      %v4916 = vrcp.pop %v4884
      %v4917 = vmul.f32 %v4662, %v4885
      %v4918 = vmul.f32 %v4664, %v4885
      %v4919 = vmul.f32 %v4666, %v4886
      %v4920 = vmul.f32 %v4668, %v4886
      %v4921 = vmul.f32 %v4670, %v4887
      %v4922 = vmul.f32 %v4672, %v4887
      %v4923 = vmul.f32 %v4674, %v4888
      %v4924 = vmul.f32 %v4676, %v4888
      %v4925 = vmul.f32 %v4678, %v4889
      %v4926 = vmul.f32 %v4680, %v4889
      %v4927 = vmul.f32 %v4682, %v4890
      %v4928 = vmul.f32 %v4684, %v4890
      %v4929 = vmul.f32 %v4686, %v4891
      %v4930 = vmul.f32 %v4688, %v4891
      %v4931 = vmul.f32 %v4690, %v4892
      %v4932 = vmul.f32 %v4692, %v4892
      %v4933 = vmul.f32 %v4694, %v4893
      %v4934 = vmul.f32 %v4696, %v4893
      %v4935 = vmul.f32 %v4698, %v4894
      %v4936 = vmul.f32 %v4700, %v4894
      %v4937 = vmul.f32 %v4702, %v4895
      %v4938 = vmul.f32 %v4704, %v4895
      %v4939 = vmul.f32 %v4706, %v4896
      %v4940 = vmul.f32 %v4708, %v4896
      %v4941 = vmul.f32 %v4710, %v4897
      %v4942 = vmul.f32 %v4712, %v4897
      %v4943 = vmul.f32 %v4714, %v4898
      %v4944 = vmul.f32 %v4716, %v4898
      %v4945 = vmul.f32 %v4718, %v4899
      %v4946 = vmul.f32 %v4720, %v4899
      %v4947 = vmul.f32 %v4722, %v4900
      %v4948 = vmul.f32 %v4724, %v4900
      %v4949 = vmul.f32 %v4726, %v4901
      %v4950 = vmul.f32 %v4728, %v4901
      %v4951 = vmul.f32 %v4730, %v4902
      %v4952 = vmul.f32 %v4732, %v4902
      %v4953 = vmul.f32 %v4734, %v4903
      %v4954 = vmul.f32 %v4736, %v4903
      %v4955 = vmul.f32 %v4738, %v4904
      %v4956 = vmul.f32 %v4740, %v4904
      %v4957 = vmul.f32 %v4742, %v4905
      %v4958 = vmul.f32 %v4744, %v4905
      %v4959 = vmul.f32 %v4746, %v4906
      %v4960 = vmul.f32 %v4748, %v4906
      %v4961 = vmul.f32 %v4750, %v4907
      %v4962 = vmul.f32 %v4752, %v4907
      %v4963 = vmul.f32 %v4754, %v4908
      %v4964 = vmul.f32 %v4756, %v4908
      %v4965 = vmul.f32 %v4758, %v4909
      %v4966 = vmul.f32 %v4760, %v4909
      %v4967 = vmul.f32 %v4762, %v4910
      %v4968 = vmul.f32 %v4764, %v4910
      %v4969 = vmul.f32 %v4766, %v4911
      %v4970 = vmul.f32 %v4768, %v4911
      %v4971 = vmul.f32 %v4770, %v4912
      %v4972 = vmul.f32 %v4772, %v4912
      %v4973 = vmul.f32 %v4774, %v4913
      %v4974 = vmul.f32 %v4776, %v4913
      %v4975 = vmul.f32 %v4778, %v4914
      %v4976 = vmul.f32 %v4780, %v4914
      %v4977 = vmul.f32 %v4782, %v4915
      %v4978 = vmul.f32 %v4784, %v4915
      %v4979 = vmul.f32 %v4786, %v4916
      %v4980 = vmul.f32 %v4788, %v4916
      %v4981 = vpack.c.bf16 %v4919, %v4917
      %v4982 = vpack.c.bf16 %v4920, %v4918
      %v4983 = vpack.c.bf16 %v4923, %v4921
      %v4984 = vpack.c.bf16 %v4924, %v4922
      %v4985 = vpack.c.bf16 %v4927, %v4925
      %v4986 = vpack.c.bf16 %v4928, %v4926
      %v4987 = vpack.c.bf16 %v4931, %v4929
      %v4988 = vpack.c.bf16 %v4932, %v4930
      %v4989 = vpack.c.bf16 %v4935, %v4933
      %v4990 = vpack.c.bf16 %v4936, %v4934
      %v4991 = vpack.c.bf16 %v4939, %v4937
      %v4992 = vpack.c.bf16 %v4940, %v4938
      %v4993 = vpack.c.bf16 %v4943, %v4941
      %v4994 = vpack.c.bf16 %v4944, %v4942
      %v4995 = vpack.c.bf16 %v4947, %v4945
      %v4996 = vpack.c.bf16 %v4948, %v4946
      %v4997 = vpack.c.bf16 %v4951, %v4949
      %v4998 = vpack.c.bf16 %v4952, %v4950
      %v4999 = vpack.c.bf16 %v4955, %v4953
      %v5000 = vpack.c.bf16 %v4956, %v4954
      %v5001 = vpack.c.bf16 %v4959, %v4957
      %v5002 = vpack.c.bf16 %v4960, %v4958
      %v5003 = vpack.c.bf16 %v4963, %v4961
      %v5004 = vpack.c.bf16 %v4964, %v4962
      %v5005 = vpack.c.bf16 %v4967, %v4965
      %v5006 = vpack.c.bf16 %v4968, %v4966
      %v5007 = vpack.c.bf16 %v4971, %v4969
      %v5008 = vpack.c.bf16 %v4972, %v4970
      %v5009 = vpack.c.bf16 %v4975, %v4973
      %v5010 = vpack.c.bf16 %v4976, %v4974
      %v5011 = vpack.c.bf16 %v4979, %v4977
      %v5012 = vpack.c.bf16 %v4980, %v4978
      %5013 = vrot.lane.b32.xlu0 %v1526, 64
      %v5014 = vpop.permute.xlu0 %5013
      %5015 = vrot.lane.b32.xlu0 %v1527, 64
      %v5016 = vpop.permute.xlu0 %5015
      %5017 = vrot.lane.b32.xlu0 %v1528, 64
      %v5018 = vpop.permute.xlu0 %5017
      %5019 = vrot.lane.b32.xlu0 %v1529, 64
      %v5020 = vpop.permute.xlu0 %5019
      %5021 = vrot.lane.b32.xlu0 %v1530, 64
      %v5022 = vpop.permute.xlu0 %5021
      %5023 = vrot.lane.b32.xlu0 %v1531, 64
      %v5024 = vpop.permute.xlu0 %5023
      %5025 = vrot.lane.b32.xlu0 %v1532, 64
      %v5026 = vpop.permute.xlu0 %5025
      %5027 = vrot.lane.b32.xlu0 %v1533, 64
      %v5028 = vpop.permute.xlu0 %5027
      %5029 = vrot.lane.b32.xlu0 %v1534, 64
      %v5030 = vpop.permute.xlu0 %5029
      %5031 = vrot.lane.b32.xlu0 %v1535, 64
      %v5032 = vpop.permute.xlu0 %5031
      %5033 = vrot.lane.b32.xlu0 %v1536, 64
      %v5034 = vpop.permute.xlu0 %5033
      %5035 = vrot.lane.b32.xlu0 %v1537, 64
      %v5036 = vpop.permute.xlu0 %5035
      %5037 = vrot.lane.b32.xlu0 %v1538, 64
      %v5038 = vpop.permute.xlu0 %5037
      %5039 = vrot.lane.b32.xlu0 %v1539, 64
      %v5040 = vpop.permute.xlu0 %5039
      %5041 = vrot.lane.b32.xlu0 %v1540, 64
      %v5042 = vpop.permute.xlu0 %5041
      %5043 = vrot.lane.b32.xlu0 %v1541, 64
      %v5044 = vpop.permute.xlu0 %5043
      %5061 = vmatprep.subr.bf16.mxu0 0
      %5062 = vmatpush1.bf16.msra.mxu0 %v5014
      %5063 = vmatprep.subr.bf16.mxu0 0
      %5064 = vmatpush1.bf16.msra.mxu0 %v5016
      %5065 = vmatprep.subr.bf16.mxu0 0
      %5066 = vmatpush1.bf16.msra.mxu0 %v5018
      %5067 = vmatprep.subr.bf16.mxu0 0
      %5068 = vmatpush1.bf16.msra.mxu0 %v5020
      %5069 = vmatprep.subr.bf16.mxu0 0
      %5070 = vmatpush1.bf16.msra.mxu0 %v5022
      %5071 = vmatprep.subr.bf16.mxu0 0
      %5072 = vmatpush1.bf16.msra.mxu0 %v5024
      %5073 = vmatprep.subr.bf16.mxu0 0
      %5074 = vmatpush1.bf16.msra.mxu0 %v5026
      %5075 = vmatprep.subr.bf16.mxu0 0
      %5076 = vmatpush1.bf16.msra.mxu0 %v5028
      %5077 = vmatprep.subr.bf16.mxu0 0
      %5078 = vmatpush1.bf16.msra.mxu0 %v5030
      %5079 = vmatprep.subr.bf16.mxu0 0
      %5080 = vmatpush1.bf16.msra.mxu0 %v5032
      %5081 = vmatprep.subr.bf16.mxu0 0
      %5082 = vmatpush1.bf16.msra.mxu0 %v5034
      %5083 = vmatprep.subr.bf16.mxu0 0
      %5084 = vmatpush1.bf16.msra.mxu0 %v5036
      %5085 = vmatprep.subr.bf16.mxu0 0
      %5086 = vmatpush1.bf16.msra.mxu0 %v5038
      %5087 = vmatprep.subr.bf16.mxu0 0
      %5088 = vmatpush1.bf16.msra.mxu0 %v5040
      %5089 = vmatprep.subr.bf16.mxu0 0
      %5090 = vmatpush1.bf16.msra.mxu0 %v5042
      %5091 = vmatprep.subr.bf16.mxu0 0
      %5092 = vmatpush1.bf16.msra.mxu0 %v5044
      %5093 = vmatprep.mubr.bf16.mxu0 %v4982
      %5094 = vmatmul.mubr.bf16.gmra.mrb[0].mxu0 %v4981
      %v5095 = vpop.f32.mrb[0].mxu0
      %v5096 = vadd.f32 0.0, %v5095
      %v5097 = vpop.f32.mrb[0].mxu0
      %v5098 = vpop.f32.mrb[0].mxu0
      %v5099 = vadd.f32 0.0, %v5098
      %v5100 = vpop.f32.mrb[0].mxu0
      %5101 = vmatprep.mubr.bf16.mxu0 %v4984
      %5102 = vmatmul.mubr.bf16.gmra.mrb[0].mxu0 %v4983
      %v5103 = vpop.f32.mrb[0].mxu0
      %v5104 = vadd.f32 0.0, %v5103
      %v5105 = vpop.f32.mrb[0].mxu0
      %v5106 = vpop.f32.mrb[0].mxu0
      %v5107 = vadd.f32 0.0, %v5106
      %v5108 = vpop.f32.mrb[0].mxu0
      %5109 = vmatprep.mubr.bf16.mxu0 %v4986
      %5110 = vmatmul.mubr.bf16.gmra.mrb[0].mxu0 %v4985
      %v5111 = vpop.f32.mrb[0].mxu0
      %v5112 = vadd.f32 0.0, %v5111
      %v5113 = vpop.f32.mrb[0].mxu0
      %v5114 = vpop.f32.mrb[0].mxu0
      %v5115 = vadd.f32 0.0, %v5114
      %v5116 = vpop.f32.mrb[0].mxu0
      %5117 = vmatprep.mubr.bf16.mxu0 %v4988
      %5118 = vmatmul.mubr.bf16.gmra.mrb[0].mxu0 %v4987
      %v5119 = vpop.f32.mrb[0].mxu0
      %v5120 = vadd.f32 0.0, %v5119
      %v5121 = vpop.f32.mrb[0].mxu0
      %v5122 = vpop.f32.mrb[0].mxu0
      %v5123 = vadd.f32 0.0, %v5122
      %v5124 = vpop.f32.mrb[0].mxu0
      %5125 = vmatprep.mubr.bf16.mxu0 %v4990
      %5126 = vmatmul.mubr.bf16.gmra.mrb[0].mxu0 %v4989
      %v5127 = vpop.f32.mrb[0].mxu0
      %v5128 = vadd.f32 0.0, %v5127
      %v5129 = vpop.f32.mrb[0].mxu0
      %v5130 = vpop.f32.mrb[0].mxu0
      %v5131 = vadd.f32 0.0, %v5130
      %v5132 = vpop.f32.mrb[0].mxu0
      %5133 = vmatprep.mubr.bf16.mxu0 %v4992
      %5134 = vmatmul.mubr.bf16.gmra.mrb[0].mxu0 %v4991
      %v5135 = vpop.f32.mrb[0].mxu0
      %v5136 = vadd.f32 0.0, %v5135
      %v5137 = vpop.f32.mrb[0].mxu0
      %v5138 = vpop.f32.mrb[0].mxu0
      %v5139 = vadd.f32 0.0, %v5138
      %v5140 = vpop.f32.mrb[0].mxu0
      %5141 = vmatprep.mubr.bf16.mxu0 %v4994
      %5142 = vmatmul.mubr.bf16.gmra.mrb[0].mxu0 %v4993
      %v5143 = vpop.f32.mrb[0].mxu0
      %v5144 = vadd.f32 0.0, %v5143
      %v5145 = vpop.f32.mrb[0].mxu0
      %v5146 = vpop.f32.mrb[0].mxu0
      %v5147 = vadd.f32 0.0, %v5146
      %v5148 = vpop.f32.mrb[0].mxu0
      %5149 = vmatprep.mubr.bf16.mxu0 %v4996
      %5150 = vmatmul.mubr.bf16.gmra.mrb[0].mxu0 %v4995
      %v5151 = vpop.f32.mrb[0].mxu0
      %v5152 = vadd.f32 0.0, %v5151
      %v5153 = vpop.f32.mrb[0].mxu0
      %v5154 = vpop.f32.mrb[0].mxu0
      %v5155 = vadd.f32 0.0, %v5154
      %v5156 = vpop.f32.mrb[0].mxu0
      %5157 = vmatprep.mubr.bf16.mxu0 %v4998
      %5158 = vmatmul.mubr.bf16.gmra.mrb[0].mxu0 %v4997
      %v5159 = vpop.f32.mrb[0].mxu0
      %v5160 = vadd.f32 0.0, %v5159
      %v5161 = vpop.f32.mrb[0].mxu0
      %v5162 = vpop.f32.mrb[0].mxu0
      %v5163 = vadd.f32 0.0, %v5162
      %v5164 = vpop.f32.mrb[0].mxu0
      %5165 = vmatprep.mubr.bf16.mxu0 %v5000
      %5166 = vmatmul.mubr.bf16.gmra.mrb[0].mxu0 %v4999
      %v5167 = vpop.f32.mrb[0].mxu0
      %v5168 = vadd.f32 0.0, %v5167
      %v5169 = vpop.f32.mrb[0].mxu0
      %v5170 = vpop.f32.mrb[0].mxu0
      %v5171 = vadd.f32 0.0, %v5170
      %v5172 = vpop.f32.mrb[0].mxu0
      %5173 = vmatprep.mubr.bf16.mxu0 %v5002
      %5174 = vmatmul.mubr.bf16.gmra.mrb[0].mxu0 %v5001
      %v5175 = vpop.f32.mrb[0].mxu0
      %v5176 = vadd.f32 0.0, %v5175
      %v5177 = vpop.f32.mrb[0].mxu0
      %v5178 = vpop.f32.mrb[0].mxu0
      %v5179 = vadd.f32 0.0, %v5178
      %v5180 = vpop.f32.mrb[0].mxu0
      %5181 = vmatprep.mubr.bf16.mxu0 %v5004
      %5182 = vmatmul.mubr.bf16.gmra.mrb[0].mxu0 %v5003
      %v5183 = vpop.f32.mrb[0].mxu0
      %v5184 = vadd.f32 0.0, %v5183
      %v5185 = vpop.f32.mrb[0].mxu0
      %v5186 = vpop.f32.mrb[0].mxu0
      %v5187 = vadd.f32 0.0, %v5186
      %v5188 = vpop.f32.mrb[0].mxu0
      %5189 = vmatprep.mubr.bf16.mxu0 %v5006
      %5190 = vmatmul.mubr.bf16.gmra.mrb[0].mxu0 %v5005
      %v5191 = vpop.f32.mrb[0].mxu0
      %v5192 = vadd.f32 0.0, %v5191
      %v5193 = vpop.f32.mrb[0].mxu0
      %v5194 = vpop.f32.mrb[0].mxu0
      %v5195 = vadd.f32 0.0, %v5194
      %v5196 = vpop.f32.mrb[0].mxu0
      %5197 = vmatprep.mubr.bf16.mxu0 %v5008
      %5198 = vmatmul.mubr.bf16.gmra.mrb[0].mxu0 %v5007
      %v5199 = vpop.f32.mrb[0].mxu0
      %v5200 = vadd.f32 0.0, %v5199
      %v5201 = vpop.f32.mrb[0].mxu0
      %v5202 = vpop.f32.mrb[0].mxu0
      %v5203 = vadd.f32 0.0, %v5202
      %v5204 = vpop.f32.mrb[0].mxu0
      %5205 = vmatprep.mubr.bf16.mxu0 %v5010
      %5206 = vmatmul.mubr.bf16.gmra.mrb[0].mxu0 %v5009
      %v5207 = vpop.f32.mrb[0].mxu0
      %v5208 = vadd.f32 0.0, %v5207
      %v5209 = vpop.f32.mrb[0].mxu0
      %v5210 = vpop.f32.mrb[0].mxu0
      %v5211 = vadd.f32 0.0, %v5210
      %v5212 = vpop.f32.mrb[0].mxu0
      %5213 = vmatprep.mubr.bf16.mxu0 %v5012
      %5214 = vmatmul.mubr.bf16.gmra.mrb[0].mxu0 %v5011
      %v5215 = vpop.f32.mrb[0].mxu0
      %v5216 = vadd.f32 0.0, %v5215
      %v5217 = vpop.f32.mrb[0].mxu0
      %v5218 = vpop.f32.mrb[0].mxu0
      %v5219 = vadd.f32 0.0, %v5218
      %v5220 = vpop.f32.mrb[0].mxu0
      %5221 = vdwg.mxu0
      %v5222 = vld [vmem:[#allocation2] sm:$0xff]
      %v5223 = vld [vmem:[#allocation2 + $0x8] sm:$0xff]
      %v5224 = vld [vmem:[#allocation2 + $0x10] sm:$0xff]
      %v5225 = vld [vmem:[#allocation2 + $0x18] sm:$0xff]
      %v5226 = vld [vmem:[#allocation2 + $0x20] sm:$0xff]
      %v5227 = vld [vmem:[#allocation2 + $0x28] sm:$0xff]
      %v5228 = vld [vmem:[#allocation2 + $0x30] sm:$0xff]
      %v5229 = vld [vmem:[#allocation2 + $0x38] sm:$0xff]
      %v5230 = vld [vmem:[#allocation2 + $0x40] sm:$0xff]
      %v5231 = vld [vmem:[#allocation2 + $0x48] sm:$0xff]
      %v5232 = vld [vmem:[#allocation2 + $0x50] sm:$0xff]
      %v5233 = vld [vmem:[#allocation2 + $0x58] sm:$0xff]
      %v5234 = vld [vmem:[#allocation2 + $0x60] sm:$0xff]
      %v5235 = vld [vmem:[#allocation2 + $0x68] sm:$0xff]
      %v5236 = vld [vmem:[#allocation2 + $0x70] sm:$0xff]
      %v5237 = vld [vmem:[#allocation2 + $0x78] sm:$0xff]
      %v5238 = vld [vmem:[#allocation2 + $0x80] sm:$0xff]
      %v5239 = vld [vmem:[#allocation2 + $0x88] sm:$0xff]
      %v5240 = vld [vmem:[#allocation2 + $0x90] sm:$0xff]
      %v5241 = vld [vmem:[#allocation2 + $0x98] sm:$0xff]
      %v5242 = vld [vmem:[#allocation2 + $0xa0] sm:$0xff]
      %v5243 = vld [vmem:[#allocation2 + $0xa8] sm:$0xff]
      %v5244 = vld [vmem:[#allocation2 + $0xb0] sm:$0xff]
      %v5245 = vld [vmem:[#allocation2 + $0xb8] sm:$0xff]
      %v5246 = vld [vmem:[#allocation2 + $0xc0] sm:$0xff]
      %v5247 = vld [vmem:[#allocation2 + $0xc8] sm:$0xff]
      %v5248 = vld [vmem:[#allocation2 + $0xd0] sm:$0xff]
      %v5249 = vld [vmem:[#allocation2 + $0xd8] sm:$0xff]
      %v5250 = vld [vmem:[#allocation2 + $0xe0] sm:$0xff]
      %v5251 = vld [vmem:[#allocation2 + $0xe8] sm:$0xff]
      %v5252 = vld [vmem:[#allocation2 + $0xf0] sm:$0xff]
      %v5253 = vld [vmem:[#allocation2 + $0xf8] sm:$0xff]
      %v5254 = vpack.c.bf16 %v5099, %v5096
      %v5255 = vpack.c.bf16 %v5107, %v5104
      %v5256 = vpack.c.bf16 %v5115, %v5112
      %v5257 = vpack.c.bf16 %v5123, %v5120
      %v5258 = vpack.c.bf16 %v5131, %v5128
      %v5259 = vpack.c.bf16 %v5139, %v5136
      %v5260 = vpack.c.bf16 %v5147, %v5144
      %v5261 = vpack.c.bf16 %v5155, %v5152
      %v5262 = vpack.c.bf16 %v5163, %v5160
      %v5263 = vpack.c.bf16 %v5171, %v5168
      %v5264 = vpack.c.bf16 %v5179, %v5176
      %v5265 = vpack.c.bf16 %v5187, %v5184
      %v5266 = vpack.c.bf16 %v5195, %v5192
      %v5267 = vpack.c.bf16 %v5203, %v5200
      %v5268 = vpack.c.bf16 %v5211, %v5208
      %v5269 = vpack.c.bf16 %v5219, %v5216
      %v5270 = vld [vmem:[%s4 + $0x20] sm:$0xf]
      %v5271 = vld [vmem:[%s4 + $0x24] sm:$0xf]
      %v5272 = vld [vmem:[%s4 + $0x28] sm:$0xf]
      %v5273 = vld [vmem:[%s4 + $0x2c] sm:$0xf]
      %v5278 = vunpack.c.l.b16 %v5270
      %v5279 = vunpack.c.l.b16 %v5271
      %v5280 = vunpack.c.l.b16 %v5272
      %v5281 = vunpack.c.l.b16 %v5273
      %v5282 = vpack.c.b16 %v5279, %v5278
      %v5283 = vpack.c.b16 %v5281, %v5280
      %v5287 = vsel %vm1613, %v5254, 0
      %v5290 = vsel %vm1613, %v5255, 0
      %v5293 = vsel %vm1613, %v5256, 0
      %v5296 = vsel %vm1613, %v5257, 0
      %v5299 = vsel %vm1613, %v5258, 0
      %v5302 = vsel %vm1613, %v5259, 0
      %v5305 = vsel %vm1613, %v5260, 0
      %v5308 = vsel %vm1613, %v5261, 0
      %v5311 = vsel %vm1613, %v5262, 0
      %v5314 = vsel %vm1613, %v5263, 0
      %v5317 = vsel %vm1613, %v5264, 0
      %v5320 = vsel %vm1613, %v5265, 0
      %v5323 = vsel %vm1613, %v5266, 0
      %v5326 = vsel %vm1613, %v5267, 0
      %v5329 = vsel %vm1613, %v5268, 0
      %v5332 = vsel %vm1613, %v5269, 0
      %5334 = vmatprep.subr.bf16.mxu0 0
      %5335 = vmatpush1.bf16.msra.mxu0 %v5282
      %5336 = vmatprep.subr.bf16.mxu0 0
      %5337 = vmatpush1.bf16.msra.mxu0 %v5283
      %5338 = vmatprep.subr.bf16.mxu0 0
      %5339 = vmatpush1.bf16.msra.mxu0 0
      %5340 = vmatprep.subr.bf16.mxu0 0
      %5341 = vmatpush1.bf16.msra.mxu0 0
      %5342 = vmatprep.subr.bf16.mxu0 0
      %5343 = vmatpush1.bf16.msra.mxu0 0
      %5344 = vmatprep.subr.bf16.mxu0 0
      %5345 = vmatpush1.bf16.msra.mxu0 0
      %5346 = vmatprep.subr.bf16.mxu0 0
      %5347 = vmatpush1.bf16.msra.mxu0 0
      %5348 = vmatprep.subr.bf16.mxu0 0
      %5349 = vmatpush1.bf16.msra.mxu0 0
      %5350 = vmatprep.subr.bf16.mxu0 0
      %5351 = vmatpush1.bf16.msra.mxu0 0
      %5352 = vmatprep.subr.bf16.mxu0 0
      %5353 = vmatpush1.bf16.msra.mxu0 0
      %5354 = vmatprep.subr.bf16.mxu0 0
      %5355 = vmatpush1.bf16.msra.mxu0 0
      %5356 = vmatprep.subr.bf16.mxu0 0
      %5357 = vmatpush1.bf16.msra.mxu0 0
      %5358 = vmatprep.subr.bf16.mxu0 0
      %5359 = vmatpush1.bf16.msra.mxu0 0
      %5360 = vmatprep.subr.bf16.mxu0 0
      %5361 = vmatpush1.bf16.msra.mxu0 0
      %5362 = vmatprep.subr.bf16.mxu0 0
      %5363 = vmatpush1.bf16.msra.mxu0 0
      %5364 = vmatprep.subr.bf16.mxu0 0
      %5365 = vmatpush1.bf16.msra.mxu0 0
      %5366 = vmatprep.mubr.bf16.mxu0 0
      %5367 = vmatmul.mubr.bf16.gmra.mrb[0].mxu0 %v5287
      %v5368 = vpop.f32.mrb[0].mxu0
      %v5369 = vadd.f32 0.0, %v5368
      %v5370 = vpop.f32.mrb[0].mxu0
      %v5371 = vpop.f32.mrb[0].mxu0
      %v5372 = vadd.f32 0.0, %v5371
      %v5373 = vpop.f32.mrb[0].mxu0
      %5374 = vmatprep.mubr.bf16.mxu0 0
      %5375 = vmatmul.mubr.bf16.gmra.mrb[0].mxu0 %v5290
      %v5376 = vpop.f32.mrb[0].mxu0
      %v5377 = vadd.f32 0.0, %v5376
      %v5378 = vpop.f32.mrb[0].mxu0
      %v5379 = vpop.f32.mrb[0].mxu0
      %v5380 = vadd.f32 0.0, %v5379
      %v5381 = vpop.f32.mrb[0].mxu0
      %5382 = vmatprep.mubr.bf16.mxu0 0
      %5383 = vmatmul.mubr.bf16.gmra.mrb[0].mxu0 %v5293
      %v5384 = vpop.f32.mrb[0].mxu0
      %v5385 = vadd.f32 0.0, %v5384
      %v5386 = vpop.f32.mrb[0].mxu0
      %v5387 = vpop.f32.mrb[0].mxu0
      %v5388 = vadd.f32 0.0, %v5387
      %v5389 = vpop.f32.mrb[0].mxu0
      %5390 = vmatprep.mubr.bf16.mxu0 0
      %5391 = vmatmul.mubr.bf16.gmra.mrb[0].mxu0 %v5296
      %v5392 = vpop.f32.mrb[0].mxu0
      %v5393 = vadd.f32 0.0, %v5392
      %v5394 = vpop.f32.mrb[0].mxu0
      %v5395 = vpop.f32.mrb[0].mxu0
      %v5396 = vadd.f32 0.0, %v5395
      %v5397 = vpop.f32.mrb[0].mxu0
      %5398 = vmatprep.mubr.bf16.mxu0 0
      %5399 = vmatmul.mubr.bf16.gmra.mrb[0].mxu0 %v5299
      %v5400 = vpop.f32.mrb[0].mxu0
      %v5401 = vadd.f32 0.0, %v5400
      %v5402 = vpop.f32.mrb[0].mxu0
      %v5403 = vpop.f32.mrb[0].mxu0
      %v5404 = vadd.f32 0.0, %v5403
      %v5405 = vpop.f32.mrb[0].mxu0
      %5406 = vmatprep.mubr.bf16.mxu0 0
      %5407 = vmatmul.mubr.bf16.gmra.mrb[0].mxu0 %v5302
      %v5408 = vpop.f32.mrb[0].mxu0
      %v5409 = vadd.f32 0.0, %v5408
      %v5410 = vpop.f32.mrb[0].mxu0
      %v5411 = vpop.f32.mrb[0].mxu0
      %v5412 = vadd.f32 0.0, %v5411
      %v5413 = vpop.f32.mrb[0].mxu0
      %5414 = vmatprep.mubr.bf16.mxu0 0
      %5415 = vmatmul.mubr.bf16.gmra.mrb[0].mxu0 %v5305
      %v5416 = vpop.f32.mrb[0].mxu0
      %v5417 = vadd.f32 0.0, %v5416
      %v5418 = vpop.f32.mrb[0].mxu0
      %v5419 = vpop.f32.mrb[0].mxu0
      %v5420 = vadd.f32 0.0, %v5419
      %v5421 = vpop.f32.mrb[0].mxu0
      %5422 = vmatprep.mubr.bf16.mxu0 0
      %5423 = vmatmul.mubr.bf16.gmra.mrb[0].mxu0 %v5308
      %v5424 = vpop.f32.mrb[0].mxu0
      %v5425 = vadd.f32 0.0, %v5424
      %v5426 = vpop.f32.mrb[0].mxu0
      %v5427 = vpop.f32.mrb[0].mxu0
      %v5428 = vadd.f32 0.0, %v5427
      %v5429 = vpop.f32.mrb[0].mxu0
      %5430 = vmatprep.mubr.bf16.mxu0 0
      %5431 = vmatmul.mubr.bf16.gmra.mrb[0].mxu0 %v5311
      %v5432 = vpop.f32.mrb[0].mxu0
      %v5433 = vadd.f32 0.0, %v5432
      %v5434 = vpop.f32.mrb[0].mxu0
      %v5435 = vpop.f32.mrb[0].mxu0
      %v5436 = vadd.f32 0.0, %v5435
      %v5437 = vpop.f32.mrb[0].mxu0
      %5438 = vmatprep.mubr.bf16.mxu0 0
      %5439 = vmatmul.mubr.bf16.gmra.mrb[0].mxu0 %v5314
      %v5440 = vpop.f32.mrb[0].mxu0
      %v5441 = vadd.f32 0.0, %v5440
      %v5442 = vpop.f32.mrb[0].mxu0
      %v5443 = vpop.f32.mrb[0].mxu0
      %v5444 = vadd.f32 0.0, %v5443
      %v5445 = vpop.f32.mrb[0].mxu0
      %5446 = vmatprep.mubr.bf16.mxu0 0
      %5447 = vmatmul.mubr.bf16.gmra.mrb[0].mxu0 %v5317
      %v5448 = vpop.f32.mrb[0].mxu0
      %v5449 = vadd.f32 0.0, %v5448
      %v5450 = vpop.f32.mrb[0].mxu0
      %v5451 = vpop.f32.mrb[0].mxu0
      %v5452 = vadd.f32 0.0, %v5451
      %v5453 = vpop.f32.mrb[0].mxu0
      %5454 = vmatprep.mubr.bf16.mxu0 0
      %5455 = vmatmul.mubr.bf16.gmra.mrb[0].mxu0 %v5320
      %v5456 = vpop.f32.mrb[0].mxu0
      %v5457 = vadd.f32 0.0, %v5456
      %v5458 = vpop.f32.mrb[0].mxu0
      %v5459 = vpop.f32.mrb[0].mxu0
      %v5460 = vadd.f32 0.0, %v5459
      %v5461 = vpop.f32.mrb[0].mxu0
      %5462 = vmatprep.mubr.bf16.mxu0 0
      %5463 = vmatmul.mubr.bf16.gmra.mrb[0].mxu0 %v5323
      %v5464 = vpop.f32.mrb[0].mxu0
      %v5465 = vadd.f32 0.0, %v5464
      %v5466 = vpop.f32.mrb[0].mxu0
      %v5467 = vpop.f32.mrb[0].mxu0
      %v5468 = vadd.f32 0.0, %v5467
      %v5469 = vpop.f32.mrb[0].mxu0
      %5470 = vmatprep.mubr.bf16.mxu0 0
      %5471 = vmatmul.mubr.bf16.gmra.mrb[0].mxu0 %v5326
      %v5472 = vpop.f32.mrb[0].mxu0
      %v5473 = vadd.f32 0.0, %v5472
      %v5474 = vpop.f32.mrb[0].mxu0
      %v5475 = vpop.f32.mrb[0].mxu0
      %v5476 = vadd.f32 0.0, %v5475
      %v5477 = vpop.f32.mrb[0].mxu0
      %5478 = vmatprep.mubr.bf16.mxu0 0
      %5479 = vmatmul.mubr.bf16.gmra.mrb[0].mxu0 %v5329
      %v5480 = vpop.f32.mrb[0].mxu0
      %v5481 = vadd.f32 0.0, %v5480
      %v5482 = vpop.f32.mrb[0].mxu0
      %v5483 = vpop.f32.mrb[0].mxu0
      %v5484 = vadd.f32 0.0, %v5483
      %v5485 = vpop.f32.mrb[0].mxu0
      %5486 = vmatprep.mubr.bf16.mxu0 0
      %5487 = vmatmul.mubr.bf16.gmra.mrb[0].mxu0 %v5332
      %v5488 = vpop.f32.mrb[0].mxu0
      %v5489 = vadd.f32 0.0, %v5488
      %v5490 = vpop.f32.mrb[0].mxu0
      %v5491 = vpop.f32.mrb[0].mxu0
      %v5492 = vadd.f32 0.0, %v5491
      %v5493 = vpop.f32.mrb[0].mxu0
      %5494 = vdwg.mxu0
      %v5495 = vadd.f32 %v5222, %v5369
      %v5496 = vadd.f32 %v5223, %v5372
      %v5497 = vadd.f32 %v5224, %v5377
      %v5498 = vadd.f32 %v5225, %v5380
      %v5499 = vadd.f32 %v5226, %v5385
      %v5500 = vadd.f32 %v5227, %v5388
      %v5501 = vadd.f32 %v5228, %v5393
      %v5502 = vadd.f32 %v5229, %v5396
      %v5503 = vadd.f32 %v5230, %v5401
      %v5504 = vadd.f32 %v5231, %v5404
      %v5505 = vadd.f32 %v5232, %v5409
      %v5506 = vadd.f32 %v5233, %v5412
      %v5507 = vadd.f32 %v5234, %v5417
      %v5508 = vadd.f32 %v5235, %v5420
      %v5509 = vadd.f32 %v5236, %v5425
      %v5510 = vadd.f32 %v5237, %v5428
      %v5511 = vadd.f32 %v5238, %v5433
      %v5512 = vadd.f32 %v5239, %v5436
      %v5513 = vadd.f32 %v5240, %v5441
      %v5514 = vadd.f32 %v5241, %v5444
      %v5515 = vadd.f32 %v5242, %v5449
      %v5516 = vadd.f32 %v5243, %v5452
      %v5517 = vadd.f32 %v5244, %v5457
      %v5518 = vadd.f32 %v5245, %v5460
      %v5519 = vadd.f32 %v5246, %v5465
      %v5520 = vadd.f32 %v5247, %v5468
      %v5521 = vadd.f32 %v5248, %v5473
      %v5522 = vadd.f32 %v5249, %v5476
      %v5523 = vadd.f32 %v5250, %v5481
      %v5524 = vadd.f32 %v5251, %v5484
      %v5525 = vadd.f32 %v5252, %v5489
      %v5526 = vadd.f32 %v5253, %v5492
      %5527 = vst [vmem:[#allocation2] sm:$0xff] %v5495
      %5528 = vst [vmem:[#allocation2 + $0x8] sm:$0xff] %v5496
      %5529 = vst [vmem:[#allocation2 + $0x10] sm:$0xff] %v5497
      %5530 = vst [vmem:[#allocation2 + $0x18] sm:$0xff] %v5498
      %5531 = vst [vmem:[#allocation2 + $0x20] sm:$0xff] %v5499
      %5532 = vst [vmem:[#allocation2 + $0x28] sm:$0xff] %v5500
      %5533 = vst [vmem:[#allocation2 + $0x30] sm:$0xff] %v5501
      %5534 = vst [vmem:[#allocation2 + $0x38] sm:$0xff] %v5502
      %5535 = vst [vmem:[#allocation2 + $0x40] sm:$0xff] %v5503
      %5536 = vst [vmem:[#allocation2 + $0x48] sm:$0xff] %v5504
      %5537 = vst [vmem:[#allocation2 + $0x50] sm:$0xff] %v5505
      %5538 = vst [vmem:[#allocation2 + $0x58] sm:$0xff] %v5506
      %5539 = vst [vmem:[#allocation2 + $0x60] sm:$0xff] %v5507
      %5540 = vst [vmem:[#allocation2 + $0x68] sm:$0xff] %v5508
      %5541 = vst [vmem:[#allocation2 + $0x70] sm:$0xff] %v5509
      %5542 = vst [vmem:[#allocation2 + $0x78] sm:$0xff] %v5510
      %5543 = vst [vmem:[#allocation2 + $0x80] sm:$0xff] %v5511
      %5544 = vst [vmem:[#allocation2 + $0x88] sm:$0xff] %v5512
      %5545 = vst [vmem:[#allocation2 + $0x90] sm:$0xff] %v5513
      %5546 = vst [vmem:[#allocation2 + $0x98] sm:$0xff] %v5514
      %5547 = vst [vmem:[#allocation2 + $0xa0] sm:$0xff] %v5515
      %5548 = vst [vmem:[#allocation2 + $0xa8] sm:$0xff] %v5516
      %5549 = vst [vmem:[#allocation2 + $0xb0] sm:$0xff] %v5517
      %5550 = vst [vmem:[#allocation2 + $0xb8] sm:$0xff] %v5518
      %5551 = vst [vmem:[#allocation2 + $0xc0] sm:$0xff] %v5519
      %5552 = vst [vmem:[#allocation2 + $0xc8] sm:$0xff] %v5520
      %5553 = vst [vmem:[#allocation2 + $0xd0] sm:$0xff] %v5521
      %5554 = vst [vmem:[#allocation2 + $0xd8] sm:$0xff] %v5522
      %5555 = vst [vmem:[#allocation2 + $0xe0] sm:$0xff] %v5523
      %5556 = vst [vmem:[#allocation2 + $0xe8] sm:$0xff] %v5524
      %5557 = vst [vmem:[#allocation2 + $0xf0] sm:$0xff] %v5525
      %5558 = vst [vmem:[#allocation2 + $0xf8] sm:$0xff] %v5526
      %5559 = vrot.lane.b32.xlu0 %v1430, 32
      %v5560 = vpop.permute.xlu0 %5559
      %5561 = vrot.lane.b32.xlu0 %v1431, 32
      %v5562 = vpop.permute.xlu0 %5561
      %5563 = vrot.lane.b32.xlu0 %v1432, 32
      %v5564 = vpop.permute.xlu0 %5563
      %5565 = vrot.lane.b32.xlu0 %v1433, 32
      %v5566 = vpop.permute.xlu0 %5565
      %5567 = vrot.lane.b32.xlu0 %v1434, 32
      %v5568 = vpop.permute.xlu0 %5567
      %5569 = vrot.lane.b32.xlu0 %v1435, 32
      %v5570 = vpop.permute.xlu0 %5569
      %5571 = vrot.lane.b32.xlu0 %v1436, 32
      %v5572 = vpop.permute.xlu0 %5571
      %5573 = vrot.lane.b32.xlu0 %v1437, 32
      %v5574 = vpop.permute.xlu0 %5573
      %5575 = vrot.lane.b32.xlu0 %v1438, 32
      %v5576 = vpop.permute.xlu0 %5575
      %5577 = vrot.lane.b32.xlu0 %v1439, 32
      %v5578 = vpop.permute.xlu0 %5577
      %5579 = vrot.lane.b32.xlu0 %v1440, 32
      %v5580 = vpop.permute.xlu0 %5579
      %5581 = vrot.lane.b32.xlu0 %v1441, 32
      %v5582 = vpop.permute.xlu0 %5581
      %5583 = vrot.lane.b32.xlu0 %v1442, 32
      %v5584 = vpop.permute.xlu0 %5583
      %5585 = vrot.lane.b32.xlu0 %v1443, 32
      %v5586 = vpop.permute.xlu0 %5585
      %5587 = vrot.lane.b32.xlu0 %v1444, 32
      %v5588 = vpop.permute.xlu0 %5587
      %5589 = vrot.lane.b32.xlu0 %v1445, 32
      %v5590 = vpop.permute.xlu0 %5589
      %v5592 = vsel %vm1613, %v5560, 0
      %v5595 = vsel %vm1613, %v5562, 0
      %v5598 = vsel %vm1613, %v5564, 0
      %v5601 = vsel %vm1613, %v5566, 0
      %v5604 = vsel %vm1613, %v5568, 0
      %v5607 = vsel %vm1613, %v5570, 0
      %v5610 = vsel %vm1613, %v5572, 0
      %v5613 = vsel %vm1613, %v5574, 0
      %v5616 = vsel %vm1613, %v5576, 0
      %v5619 = vsel %vm1613, %v5578, 0
      %v5622 = vsel %vm1613, %v5580, 0
      %v5625 = vsel %vm1613, %v5582, 0
      %v5628 = vsel %vm1613, %v5584, 0
      %v5631 = vsel %vm1613, %v5586, 0
      %v5634 = vsel %vm1613, %v5588, 0
      %v5637 = vsel %vm1613, %v5590, 0
      %5639 = vmatprep.subr.bf16.mxu0 %v1523
      %5640 = vmatpush1.bf16.msra.mxu0 %v1522
      %5641 = vmatprep.subr.bf16.mxu0 %v1525
      %5642 = vmatpush1.bf16.msra.mxu0 %v1524
      %5643 = vmatprep.subr.bf16.mxu0 0
      %5644 = vmatpush1.bf16.msra.mxu0 0
      %5645 = vmatprep.subr.bf16.mxu0 0
      %5646 = vmatpush1.bf16.msra.mxu0 0
      %5647 = vmatprep.subr.bf16.mxu0 0
      %5648 = vmatpush1.bf16.msra.mxu0 0
      %5649 = vmatprep.subr.bf16.mxu0 0
      %5650 = vmatpush1.bf16.msra.mxu0 0
      %5651 = vmatprep.subr.bf16.mxu0 0
      %5652 = vmatpush1.bf16.msra.mxu0 0
      %5653 = vmatprep.subr.bf16.mxu0 0
      %5654 = vmatpush1.bf16.msra.mxu0 0
      %5655 = vmatprep.subr.bf16.mxu0 0
      %5656 = vmatpush1.bf16.msra.mxu0 0
      %5657 = vmatprep.subr.bf16.mxu0 0
      %5658 = vmatpush1.bf16.msra.mxu0 0
      %5659 = vmatprep.subr.bf16.mxu0 0
      %5660 = vmatpush1.bf16.msra.mxu0 0
      %5661 = vmatprep.subr.bf16.mxu0 0
      %5662 = vmatpush1.bf16.msra.mxu0 0
      %5663 = vmatprep.subr.bf16.mxu0 0
      %5664 = vmatpush1.bf16.msra.mxu0 0
      %5665 = vmatprep.subr.bf16.mxu0 0
      %5666 = vmatpush1.bf16.msra.mxu0 0
      %5667 = vmatprep.subr.bf16.mxu0 0
      %5668 = vmatpush1.bf16.msra.mxu0 0
      %5669 = vmatprep.subr.bf16.mxu0 0
      %5670 = vmatpush1.bf16.msra.mxu0 0
      %5671 = vmatprep.mubr.bf16.mxu0 0
      %5672 = vmatmul.mubr.bf16.gmra.mrb[0].mxu0 %v5592
      %v5673 = vpop.f32.mrb[0].mxu0
      %v5674 = vadd.f32 0.0, %v5673
      %v5675 = vpop.f32.mrb[0].mxu0
      %v5676 = vadd.f32 0.0, %v5675
      %v5677 = vpop.f32.mrb[0].mxu0
      %v5678 = vadd.f32 0.0, %v5677
      %v5679 = vpop.f32.mrb[0].mxu0
      %v5680 = vadd.f32 0.0, %v5679
      %5681 = vmatprep.mubr.bf16.mxu0 0
      %5682 = vmatmul.mubr.bf16.gmra.mrb[0].mxu0 %v5595
      %v5683 = vpop.f32.mrb[0].mxu0
      %v5684 = vadd.f32 0.0, %v5683
      %v5685 = vpop.f32.mrb[0].mxu0
      %v5686 = vadd.f32 0.0, %v5685
      %v5687 = vpop.f32.mrb[0].mxu0
      %v5688 = vadd.f32 0.0, %v5687
      %v5689 = vpop.f32.mrb[0].mxu0
      %v5690 = vadd.f32 0.0, %v5689
      %5691 = vmatprep.mubr.bf16.mxu0 0
      %5692 = vmatmul.mubr.bf16.gmra.mrb[0].mxu0 %v5598
      %v5693 = vpop.f32.mrb[0].mxu0
      %v5694 = vadd.f32 0.0, %v5693
      %v5695 = vpop.f32.mrb[0].mxu0
      %v5696 = vadd.f32 0.0, %v5695
      %v5697 = vpop.f32.mrb[0].mxu0
      %v5698 = vadd.f32 0.0, %v5697
      %v5699 = vpop.f32.mrb[0].mxu0
      %v5700 = vadd.f32 0.0, %v5699
      %5701 = vmatprep.mubr.bf16.mxu0 0
      %5702 = vmatmul.mubr.bf16.gmra.mrb[0].mxu0 %v5601
      %v5703 = vpop.f32.mrb[0].mxu0
      %v5704 = vadd.f32 0.0, %v5703
      %v5705 = vpop.f32.mrb[0].mxu0
      %v5706 = vadd.f32 0.0, %v5705
      %v5707 = vpop.f32.mrb[0].mxu0
      %v5708 = vadd.f32 0.0, %v5707
      %v5709 = vpop.f32.mrb[0].mxu0
      %v5710 = vadd.f32 0.0, %v5709
      %5711 = vmatprep.mubr.bf16.mxu0 0
      %5712 = vmatmul.mubr.bf16.gmra.mrb[0].mxu0 %v5604
      %v5713 = vpop.f32.mrb[0].mxu0
      %v5714 = vadd.f32 0.0, %v5713
      %v5715 = vpop.f32.mrb[0].mxu0
      %v5716 = vadd.f32 0.0, %v5715
      %v5717 = vpop.f32.mrb[0].mxu0
      %v5718 = vadd.f32 0.0, %v5717
      %v5719 = vpop.f32.mrb[0].mxu0
      %v5720 = vadd.f32 0.0, %v5719
      %5721 = vmatprep.mubr.bf16.mxu0 0
      %5722 = vmatmul.mubr.bf16.gmra.mrb[0].mxu0 %v5607
      %v5723 = vpop.f32.mrb[0].mxu0
      %v5724 = vadd.f32 0.0, %v5723
      %v5725 = vpop.f32.mrb[0].mxu0
      %v5726 = vadd.f32 0.0, %v5725
      %v5727 = vpop.f32.mrb[0].mxu0
      %v5728 = vadd.f32 0.0, %v5727
      %v5729 = vpop.f32.mrb[0].mxu0
      %v5730 = vadd.f32 0.0, %v5729
      %5731 = vmatprep.mubr.bf16.mxu0 0
      %5732 = vmatmul.mubr.bf16.gmra.mrb[0].mxu0 %v5610
      %v5733 = vpop.f32.mrb[0].mxu0
      %v5734 = vadd.f32 0.0, %v5733
      %v5735 = vpop.f32.mrb[0].mxu0
      %v5736 = vadd.f32 0.0, %v5735
      %v5737 = vpop.f32.mrb[0].mxu0
      %v5738 = vadd.f32 0.0, %v5737
      %v5739 = vpop.f32.mrb[0].mxu0
      %v5740 = vadd.f32 0.0, %v5739
      %5741 = vmatprep.mubr.bf16.mxu0 0
      %5742 = vmatmul.mubr.bf16.gmra.mrb[0].mxu0 %v5613
      %v5743 = vpop.f32.mrb[0].mxu0
      %v5744 = vadd.f32 0.0, %v5743
      %v5745 = vpop.f32.mrb[0].mxu0
      %v5746 = vadd.f32 0.0, %v5745
      %v5747 = vpop.f32.mrb[0].mxu0
      %v5748 = vadd.f32 0.0, %v5747
      %v5749 = vpop.f32.mrb[0].mxu0
      %v5750 = vadd.f32 0.0, %v5749
      %5751 = vmatprep.mubr.bf16.mxu0 0
      %5752 = vmatmul.mubr.bf16.gmra.mrb[0].mxu0 %v5616
      %v5753 = vpop.f32.mrb[0].mxu0
      %v5754 = vadd.f32 0.0, %v5753
      %v5755 = vpop.f32.mrb[0].mxu0
      %v5756 = vadd.f32 0.0, %v5755
      %v5757 = vpop.f32.mrb[0].mxu0
      %v5758 = vadd.f32 0.0, %v5757
      %v5759 = vpop.f32.mrb[0].mxu0
      %v5760 = vadd.f32 0.0, %v5759
      %5761 = vmatprep.mubr.bf16.mxu0 0
      %5762 = vmatmul.mubr.bf16.gmra.mrb[0].mxu0 %v5619
      %v5763 = vpop.f32.mrb[0].mxu0
      %v5764 = vadd.f32 0.0, %v5763
      %v5765 = vpop.f32.mrb[0].mxu0
      %v5766 = vadd.f32 0.0, %v5765
      %v5767 = vpop.f32.mrb[0].mxu0
      %v5768 = vadd.f32 0.0, %v5767
      %v5769 = vpop.f32.mrb[0].mxu0
      %v5770 = vadd.f32 0.0, %v5769
      %5771 = vmatprep.mubr.bf16.mxu0 0
      %5772 = vmatmul.mubr.bf16.gmra.mrb[0].mxu0 %v5622
      %v5773 = vpop.f32.mrb[0].mxu0
      %v5774 = vadd.f32 0.0, %v5773
      %v5775 = vpop.f32.mrb[0].mxu0
      %v5776 = vadd.f32 0.0, %v5775
      %v5777 = vpop.f32.mrb[0].mxu0
      %v5778 = vadd.f32 0.0, %v5777
      %v5779 = vpop.f32.mrb[0].mxu0
      %v5780 = vadd.f32 0.0, %v5779
      %5781 = vmatprep.mubr.bf16.mxu0 0
      %5782 = vmatmul.mubr.bf16.gmra.mrb[0].mxu0 %v5625
      %v5783 = vpop.f32.mrb[0].mxu0
      %v5784 = vadd.f32 0.0, %v5783
      %v5785 = vpop.f32.mrb[0].mxu0
      %v5786 = vadd.f32 0.0, %v5785
      %v5787 = vpop.f32.mrb[0].mxu0
      %v5788 = vadd.f32 0.0, %v5787
      %v5789 = vpop.f32.mrb[0].mxu0
      %v5790 = vadd.f32 0.0, %v5789
      %5791 = vmatprep.mubr.bf16.mxu0 0
      %5792 = vmatmul.mubr.bf16.gmra.mrb[0].mxu0 %v5628
      %v5793 = vpop.f32.mrb[0].mxu0
      %v5794 = vadd.f32 0.0, %v5793
      %v5795 = vpop.f32.mrb[0].mxu0
      %v5796 = vadd.f32 0.0, %v5795
      %v5797 = vpop.f32.mrb[0].mxu0
      %v5798 = vadd.f32 0.0, %v5797
      %v5799 = vpop.f32.mrb[0].mxu0
      %v5800 = vadd.f32 0.0, %v5799
      %5801 = vmatprep.mubr.bf16.mxu0 0
      %5802 = vmatmul.mubr.bf16.gmra.mrb[0].mxu0 %v5631
      %v5803 = vpop.f32.mrb[0].mxu0
      %v5804 = vadd.f32 0.0, %v5803
      %v5805 = vpop.f32.mrb[0].mxu0
      %v5806 = vadd.f32 0.0, %v5805
      %v5807 = vpop.f32.mrb[0].mxu0
      %v5808 = vadd.f32 0.0, %v5807
      %v5809 = vpop.f32.mrb[0].mxu0
      %v5810 = vadd.f32 0.0, %v5809
      %5811 = vmatprep.mubr.bf16.mxu0 0
      %5812 = vmatmul.mubr.bf16.gmra.mrb[0].mxu0 %v5634
      %v5813 = vpop.f32.mrb[0].mxu0
      %v5814 = vadd.f32 0.0, %v5813
      %v5815 = vpop.f32.mrb[0].mxu0
      %v5816 = vadd.f32 0.0, %v5815
      %v5817 = vpop.f32.mrb[0].mxu0
      %v5818 = vadd.f32 0.0, %v5817
      %v5819 = vpop.f32.mrb[0].mxu0
      %v5820 = vadd.f32 0.0, %v5819
      %5821 = vmatprep.mubr.bf16.mxu0 0
      %5822 = vmatmul.mubr.bf16.gmra.mrb[0].mxu0 %v5637
      %v5823 = vpop.f32.mrb[0].mxu0
      %v5824 = vadd.f32 0.0, %v5823
      %v5825 = vpop.f32.mrb[0].mxu0
      %v5826 = vadd.f32 0.0, %v5825
      %v5827 = vpop.f32.mrb[0].mxu0
      %v5828 = vadd.f32 0.0, %v5827
      %v5829 = vpop.f32.mrb[0].mxu0
      %v5830 = vadd.f32 0.0, %v5829
      %5831 = vdwg.mxu0
      %v5832 = vmax.f32 %v5674, %v5676
      %5833 = vmax.xlane.f32.xlu0 %v5832
      %v5834 = vpop.xlane.xlu0 %5833
      %v5835 = vmax.f32 %v5678, %v5680
      %5836 = vmax.xlane.f32.xlu0 %v5835
      %v5837 = vpop.xlane.xlu0 %5836
      %v5838 = vmax.f32 %v5684, %v5686
      %5839 = vmax.xlane.f32.xlu0 %v5838
      %v5840 = vpop.xlane.xlu0 %5839
      %v5841 = vmax.f32 %v5688, %v5690
      %5842 = vmax.xlane.f32.xlu0 %v5841
      %v5843 = vpop.xlane.xlu0 %5842
      %v5844 = vmax.f32 %v5694, %v5696
      %5845 = vmax.xlane.f32.xlu0 %v5844
      %v5846 = vpop.xlane.xlu0 %5845
      %v5847 = vmax.f32 %v5698, %v5700
      %5848 = vmax.xlane.f32.xlu0 %v5847
      %v5849 = vpop.xlane.xlu0 %5848
      %v5850 = vmax.f32 %v5704, %v5706
      %5851 = vmax.xlane.f32.xlu0 %v5850
      %v5852 = vpop.xlane.xlu0 %5851
      %v5853 = vmax.f32 %v5708, %v5710
      %5854 = vmax.xlane.f32.xlu0 %v5853
      %v5855 = vpop.xlane.xlu0 %5854
      %v5856 = vmax.f32 %v5714, %v5716
      %5857 = vmax.xlane.f32.xlu0 %v5856
      %v5858 = vpop.xlane.xlu0 %5857
      %v5859 = vmax.f32 %v5718, %v5720
      %5860 = vmax.xlane.f32.xlu0 %v5859
      %v5861 = vpop.xlane.xlu0 %5860
      %v5862 = vmax.f32 %v5724, %v5726
      %5863 = vmax.xlane.f32.xlu0 %v5862
      %v5864 = vpop.xlane.xlu0 %5863
      %v5865 = vmax.f32 %v5728, %v5730
      %5866 = vmax.xlane.f32.xlu0 %v5865
      %v5867 = vpop.xlane.xlu0 %5866
      %v5868 = vmax.f32 %v5734, %v5736
      %5869 = vmax.xlane.f32.xlu0 %v5868
      %v5870 = vpop.xlane.xlu0 %5869
      %v5871 = vmax.f32 %v5738, %v5740
      %5872 = vmax.xlane.f32.xlu0 %v5871
      %v5873 = vpop.xlane.xlu0 %5872
      %v5874 = vmax.f32 %v5744, %v5746
      %5875 = vmax.xlane.f32.xlu0 %v5874
      %v5876 = vpop.xlane.xlu0 %5875
      %v5877 = vmax.f32 %v5748, %v5750
      %5878 = vmax.xlane.f32.xlu0 %v5877
      %v5879 = vpop.xlane.xlu0 %5878
      %v5880 = vmax.f32 %v5754, %v5756
      %5881 = vmax.xlane.f32.xlu0 %v5880
      %v5882 = vpop.xlane.xlu0 %5881
      %v5883 = vmax.f32 %v5758, %v5760
      %5884 = vmax.xlane.f32.xlu0 %v5883
      %v5885 = vpop.xlane.xlu0 %5884
      %v5886 = vmax.f32 %v5764, %v5766
      %5887 = vmax.xlane.f32.xlu0 %v5886
      %v5888 = vpop.xlane.xlu0 %5887
      %v5889 = vmax.f32 %v5768, %v5770
      %5890 = vmax.xlane.f32.xlu0 %v5889
      %v5891 = vpop.xlane.xlu0 %5890
      %v5892 = vmax.f32 %v5774, %v5776
      %5893 = vmax.xlane.f32.xlu0 %v5892
      %v5894 = vpop.xlane.xlu0 %5893
      %v5895 = vmax.f32 %v5778, %v5780
      %5896 = vmax.xlane.f32.xlu0 %v5895
      %v5897 = vpop.xlane.xlu0 %5896
      %v5898 = vmax.f32 %v5784, %v5786
      %5899 = vmax.xlane.f32.xlu0 %v5898
      %v5900 = vpop.xlane.xlu0 %5899
      %v5901 = vmax.f32 %v5788, %v5790
      %5902 = vmax.xlane.f32.xlu0 %v5901
      %v5903 = vpop.xlane.xlu0 %5902
      %v5904 = vmax.f32 %v5794, %v5796
      %5905 = vmax.xlane.f32.xlu0 %v5904
      %v5906 = vpop.xlane.xlu0 %5905
      %v5907 = vmax.f32 %v5798, %v5800
      %5908 = vmax.xlane.f32.xlu0 %v5907
      %v5909 = vpop.xlane.xlu0 %5908
      %v5910 = vmax.f32 %v5804, %v5806
      %5911 = vmax.xlane.f32.xlu0 %v5910
      %v5912 = vpop.xlane.xlu0 %5911
      %v5913 = vmax.f32 %v5808, %v5810
      %5914 = vmax.xlane.f32.xlu0 %v5913
      %v5915 = vpop.xlane.xlu0 %5914
      %v5916 = vmax.f32 %v5814, %v5816
      %5917 = vmax.xlane.f32.xlu0 %v5916
      %v5918 = vpop.xlane.xlu0 %5917
      %v5919 = vmax.f32 %v5818, %v5820
      %5920 = vmax.xlane.f32.xlu0 %v5919
      %v5921 = vpop.xlane.xlu0 %5920
      %v5922 = vmax.f32 %v5824, %v5826
      %5923 = vmax.xlane.f32.xlu0 %v5922
      %v5924 = vpop.xlane.xlu0 %5923
      %v5925 = vmax.f32 %v5828, %v5830
      %5926 = vmax.xlane.f32.xlu0 %v5925
      %v5927 = vpop.xlane.xlu0 %5926
      %v5928 = vsub.f32 %v5674, %v5834
      %v5929 = vsub.f32 %v5676, %v5834
      %v5930 = vsub.f32 %v5678, %v5837
      %v5931 = vsub.f32 %v5680, %v5837
      %v5932 = vsub.f32 %v5684, %v5840
      %v5933 = vsub.f32 %v5686, %v5840
      %v5934 = vsub.f32 %v5688, %v5843
      %v5935 = vsub.f32 %v5690, %v5843
      %v5936 = vsub.f32 %v5694, %v5846
      %v5937 = vsub.f32 %v5696, %v5846
      %v5938 = vsub.f32 %v5698, %v5849
      %v5939 = vsub.f32 %v5700, %v5849
      %v5940 = vsub.f32 %v5704, %v5852
      %v5941 = vsub.f32 %v5706, %v5852
      %v5942 = vsub.f32 %v5708, %v5855
      %v5943 = vsub.f32 %v5710, %v5855
      %v5944 = vsub.f32 %v5714, %v5858
      %v5945 = vsub.f32 %v5716, %v5858
      %v5946 = vsub.f32 %v5718, %v5861
      %v5947 = vsub.f32 %v5720, %v5861
      %v5948 = vsub.f32 %v5724, %v5864
      %v5949 = vsub.f32 %v5726, %v5864
      %v5950 = vsub.f32 %v5728, %v5867
      %v5951 = vsub.f32 %v5730, %v5867
      %v5952 = vsub.f32 %v5734, %v5870
      %v5953 = vsub.f32 %v5736, %v5870
      %v5954 = vsub.f32 %v5738, %v5873
      %v5955 = vsub.f32 %v5740, %v5873
      %v5956 = vsub.f32 %v5744, %v5876
      %v5957 = vsub.f32 %v5746, %v5876
      %v5958 = vsub.f32 %v5748, %v5879
      %v5959 = vsub.f32 %v5750, %v5879
      %v5960 = vsub.f32 %v5754, %v5882
      %v5961 = vsub.f32 %v5756, %v5882
      %v5962 = vsub.f32 %v5758, %v5885
      %v5963 = vsub.f32 %v5760, %v5885
      %v5964 = vsub.f32 %v5764, %v5888
      %v5965 = vsub.f32 %v5766, %v5888
      %v5966 = vsub.f32 %v5768, %v5891
      %v5967 = vsub.f32 %v5770, %v5891
      %v5968 = vsub.f32 %v5774, %v5894
      %v5969 = vsub.f32 %v5776, %v5894
      %v5970 = vsub.f32 %v5778, %v5897
      %v5971 = vsub.f32 %v5780, %v5897
      %v5972 = vsub.f32 %v5784, %v5900
      %v5973 = vsub.f32 %v5786, %v5900
      %v5974 = vsub.f32 %v5788, %v5903
      %v5975 = vsub.f32 %v5790, %v5903
      %v5976 = vsub.f32 %v5794, %v5906
      %v5977 = vsub.f32 %v5796, %v5906
      %v5978 = vsub.f32 %v5798, %v5909
      %v5979 = vsub.f32 %v5800, %v5909
      %v5980 = vsub.f32 %v5804, %v5912
      %v5981 = vsub.f32 %v5806, %v5912
      %v5982 = vsub.f32 %v5808, %v5915
      %v5983 = vsub.f32 %v5810, %v5915
      %v5984 = vsub.f32 %v5814, %v5918
      %v5985 = vsub.f32 %v5816, %v5918
      %v5986 = vsub.f32 %v5818, %v5921
      %v5987 = vsub.f32 %v5820, %v5921
      %v5988 = vsub.f32 %v5824, %v5924
      %v5989 = vsub.f32 %v5826, %v5924
      %v5990 = vsub.f32 %v5828, %v5927
      %v5991 = vsub.f32 %v5830, %v5927
      %v5992 = vmul.f32 %v5928, 1.442695
      %v5993 = vpow.pop %v5992
      %v5994 = vmul.f32 %v5929, 1.442695
      %v5995 = vpow.pop %v5994
      %v5996 = vmul.f32 %v5930, 1.442695
      %v5997 = vpow.pop %v5996
      %v5998 = vmul.f32 %v5931, 1.442695
      %v5999 = vpow.pop %v5998
      %v6000 = vmul.f32 %v5932, 1.442695
      %v6001 = vpow.pop %v6000
      %v6002 = vmul.f32 %v5933, 1.442695
      %v6003 = vpow.pop %v6002
      %v6004 = vmul.f32 %v5934, 1.442695
      %v6005 = vpow.pop %v6004
      %v6006 = vmul.f32 %v5935, 1.442695
      %v6007 = vpow.pop %v6006
      %v6008 = vmul.f32 %v5936, 1.442695
      %v6009 = vpow.pop %v6008
      %v6010 = vmul.f32 %v5937, 1.442695
      %v6011 = vpow.pop %v6010
      %v6012 = vmul.f32 %v5938, 1.442695
      %v6013 = vpow.pop %v6012
      %v6014 = vmul.f32 %v5939, 1.442695
      %v6015 = vpow.pop %v6014
      %v6016 = vmul.f32 %v5940, 1.442695
      %v6017 = vpow.pop %v6016
      %v6018 = vmul.f32 %v5941, 1.442695
      %v6019 = vpow.pop %v6018
      %v6020 = vmul.f32 %v5942, 1.442695
      %v6021 = vpow.pop %v6020
      %v6022 = vmul.f32 %v5943, 1.442695
      %v6023 = vpow.pop %v6022
      %v6024 = vmul.f32 %v5944, 1.442695
      %v6025 = vpow.pop %v6024
      %v6026 = vmul.f32 %v5945, 1.442695
      %v6027 = vpow.pop %v6026
      %v6028 = vmul.f32 %v5946, 1.442695
      %v6029 = vpow.pop %v6028
      %v6030 = vmul.f32 %v5947, 1.442695
      %v6031 = vpow.pop %v6030
      %v6032 = vmul.f32 %v5948, 1.442695
      %v6033 = vpow.pop %v6032
      %v6034 = vmul.f32 %v5949, 1.442695
      %v6035 = vpow.pop %v6034
      %v6036 = vmul.f32 %v5950, 1.442695
      %v6037 = vpow.pop %v6036
      %v6038 = vmul.f32 %v5951, 1.442695
      %v6039 = vpow.pop %v6038
      %v6040 = vmul.f32 %v5952, 1.442695
      %v6041 = vpow.pop %v6040
      %v6042 = vmul.f32 %v5953, 1.442695
      %v6043 = vpow.pop %v6042
      %v6044 = vmul.f32 %v5954, 1.442695
      %v6045 = vpow.pop %v6044
      %v6046 = vmul.f32 %v5955, 1.442695
      %v6047 = vpow.pop %v6046
      %v6048 = vmul.f32 %v5956, 1.442695
      %v6049 = vpow.pop %v6048
      %v6050 = vmul.f32 %v5957, 1.442695
      %v6051 = vpow.pop %v6050
      %v6052 = vmul.f32 %v5958, 1.442695
      %v6053 = vpow.pop %v6052
      %v6054 = vmul.f32 %v5959, 1.442695
      %v6055 = vpow.pop %v6054
      %v6056 = vmul.f32 %v5960, 1.442695
      %v6057 = vpow.pop %v6056
      %v6058 = vmul.f32 %v5961, 1.442695
      %v6059 = vpow.pop %v6058
      %v6060 = vmul.f32 %v5962, 1.442695
      %v6061 = vpow.pop %v6060
      %v6062 = vmul.f32 %v5963, 1.442695
      %v6063 = vpow.pop %v6062
      %v6064 = vmul.f32 %v5964, 1.442695
      %v6065 = vpow.pop %v6064
      %v6066 = vmul.f32 %v5965, 1.442695
      %v6067 = vpow.pop %v6066
      %v6068 = vmul.f32 %v5966, 1.442695
      %v6069 = vpow.pop %v6068
      %v6070 = vmul.f32 %v5967, 1.442695
      %v6071 = vpow.pop %v6070
      %v6072 = vmul.f32 %v5968, 1.442695
      %v6073 = vpow.pop %v6072
      %v6074 = vmul.f32 %v5969, 1.442695
      %v6075 = vpow.pop %v6074
      %v6076 = vmul.f32 %v5970, 1.442695
      %v6077 = vpow.pop %v6076
      %v6078 = vmul.f32 %v5971, 1.442695
      %v6079 = vpow.pop %v6078
      %v6080 = vmul.f32 %v5972, 1.442695
      %v6081 = vpow.pop %v6080
      %v6082 = vmul.f32 %v5973, 1.442695
      %v6083 = vpow.pop %v6082
      %v6084 = vmul.f32 %v5974, 1.442695
      %v6085 = vpow.pop %v6084
      %v6086 = vmul.f32 %v5975, 1.442695
      %v6087 = vpow.pop %v6086
      %v6088 = vmul.f32 %v5976, 1.442695
      %v6089 = vpow.pop %v6088
      %v6090 = vmul.f32 %v5977, 1.442695
      %v6091 = vpow.pop %v6090
      %v6092 = vmul.f32 %v5978, 1.442695
      %v6093 = vpow.pop %v6092
      %v6094 = vmul.f32 %v5979, 1.442695
      %v6095 = vpow.pop %v6094
      %v6096 = vmul.f32 %v5980, 1.442695
      %v6097 = vpow.pop %v6096
      %v6098 = vmul.f32 %v5981, 1.442695
      %v6099 = vpow.pop %v6098
      %v6100 = vmul.f32 %v5982, 1.442695
      %v6101 = vpow.pop %v6100
      %v6102 = vmul.f32 %v5983, 1.442695
      %v6103 = vpow.pop %v6102
      %v6104 = vmul.f32 %v5984, 1.442695
      %v6105 = vpow.pop %v6104
      %v6106 = vmul.f32 %v5985, 1.442695
      %v6107 = vpow.pop %v6106
      %v6108 = vmul.f32 %v5986, 1.442695
      %v6109 = vpow.pop %v6108
      %v6110 = vmul.f32 %v5987, 1.442695
      %v6111 = vpow.pop %v6110
      %v6112 = vmul.f32 %v5988, 1.442695
      %v6113 = vpow.pop %v6112
      %v6114 = vmul.f32 %v5989, 1.442695
      %v6115 = vpow.pop %v6114
      %v6116 = vmul.f32 %v5990, 1.442695
      %v6117 = vpow.pop %v6116
      %v6118 = vmul.f32 %v5991, 1.442695
      %v6119 = vpow.pop %v6118
      %v6120 = vadd.f32 %v5993, %v5995
      %6121 = vadd.xlane.f32.xlu0 %v6120
      %v6122 = vpop.xlane.xlu0 %6121
      %v6123 = vadd.f32 %v5997, %v5999
      %6124 = vadd.xlane.f32.xlu0 %v6123
      %v6125 = vpop.xlane.xlu0 %6124
      %v6126 = vadd.f32 %v6001, %v6003
      %6127 = vadd.xlane.f32.xlu0 %v6126
      %v6128 = vpop.xlane.xlu0 %6127
      %v6129 = vadd.f32 %v6005, %v6007
      %6130 = vadd.xlane.f32.xlu0 %v6129
      %v6131 = vpop.xlane.xlu0 %6130
      %v6132 = vadd.f32 %v6009, %v6011
      %6133 = vadd.xlane.f32.xlu0 %v6132
      %v6134 = vpop.xlane.xlu0 %6133
      %v6135 = vadd.f32 %v6013, %v6015
      %6136 = vadd.xlane.f32.xlu0 %v6135
      %v6137 = vpop.xlane.xlu0 %6136
      %v6138 = vadd.f32 %v6017, %v6019
      %6139 = vadd.xlane.f32.xlu0 %v6138
      %v6140 = vpop.xlane.xlu0 %6139
      %v6141 = vadd.f32 %v6021, %v6023
      %6142 = vadd.xlane.f32.xlu0 %v6141
      %v6143 = vpop.xlane.xlu0 %6142
      %v6144 = vadd.f32 %v6025, %v6027
      %6145 = vadd.xlane.f32.xlu0 %v6144
      %v6146 = vpop.xlane.xlu0 %6145
      %v6147 = vadd.f32 %v6029, %v6031
      %6148 = vadd.xlane.f32.xlu0 %v6147
      %v6149 = vpop.xlane.xlu0 %6148
      %v6150 = vadd.f32 %v6033, %v6035
      %6151 = vadd.xlane.f32.xlu0 %v6150
      %v6152 = vpop.xlane.xlu0 %6151
      %v6153 = vadd.f32 %v6037, %v6039
      %6154 = vadd.xlane.f32.xlu0 %v6153
      %v6155 = vpop.xlane.xlu0 %6154
      %v6156 = vadd.f32 %v6041, %v6043
      %6157 = vadd.xlane.f32.xlu0 %v6156
      %v6158 = vpop.xlane.xlu0 %6157
      %v6159 = vadd.f32 %v6045, %v6047
      %6160 = vadd.xlane.f32.xlu0 %v6159
      %v6161 = vpop.xlane.xlu0 %6160
      %v6162 = vadd.f32 %v6049, %v6051
      %6163 = vadd.xlane.f32.xlu0 %v6162
      %v6164 = vpop.xlane.xlu0 %6163
      %v6165 = vadd.f32 %v6053, %v6055
      %6166 = vadd.xlane.f32.xlu0 %v6165
      %v6167 = vpop.xlane.xlu0 %6166
      %v6168 = vadd.f32 %v6057, %v6059
      %6169 = vadd.xlane.f32.xlu0 %v6168
      %v6170 = vpop.xlane.xlu0 %6169
      %v6171 = vadd.f32 %v6061, %v6063
      %6172 = vadd.xlane.f32.xlu0 %v6171
      %v6173 = vpop.xlane.xlu0 %6172
      %v6174 = vadd.f32 %v6065, %v6067
      %6175 = vadd.xlane.f32.xlu0 %v6174
      %v6176 = vpop.xlane.xlu0 %6175
      %v6177 = vadd.f32 %v6069, %v6071
      %6178 = vadd.xlane.f32.xlu0 %v6177
      %v6179 = vpop.xlane.xlu0 %6178
      %v6180 = vadd.f32 %v6073, %v6075
      %6181 = vadd.xlane.f32.xlu0 %v6180
      %v6182 = vpop.xlane.xlu0 %6181
      %v6183 = vadd.f32 %v6077, %v6079
      %6184 = vadd.xlane.f32.xlu0 %v6183
      %v6185 = vpop.xlane.xlu0 %6184
      %v6186 = vadd.f32 %v6081, %v6083
      %6187 = vadd.xlane.f32.xlu0 %v6186
      %v6188 = vpop.xlane.xlu0 %6187
      %v6189 = vadd.f32 %v6085, %v6087
      %6190 = vadd.xlane.f32.xlu0 %v6189
      %v6191 = vpop.xlane.xlu0 %6190
      %v6192 = vadd.f32 %v6089, %v6091
      %6193 = vadd.xlane.f32.xlu0 %v6192
      %v6194 = vpop.xlane.xlu0 %6193
      %v6195 = vadd.f32 %v6093, %v6095
      %6196 = vadd.xlane.f32.xlu0 %v6195
      %v6197 = vpop.xlane.xlu0 %6196
      %v6198 = vadd.f32 %v6097, %v6099
      %6199 = vadd.xlane.f32.xlu0 %v6198
      %v6200 = vpop.xlane.xlu0 %6199
      %v6201 = vadd.f32 %v6101, %v6103
      %6202 = vadd.xlane.f32.xlu0 %v6201
      %v6203 = vpop.xlane.xlu0 %6202
      %v6204 = vadd.f32 %v6105, %v6107
      %6205 = vadd.xlane.f32.xlu0 %v6204
      %v6206 = vpop.xlane.xlu0 %6205
      %v6207 = vadd.f32 %v6109, %v6111
      %6208 = vadd.xlane.f32.xlu0 %v6207
      %v6209 = vpop.xlane.xlu0 %6208
      %v6210 = vadd.f32 %v6113, %v6115
      %6211 = vadd.xlane.f32.xlu0 %v6210
      %v6212 = vpop.xlane.xlu0 %6211
      %v6213 = vadd.f32 %v6117, %v6119
      %6214 = vadd.xlane.f32.xlu0 %v6213
      %v6215 = vpop.xlane.xlu0 %6214
      %v6216 = vrcp.pop %v6122
      %v6217 = vrcp.pop %v6125
      %v6218 = vrcp.pop %v6128
      %v6219 = vrcp.pop %v6131
      %v6220 = vrcp.pop %v6134
      %v6221 = vrcp.pop %v6137
      %v6222 = vrcp.pop %v6140
      %v6223 = vrcp.pop %v6143
      %v6224 = vrcp.pop %v6146
      %v6225 = vrcp.pop %v6149
      %v6226 = vrcp.pop %v6152
      %v6227 = vrcp.pop %v6155
      %v6228 = vrcp.pop %v6158
      %v6229 = vrcp.pop %v6161
      %v6230 = vrcp.pop %v6164
      %v6231 = vrcp.pop %v6167
      %v6232 = vrcp.pop %v6170
      %v6233 = vrcp.pop %v6173
      %v6234 = vrcp.pop %v6176
      %v6235 = vrcp.pop %v6179
      %v6236 = vrcp.pop %v6182
      %v6237 = vrcp.pop %v6185
      %v6238 = vrcp.pop %v6188
      %v6239 = vrcp.pop %v6191
      %v6240 = vrcp.pop %v6194
      %v6241 = vrcp.pop %v6197
      %v6242 = vrcp.pop %v6200
      %v6243 = vrcp.pop %v6203
      %v6244 = vrcp.pop %v6206
      %v6245 = vrcp.pop %v6209
      %v6246 = vrcp.pop %v6212
      %v6247 = vrcp.pop %v6215
      %v6248 = vmul.f32 %v5993, %v6216
      %v6249 = vmul.f32 %v5995, %v6216
      %v6250 = vmul.f32 %v5997, %v6217
      %v6251 = vmul.f32 %v5999, %v6217
      %v6252 = vmul.f32 %v6001, %v6218
      %v6253 = vmul.f32 %v6003, %v6218
      %v6254 = vmul.f32 %v6005, %v6219
      %v6255 = vmul.f32 %v6007, %v6219
      %v6256 = vmul.f32 %v6009, %v6220
      %v6257 = vmul.f32 %v6011, %v6220
      %v6258 = vmul.f32 %v6013, %v6221
      %v6259 = vmul.f32 %v6015, %v6221
      %v6260 = vmul.f32 %v6017, %v6222
      %v6261 = vmul.f32 %v6019, %v6222
      %v6262 = vmul.f32 %v6021, %v6223
      %v6263 = vmul.f32 %v6023, %v6223
      %v6264 = vmul.f32 %v6025, %v6224
      %v6265 = vmul.f32 %v6027, %v6224
      %v6266 = vmul.f32 %v6029, %v6225
      %v6267 = vmul.f32 %v6031, %v6225
      %v6268 = vmul.f32 %v6033, %v6226
      %v6269 = vmul.f32 %v6035, %v6226
      %v6270 = vmul.f32 %v6037, %v6227
      %v6271 = vmul.f32 %v6039, %v6227
      %v6272 = vmul.f32 %v6041, %v6228
      %v6273 = vmul.f32 %v6043, %v6228
      %v6274 = vmul.f32 %v6045, %v6229
      %v6275 = vmul.f32 %v6047, %v6229
      %v6276 = vmul.f32 %v6049, %v6230
      %v6277 = vmul.f32 %v6051, %v6230
      %v6278 = vmul.f32 %v6053, %v6231
      %v6279 = vmul.f32 %v6055, %v6231
      %v6280 = vmul.f32 %v6057, %v6232
      %v6281 = vmul.f32 %v6059, %v6232
      %v6282 = vmul.f32 %v6061, %v6233
      %v6283 = vmul.f32 %v6063, %v6233
      %v6284 = vmul.f32 %v6065, %v6234
      %v6285 = vmul.f32 %v6067, %v6234
      %v6286 = vmul.f32 %v6069, %v6235
      %v6287 = vmul.f32 %v6071, %v6235
      %v6288 = vmul.f32 %v6073, %v6236
      %v6289 = vmul.f32 %v6075, %v6236
      %v6290 = vmul.f32 %v6077, %v6237
      %v6291 = vmul.f32 %v6079, %v6237
      %v6292 = vmul.f32 %v6081, %v6238
      %v6293 = vmul.f32 %v6083, %v6238
      %v6294 = vmul.f32 %v6085, %v6239
      %v6295 = vmul.f32 %v6087, %v6239
      %v6296 = vmul.f32 %v6089, %v6240
      %v6297 = vmul.f32 %v6091, %v6240
      %v6298 = vmul.f32 %v6093, %v6241
      %v6299 = vmul.f32 %v6095, %v6241
      %v6300 = vmul.f32 %v6097, %v6242
      %v6301 = vmul.f32 %v6099, %v6242
      %v6302 = vmul.f32 %v6101, %v6243
      %v6303 = vmul.f32 %v6103, %v6243
      %v6304 = vmul.f32 %v6105, %v6244
      %v6305 = vmul.f32 %v6107, %v6244
      %v6306 = vmul.f32 %v6109, %v6245
      %v6307 = vmul.f32 %v6111, %v6245
      %v6308 = vmul.f32 %v6113, %v6246
      %v6309 = vmul.f32 %v6115, %v6246
      %v6310 = vmul.f32 %v6117, %v6247
      %v6311 = vmul.f32 %v6119, %v6247
      %v6312 = vpack.c.bf16 %v6250, %v6248
      %v6313 = vpack.c.bf16 %v6251, %v6249
      %v6314 = vpack.c.bf16 %v6254, %v6252
      %v6315 = vpack.c.bf16 %v6255, %v6253
      %v6316 = vpack.c.bf16 %v6258, %v6256
      %v6317 = vpack.c.bf16 %v6259, %v6257
      %v6318 = vpack.c.bf16 %v6262, %v6260
      %v6319 = vpack.c.bf16 %v6263, %v6261
      %v6320 = vpack.c.bf16 %v6266, %v6264
      %v6321 = vpack.c.bf16 %v6267, %v6265
      %v6322 = vpack.c.bf16 %v6270, %v6268
      %v6323 = vpack.c.bf16 %v6271, %v6269
      %v6324 = vpack.c.bf16 %v6274, %v6272
      %v6325 = vpack.c.bf16 %v6275, %v6273
      %v6326 = vpack.c.bf16 %v6278, %v6276
      %v6327 = vpack.c.bf16 %v6279, %v6277
      %v6328 = vpack.c.bf16 %v6282, %v6280
      %v6329 = vpack.c.bf16 %v6283, %v6281
      %v6330 = vpack.c.bf16 %v6286, %v6284
      %v6331 = vpack.c.bf16 %v6287, %v6285
      %v6332 = vpack.c.bf16 %v6290, %v6288
      %v6333 = vpack.c.bf16 %v6291, %v6289
      %v6334 = vpack.c.bf16 %v6294, %v6292
      %v6335 = vpack.c.bf16 %v6295, %v6293
      %v6336 = vpack.c.bf16 %v6298, %v6296
      %v6337 = vpack.c.bf16 %v6299, %v6297
      %v6338 = vpack.c.bf16 %v6302, %v6300
      %v6339 = vpack.c.bf16 %v6303, %v6301
      %v6340 = vpack.c.bf16 %v6306, %v6304
      %v6341 = vpack.c.bf16 %v6307, %v6305
      %v6342 = vpack.c.bf16 %v6310, %v6308
      %v6343 = vpack.c.bf16 %v6311, %v6309
      %6344 = vrot.lane.b32.xlu0 %v1526, 32
      %v6345 = vpop.permute.xlu0 %6344
      %6346 = vrot.lane.b32.xlu0 %v1527, 32
      %v6347 = vpop.permute.xlu0 %6346
      %6348 = vrot.lane.b32.xlu0 %v1528, 32
      %v6349 = vpop.permute.xlu0 %6348
      %6350 = vrot.lane.b32.xlu0 %v1529, 32
      %v6351 = vpop.permute.xlu0 %6350
      %6352 = vrot.lane.b32.xlu0 %v1530, 32
      %v6353 = vpop.permute.xlu0 %6352
      %6354 = vrot.lane.b32.xlu0 %v1531, 32
      %v6355 = vpop.permute.xlu0 %6354
      %6356 = vrot.lane.b32.xlu0 %v1532, 32
      %v6357 = vpop.permute.xlu0 %6356
      %6358 = vrot.lane.b32.xlu0 %v1533, 32
      %v6359 = vpop.permute.xlu0 %6358
      %6360 = vrot.lane.b32.xlu0 %v1534, 32
      %v6361 = vpop.permute.xlu0 %6360
      %6362 = vrot.lane.b32.xlu0 %v1535, 32
      %v6363 = vpop.permute.xlu0 %6362
      %6364 = vrot.lane.b32.xlu0 %v1536, 32
      %v6365 = vpop.permute.xlu0 %6364
      %6366 = vrot.lane.b32.xlu0 %v1537, 32
      %v6367 = vpop.permute.xlu0 %6366
      %6368 = vrot.lane.b32.xlu0 %v1538, 32
      %v6369 = vpop.permute.xlu0 %6368
      %6370 = vrot.lane.b32.xlu0 %v1539, 32
      %v6371 = vpop.permute.xlu0 %6370
      %6372 = vrot.lane.b32.xlu0 %v1540, 32
      %v6373 = vpop.permute.xlu0 %6372
      %6374 = vrot.lane.b32.xlu0 %v1541, 32
      %v6375 = vpop.permute.xlu0 %6374
      %6392 = vmatprep.subr.bf16.mxu0 0
      %6393 = vmatpush1.bf16.msra.mxu0 %v6345
      %6394 = vmatprep.subr.bf16.mxu0 0
      %6395 = vmatpush1.bf16.msra.mxu0 %v6347
      %6396 = vmatprep.subr.bf16.mxu0 0
      %6397 = vmatpush1.bf16.msra.mxu0 %v6349
      %6398 = vmatprep.subr.bf16.mxu0 0
      %6399 = vmatpush1.bf16.msra.mxu0 %v6351
      %6400 = vmatprep.subr.bf16.mxu0 0
      %6401 = vmatpush1.bf16.msra.mxu0 %v6353
      %6402 = vmatprep.subr.bf16.mxu0 0
      %6403 = vmatpush1.bf16.msra.mxu0 %v6355
      %6404 = vmatprep.subr.bf16.mxu0 0
      %6405 = vmatpush1.bf16.msra.mxu0 %v6357
      %6406 = vmatprep.subr.bf16.mxu0 0
      %6407 = vmatpush1.bf16.msra.mxu0 %v6359
      %6408 = vmatprep.subr.bf16.mxu0 0
      %6409 = vmatpush1.bf16.msra.mxu0 %v6361
      %6410 = vmatprep.subr.bf16.mxu0 0
      %6411 = vmatpush1.bf16.msra.mxu0 %v6363
      %6412 = vmatprep.subr.bf16.mxu0 0
      %6413 = vmatpush1.bf16.msra.mxu0 %v6365
      %6414 = vmatprep.subr.bf16.mxu0 0
      %6415 = vmatpush1.bf16.msra.mxu0 %v6367
      %6416 = vmatprep.subr.bf16.mxu0 0
      %6417 = vmatpush1.bf16.msra.mxu0 %v6369
      %6418 = vmatprep.subr.bf16.mxu0 0
      %6419 = vmatpush1.bf16.msra.mxu0 %v6371
      %6420 = vmatprep.subr.bf16.mxu0 0
      %6421 = vmatpush1.bf16.msra.mxu0 %v6373
      %6422 = vmatprep.subr.bf16.mxu0 0
      %6423 = vmatpush1.bf16.msra.mxu0 %v6375
      %6424 = vmatprep.mubr.bf16.mxu0 %v6313
      %6425 = vmatmul.mubr.bf16.gmra.mrb[0].mxu0 %v6312
      %v6426 = vpop.f32.mrb[0].mxu0
      %v6427 = vadd.f32 0.0, %v6426
      %v6428 = vpop.f32.mrb[0].mxu0
      %v6429 = vpop.f32.mrb[0].mxu0
      %v6430 = vadd.f32 0.0, %v6429
      %v6431 = vpop.f32.mrb[0].mxu0
      %6432 = vmatprep.mubr.bf16.mxu0 %v6315
      %6433 = vmatmul.mubr.bf16.gmra.mrb[0].mxu0 %v6314
      %v6434 = vpop.f32.mrb[0].mxu0
      %v6435 = vadd.f32 0.0, %v6434
      %v6436 = vpop.f32.mrb[0].mxu0
      %v6437 = vpop.f32.mrb[0].mxu0
      %v6438 = vadd.f32 0.0, %v6437
      %v6439 = vpop.f32.mrb[0].mxu0
      %6440 = vmatprep.mubr.bf16.mxu0 %v6317
      %6441 = vmatmul.mubr.bf16.gmra.mrb[0].mxu0 %v6316
      %v6442 = vpop.f32.mrb[0].mxu0
      %v6443 = vadd.f32 0.0, %v6442
      %v6444 = vpop.f32.mrb[0].mxu0
      %v6445 = vpop.f32.mrb[0].mxu0
      %v6446 = vadd.f32 0.0, %v6445
      %v6447 = vpop.f32.mrb[0].mxu0
      %6448 = vmatprep.mubr.bf16.mxu0 %v6319
      %6449 = vmatmul.mubr.bf16.gmra.mrb[0].mxu0 %v6318
      %v6450 = vpop.f32.mrb[0].mxu0
      %v6451 = vadd.f32 0.0, %v6450
      %v6452 = vpop.f32.mrb[0].mxu0
      %v6453 = vpop.f32.mrb[0].mxu0
      %v6454 = vadd.f32 0.0, %v6453
      %v6455 = vpop.f32.mrb[0].mxu0
      %6456 = vmatprep.mubr.bf16.mxu0 %v6321
      %6457 = vmatmul.mubr.bf16.gmra.mrb[0].mxu0 %v6320
      %v6458 = vpop.f32.mrb[0].mxu0
      %v6459 = vadd.f32 0.0, %v6458
      %v6460 = vpop.f32.mrb[0].mxu0
      %v6461 = vpop.f32.mrb[0].mxu0
      %v6462 = vadd.f32 0.0, %v6461
      %v6463 = vpop.f32.mrb[0].mxu0
      %6464 = vmatprep.mubr.bf16.mxu0 %v6323
      %6465 = vmatmul.mubr.bf16.gmra.mrb[0].mxu0 %v6322
      %v6466 = vpop.f32.mrb[0].mxu0
      %v6467 = vadd.f32 0.0, %v6466
      %v6468 = vpop.f32.mrb[0].mxu0
      %v6469 = vpop.f32.mrb[0].mxu0
      %v6470 = vadd.f32 0.0, %v6469
      %v6471 = vpop.f32.mrb[0].mxu0
      %6472 = vmatprep.mubr.bf16.mxu0 %v6325
      %6473 = vmatmul.mubr.bf16.gmra.mrb[0].mxu0 %v6324
      %v6474 = vpop.f32.mrb[0].mxu0
      %v6475 = vadd.f32 0.0, %v6474
      %v6476 = vpop.f32.mrb[0].mxu0
      %v6477 = vpop.f32.mrb[0].mxu0
      %v6478 = vadd.f32 0.0, %v6477
      %v6479 = vpop.f32.mrb[0].mxu0
      %6480 = vmatprep.mubr.bf16.mxu0 %v6327
      %6481 = vmatmul.mubr.bf16.gmra.mrb[0].mxu0 %v6326
      %v6482 = vpop.f32.mrb[0].mxu0
      %v6483 = vadd.f32 0.0, %v6482
      %v6484 = vpop.f32.mrb[0].mxu0
      %v6485 = vpop.f32.mrb[0].mxu0
      %v6486 = vadd.f32 0.0, %v6485
      %v6487 = vpop.f32.mrb[0].mxu0
      %6488 = vmatprep.mubr.bf16.mxu0 %v6329
      %6489 = vmatmul.mubr.bf16.gmra.mrb[0].mxu0 %v6328
      %v6490 = vpop.f32.mrb[0].mxu0
      %v6491 = vadd.f32 0.0, %v6490
      %v6492 = vpop.f32.mrb[0].mxu0
      %v6493 = vpop.f32.mrb[0].mxu0
      %v6494 = vadd.f32 0.0, %v6493
      %v6495 = vpop.f32.mrb[0].mxu0
      %6496 = vmatprep.mubr.bf16.mxu0 %v6331
      %6497 = vmatmul.mubr.bf16.gmra.mrb[0].mxu0 %v6330
      %v6498 = vpop.f32.mrb[0].mxu0
      %v6499 = vadd.f32 0.0, %v6498
      %v6500 = vpop.f32.mrb[0].mxu0
      %v6501 = vpop.f32.mrb[0].mxu0
      %v6502 = vadd.f32 0.0, %v6501
      %v6503 = vpop.f32.mrb[0].mxu0
      %6504 = vmatprep.mubr.bf16.mxu0 %v6333
      %6505 = vmatmul.mubr.bf16.gmra.mrb[0].mxu0 %v6332
      %v6506 = vpop.f32.mrb[0].mxu0
      %v6507 = vadd.f32 0.0, %v6506
      %v6508 = vpop.f32.mrb[0].mxu0
      %v6509 = vpop.f32.mrb[0].mxu0
      %v6510 = vadd.f32 0.0, %v6509
      %v6511 = vpop.f32.mrb[0].mxu0
      %6512 = vmatprep.mubr.bf16.mxu0 %v6335
      %6513 = vmatmul.mubr.bf16.gmra.mrb[0].mxu0 %v6334
      %v6514 = vpop.f32.mrb[0].mxu0
      %v6515 = vadd.f32 0.0, %v6514
      %v6516 = vpop.f32.mrb[0].mxu0
      %v6517 = vpop.f32.mrb[0].mxu0
      %v6518 = vadd.f32 0.0, %v6517
      %v6519 = vpop.f32.mrb[0].mxu0
      %6520 = vmatprep.mubr.bf16.mxu0 %v6337
      %6521 = vmatmul.mubr.bf16.gmra.mrb[0].mxu0 %v6336
      %v6522 = vpop.f32.mrb[0].mxu0
      %v6523 = vadd.f32 0.0, %v6522
      %v6524 = vpop.f32.mrb[0].mxu0
      %v6525 = vpop.f32.mrb[0].mxu0
      %v6526 = vadd.f32 0.0, %v6525
      %v6527 = vpop.f32.mrb[0].mxu0
      %6528 = vmatprep.mubr.bf16.mxu0 %v6339
      %6529 = vmatmul.mubr.bf16.gmra.mrb[0].mxu0 %v6338
      %v6530 = vpop.f32.mrb[0].mxu0
      %v6531 = vadd.f32 0.0, %v6530
      %v6532 = vpop.f32.mrb[0].mxu0
      %v6533 = vpop.f32.mrb[0].mxu0
      %v6534 = vadd.f32 0.0, %v6533
      %v6535 = vpop.f32.mrb[0].mxu0
      %6536 = vmatprep.mubr.bf16.mxu0 %v6341
      %6537 = vmatmul.mubr.bf16.gmra.mrb[0].mxu0 %v6340
      %v6538 = vpop.f32.mrb[0].mxu0
      %v6539 = vadd.f32 0.0, %v6538
      %v6540 = vpop.f32.mrb[0].mxu0
      %v6541 = vpop.f32.mrb[0].mxu0
      %v6542 = vadd.f32 0.0, %v6541
      %v6543 = vpop.f32.mrb[0].mxu0
      %6544 = vmatprep.mubr.bf16.mxu0 %v6343
      %6545 = vmatmul.mubr.bf16.gmra.mrb[0].mxu0 %v6342
      %v6546 = vpop.f32.mrb[0].mxu0
      %v6547 = vadd.f32 0.0, %v6546
      %v6548 = vpop.f32.mrb[0].mxu0
      %v6549 = vpop.f32.mrb[0].mxu0
      %v6550 = vadd.f32 0.0, %v6549
      %v6551 = vpop.f32.mrb[0].mxu0
      %6552 = vdwg.mxu0
      %v6553 = vld [vmem:[#allocation2] sm:$0xff]
      %v6554 = vld [vmem:[#allocation2 + $0x8] sm:$0xff]
      %v6555 = vld [vmem:[#allocation2 + $0x10] sm:$0xff]
      %v6556 = vld [vmem:[#allocation2 + $0x18] sm:$0xff]
      %v6557 = vld [vmem:[#allocation2 + $0x20] sm:$0xff]
      %v6558 = vld [vmem:[#allocation2 + $0x28] sm:$0xff]
      %v6559 = vld [vmem:[#allocation2 + $0x30] sm:$0xff]
      %v6560 = vld [vmem:[#allocation2 + $0x38] sm:$0xff]
      %v6561 = vld [vmem:[#allocation2 + $0x40] sm:$0xff]
      %v6562 = vld [vmem:[#allocation2 + $0x48] sm:$0xff]
      %v6563 = vld [vmem:[#allocation2 + $0x50] sm:$0xff]
      %v6564 = vld [vmem:[#allocation2 + $0x58] sm:$0xff]
      %v6565 = vld [vmem:[#allocation2 + $0x60] sm:$0xff]
      %v6566 = vld [vmem:[#allocation2 + $0x68] sm:$0xff]
      %v6567 = vld [vmem:[#allocation2 + $0x70] sm:$0xff]
      %v6568 = vld [vmem:[#allocation2 + $0x78] sm:$0xff]
      %v6569 = vld [vmem:[#allocation2 + $0x80] sm:$0xff]
      %v6570 = vld [vmem:[#allocation2 + $0x88] sm:$0xff]
      %v6571 = vld [vmem:[#allocation2 + $0x90] sm:$0xff]
      %v6572 = vld [vmem:[#allocation2 + $0x98] sm:$0xff]
      %v6573 = vld [vmem:[#allocation2 + $0xa0] sm:$0xff]
      %v6574 = vld [vmem:[#allocation2 + $0xa8] sm:$0xff]
      %v6575 = vld [vmem:[#allocation2 + $0xb0] sm:$0xff]
      %v6576 = vld [vmem:[#allocation2 + $0xb8] sm:$0xff]
      %v6577 = vld [vmem:[#allocation2 + $0xc0] sm:$0xff]
      %v6578 = vld [vmem:[#allocation2 + $0xc8] sm:$0xff]
      %v6579 = vld [vmem:[#allocation2 + $0xd0] sm:$0xff]
      %v6580 = vld [vmem:[#allocation2 + $0xd8] sm:$0xff]
      %v6581 = vld [vmem:[#allocation2 + $0xe0] sm:$0xff]
      %v6582 = vld [vmem:[#allocation2 + $0xe8] sm:$0xff]
      %v6583 = vld [vmem:[#allocation2 + $0xf0] sm:$0xff]
      %v6584 = vld [vmem:[#allocation2 + $0xf8] sm:$0xff]
      %v6585 = vpack.c.bf16 %v6430, %v6427
      %v6586 = vpack.c.bf16 %v6438, %v6435
      %v6587 = vpack.c.bf16 %v6446, %v6443
      %v6588 = vpack.c.bf16 %v6454, %v6451
      %v6589 = vpack.c.bf16 %v6462, %v6459
      %v6590 = vpack.c.bf16 %v6470, %v6467
      %v6591 = vpack.c.bf16 %v6478, %v6475
      %v6592 = vpack.c.bf16 %v6486, %v6483
      %v6593 = vpack.c.bf16 %v6494, %v6491
      %v6594 = vpack.c.bf16 %v6502, %v6499
      %v6595 = vpack.c.bf16 %v6510, %v6507
      %v6596 = vpack.c.bf16 %v6518, %v6515
      %v6597 = vpack.c.bf16 %v6526, %v6523
      %v6598 = vpack.c.bf16 %v6534, %v6531
      %v6599 = vpack.c.bf16 %v6542, %v6539
      %v6600 = vpack.c.bf16 %v6550, %v6547
      %v6601 = vld [vmem:[%s4 + $0x30] sm:$0xf]
      %v6602 = vld [vmem:[%s4 + $0x34] sm:$0xf]
      %v6603 = vld [vmem:[%s4 + $0x38] sm:$0xf]
      %v6604 = vld [vmem:[%s4 + $0x3c] sm:$0xf]
      %v6609 = vunpack.c.l.b16 %v6601
      %v6610 = vunpack.c.l.b16 %v6602
      %v6611 = vunpack.c.l.b16 %v6603
      %v6612 = vunpack.c.l.b16 %v6604
      %v6613 = vpack.c.b16 %v6610, %v6609
      %v6614 = vpack.c.b16 %v6612, %v6611
      %v6618 = vsel %vm1613, %v6585, 0
      %v6621 = vsel %vm1613, %v6586, 0
      %v6624 = vsel %vm1613, %v6587, 0
      %v6627 = vsel %vm1613, %v6588, 0
      %v6630 = vsel %vm1613, %v6589, 0
      %v6633 = vsel %vm1613, %v6590, 0
      %v6636 = vsel %vm1613, %v6591, 0
      %v6639 = vsel %vm1613, %v6592, 0
      %v6642 = vsel %vm1613, %v6593, 0
      %v6645 = vsel %vm1613, %v6594, 0
      %v6648 = vsel %vm1613, %v6595, 0
      %v6651 = vsel %vm1613, %v6596, 0
      %v6654 = vsel %vm1613, %v6597, 0
      %v6657 = vsel %vm1613, %v6598, 0
      %v6660 = vsel %vm1613, %v6599, 0
      %v6663 = vsel %vm1613, %v6600, 0
      %6665 = vmatprep.subr.bf16.mxu0 0
      %6666 = vmatpush1.bf16.msra.mxu0 %v6613
      %6667 = vmatprep.subr.bf16.mxu0 0
      %6668 = vmatpush1.bf16.msra.mxu0 %v6614
      %6669 = vmatprep.subr.bf16.mxu0 0
      %6670 = vmatpush1.bf16.msra.mxu0 0
      %6671 = vmatprep.subr.bf16.mxu0 0
      %6672 = vmatpush1.bf16.msra.mxu0 0
      %6673 = vmatprep.subr.bf16.mxu0 0
      %6674 = vmatpush1.bf16.msra.mxu0 0
      %6675 = vmatprep.subr.bf16.mxu0 0
      %6676 = vmatpush1.bf16.msra.mxu0 0
      %6677 = vmatprep.subr.bf16.mxu0 0
      %6678 = vmatpush1.bf16.msra.mxu0 0
      %6679 = vmatprep.subr.bf16.mxu0 0
      %6680 = vmatpush1.bf16.msra.mxu0 0
      %6681 = vmatprep.subr.bf16.mxu0 0
      %6682 = vmatpush1.bf16.msra.mxu0 0
      %6683 = vmatprep.subr.bf16.mxu0 0
      %6684 = vmatpush1.bf16.msra.mxu0 0
      %6685 = vmatprep.subr.bf16.mxu0 0
      %6686 = vmatpush1.bf16.msra.mxu0 0
      %6687 = vmatprep.subr.bf16.mxu0 0
      %6688 = vmatpush1.bf16.msra.mxu0 0
      %6689 = vmatprep.subr.bf16.mxu0 0
      %6690 = vmatpush1.bf16.msra.mxu0 0
      %6691 = vmatprep.subr.bf16.mxu0 0
      %6692 = vmatpush1.bf16.msra.mxu0 0
      %6693 = vmatprep.subr.bf16.mxu0 0
      %6694 = vmatpush1.bf16.msra.mxu0 0
      %6695 = vmatprep.subr.bf16.mxu0 0
      %6696 = vmatpush1.bf16.msra.mxu0 0
      %6697 = vmatprep.mubr.bf16.mxu0 0
      %6698 = vmatmul.mubr.bf16.gmra.mrb[0].mxu0 %v6618
      %v6699 = vpop.f32.mrb[0].mxu0
      %v6700 = vadd.f32 0.0, %v6699
      %v6701 = vpop.f32.mrb[0].mxu0
      %v6702 = vpop.f32.mrb[0].mxu0
      %v6703 = vadd.f32 0.0, %v6702
      %v6704 = vpop.f32.mrb[0].mxu0
      %6705 = vmatprep.mubr.bf16.mxu0 0
      %6706 = vmatmul.mubr.bf16.gmra.mrb[0].mxu0 %v6621
      %v6707 = vpop.f32.mrb[0].mxu0
      %v6708 = vadd.f32 0.0, %v6707
      %v6709 = vpop.f32.mrb[0].mxu0
      %v6710 = vpop.f32.mrb[0].mxu0
      %v6711 = vadd.f32 0.0, %v6710
      %v6712 = vpop.f32.mrb[0].mxu0
      %6713 = vmatprep.mubr.bf16.mxu0 0
      %6714 = vmatmul.mubr.bf16.gmra.mrb[0].mxu0 %v6624
      %v6715 = vpop.f32.mrb[0].mxu0
      %v6716 = vadd.f32 0.0, %v6715
      %v6717 = vpop.f32.mrb[0].mxu0
      %v6718 = vpop.f32.mrb[0].mxu0
      %v6719 = vadd.f32 0.0, %v6718
      %v6720 = vpop.f32.mrb[0].mxu0
      %6721 = vmatprep.mubr.bf16.mxu0 0
      %6722 = vmatmul.mubr.bf16.gmra.mrb[0].mxu0 %v6627
      %v6723 = vpop.f32.mrb[0].mxu0
      %v6724 = vadd.f32 0.0, %v6723
      %v6725 = vpop.f32.mrb[0].mxu0
      %v6726 = vpop.f32.mrb[0].mxu0
      %v6727 = vadd.f32 0.0, %v6726
      %v6728 = vpop.f32.mrb[0].mxu0
      %6729 = vmatprep.mubr.bf16.mxu0 0
      %6730 = vmatmul.mubr.bf16.gmra.mrb[0].mxu0 %v6630
      %v6731 = vpop.f32.mrb[0].mxu0
      %v6732 = vadd.f32 0.0, %v6731
      %v6733 = vpop.f32.mrb[0].mxu0
      %v6734 = vpop.f32.mrb[0].mxu0
      %v6735 = vadd.f32 0.0, %v6734
      %v6736 = vpop.f32.mrb[0].mxu0
      %6737 = vmatprep.mubr.bf16.mxu0 0
      %6738 = vmatmul.mubr.bf16.gmra.mrb[0].mxu0 %v6633
      %v6739 = vpop.f32.mrb[0].mxu0
      %v6740 = vadd.f32 0.0, %v6739
      %v6741 = vpop.f32.mrb[0].mxu0
      %v6742 = vpop.f32.mrb[0].mxu0
      %v6743 = vadd.f32 0.0, %v6742
      %v6744 = vpop.f32.mrb[0].mxu0
      %6745 = vmatprep.mubr.bf16.mxu0 0
      %6746 = vmatmul.mubr.bf16.gmra.mrb[0].mxu0 %v6636
      %v6747 = vpop.f32.mrb[0].mxu0
      %v6748 = vadd.f32 0.0, %v6747
      %v6749 = vpop.f32.mrb[0].mxu0
      %v6750 = vpop.f32.mrb[0].mxu0
      %v6751 = vadd.f32 0.0, %v6750
      %v6752 = vpop.f32.mrb[0].mxu0
      %6753 = vmatprep.mubr.bf16.mxu0 0
      %6754 = vmatmul.mubr.bf16.gmra.mrb[0].mxu0 %v6639
      %v6755 = vpop.f32.mrb[0].mxu0
      %v6756 = vadd.f32 0.0, %v6755
      %v6757 = vpop.f32.mrb[0].mxu0
      %v6758 = vpop.f32.mrb[0].mxu0
      %v6759 = vadd.f32 0.0, %v6758
      %v6760 = vpop.f32.mrb[0].mxu0
      %6761 = vmatprep.mubr.bf16.mxu0 0
      %6762 = vmatmul.mubr.bf16.gmra.mrb[0].mxu0 %v6642
      %v6763 = vpop.f32.mrb[0].mxu0
      %v6764 = vadd.f32 0.0, %v6763
      %v6765 = vpop.f32.mrb[0].mxu0
      %v6766 = vpop.f32.mrb[0].mxu0
      %v6767 = vadd.f32 0.0, %v6766
      %v6768 = vpop.f32.mrb[0].mxu0
      %6769 = vmatprep.mubr.bf16.mxu0 0
      %6770 = vmatmul.mubr.bf16.gmra.mrb[0].mxu0 %v6645
      %v6771 = vpop.f32.mrb[0].mxu0
      %v6772 = vadd.f32 0.0, %v6771
      %v6773 = vpop.f32.mrb[0].mxu0
      %v6774 = vpop.f32.mrb[0].mxu0
      %v6775 = vadd.f32 0.0, %v6774
      %v6776 = vpop.f32.mrb[0].mxu0
      %6777 = vmatprep.mubr.bf16.mxu0 0
      %6778 = vmatmul.mubr.bf16.gmra.mrb[0].mxu0 %v6648
      %v6779 = vpop.f32.mrb[0].mxu0
      %v6780 = vadd.f32 0.0, %v6779
      %v6781 = vpop.f32.mrb[0].mxu0
      %v6782 = vpop.f32.mrb[0].mxu0
      %v6783 = vadd.f32 0.0, %v6782
      %v6784 = vpop.f32.mrb[0].mxu0
      %6785 = vmatprep.mubr.bf16.mxu0 0
      %6786 = vmatmul.mubr.bf16.gmra.mrb[0].mxu0 %v6651
      %v6787 = vpop.f32.mrb[0].mxu0
      %v6788 = vadd.f32 0.0, %v6787
      %v6789 = vpop.f32.mrb[0].mxu0
      %v6790 = vpop.f32.mrb[0].mxu0
      %v6791 = vadd.f32 0.0, %v6790
      %v6792 = vpop.f32.mrb[0].mxu0
      %6793 = vmatprep.mubr.bf16.mxu0 0
      %6794 = vmatmul.mubr.bf16.gmra.mrb[0].mxu0 %v6654
      %v6795 = vpop.f32.mrb[0].mxu0
      %v6796 = vadd.f32 0.0, %v6795
      %v6797 = vpop.f32.mrb[0].mxu0
      %v6798 = vpop.f32.mrb[0].mxu0
      %v6799 = vadd.f32 0.0, %v6798
      %v6800 = vpop.f32.mrb[0].mxu0
      %6801 = vmatprep.mubr.bf16.mxu0 0
      %6802 = vmatmul.mubr.bf16.gmra.mrb[0].mxu0 %v6657
      %v6803 = vpop.f32.mrb[0].mxu0
      %v6804 = vadd.f32 0.0, %v6803
      %v6805 = vpop.f32.mrb[0].mxu0
      %v6806 = vpop.f32.mrb[0].mxu0
      %v6807 = vadd.f32 0.0, %v6806
      %v6808 = vpop.f32.mrb[0].mxu0
      %6809 = vmatprep.mubr.bf16.mxu0 0
      %6810 = vmatmul.mubr.bf16.gmra.mrb[0].mxu0 %v6660
      %v6811 = vpop.f32.mrb[0].mxu0
      %v6812 = vadd.f32 0.0, %v6811
      %v6813 = vpop.f32.mrb[0].mxu0
      %v6814 = vpop.f32.mrb[0].mxu0
      %v6815 = vadd.f32 0.0, %v6814
      %v6816 = vpop.f32.mrb[0].mxu0
      %6817 = vmatprep.mubr.bf16.mxu0 0
      %6818 = vmatmul.mubr.bf16.gmra.mrb[0].mxu0 %v6663
      %v6819 = vpop.f32.mrb[0].mxu0
      %v6820 = vadd.f32 0.0, %v6819
      %v6821 = vpop.f32.mrb[0].mxu0
      %v6822 = vpop.f32.mrb[0].mxu0
      %v6823 = vadd.f32 0.0, %v6822
      %v6824 = vpop.f32.mrb[0].mxu0
      %6825 = vdwg.mxu0
      %v6826 = vadd.f32 %v6553, %v6700
      %v6827 = vadd.f32 %v6554, %v6703
      %v6828 = vadd.f32 %v6555, %v6708
      %v6829 = vadd.f32 %v6556, %v6711
      %v6830 = vadd.f32 %v6557, %v6716
      %v6831 = vadd.f32 %v6558, %v6719
      %v6832 = vadd.f32 %v6559, %v6724
      %v6833 = vadd.f32 %v6560, %v6727
      %v6834 = vadd.f32 %v6561, %v6732
      %v6835 = vadd.f32 %v6562, %v6735
      %v6836 = vadd.f32 %v6563, %v6740
      %v6837 = vadd.f32 %v6564, %v6743
      %v6838 = vadd.f32 %v6565, %v6748
      %v6839 = vadd.f32 %v6566, %v6751
      %v6840 = vadd.f32 %v6567, %v6756
      %v6841 = vadd.f32 %v6568, %v6759
      %v6842 = vadd.f32 %v6569, %v6764
      %v6843 = vadd.f32 %v6570, %v6767
      %v6844 = vadd.f32 %v6571, %v6772
      %v6845 = vadd.f32 %v6572, %v6775
      %v6846 = vadd.f32 %v6573, %v6780
      %v6847 = vadd.f32 %v6574, %v6783
      %v6848 = vadd.f32 %v6575, %v6788
      %v6849 = vadd.f32 %v6576, %v6791
      %v6850 = vadd.f32 %v6577, %v6796
      %v6851 = vadd.f32 %v6578, %v6799
      %v6852 = vadd.f32 %v6579, %v6804
      %v6853 = vadd.f32 %v6580, %v6807
      %v6854 = vadd.f32 %v6581, %v6812
      %v6855 = vadd.f32 %v6582, %v6815
      %v6856 = vadd.f32 %v6583, %v6820
      %v6857 = vadd.f32 %v6584, %v6823
      %6858 = vst [vmem:[#allocation2] sm:$0xff] %v6826
      %6859 = vst [vmem:[#allocation2 + $0x8] sm:$0xff] %v6827
      %6860 = vst [vmem:[#allocation2 + $0x10] sm:$0xff] %v6828
      %6861 = vst [vmem:[#allocation2 + $0x18] sm:$0xff] %v6829
      %6862 = vst [vmem:[#allocation2 + $0x20] sm:$0xff] %v6830
      %6863 = vst [vmem:[#allocation2 + $0x28] sm:$0xff] %v6831
      %6864 = vst [vmem:[#allocation2 + $0x30] sm:$0xff] %v6832
      %6865 = vst [vmem:[#allocation2 + $0x38] sm:$0xff] %v6833
      %6866 = vst [vmem:[#allocation2 + $0x40] sm:$0xff] %v6834
      %6867 = vst [vmem:[#allocation2 + $0x48] sm:$0xff] %v6835
      %6868 = vst [vmem:[#allocation2 + $0x50] sm:$0xff] %v6836
      %6869 = vst [vmem:[#allocation2 + $0x58] sm:$0xff] %v6837
      %6870 = vst [vmem:[#allocation2 + $0x60] sm:$0xff] %v6838
      %6871 = vst [vmem:[#allocation2 + $0x68] sm:$0xff] %v6839
      %6872 = vst [vmem:[#allocation2 + $0x70] sm:$0xff] %v6840
      %6873 = vst [vmem:[#allocation2 + $0x78] sm:$0xff] %v6841
      %6874 = vst [vmem:[#allocation2 + $0x80] sm:$0xff] %v6842
      %6875 = vst [vmem:[#allocation2 + $0x88] sm:$0xff] %v6843
      %6876 = vst [vmem:[#allocation2 + $0x90] sm:$0xff] %v6844
      %6877 = vst [vmem:[#allocation2 + $0x98] sm:$0xff] %v6845
      %6878 = vst [vmem:[#allocation2 + $0xa0] sm:$0xff] %v6846
      %6879 = vst [vmem:[#allocation2 + $0xa8] sm:$0xff] %v6847
      %6880 = vst [vmem:[#allocation2 + $0xb0] sm:$0xff] %v6848
      %6881 = vst [vmem:[#allocation2 + $0xb8] sm:$0xff] %v6849
      %6882 = vst [vmem:[#allocation2 + $0xc0] sm:$0xff] %v6850
      %6883 = vst [vmem:[#allocation2 + $0xc8] sm:$0xff] %v6851
      %6884 = vst [vmem:[#allocation2 + $0xd0] sm:$0xff] %v6852
      %6885 = vst [vmem:[#allocation2 + $0xd8] sm:$0xff] %v6853
      %6886 = vst [vmem:[#allocation2 + $0xe0] sm:$0xff] %v6854
      %6887 = vst [vmem:[#allocation2 + $0xe8] sm:$0xff] %v6855
      %6888 = vst [vmem:[#allocation2 + $0xf0] sm:$0xff] %v6856
      %6889 = vst [vmem:[#allocation2 + $0xf8] sm:$0xff] %v6857
      %v6890 = vld [vmem:[#allocation2] sm:$0xff]
      %v6891 = vld [vmem:[#allocation2 + $0x8] sm:$0xff]
      %v6892 = vld [vmem:[#allocation2 + $0x10] sm:$0xff]
      %v6893 = vld [vmem:[#allocation2 + $0x18] sm:$0xff]
      %v6894 = vld [vmem:[#allocation2 + $0x20] sm:$0xff]
      %v6895 = vld [vmem:[#allocation2 + $0x28] sm:$0xff]
      %v6896 = vld [vmem:[#allocation2 + $0x30] sm:$0xff]
      %v6897 = vld [vmem:[#allocation2 + $0x38] sm:$0xff]
      %v6898 = vld [vmem:[#allocation2 + $0x40] sm:$0xff]
      %v6899 = vld [vmem:[#allocation2 + $0x48] sm:$0xff]
      %v6900 = vld [vmem:[#allocation2 + $0x50] sm:$0xff]
      %v6901 = vld [vmem:[#allocation2 + $0x58] sm:$0xff]
      %v6902 = vld [vmem:[#allocation2 + $0x60] sm:$0xff]
      %v6903 = vld [vmem:[#allocation2 + $0x68] sm:$0xff]
      %v6904 = vld [vmem:[#allocation2 + $0x70] sm:$0xff]
      %v6905 = vld [vmem:[#allocation2 + $0x78] sm:$0xff]
      %v6906 = vld [vmem:[#allocation2 + $0x80] sm:$0xff]
      %v6907 = vld [vmem:[#allocation2 + $0x88] sm:$0xff]
      %v6908 = vld [vmem:[#allocation2 + $0x90] sm:$0xff]
      %v6909 = vld [vmem:[#allocation2 + $0x98] sm:$0xff]
      %v6910 = vld [vmem:[#allocation2 + $0xa0] sm:$0xff]
      %v6911 = vld [vmem:[#allocation2 + $0xa8] sm:$0xff]
      %v6912 = vld [vmem:[#allocation2 + $0xb0] sm:$0xff]
      %v6913 = vld [vmem:[#allocation2 + $0xb8] sm:$0xff]
      %v6914 = vld [vmem:[#allocation2 + $0xc0] sm:$0xff]
      %v6915 = vld [vmem:[#allocation2 + $0xc8] sm:$0xff]
      %v6916 = vld [vmem:[#allocation2 + $0xd0] sm:$0xff]
      %v6917 = vld [vmem:[#allocation2 + $0xd8] sm:$0xff]
      %v6918 = vld [vmem:[#allocation2 + $0xe0] sm:$0xff]
      %v6919 = vld [vmem:[#allocation2 + $0xe8] sm:$0xff]
      %v6920 = vld [vmem:[#allocation2 + $0xf0] sm:$0xff]
      %v6921 = vld [vmem:[#allocation2 + $0xf8] sm:$0xff]
      %6922 = vxpose.xlu0.b32.start [1/16] %v6890, 128
      %6923 = vxpose.xlu0.b32.cont [2/16] %v6891, 128
      %6924 = vxpose.xlu0.b32.cont [3/16] %v6892, 128
      %6925 = vxpose.xlu0.b32.cont [4/16] %v6893, 128
      %6926 = vxpose.xlu0.b32.cont [5/16] %v6894, 128
      %6927 = vxpose.xlu0.b32.cont [6/16] %v6895, 128
      %6928 = vxpose.xlu0.b32.cont [7/16] %v6896, 128
      %6929 = vxpose.xlu0.b32.cont [8/16] %v6897, 128
      %6930 = vxpose.xlu0.b32.cont [9/16] %v6898, 128
      %6931 = vxpose.xlu0.b32.cont [10/16] %v6899, 128
      %6932 = vxpose.xlu0.b32.cont [11/16] %v6900, 128
      %6933 = vxpose.xlu0.b32.cont [12/16] %v6901, 128
      %6934 = vxpose.xlu0.b32.cont [13/16] %v6902, 128
      %6935 = vxpose.xlu0.b32.cont [14/16] %v6903, 128
      %6936 = vxpose.xlu0.b32.cont [15/16] %v6904, 128
      %6937 = vxpose.xlu0.b32.end [16/16] %v6905, 128
      %v6938 = vpop.trf.xlu0
      %v6939 = vpop.trf.xlu0
      %v6940 = vpop.trf.xlu0
      %v6941 = vpop.trf.xlu0
      %v6942 = vpop.trf.xlu0
      %v6943 = vpop.trf.xlu0
      %v6944 = vpop.trf.xlu0
      %v6945 = vpop.trf.xlu0
      %v6946 = vpop.trf.xlu0
      %v6947 = vpop.trf.xlu0
      %v6948 = vpop.trf.xlu0
      %v6949 = vpop.trf.xlu0
      %v6950 = vpop.trf.xlu0
      %v6951 = vpop.trf.xlu0
      %v6952 = vpop.trf.xlu0
      %v6953 = vpop.trf.xlu0
      %6954 = vxpose.xlu0.b32.start [1/16] %v6906, 128
      %6955 = vxpose.xlu0.b32.cont [2/16] %v6907, 128
      %6956 = vxpose.xlu0.b32.cont [3/16] %v6908, 128
      %6957 = vxpose.xlu0.b32.cont [4/16] %v6909, 128
      %6958 = vxpose.xlu0.b32.cont [5/16] %v6910, 128
      %6959 = vxpose.xlu0.b32.cont [6/16] %v6911, 128
      %6960 = vxpose.xlu0.b32.cont [7/16] %v6912, 128
      %6961 = vxpose.xlu0.b32.cont [8/16] %v6913, 128
      %6962 = vxpose.xlu0.b32.cont [9/16] %v6914, 128
      %6963 = vxpose.xlu0.b32.cont [10/16] %v6915, 128
      %6964 = vxpose.xlu0.b32.cont [11/16] %v6916, 128
      %6965 = vxpose.xlu0.b32.cont [12/16] %v6917, 128
      %6966 = vxpose.xlu0.b32.cont [13/16] %v6918, 128
      %6967 = vxpose.xlu0.b32.cont [14/16] %v6919, 128
      %6968 = vxpose.xlu0.b32.cont [15/16] %v6920, 128
      %6969 = vxpose.xlu0.b32.end [16/16] %v6921, 128
      %v6970 = vpop.trf.xlu0
      %v6971 = vpop.trf.xlu0
      %v6972 = vpop.trf.xlu0
      %v6973 = vpop.trf.xlu0
      %v6974 = vpop.trf.xlu0
      %v6975 = vpop.trf.xlu0
      %v6976 = vpop.trf.xlu0
      %v6977 = vpop.trf.xlu0
      %v6978 = vpop.trf.xlu0
      %v6979 = vpop.trf.xlu0
      %v6980 = vpop.trf.xlu0
      %v6981 = vpop.trf.xlu0
      %v6982 = vpop.trf.xlu0
      %v6983 = vpop.trf.xlu0
      %v6984 = vpop.trf.xlu0
      %v6985 = vpop.trf.xlu0
      %6986 = vst [vmem:[%s251] sm:$0xff] %v6938
      %6987 = vst [vmem:[%s251 + $0x8] sm:$0xff] %v6970
      %6988 = vst [vmem:[%s251 + $0x10] sm:$0xff] %v6939
      %6989 = vst [vmem:[%s251 + $0x18] sm:$0xff] %v6971
      %6990 = vst [vmem:[%s251 + $0x20] sm:$0xff] %v6940
      %6991 = vst [vmem:[%s251 + $0x28] sm:$0xff] %v6972
      %6992 = vst [vmem:[%s251 + $0x30] sm:$0xff] %v6941
      %6993 = vst [vmem:[%s251 + $0x38] sm:$0xff] %v6973
      %6994 = vst [vmem:[%s251 + $0x40] sm:$0xff] %v6942
      %6995 = vst [vmem:[%s251 + $0x48] sm:$0xff] %v6974
      %6996 = vst [vmem:[%s251 + $0x50] sm:$0xff] %v6943
      %6997 = vst [vmem:[%s251 + $0x58] sm:$0xff] %v6975
      %6998 = vst [vmem:[%s251 + $0x60] sm:$0xff] %v6944
      %6999 = vst [vmem:[%s251 + $0x68] sm:$0xff] %v6976
      %7000 = vst [vmem:[%s251 + $0x70] sm:$0xff] %v6945
      %7001 = vst [vmem:[%s251 + $0x78] sm:$0xff] %v6977
      %7002 = vst [vmem:[%s251 + $0x80] sm:$0xff] %v6946
      %7003 = vst [vmem:[%s251 + $0x88] sm:$0xff] %v6978
      %7004 = vst [vmem:[%s251 + $0x90] sm:$0xff] %v6947
      %7005 = vst [vmem:[%s251 + $0x98] sm:$0xff] %v6979
      %7006 = vst [vmem:[%s251 + $0xa0] sm:$0xff] %v6948
      %7007 = vst [vmem:[%s251 + $0xa8] sm:$0xff] %v6980
      %7008 = vst [vmem:[%s251 + $0xb0] sm:$0xff] %v6949
      %7009 = vst [vmem:[%s251 + $0xb8] sm:$0xff] %v6981
      %7010 = vst [vmem:[%s251 + $0xc0] sm:$0xff] %v6950
      %7011 = vst [vmem:[%s251 + $0xc8] sm:$0xff] %v6982
      %7012 = vst [vmem:[%s251 + $0xd0] sm:$0xff] %v6951
      %7013 = vst [vmem:[%s251 + $0xd8] sm:$0xff] %v6983
      %7014 = vst [vmem:[%s251 + $0xe0] sm:$0xff] %v6952
      %7015 = vst [vmem:[%s251 + $0xe8] sm:$0xff] %v6984
      %7016 = vst [vmem:[%s251 + $0xf0] sm:$0xff] %v6953
      %7017 = vst [vmem:[%s251 + $0xf8] sm:$0xff] %v6985
      %p7018 = scmp.lt.s32.totalorder %s17, 1
      %s7019 = scalar_select %p7018, %s17, 1
      %s7020 = smul.addr %s7019, 32
      %s7021 = smul.addr %s7020, 8
      %s7022 = scalar_lea.vmem %s6, %s7021
      // Predicated region
      $region45: #{attention_block.1} parent=43 // pred_check
        %p7023 = pneg %p166
      $region46: #{attention_block.1} parent=43 // pred_check_branch
        %7025 = sbr.rel (%p7023) target = $region48
      $region47: #{attention_block.1} parent=43 // pred_region
        _
      $region48: #{attention_block.1} parent=43 // pred_fallthru
        _
    $region44: #{attention_block.1} parent=5 // pred_fallthru
      _
    %p7026 = scmp.le.s32.totalorder 2, %s12
    // Predicated region
    $region49: #{attention_block.1} parent=5 // pred_check
      %p7027 = pneg %p7026
    $region50: #{attention_block.1} parent=5 // pred_check_branch
      %7029 = sbr.rel (%p7027) target = $region52
    $region51: #{attention_block.1} parent=5 // pred_region
      %s7030 = ssub.s32 %s12, 2
      // Predicated region
      $region53: #{attention_block.1} parent=51 // pred_check
        %p7031 = pneg %p172
      $region54: #{attention_block.1} parent=51 // pred_check_branch
        %7033 = sbr.rel (%p7031) target = $region56
      $region55: #{attention_block.1} parent=51 // pred_region
        %p7034 = scmp.lt.s32.totalorder %s18, 1
        %s7035 = scalar_select %p7034, %s18, 1
        %s7036 = smul.addr %s7035, 32
        %s7037 = smul.addr %s7036, 8
        %s7038 = scalar_lea.vmem %s6, %s7037
      $region56: #{attention_block.1} parent=51 // pred_fallthru
        _
    $region52: #{attention_block.1} parent=5 // pred_fallthru
      _
  $region6: #{attention_block.1} parent=0 // loop_footer
    %s16 = sadd.s32 1, %s12
  $region7: #{attention_block.1} parent=0 // loop_footer_branch
    %11 = sbr.rel target = $region3
  $region8: #{attention_block.1} parent=0 // loop_exit
    _

</llo_original>
